<compile_context>
chip_gen: v6e
topology: v6e:2x2x1
jax: 0.10.0
libtpu: 0.0.40
codegen_flags: <defaults>
</compile_context>

<pallas_src>
import functools

import jax
import jax.numpy as jnp
from jax.experimental import pallas as pl
from jax.experimental.pallas import tpu as pltpu


# ---------------------------------------------------------------------------
# helpers
# ---------------------------------------------------------------------------

def _round_up(x, m):
    return ((x + m - 1) // m) * m


def _pick_tile(rows, max_tile, align=8, min_grid=2):
    """Largest aligned row tile <= max_tile, capped so the grid has >= min_grid
    steps whenever the row count allows it (keeps both v7x TensorCores busy)."""
    rows_aligned = _round_up(rows, align)
    if rows_aligned <= align * min_grid:
        return rows_aligned
    tile = min(max_tile, _round_up(-(-rows // min_grid), align))
    return max(align, tile)


def _head_tail(z1, w2, b2, w3, b3, w4, b4):
    """relu -> Lin -> relu -> Lin -> relu -> Lin -> log_softmax.

    All BatchNorm affines are pre-folded into the following Linear; the last
    Linear is lane-padded to 128 columns with bias -1e30 on the pad columns so
    log_softmax over the padded block equals log_softmax over the real ones.
    """
    z = jnp.maximum(z1, 0.0)
    z = jnp.dot(z.astype(jnp.bfloat16), w2, preferred_element_type=jnp.float32) + b2
    z = jnp.maximum(z, 0.0)
    z = jnp.dot(z.astype(jnp.bfloat16), w3, preferred_element_type=jnp.float32) + b3
    z = jnp.maximum(z, 0.0)
    logits = jnp.dot(z.astype(jnp.bfloat16), w4,
                     preferred_element_type=jnp.float32) + b4
    mx = jnp.max(logits, axis=-1, keepdims=True)
    lse = mx + jnp.log(jnp.sum(jnp.exp(logits - mx), axis=-1, keepdims=True))
    return logits - lse


# ---------------------------------------------------------------------------
# Fused small-graph kernel: whole network in one pallas_call
# ---------------------------------------------------------------------------

def _fused_net_kernel(*refs):
    """3x EdgeConv + head + log_softmax, fully resident in VMEM.

    Gather / scatter-add are one-hot matmuls (pure MXU work), so no per-edge
    activation ever leaves VMEM and no argsort/segment_sum XLA ops are needed.
    """
    x_ref, gs_ref, gd_ref, gdt_ref = refs[:4]
    conv_refs = refs[4:4 + 3 * 7]
    (hw1_ref, hb1_ref, hw2_ref, hb2_ref,
     hw3_ref, hb3_ref, hw4_ref, hb4_ref) = refs[4 + 3 * 7:-1]
    o_ref = refs[-1]

    gs = gs_ref[...]      # [E, N] one-hot of edge sources (x_j), bf16
    gd = gd_ref[...]      # [E, N] one-hot of edge targets (x_i), bf16
    gdt = gdt_ref[...]    # [N, E] = gd^T  -> scatter-add to target nodes

    def conv(h, wa_ref, wb_ref, b1_ref, w2_ref, b2_ref, s2_ref, t2_ref):
        hb = h.astype(jnp.bfloat16)
        # Lin1 lifted to node level (concat-free split of W1).
        p = jnp.dot(hb, wa_ref[...],
                    preferred_element_type=jnp.float32).astype(jnp.bfloat16)
        q = jnp.dot(hb, wb_ref[...],
                    preferred_element_type=jnp.float32).astype(jnp.bfloat16)
        # Per-edge gather of P[dst] / Q[src] via one-hot matmuls (exact).
        x_i = jnp.dot(gd, p, preferred_element_type=jnp.float32)
        x_j = jnp.dot(gs, q, preferred_element_type=jnp.float32)
        h1 = jnp.maximum(x_i + x_j + b1_ref[...], 0.0)       # BN1 folded into w2/b2
        m = jnp.dot(h1.astype(jnp.bfloat16), w2_ref[...],
                    preferred_element_type=jnp.float32) + b2_ref[...]
        m = jnp.maximum(m, 0.0) * s2_ref[...] + t2_ref[...]  # BN2 affine
        # scatter-add (aggr='add') back to the target nodes
        return jnp.dot(gdt, m.astype(jnp.bfloat16),
                       preferred_element_type=jnp.float32)

    h = x_ref[...]
    feats = []
    for li in range(3):
        h = conv(h, *conv_refs[li * 7:(li + 1) * 7])
        feats.append(h)
    h1, h2, h3 = feats

    c0 = h1.shape[1]
    # Head Lin1 on the implicit [h1|h2|h3] concat via three slabs of the shared
    # zero-padded [256, 1024] weight (rows 192.. are zero and unused here).
    z1 = (jnp.dot(h1.astype(jnp.bfloat16), hw1_ref[0 * c0:1 * c0, :],
                  preferred_element_type=jnp.float32)
          + jnp.dot(h2.astype(jnp.bfloat16), hw1_ref[1 * c0:2 * c0, :],
                    preferred_element_type=jnp.float32)
          + jnp.dot(h3.astype(jnp.bfloat16), hw1_ref[2 * c0:3 * c0, :],
                    preferred_element_type=jnp.float32)
          + hb1_ref[...])
    o_ref[...] = _head_tail(z1, hw2_ref[...], hb2_ref[...], hw3_ref[...],
                            hb3_ref[...], hw4_ref[...], hb4_ref[...])


def _flatten_fused_args(params):
    args = []
    for c in params["convs"]:
        args += [c["wa"], c["wb"], c["b1"], c["w2"], c["b2"], c["s2"], c["t2"]]
    h = params["head"]
    args += [h["w1"], h["b1"], h["w2"], h["b2"], h["w3"], h["b3"], h["w4"], h["b4"]]
    return args


def net_forward_fused(params, x, gs, gd, gdt, out_channels):
    """Single-kernel forward for graphs whose one-hot gather matrices fit VMEM."""
    n = x.shape[0]
    cp = params["head"]["w4"].shape[1]
    out = pl.pallas_call(
        _fused_net_kernel,
        out_shape=jax.ShapeDtypeStruct((n, cp), jnp.float32),
        compiler_params=pltpu.CompilerParams(
            vmem_limit_bytes=48 * 1024 * 1024),
    )(x, gs, gd, gdt, *_flatten_fused_args(params))
    return out[:, :out_channels]


def build_gather_mats(edge_index, num_nodes):
    """One-time preprocessing (outside jit): one-hot gather/scatter matrices."""
    src, dst = edge_index[0], edge_index[1]
    gs = jax.nn.one_hot(src, num_nodes, dtype=jnp.bfloat16)   # [E, N] -> x_j
    gd = jax.nn.one_hot(dst, num_nodes, dtype=jnp.bfloat16)   # [E, N] -> x_i
    gdt = jnp.transpose(gd)                                    # [N, E] scatter-add
    return gs, gd, gdt


def fused_path_fits(num_nodes, num_edges):
    """Conservative VMEM budget check for the fused path."""
    return num_nodes * num_edges <= (1 << 20) and num_edges <= 4096


# ---------------------------------------------------------------------------
# Tiled large-graph path (node transform -> edge messages -> segment sum -> head)
# ---------------------------------------------------------------------------

def _node_transform_kernel(h_ref, wab_ref, o_ref):
    """P|Q = h @ [W1a | W1b] as one lane-dense [tile, 128] bf16 store."""
    hb = h_ref[...].astype(jnp.bfloat16)
    o_ref[...] = jnp.dot(hb, wab_ref[...],
                         preferred_element_type=jnp.float32).astype(jnp.bfloat16)


def node_transform(h, wab, max_tile_n=1024):
    n, cin = h.shape
    cout = wab.shape[1]
    tile = _pick_tile(n, max_tile_n, align=16)
    grid = (pl.cdiv(n, tile),)
    return pl.pallas_call(
        _node_transform_kernel,
        out_shape=jax.ShapeDtypeStruct((n, cout), jnp.bfloat16),
        grid=grid,
        in_specs=[pl.BlockSpec((tile, cin), lambda i: (i, 0)),
                  pl.BlockSpec((cin, cout), lambda i: (0, 0))],
        out_specs=pl.BlockSpec((tile, cout), lambda i: (i, 0)),
        compiler_params=pltpu.CompilerParams(
            dimension_semantics=("parallel",)),
    )(h, wab)


def _edge_msg_kernel(xi_ref, xj_ref, b1_ref, w2_ref, b2_ref, s2_ref, t2_ref,
                     o_ref):
    """EdgeConv message tail: Lin1 was lifted to node level, only the per-edge
    add + ReLU + Lin2 + BN2 remain.  Output stored bf16 (halves writeback)."""
    h = xi_ref[...].astype(jnp.float32) + xj_ref[...].astype(jnp.float32) + b1_ref[...]
    h = jnp.maximum(h, 0.0)                                 # BN1 folded into w2/b2
    h = jnp.dot(h.astype(jnp.bfloat16), w2_ref[...],
                preferred_element_type=jnp.float32) + b2_ref[...]
    h = jnp.maximum(h, 0.0) * s2_ref[...] + t2_ref[...]     # BN2 affine
    o_ref[...] = h.astype(jnp.bfloat16)


def edge_messages(x_i, x_j, conv_p, max_tile_e=4096):
    e, c = x_i.shape
    tile = _pick_tile(e, max_tile_e, align=16)
    grid = (pl.cdiv(e, tile),)
    full = lambda i: (0, 0)
    row = lambda i: (i, 0)
    # TODO(synk): mark constant weight specs pipeline_mode=pl.Buffered(1) (their
    # block index never changes, double-buffering them is wasted VMEM).
    return pl.pallas_call(
        _edge_msg_kernel,
        out_shape=jax.ShapeDtypeStruct((e, c), jnp.bfloat16),
        grid=grid,
        in_specs=[
            pl.BlockSpec((tile, c), row),              # gathered P[dst] (bf16)
            pl.BlockSpec((tile, c), row),              # gathered Q[src] (bf16)
            pl.BlockSpec((1, c), full),                # b1
            pl.BlockSpec((c, c), full),                # W2 (BN1 folded, bf16)
            pl.BlockSpec((1, c), full),                # b2
            pl.BlockSpec((1, c), full),                # BN2 scale
            pl.BlockSpec((1, c), full),                # BN2 shift
        ],
        out_specs=pl.BlockSpec((tile, c), row),
        compiler_params=pltpu.CompilerParams(
            dimension_semantics=("parallel",),
            vmem_limit_bytes=32 * 1024 * 1024),
    )(x_i, x_j, conv_p["b1"], conv_p["w2"], conv_p["b2"],
      conv_p["s2"], conv_p["t2"])


def _head_kernel(xc_ref, w1_ref, b1_ref, w2_ref, b2_ref, w3_ref, b3_ref,
                 w4_ref, b4_ref, o_ref):
    """Single K=256 first matmul on the zero-padded [x1|x2|x3|0] slab, then the
    shared MLP tail with folded BNs and lane-padded log_softmax."""
    z1 = jnp.dot(xc_ref[...], w1_ref[...],
                 preferred_element_type=jnp.float32) + b1_ref[...]
    o_ref[...] = _head_tail(z1, w2_ref[...], b2_ref[...], w3_ref[...],
                            b3_ref[...], w4_ref[...], b4_ref[...])


def head_tiled(hcat, hp, out_channels, max_tile_n=1024):
    n, kp = hcat.shape
    c1, c2, c3 = hp["w1"].shape[1], hp["w2"].shape[1], hp["w3"].shape[1]
    cp = hp["w4"].shape[1]
    tile = _pick_tile(n, max_tile_n, align=16)
    grid = (pl.cdiv(n, tile),)
    full = lambda i: (0, 0)
    row = lambda i: (i, 0)
    out = pl.pallas_call(
        _head_kernel,
        out_shape=jax.ShapeDtypeStruct((n, cp), jnp.float32),
        grid=grid,
        in_specs=[
            pl.BlockSpec((tile, kp), row),             # [x1|x2|x3|0] bf16
            pl.BlockSpec((kp, c1), full), pl.BlockSpec((1, c1), full),
            pl.BlockSpec((c1, c2), full), pl.BlockSpec((1, c2), full),
            pl.BlockSpec((c2, c3), full), pl.BlockSpec((1, c3), full),
            pl.BlockSpec((c3, cp), full), pl.BlockSpec((1, cp), full),
        ],
        out_specs=pl.BlockSpec((tile, cp), row),
        compiler_params=pltpu.CompilerParams(
            dimension_semantics=("parallel",),
            vmem_limit_bytes=32 * 1024 * 1024),
    )(hcat, hp["w1"], hp["b1"], hp["w2"], hp["b2"],
      hp["w3"], hp["b3"], hp["w4"], hp["b4"])
    return out[:, :out_channels]


def sort_edges_by_dst(edge_index):
    """One-time preprocessing (outside jit): sort edges by destination node."""
    order = jnp.argsort(edge_index[1])
    return edge_index[0][order], edge_index[1][order]


def net_forward_tiled(params, x, src_s, dst_s, n_nodes, out_channels):
    """General path for graphs too large for the fused kernel."""
    h = x
    feats = []
    for conv_p in params["convs"]:
        pq = node_transform(h, conv_p["wab"])            # [N,128] bf16, lane dense
        c = pq.shape[1] // 2
        x_i = jnp.take(pq[:, :c], dst_s, axis=0)         # bf16 gathers
        x_j = jnp.take(pq[:, c:], src_s, axis=0)
        msg = edge_messages(x_i, x_j, conv_p)            # [E,64] bf16 messages
        # TODO(synk): fuse this gather + sorted segment-sum into the edge kernel
        # via scalar-prefetched CSR offsets to remove the remaining [E,64] HBM
        # round trips for graphs that do not fit the fused path.
        h = jax.ops.segment_sum(msg.astype(jnp.float32), dst_s,
                                num_segments=n_nodes, indices_are_sorted=True)
        feats.append(h)
    x1, x2, x3 = feats

    kp = params["head"]["w1"].shape[0]
    pieces = [x1, x2, x3]
    pad_w = kp - 3 * x1.shape[1]
    if pad_w > 0:
        pieces.append(jnp.zeros((x1.shape[0], pad_w), x1.dtype))
    hcat = jnp.concatenate(pieces, axis=1).astype(jnp.bfloat16)   # [N, 256] bf16
    return head_tiled(hcat, params["head"], out_channels)


# ---------------------------------------------------------------------------
# Parameter initialization (deterministic, synthetic) + folding/prep
# ---------------------------------------------------------------------------

def _linear_init(key, cin, cout):
    kw, kb = jax.random.split(key)
    bound = 1.0 / (float(cin) ** 0.5)
    w = jax.random.uniform(kw, (cin, cout), jnp.float32, -bound, bound)
    b = jax.random.uniform(kb, (1, cout), jnp.float32, -bound, bound)
    return w, b


def _bn_affine_init(key, c, eps=1e-5):
    kg, kb, km, kv = jax.random.split(key, 4)
    gamma = 1.0 + 0.1 * jax.random.normal(kg, (1, c), jnp.float32)
    beta = 0.1 * jax.random.normal(kb, (1, c), jnp.float32)
    mean = 0.1 * jax.random.normal(km, (1, c), jnp.float32)
    var = jnp.abs(jax.random.normal(kv, (1, c), jnp.float32)) + 0.5
    s = gamma / jnp.sqrt(var + eps)            # inference-mode BN -> affine
    t = beta - mean * s
    return s, t


def _mlp2_init(key, cin, cmid, cout):
    k1, k2, k3, k4 = jax.random.split(key, 4)
    w1, b1 = _linear_init(k1, cin, cmid)
    s1, t1 = _bn_affine_init(k2, cmid)
    w2, b2 = _linear_init(k3, cmid, cout)
    s2, t2 = _bn_affine_init(k4, cout)
    return (w1, b1, s1, t1, w2, b2, s2, t2)


def _fold_bn_into_next(s, t, w_next, b_next):
    """y = s*r + t followed by y @ W + b  ==  r @ (s^T * W) + (t @ W + b)."""
    return s.reshape(-1, 1) * w_next, b_next + t @ w_next


def _prep_conv(raw):
    """Split W1 for the concat-free node-level lift; fold BN1 into Lin2; bf16."""
    w1, b1, s1, t1, w2, b2, s2, t2 = raw
    c = w1.shape[0] // 2
    wa = w1[:c] - w1[c:]        # multiplies x_i   (cat([x_i, x_j - x_i]) @ W1)
    wb = w1[c:]                 # multiplies x_j
    w2f, b2f = _fold_bn_into_next(s1, t1, w2, b2)
    return {
        "wa": wa.astype(jnp.bfloat16),
        "wb": wb.astype(jnp.bfloat16),
        "wab": jnp.concatenate([wa, wb], axis=1).astype(jnp.bfloat16),  # [cin,128]
        "b1": b1,
        "w2": w2f.astype(jnp.bfloat16),
        "b2": b2f,
        "s2": s2,
        "t2": t2,
    }


def _prep_head(raw, out_channels):
    """Fold all BNs forward, zero-pad W1 rows 192->256 (MXU-depth K), lane-pad
    the final logits to 128 columns (pad bias -1e30 kept in f32)."""
    (w1, b1, s1, t1, w2, b2, s2, t2, w3, b3, s3, t3, w4, b4) = raw
    w2f, b2f = _fold_bn_into_next(s1, t1, w2, b2)
    w3f, b3f = _fold_bn_into_next(s2, t2, w3, b3)
    w4f, b4f = _fold_bn_into_next(s3, t3, w4, b4)
    k = w1.shape[0]                                    # 192
    kp = _round_up(k, 128)                             # 256
    w1p = jnp.zeros((kp, w1.shape[1]), jnp.float32).at[:k].set(w1)
    cp = max(128, _round_up(out_channels, 128))        # lane-dense logits
    w4p = jnp.zeros((w4f.shape[0], cp), jnp.float32).at[:, :out_channels].set(w4f)
    b4p = jnp.full((1, cp), -1e30, jnp.float32).at[:, :out_channels].set(b4f)
    return {"w1": w1p.astype(jnp.bfloat16), "b1": b1,
            "w2": w2f.astype(jnp.bfloat16), "b2": b2f,
            "w3": w3f.astype(jnp.bfloat16), "b3": b3f,
            "w4": w4p.astype(jnp.bfloat16), "b4": b4p}   # b4p stays f32


def init_net_params(key, out_channels):
    ks = jax.random.split(key, 8)
    convs_raw = [
        _mlp2_init(ks[0], 2 * 4, 64, 64),       # conv1: MLP([8, 64, 64])
        _mlp2_init(ks[1], 2 * 64, 64, 64),      # conv2: MLP([128, 64, 64])
        _mlp2_init(ks[2], 2 * 64, 64, 64),      # conv3: MLP([128, 64, 64])
    ]
    w1, b1 = _linear_init(ks[3], 3 * 64, 1024)      # lin1: MLP([192, 1024])
    s1, t1 = _bn_affine_init(ks[4], 1024)
    w2, b2 = _linear_init(ks[5], 1024, 256)         # MLP([1024, 256])
    s2, t2 = _bn_affine_init(ks[6], 256)
    kk = jax.random.split(ks[7], 3)
    w3, b3 = _linear_init(kk[0], 256, 128)          # MLP([256, 128])
    s3, t3 = _bn_affine_init(kk[1], 128)
    w4, b4 = _linear_init(kk[2], 128, out_channels)  # Lin(128, out_channels)
    head_raw = (w1, b1, s1, t1, w2, b2, s2, t2, w3, b3, s3, t3, w4, b4)
    return {"convs": [_prep_conv(p) for p in convs_raw],
            "head": _prep_head(head_raw, out_channels)}


# ---------------------------------------------------------------------------
# Main
# ---------------------------------------------------------------------------

if __name__ == "__main__":
    key = jax.random.PRNGKey(0)
    k_param, k_x, k_src, k_dst = jax.random.split(key, 4)

    N = 64            # number of nodes
    F = 4             # node feature dim (matches MLP([2*4, ...]))
    E = 256           # number of edges
    OUT_CHANNELS = 10

    x = jax.random.normal(k_x, (N, F), jnp.float32)
    edge_index = jnp.stack([
        jax.random.randint(k_src, (E,), 0, N, jnp.int32),   # row 0 = source (x_j)
        jax.random.randint(k_dst, (E,), 0, N, jnp.int32),   # row 1 = target (x_i)
    ], axis=0)

    params = init_net_params(k_param, OUT_CHANNELS)

    # --- fused small-graph path: one kernel launch, zero HBM round trips ----
    assert fused_path_fits(N, E)
    gs, gd, gdt = build_gather_mats(edge_index, N)        # eager, one-time
    fused = jax.jit(functools.partial(net_forward_fused,
                                      out_channels=OUT_CHANNELS))
    out_fused = jax.block_until_ready(fused(params, x, gs, gd, gdt))

    # --- tiled large-graph path (exercised here as a cross-check) -----------
    src_s, dst_s = sort_edges_by_dst(edge_index)          # hoisted out of jit
    tiled = jax.jit(functools.partial(net_forward_tiled,
                                      n_nodes=N, out_channels=OUT_CHANNELS))
    out_tiled = jax.block_until_ready(tiled(params, x, src_s, dst_s))

    for out in (out_fused, out_tiled):
        assert out.shape == (N, OUT_CHANNELS)
        assert bool(jnp.all(jnp.isfinite(out)))
        # rows of log_softmax should (numerically) sum to 1 after exp
        assert bool(jnp.allclose(jnp.sum(jnp.exp(out), axis=1), 1.0, atol=1e-3))
    # both paths implement the same math up to f32 summation order
    assert bool(jnp.allclose(out_fused, out_tiled, atol=2e-2))

    print("KERNEL_OK")
</pallas_src>

<mosaic_0001>
module attributes {stable_mosaic.version = 11 : i64} {
  func.func @_fused_net_kernel(%arg0: memref<64x4xf32, #tpu.memory_space<vmem>>, %arg1: memref<256x64xbf16, #tpu.memory_space<vmem>>, %arg2: memref<256x64xbf16, #tpu.memory_space<vmem>>, %arg3: memref<64x256xbf16, #tpu.memory_space<vmem>>, %arg4: memref<4x64xbf16, #tpu.memory_space<vmem>>, %arg5: memref<4x64xbf16, #tpu.memory_space<vmem>>, %arg6: memref<1x64xf32, #tpu.memory_space<vmem>>, %arg7: memref<64x64xbf16, #tpu.memory_space<vmem>>, %arg8: memref<1x64xf32, #tpu.memory_space<vmem>>, %arg9: memref<1x64xf32, #tpu.memory_space<vmem>>, %arg10: memref<1x64xf32, #tpu.memory_space<vmem>>, %arg11: memref<64x64xbf16, #tpu.memory_space<vmem>>, %arg12: memref<64x64xbf16, #tpu.memory_space<vmem>>, %arg13: memref<1x64xf32, #tpu.memory_space<vmem>>, %arg14: memref<64x64xbf16, #tpu.memory_space<vmem>>, %arg15: memref<1x64xf32, #tpu.memory_space<vmem>>, %arg16: memref<1x64xf32, #tpu.memory_space<vmem>>, %arg17: memref<1x64xf32, #tpu.memory_space<vmem>>, %arg18: memref<64x64xbf16, #tpu.memory_space<vmem>>, %arg19: memref<64x64xbf16, #tpu.memory_space<vmem>>, %arg20: memref<1x64xf32, #tpu.memory_space<vmem>>, %arg21: memref<64x64xbf16, #tpu.memory_space<vmem>>, %arg22: memref<1x64xf32, #tpu.memory_space<vmem>>, %arg23: memref<1x64xf32, #tpu.memory_space<vmem>>, %arg24: memref<1x64xf32, #tpu.memory_space<vmem>>, %arg25: memref<256x1024xbf16, #tpu.memory_space<vmem>>, %arg26: memref<1x1024xf32, #tpu.memory_space<vmem>>, %arg27: memref<1024x256xbf16, #tpu.memory_space<vmem>>, %arg28: memref<1x256xf32, #tpu.memory_space<vmem>>, %arg29: memref<256x128xbf16, #tpu.memory_space<vmem>>, %arg30: memref<1x128xf32, #tpu.memory_space<vmem>>, %arg31: memref<128x128xbf16, #tpu.memory_space<vmem>>, %arg32: memref<1x128xf32, #tpu.memory_space<vmem>>, %arg33: memref<64x128xf32, #tpu.memory_space<vmem>>) attributes {dimension_semantics = [], scalar_prefetch = 0 : i64, scratch_operands = 0 : i64, tpu.core_type = #tpu.core_type<tc>} {
    %c0 = arith.constant 0 : index
    %c0_0 = arith.constant 0 : index
    %0 = vector.load %arg1[%c0, %c0_0] : memref<256x64xbf16, #tpu.memory_space<vmem>>, vector<256x64xbf16>
    %c0_1 = arith.constant 0 : index
    %c0_2 = arith.constant 0 : index
    %1 = vector.load %arg2[%c0_1, %c0_2] : memref<256x64xbf16, #tpu.memory_space<vmem>>, vector<256x64xbf16>
    %c0_3 = arith.constant 0 : index
    %c0_4 = arith.constant 0 : index
    %2 = vector.load %arg3[%c0_3, %c0_4] : memref<64x256xbf16, #tpu.memory_space<vmem>>, vector<64x256xbf16>
    %c0_5 = arith.constant 0 : index
    %c0_6 = arith.constant 0 : index
    %3 = vector.load %arg0[%c0_5, %c0_6] : memref<64x4xf32, #tpu.memory_space<vmem>>, vector<64x4xf32>
    %4 = arith.truncf %3 : vector<64x4xf32> to vector<64x4xbf16>
    %c0_7 = arith.constant 0 : index
    %c0_8 = arith.constant 0 : index
    %5 = vector.load %arg4[%c0_7, %c0_8] : memref<4x64xbf16, #tpu.memory_space<vmem>>, vector<4x64xbf16>
    %cst = arith.constant dense<0.000000e+00> : vector<64x64xf32>
    %6 = tpu.matmul %4, %5, %cst {dimension_numbers = #tpu.dot_dimension_numbers<[1], [0], [0], [1], [0, 0, 1, 1], [], []>} : vector<64x4xbf16>, vector<4x64xbf16>, vector<64x64xf32> -> vector<64x64xf32>
    %7 = arith.truncf %6 : vector<64x64xf32> to vector<64x64xbf16>
    %c0_9 = arith.constant 0 : index
    %c0_10 = arith.constant 0 : index
    %8 = vector.load %arg5[%c0_9, %c0_10] : memref<4x64xbf16, #tpu.memory_space<vmem>>, vector<4x64xbf16>
    %cst_11 = arith.constant dense<0.000000e+00> : vector<64x64xf32>
    %9 = tpu.matmul %4, %8, %cst_11 {dimension_numbers = #tpu.dot_dimension_numbers<[1], [0], [0], [1], [0, 0, 1, 1], [], []>} : vector<64x4xbf16>, vector<4x64xbf16>, vector<64x64xf32> -> vector<64x64xf32>
    %10 = arith.truncf %9 : vector<64x64xf32> to vector<64x64xbf16>
    %cst_12 = arith.constant dense<0.000000e+00> : vector<256x64xf32>
    %11 = tpu.matmul %1, %7, %cst_12 {dimension_numbers = #tpu.dot_dimension_numbers<[1], [0], [0], [1], [0, 0, 1, 1], [], []>} : vector<256x64xbf16>, vector<64x64xbf16>, vector<256x64xf32> -> vector<256x64xf32>
    %cst_13 = arith.constant dense<0.000000e+00> : vector<256x64xf32>
    %12 = tpu.matmul %0, %10, %cst_13 {dimension_numbers = #tpu.dot_dimension_numbers<[1], [0], [0], [1], [0, 0, 1, 1], [], []>} : vector<256x64xbf16>, vector<64x64xbf16>, vector<256x64xf32> -> vector<256x64xf32>
    %13 = arith.addf %11, %12 : vector<256x64xf32>
    %c0_14 = arith.constant 0 : index
    %c0_15 = arith.constant 0 : index
    %14 = vector.load %arg6[%c0_14, %c0_15] : memref<1x64xf32, #tpu.memory_space<vmem>>, vector<1x64xf32>
    %15 = vector.broadcast %14 : vector<1x64xf32> to vector<256x64xf32>
    %16 = arith.addf %13, %15 : vector<256x64xf32>
    %cst_16 = arith.constant 0.000000e+00 : f32
    %17 = vector.broadcast %cst_16 : f32 to vector<256x64xf32>
    %18 = arith.maximumf %16, %17 : vector<256x64xf32>
    %19 = arith.truncf %18 : vector<256x64xf32> to vector<256x64xbf16>
    %c0_17 = arith.constant 0 : index
    %c0_18 = arith.constant 0 : index
    %20 = vector.load %arg7[%c0_17, %c0_18] : memref<64x64xbf16, #tpu.memory_space<vmem>>, vector<64x64xbf16>
    %cst_19 = arith.constant dense<0.000000e+00> : vector<256x64xf32>
    %21 = tpu.matmul %19, %20, %cst_19 {dimension_numbers = #tpu.dot_dimension_numbers<[1], [0], [0], [1], [0, 0, 1, 1], [], []>} : vector<256x64xbf16>, vector<64x64xbf16>, vector<256x64xf32> -> vector<256x64xf32>
    %c0_20 = arith.constant 0 : index
    %c0_21 = arith.constant 0 : index
    %22 = vector.load %arg8[%c0_20, %c0_21] : memref<1x64xf32, #tpu.memory_space<vmem>>, vector<1x64xf32>
    %23 = vector.broadcast %22 : vector<1x64xf32> to vector<256x64xf32>
    %24 = arith.addf %21, %23 : vector<256x64xf32>
    %cst_22 = arith.constant 0.000000e+00 : f32
    %25 = vector.broadcast %cst_22 : f32 to vector<256x64xf32>
    %26 = arith.maximumf %24, %25 : vector<256x64xf32>
    %c0_23 = arith.constant 0 : index
    %c0_24 = arith.constant 0 : index
    %27 = vector.load %arg9[%c0_23, %c0_24] : memref<1x64xf32, #tpu.memory_space<vmem>>, vector<1x64xf32>
    %28 = vector.broadcast %27 : vector<1x64xf32> to vector<256x64xf32>
    %29 = arith.mulf %26, %28 : vector<256x64xf32>
    %c0_25 = arith.constant 0 : index
    %c0_26 = arith.constant 0 : index
    %30 = vector.load %arg10[%c0_25, %c0_26] : memref<1x64xf32, #tpu.memory_space<vmem>>, vector<1x64xf32>
    %31 = vector.broadcast %30 : vector<1x64xf32> to vector<256x64xf32>
    %32 = arith.addf %29, %31 : vector<256x64xf32>
    %33 = arith.truncf %32 : vector<256x64xf32> to vector<256x64xbf16>
    %cst_27 = arith.constant dense<0.000000e+00> : vector<64x64xf32>
    %34 = tpu.matmul %2, %33, %cst_27 {dimension_numbers = #tpu.dot_dimension_numbers<[1], [0], [0], [1], [0, 0, 1, 1], [], []>} : vector<64x256xbf16>, vector<256x64xbf16>, vector<64x64xf32> -> vector<64x64xf32>
    %35 = arith.truncf %34 : vector<64x64xf32> to vector<64x64xbf16>
    %c0_28 = arith.constant 0 : index
    %c0_29 = arith.constant 0 : index
    %36 = vector.load %arg11[%c0_28, %c0_29] : memref<64x64xbf16, #tpu.memory_space<vmem>>, vector<64x64xbf16>
    %cst_30 = arith.constant dense<0.000000e+00> : vector<64x64xf32>
    %37 = tpu.matmul %35, %36, %cst_30 {dimension_numbers = #tpu.dot_dimension_numbers<[1], [0], [0], [1], [0, 0, 1, 1], [], []>} : vector<64x64xbf16>, vector<64x64xbf16>, vector<64x64xf32> -> vector<64x64xf32>
    %38 = arith.truncf %37 : vector<64x64xf32> to vector<64x64xbf16>
    %c0_31 = arith.constant 0 : index
    %c0_32 = arith.constant 0 : index
    %39 = vector.load %arg12[%c0_31, %c0_32] : memref<64x64xbf16, #tpu.memory_space<vmem>>, vector<64x64xbf16>
    %cst_33 = arith.constant dense<0.000000e+00> : vector<64x64xf32>
    %40 = tpu.matmul %35, %39, %cst_33 {dimension_numbers = #tpu.dot_dimension_numbers<[1], [0], [0], [1], [0, 0, 1, 1], [], []>} : vector<64x64xbf16>, vector<64x64xbf16>, vector<64x64xf32> -> vector<64x64xf32>
    %41 = arith.truncf %40 : vector<64x64xf32> to vector<64x64xbf16>
    %cst_34 = arith.constant dense<0.000000e+00> : vector<256x64xf32>
    %42 = tpu.matmul %1, %38, %cst_34 {dimension_numbers = #tpu.dot_dimension_numbers<[1], [0], [0], [1], [0, 0, 1, 1], [], []>} : vector<256x64xbf16>, vector<64x64xbf16>, vector<256x64xf32> -> vector<256x64xf32>
    %cst_35 = arith.constant dense<0.000000e+00> : vector<256x64xf32>
    %43 = tpu.matmul %0, %41, %cst_35 {dimension_numbers = #tpu.dot_dimension_numbers<[1], [0], [0], [1], [0, 0, 1, 1], [], []>} : vector<256x64xbf16>, vector<64x64xbf16>, vector<256x64xf32> -> vector<256x64xf32>
    %44 = arith.addf %42, %43 : vector<256x64xf32>
    %c0_36 = arith.constant 0 : index
    %c0_37 = arith.constant 0 : index
    %45 = vector.load %arg13[%c0_36, %c0_37] : memref<1x64xf32, #tpu.memory_space<vmem>>, vector<1x64xf32>
    %46 = vector.broadcast %45 : vector<1x64xf32> to vector<256x64xf32>
    %47 = arith.addf %44, %46 : vector<256x64xf32>
    %cst_38 = arith.constant 0.000000e+00 : f32
    %48 = vector.broadcast %cst_38 : f32 to vector<256x64xf32>
    %49 = arith.maximumf %47, %48 : vector<256x64xf32>
    %50 = arith.truncf %49 : vector<256x64xf32> to vector<256x64xbf16>
    %c0_39 = arith.constant 0 : index
    %c0_40 = arith.constant 0 : index
    %51 = vector.load %arg14[%c0_39, %c0_40] : memref<64x64xbf16, #tpu.memory_space<vmem>>, vector<64x64xbf16>
    %cst_41 = arith.constant dense<0.000000e+00> : vector<256x64xf32>
    %52 = tpu.matmul %50, %51, %cst_41 {dimension_numbers = #tpu.dot_dimension_numbers<[1], [0], [0], [1], [0, 0, 1, 1], [], []>} : vector<256x64xbf16>, vector<64x64xbf16>, vector<256x64xf32> -> vector<256x64xf32>
    %c0_42 = arith.constant 0 : index
    %c0_43 = arith.constant 0 : index
    %53 = vector.load %arg15[%c0_42, %c0_43] : memref<1x64xf32, #tpu.memory_space<vmem>>, vector<1x64xf32>
    %54 = vector.broadcast %53 : vector<1x64xf32> to vector<256x64xf32>
    %55 = arith.addf %52, %54 : vector<256x64xf32>
    %cst_44 = arith.constant 0.000000e+00 : f32
    %56 = vector.broadcast %cst_44 : f32 to vector<256x64xf32>
    %57 = arith.maximumf %55, %56 : vector<256x64xf32>
    %c0_45 = arith.constant 0 : index
    %c0_46 = arith.constant 0 : index
    %58 = vector.load %arg16[%c0_45, %c0_46] : memref<1x64xf32, #tpu.memory_space<vmem>>, vector<1x64xf32>
    %59 = vector.broadcast %58 : vector<1x64xf32> to vector<256x64xf32>
    %60 = arith.mulf %57, %59 : vector<256x64xf32>
    %c0_47 = arith.constant 0 : index
    %c0_48 = arith.constant 0 : index
    %61 = vector.load %arg17[%c0_47, %c0_48] : memref<1x64xf32, #tpu.memory_space<vmem>>, vector<1x64xf32>
    %62 = vector.broadcast %61 : vector<1x64xf32> to vector<256x64xf32>
    %63 = arith.addf %60, %62 : vector<256x64xf32>
    %64 = arith.truncf %63 : vector<256x64xf32> to vector<256x64xbf16>
    %cst_49 = arith.constant dense<0.000000e+00> : vector<64x64xf32>
    %65 = tpu.matmul %2, %64, %cst_49 {dimension_numbers = #tpu.dot_dimension_numbers<[1], [0], [0], [1], [0, 0, 1, 1], [], []>} : vector<64x256xbf16>, vector<256x64xbf16>, vector<64x64xf32> -> vector<64x64xf32>
    %66 = arith.truncf %65 : vector<64x64xf32> to vector<64x64xbf16>
    %c0_50 = arith.constant 0 : index
    %c0_51 = arith.constant 0 : index
    %67 = vector.load %arg18[%c0_50, %c0_51] : memref<64x64xbf16, #tpu.memory_space<vmem>>, vector<64x64xbf16>
    %cst_52 = arith.constant dense<0.000000e+00> : vector<64x64xf32>
    %68 = tpu.matmul %66, %67, %cst_52 {dimension_numbers = #tpu.dot_dimension_numbers<[1], [0], [0], [1], [0, 0, 1, 1], [], []>} : vector<64x64xbf16>, vector<64x64xbf16>, vector<64x64xf32> -> vector<64x64xf32>
    %69 = arith.truncf %68 : vector<64x64xf32> to vector<64x64xbf16>
    %c0_53 = arith.constant 0 : index
    %c0_54 = arith.constant 0 : index
    %70 = vector.load %arg19[%c0_53, %c0_54] : memref<64x64xbf16, #tpu.memory_space<vmem>>, vector<64x64xbf16>
    %cst_55 = arith.constant dense<0.000000e+00> : vector<64x64xf32>
    %71 = tpu.matmul %66, %70, %cst_55 {dimension_numbers = #tpu.dot_dimension_numbers<[1], [0], [0], [1], [0, 0, 1, 1], [], []>} : vector<64x64xbf16>, vector<64x64xbf16>, vector<64x64xf32> -> vector<64x64xf32>
    %72 = arith.truncf %71 : vector<64x64xf32> to vector<64x64xbf16>
    %cst_56 = arith.constant dense<0.000000e+00> : vector<256x64xf32>
    %73 = tpu.matmul %1, %69, %cst_56 {dimension_numbers = #tpu.dot_dimension_numbers<[1], [0], [0], [1], [0, 0, 1, 1], [], []>} : vector<256x64xbf16>, vector<64x64xbf16>, vector<256x64xf32> -> vector<256x64xf32>
    %cst_57 = arith.constant dense<0.000000e+00> : vector<256x64xf32>
    %74 = tpu.matmul %0, %72, %cst_57 {dimension_numbers = #tpu.dot_dimension_numbers<[1], [0], [0], [1], [0, 0, 1, 1], [], []>} : vector<256x64xbf16>, vector<64x64xbf16>, vector<256x64xf32> -> vector<256x64xf32>
    %75 = arith.addf %73, %74 : vector<256x64xf32>
    %c0_58 = arith.constant 0 : index
    %c0_59 = arith.constant 0 : index
    %76 = vector.load %arg20[%c0_58, %c0_59] : memref<1x64xf32, #tpu.memory_space<vmem>>, vector<1x64xf32>
    %77 = vector.broadcast %76 : vector<1x64xf32> to vector<256x64xf32>
    %78 = arith.addf %75, %77 : vector<256x64xf32>
    %cst_60 = arith.constant 0.000000e+00 : f32
    %79 = vector.broadcast %cst_60 : f32 to vector<256x64xf32>
    %80 = arith.maximumf %78, %79 : vector<256x64xf32>
    %81 = arith.truncf %80 : vector<256x64xf32> to vector<256x64xbf16>
    %c0_61 = arith.constant 0 : index
    %c0_62 = arith.constant 0 : index
    %82 = vector.load %arg21[%c0_61, %c0_62] : memref<64x64xbf16, #tpu.memory_space<vmem>>, vector<64x64xbf16>
    %cst_63 = arith.constant dense<0.000000e+00> : vector<256x64xf32>
    %83 = tpu.matmul %81, %82, %cst_63 {dimension_numbers = #tpu.dot_dimension_numbers<[1], [0], [0], [1], [0, 0, 1, 1], [], []>} : vector<256x64xbf16>, vector<64x64xbf16>, vector<256x64xf32> -> vector<256x64xf32>
    %c0_64 = arith.constant 0 : index
    %c0_65 = arith.constant 0 : index
    %84 = vector.load %arg22[%c0_64, %c0_65] : memref<1x64xf32, #tpu.memory_space<vmem>>, vector<1x64xf32>
    %85 = vector.broadcast %84 : vector<1x64xf32> to vector<256x64xf32>
    %86 = arith.addf %83, %85 : vector<256x64xf32>
    %cst_66 = arith.constant 0.000000e+00 : f32
    %87 = vector.broadcast %cst_66 : f32 to vector<256x64xf32>
    %88 = arith.maximumf %86, %87 : vector<256x64xf32>
    %c0_67 = arith.constant 0 : index
    %c0_68 = arith.constant 0 : index
    %89 = vector.load %arg23[%c0_67, %c0_68] : memref<1x64xf32, #tpu.memory_space<vmem>>, vector<1x64xf32>
    %90 = vector.broadcast %89 : vector<1x64xf32> to vector<256x64xf32>
    %91 = arith.mulf %88, %90 : vector<256x64xf32>
    %c0_69 = arith.constant 0 : index
    %c0_70 = arith.constant 0 : index
    %92 = vector.load %arg24[%c0_69, %c0_70] : memref<1x64xf32, #tpu.memory_space<vmem>>, vector<1x64xf32>
    %93 = vector.broadcast %92 : vector<1x64xf32> to vector<256x64xf32>
    %94 = arith.addf %91, %93 : vector<256x64xf32>
    %95 = arith.truncf %94 : vector<256x64xf32> to vector<256x64xbf16>
    %cst_71 = arith.constant dense<0.000000e+00> : vector<64x64xf32>
    %96 = tpu.matmul %2, %95, %cst_71 {dimension_numbers = #tpu.dot_dimension_numbers<[1], [0], [0], [1], [0, 0, 1, 1], [], []>} : vector<64x256xbf16>, vector<256x64xbf16>, vector<64x64xf32> -> vector<64x64xf32>
    %97 = arith.truncf %34 : vector<64x64xf32> to vector<64x64xbf16>
    %c0_72 = arith.constant 0 : index
    %c0_73 = arith.constant 0 : index
    %98 = vector.load %arg25[%c0_72, %c0_73] : memref<256x1024xbf16, #tpu.memory_space<vmem>>, vector<64x1024xbf16>
    %cst_74 = arith.constant dense<0.000000e+00> : vector<64x1024xf32>
    %99 = tpu.matmul %97, %98, %cst_74 {dimension_numbers = #tpu.dot_dimension_numbers<[1], [0], [0], [1], [0, 0, 1, 1], [], []>} : vector<64x64xbf16>, vector<64x1024xbf16>, vector<64x1024xf32> -> vector<64x1024xf32>
    %100 = arith.truncf %65 : vector<64x64xf32> to vector<64x64xbf16>
    %c64 = arith.constant 64 : index
    %c0_75 = arith.constant 0 : index
    %101 = vector.load %arg25[%c64, %c0_75] : memref<256x1024xbf16, #tpu.memory_space<vmem>>, vector<64x1024xbf16>
    %cst_76 = arith.constant dense<0.000000e+00> : vector<64x1024xf32>
    %102 = tpu.matmul %100, %101, %cst_76 {dimension_numbers = #tpu.dot_dimension_numbers<[1], [0], [0], [1], [0, 0, 1, 1], [], []>} : vector<64x64xbf16>, vector<64x1024xbf16>, vector<64x1024xf32> -> vector<64x1024xf32>
    %103 = arith.addf %99, %102 : vector<64x1024xf32>
    %104 = arith.truncf %96 : vector<64x64xf32> to vector<64x64xbf16>
    %c128 = arith.constant 128 : index
    %c0_77 = arith.constant 0 : index
    %105 = vector.load %arg25[%c128, %c0_77] : memref<256x1024xbf16, #tpu.memory_space<vmem>>, vector<64x1024xbf16>
    %cst_78 = arith.constant dense<0.000000e+00> : vector<64x1024xf32>
    %106 = tpu.matmul %104, %105, %cst_78 {dimension_numbers = #tpu.dot_dimension_numbers<[1], [0], [0], [1], [0, 0, 1, 1], [], []>} : vector<64x64xbf16>, vector<64x1024xbf16>, vector<64x1024xf32> -> vector<64x1024xf32>
    %107 = arith.addf %103, %106 : vector<64x1024xf32>
    %c0_79 = arith.constant 0 : index
    %c0_80 = arith.constant 0 : index
    %108 = vector.load %arg26[%c0_79, %c0_80] : memref<1x1024xf32, #tpu.memory_space<vmem>>, vector<1x1024xf32>
    %109 = vector.broadcast %108 : vector<1x1024xf32> to vector<64x1024xf32>
    %110 = arith.addf %107, %109 : vector<64x1024xf32>
    %c0_81 = arith.constant 0 : index
    %c0_82 = arith.constant 0 : index
    %111 = vector.load %arg27[%c0_81, %c0_82] : memref<1024x256xbf16, #tpu.memory_space<vmem>>, vector<1024x256xbf16>
    %c0_83 = arith.constant 0 : index
    %c0_84 = arith.constant 0 : index
    %112 = vector.load %arg28[%c0_83, %c0_84] : memref<1x256xf32, #tpu.memory_space<vmem>>, vector<1x256xf32>
    %c0_85 = arith.constant 0 : index
    %c0_86 = arith.constant 0 : index
    %113 = vector.load %arg29[%c0_85, %c0_86] : memref<256x128xbf16, #tpu.memory_space<vmem>>, vector<256x128xbf16>
    %c0_87 = arith.constant 0 : index
    %c0_88 = arith.constant 0 : index
    %114 = vector.load %arg30[%c0_87, %c0_88] : memref<1x128xf32, #tpu.memory_space<vmem>>, vector<1x128xf32>
    %c0_89 = arith.constant 0 : index
    %c0_90 = arith.constant 0 : index
    %115 = vector.load %arg31[%c0_89, %c0_90] : memref<128x128xbf16, #tpu.memory_space<vmem>>, vector<128x128xbf16>
    %c0_91 = arith.constant 0 : index
    %c0_92 = arith.constant 0 : index
    %116 = vector.load %arg32[%c0_91, %c0_92] : memref<1x128xf32, #tpu.memory_space<vmem>>, vector<1x128xf32>
    %cst_93 = arith.constant 0.000000e+00 : f32
    %117 = vector.broadcast %cst_93 : f32 to vector<64x1024xf32>
    %118 = arith.maximumf %110, %117 : vector<64x1024xf32>
    %119 = arith.truncf %118 : vector<64x1024xf32> to vector<64x1024xbf16>
    %cst_94 = arith.constant dense<0.000000e+00> : vector<64x256xf32>
    %120 = tpu.matmul %119, %111, %cst_94 {dimension_numbers = #tpu.dot_dimension_numbers<[1], [0], [0], [1], [0, 0, 1, 1], [], []>} : vector<64x1024xbf16>, vector<1024x256xbf16>, vector<64x256xf32> -> vector<64x256xf32>
    %121 = vector.broadcast %112 : vector<1x256xf32> to vector<64x256xf32>
    %122 = arith.addf %120, %121 : vector<64x256xf32>
    %cst_95 = arith.constant 0.000000e+00 : f32
    %123 = vector.broadcast %cst_95 : f32 to vector<64x256xf32>
    %124 = arith.maximumf %122, %123 : vector<64x256xf32>
    %125 = arith.truncf %124 : vector<64x256xf32> to vector<64x256xbf16>
    %cst_96 = arith.constant dense<0.000000e+00> : vector<64x128xf32>
    %126 = tpu.matmul %125, %113, %cst_96 {dimension_numbers = #tpu.dot_dimension_numbers<[1], [0], [0], [1], [0, 0, 1, 1], [], []>} : vector<64x256xbf16>, vector<256x128xbf16>, vector<64x128xf32> -> vector<64x128xf32>
    %127 = vector.broadcast %114 : vector<1x128xf32> to vector<64x128xf32>
    %128 = arith.addf %126, %127 : vector<64x128xf32>
    %cst_97 = arith.constant 0.000000e+00 : f32
    %129 = vector.broadcast %cst_97 : f32 to vector<64x128xf32>
    %130 = arith.maximumf %128, %129 : vector<64x128xf32>
    %131 = arith.truncf %130 : vector<64x128xf32> to vector<64x128xbf16>
    %cst_98 = arith.constant dense<0.000000e+00> : vector<64x128xf32>
    %132 = tpu.matmul %131, %115, %cst_98 {dimension_numbers = #tpu.dot_dimension_numbers<[1], [0], [0], [1], [0, 0, 1, 1], [], []>} : vector<64x128xbf16>, vector<128x128xbf16>, vector<64x128xf32> -> vector<64x128xf32>
    %133 = vector.broadcast %116 : vector<1x128xf32> to vector<64x128xf32>
    %134 = arith.addf %132, %133 : vector<64x128xf32>
    %cst_99 = arith.constant dense<0xFF800000> : vector<64xf32>
    %135 = vector.multi_reduction <maximumf>, %134, %cst_99 [1] : vector<64x128xf32> to vector<64xf32>
    %136 = vector.shape_cast %135 : vector<64xf32> to vector<64x1xf32>
    %137 = vector.broadcast %136 : vector<64x1xf32> to vector<64x128xf32>
    %138 = arith.subf %134, %137 : vector<64x128xf32>
    %139 = math.exp %138 : vector<64x128xf32>
    %cst_100 = arith.constant dense<0.000000e+00> : vector<64xf32>
    %140 = vector.multi_reduction <add>, %139, %cst_100 [1] : vector<64x128xf32> to vector<64xf32>
    %141 = vector.shape_cast %140 : vector<64xf32> to vector<64x1xf32>
    %142 = math.log %141 : vector<64x1xf32>
    %143 = arith.addf %136, %142 : vector<64x1xf32>
    %144 = vector.broadcast %143 : vector<64x1xf32> to vector<64x128xf32>
    %145 = arith.subf %134, %144 : vector<64x128xf32>
    %c0_101 = arith.constant 0 : index
    %c0_102 = arith.constant 0 : index
    %146 = vector.load %arg33[%c0_101, %c0_102] : memref<64x128xf32, #tpu.memory_space<vmem>>, vector<64x128xf32>
    tpu.vector_store %arg33[%c0_101, %c0_102], %145 {strides = array<i32>} : memref<64x128xf32, #tpu.memory_space<vmem>>, vector<64x128xf32>,
    return
  }
}

</mosaic_0001>

<llo_original>
// kernel: net_forward_fused.1
$region0: #{net_forward_fused.1}
  #allocation0 [shape = 'u32[]', space=smem, size = 0x4, offset = 0x4, fixed_abs, tag = 'smem constant byte address 0x4 - core index']
  #allocation1 [shape = 'u32[144,128]{1,0:T(1,128)}', space=vmem, size = 0x12000, scoped, tag = 'internal scratch']
  %s0 = inlined_call_operand.smem [shape: u32[34], index: -1, kind: input, shape index: {}]
  %s1 = sld [smem:[%s0]]
  %s2 = scalar_lea.smem %s0, 1
  %s3 = sld [smem:[%s2]]
  %s4 = scalar_lea.smem %s0, 2
  %s5 = sld [smem:[%s4]]
  %s6 = scalar_lea.smem %s0, 3
  %s7 = sld [smem:[%s6]]
  %s8 = scalar_lea.smem %s0, 4
  %s9 = sld [smem:[%s8]]
  %s10 = scalar_lea.smem %s0, 5
  %s11 = sld [smem:[%s10]]
  %s12 = scalar_lea.smem %s0, 6
  %s13 = sld [smem:[%s12]]
  %s14 = scalar_lea.smem %s0, 7
  %s15 = sld [smem:[%s14]]
  %s16 = scalar_lea.smem %s0, 8
  %s17 = sld [smem:[%s16]]
  %s18 = scalar_lea.smem %s0, 9
  %s19 = sld [smem:[%s18]]
  %s20 = scalar_lea.smem %s0, 10
  %s21 = sld [smem:[%s20]]
  %s22 = scalar_lea.smem %s0, 11
  %s23 = sld [smem:[%s22]]
  %s24 = scalar_lea.smem %s0, 12
  %s25 = sld [smem:[%s24]]
  %s26 = scalar_lea.smem %s0, 13
  %s27 = sld [smem:[%s26]]
  %s28 = scalar_lea.smem %s0, 14
  %s29 = sld [smem:[%s28]]
  %s30 = scalar_lea.smem %s0, 15
  %s31 = sld [smem:[%s30]]
  %s32 = scalar_lea.smem %s0, 16
  %s33 = sld [smem:[%s32]]
  %s34 = scalar_lea.smem %s0, 17
  %s35 = sld [smem:[%s34]]
  %s36 = scalar_lea.smem %s0, 18
  %s37 = sld [smem:[%s36]]
  %s38 = scalar_lea.smem %s0, 19
  %s39 = sld [smem:[%s38]]
  %s40 = scalar_lea.smem %s0, 20
  %s41 = sld [smem:[%s40]]
  %s42 = scalar_lea.smem %s0, 21
  %s43 = sld [smem:[%s42]]
  %s44 = scalar_lea.smem %s0, 22
  %s45 = sld [smem:[%s44]]
  %s46 = scalar_lea.smem %s0, 23
  %s47 = sld [smem:[%s46]]
  %s48 = scalar_lea.smem %s0, 24
  %s49 = sld [smem:[%s48]]
  %s50 = scalar_lea.smem %s0, 25
  %s51 = sld [smem:[%s50]]
  %s52 = scalar_lea.smem %s0, 26
  %s53 = sld [smem:[%s52]]
  %s54 = scalar_lea.smem %s0, 27
  %s55 = sld [smem:[%s54]]
  %s56 = scalar_lea.smem %s0, 28
  %s57 = sld [smem:[%s56]]
  %s58 = scalar_lea.smem %s0, 29
  %s59 = sld [smem:[%s58]]
  %s60 = scalar_lea.smem %s0, 30
  %s61 = sld [smem:[%s60]]
  %s62 = scalar_lea.smem %s0, 31
  %s63 = sld [smem:[%s62]]
  %s64 = scalar_lea.smem %s0, 32
  %s65 = sld [smem:[%s64]]
  %s66 = scalar_lea.smem %s0, 33
  %s67 = sld [smem:[%s66]]
  %s68 = sld [smem:[#allocation0]]
  $region174: #{net_forward_fused.1} parent=0
    _
  %s70 = ssub.s32 1, %s68
  %s71 = scalar_select 0, %s70, %s68
  $region1: #{net_forward_fused.1} parent=0
    #allocation2 [shape = 'u8[16384]{0}', space=vmem, size = 0x4000, scoped, tag = 'input window, operand 14, single buffered']
    #allocation3 [shape = 's32[1]{0}', space=sflag, size = 0x4, scoped, tag = 'scoped memory for net_forward_fused.1']
    #allocation4 [shape = 'u8[16384]{0}', space=vmem, size = 0x4000, scoped, tag = 'input window, operand 18, single buffered']
    #allocation5 [shape = 's32[1]{0}', space=sflag, size = 0x4, scoped, tag = 'scoped memory for net_forward_fused.1']
    #allocation6 [shape = 'u8[16384]{0}', space=vmem, size = 0x4000, scoped, tag = 'input window, operand 19, single buffered']
    #allocation7 [shape = 'u8[16384]{0}', space=vmem, size = 0x4000, scoped, tag = 'input window, operand 21, single buffered']
    #allocation8 [shape = 's32[1]{0}', space=sflag, size = 0x4, scoped, tag = 'scoped memory for net_forward_fused.1']
    #allocation9 [shape = 'u8[524288]{0}', space=vmem, size = 0x80000, scoped, tag = 'input window, operand 25, single buffered']
    #allocation10 [shape = 'u8[524288]{0}', space=vmem, size = 0x80000, scoped, tag = 'input window, operand 27, single buffered']
    #allocation11 [shape = 's32[1]{0}', space=sflag, size = 0x4, scoped, tag = 'scoped memory for net_forward_fused.1']
    #allocation12 [shape = 'u8[512]{0}', space=vmem, size = 0x400, scoped, tag = 'input window, operand 30, single buffered']
    #allocation13 [shape = 'u8[512]{0}', space=vmem, size = 0x400, scoped, tag = 'input window, operand 32, single buffered']
    #allocation14 [shape = 's32[1]{0}', space=sflag, size = 0x4, scoped, tag = 'scoped memory for net_forward_fused.1']
    %72 = vsyncpa [#allocation3], 0
    %73 = vsyncpa [#allocation5], 0
    %74 = vsyncpa [#allocation8], 0
    %75 = vsyncpa [#allocation11], 0
    %76 = vsyncpa [#allocation14], 0
    // Predicated region
    $region2: #{net_forward_fused.1} parent=1 // pred_check
      _
    $region3: #{net_forward_fused.1} parent=1 // pred_check_branch
      %78 = sbr.rel (0) target = $region5
    $region4: #{net_forward_fused.1} parent=1 // pred_region
      _
    $region5: #{net_forward_fused.1} parent=1 // pred_fallthru
      _
    // Predicated region
    $region6: #{net_forward_fused.1} parent=1 // pred_check
      _
    $region7: #{net_forward_fused.1} parent=1 // pred_check_branch
      %80 = sbr.rel (0) target = $region9
    $region8: #{net_forward_fused.1} parent=1 // pred_region
      _
    $region9: #{net_forward_fused.1} parent=1 // pred_fallthru
      _
    // Predicated region
    $region10: #{net_forward_fused.1} parent=1 // pred_check
      _
    $region11: #{net_forward_fused.1} parent=1 // pred_check_branch
      %82 = sbr.rel (0) target = $region13
    $region12: #{net_forward_fused.1} parent=1 // pred_region
      _
    $region13: #{net_forward_fused.1} parent=1 // pred_fallthru
      _
    // Predicated region
    $region14: #{net_forward_fused.1} parent=1 // pred_check
      _
    $region15: #{net_forward_fused.1} parent=1 // pred_check_branch
      %84 = sbr.rel (0) target = $region17
    $region16: #{net_forward_fused.1} parent=1 // pred_region
      _
    $region17: #{net_forward_fused.1} parent=1 // pred_fallthru
      _
    // Predicated region
    $region18: #{net_forward_fused.1} parent=1 // pred_check
      _
    $region19: #{net_forward_fused.1} parent=1 // pred_check_branch
      %86 = sbr.rel (0) target = $region21
    $region20: #{net_forward_fused.1} parent=1 // pred_region
      _
    $region21: #{net_forward_fused.1} parent=1 // pred_fallthru
      _
    // Predicated region
    $region22: #{net_forward_fused.1} parent=1 // pred_check
      _
    $region23: #{net_forward_fused.1} parent=1 // pred_check_branch
      %88 = sbr.rel (0) target = $region25
    $region24: #{net_forward_fused.1} parent=1 // pred_region
      _
    $region25: #{net_forward_fused.1} parent=1 // pred_fallthru
      _
    // Predicated region
    $region26: #{net_forward_fused.1} parent=1 // pred_check
      _
    $region27: #{net_forward_fused.1} parent=1 // pred_check_branch
      %90 = sbr.rel (0) target = $region29
    $region28: #{net_forward_fused.1} parent=1 // pred_region
      _
    $region29: #{net_forward_fused.1} parent=1 // pred_fallthru
      _
    // Predicated region
    $region30: #{net_forward_fused.1} parent=1 // pred_check
      _
    $region31: #{net_forward_fused.1} parent=1 // pred_check_branch
      %92 = sbr.rel (0) target = $region33
    $region32: #{net_forward_fused.1} parent=1 // pred_region
      _
    $region33: #{net_forward_fused.1} parent=1 // pred_fallthru
      _
    // Predicated region
    $region34: #{net_forward_fused.1} parent=1 // pred_check
      _
    $region35: #{net_forward_fused.1} parent=1 // pred_check_branch
      %94 = sbr.rel (0) target = $region37
    $region36: #{net_forward_fused.1} parent=1 // pred_region
      _
    $region37: #{net_forward_fused.1} parent=1 // pred_fallthru
      _
    // Predicated region
    $region38: #{net_forward_fused.1} parent=1 // pred_check
      _
    $region39: #{net_forward_fused.1} parent=1 // pred_check_branch
      %96 = sbr.rel (0) target = $region41
    $region40: #{net_forward_fused.1} parent=1 // pred_region
      _
    $region41: #{net_forward_fused.1} parent=1 // pred_fallthru
      _
    // Predicated region
    $region42: #{net_forward_fused.1} parent=1 // pred_check
      _
    $region43: #{net_forward_fused.1} parent=1 // pred_check_branch
      %98 = sbr.rel (0) target = $region45
    $region44: #{net_forward_fused.1} parent=1 // pred_region
      _
    $region45: #{net_forward_fused.1} parent=1 // pred_fallthru
      _
    // Predicated region
    $region46: #{net_forward_fused.1} parent=1 // pred_check
      _
    $region47: #{net_forward_fused.1} parent=1 // pred_check_branch
      %100 = sbr.rel (0) target = $region49
    $region48: #{net_forward_fused.1} parent=1 // pred_region
      _
    $region49: #{net_forward_fused.1} parent=1 // pred_fallthru
      _
    // Predicated region
    $region50: #{net_forward_fused.1} parent=1 // pred_check
      _
    $region51: #{net_forward_fused.1} parent=1 // pred_check_branch
      %102 = sbr.rel (0) target = $region53
    $region52: #{net_forward_fused.1} parent=1 // pred_region
      _
    $region53: #{net_forward_fused.1} parent=1 // pred_fallthru
      _
    // Predicated region
    $region54: #{net_forward_fused.1} parent=1 // pred_check
      _
    $region55: #{net_forward_fused.1} parent=1 // pred_check_branch
      %104 = sbr.rel (0) target = $region57
    $region56: #{net_forward_fused.1} parent=1 // pred_region
      _
    $region57: #{net_forward_fused.1} parent=1 // pred_fallthru
      _
    // Predicated region
    $region58: #{net_forward_fused.1} parent=1 // pred_check
      _
    $region59: #{net_forward_fused.1} parent=1 // pred_check_branch
      %106 = sbr.rel (0) target = $region61
    $region60: #{net_forward_fused.1} parent=1 // pred_region
      %s108 = ssub.s32 512, 512
      %109 = vsyncadd [#allocation3], %s108
      %s110 = sshll.u32 [#allocation2], 4
      %s111 = int_to_ptr.vmem [resolvable:$true] %s110
      %116 = dma.hbm_to_vmem [thread:$0]  %s29, 512, %s111, [#allocation3], 64, 64, 4
    $region61: #{net_forward_fused.1} parent=1 // pred_fallthru
      _
    // Predicated region
    $region62: #{net_forward_fused.1} parent=1 // pred_check
      _
    $region63: #{net_forward_fused.1} parent=1 // pred_check_branch
      %118 = sbr.rel (0) target = $region65
    $region64: #{net_forward_fused.1} parent=1 // pred_region
      _
    $region65: #{net_forward_fused.1} parent=1 // pred_fallthru
      _
    // Predicated region
    $region66: #{net_forward_fused.1} parent=1 // pred_check
      _
    $region67: #{net_forward_fused.1} parent=1 // pred_check_branch
      %120 = sbr.rel (0) target = $region69
    $region68: #{net_forward_fused.1} parent=1 // pred_region
      _
    $region69: #{net_forward_fused.1} parent=1 // pred_fallthru
      _
    // Predicated region
    $region70: #{net_forward_fused.1} parent=1 // pred_check
      _
    $region71: #{net_forward_fused.1} parent=1 // pred_check_branch
      %122 = sbr.rel (0) target = $region73
    $region72: #{net_forward_fused.1} parent=1 // pred_region
      _
    $region73: #{net_forward_fused.1} parent=1 // pred_fallthru
      _
    // Predicated region
    $region74: #{net_forward_fused.1} parent=1 // pred_check
      _
    $region75: #{net_forward_fused.1} parent=1 // pred_check_branch
      %124 = sbr.rel (0) target = $region77
    $region76: #{net_forward_fused.1} parent=1 // pred_region
      %s126 = ssub.s32 512, 512
      %127 = vsyncadd [#allocation5], %s126
      %s128 = sshll.u32 [#allocation4], 4
      %s129 = int_to_ptr.vmem [resolvable:$true] %s128
      %134 = dma.hbm_to_vmem [thread:$0]  %s37, 512, %s129, [#allocation5], 64, 64, 4
    $region77: #{net_forward_fused.1} parent=1 // pred_fallthru
      _
    // Predicated region
    $region78: #{net_forward_fused.1} parent=1 // pred_check
      _
    $region79: #{net_forward_fused.1} parent=1 // pred_check_branch
      %136 = sbr.rel (0) target = $region81
    $region80: #{net_forward_fused.1} parent=1 // pred_region
      %s138 = ssub.s32 512, 512
      %139 = vsyncadd [#allocation5], %s138
      %s140 = sshll.u32 [#allocation6], 4
      %s141 = int_to_ptr.vmem [resolvable:$true] %s140
      %146 = dma.hbm_to_vmem [thread:$0]  %s39, 512, %s141, [#allocation5], 64, 64, 4
    $region81: #{net_forward_fused.1} parent=1 // pred_fallthru
      _
    // Predicated region
    $region82: #{net_forward_fused.1} parent=1 // pred_check
      _
    $region83: #{net_forward_fused.1} parent=1 // pred_check_branch
      %148 = sbr.rel (0) target = $region85
    $region84: #{net_forward_fused.1} parent=1 // pred_region
      _
    $region85: #{net_forward_fused.1} parent=1 // pred_fallthru
      _
    // Predicated region
    $region86: #{net_forward_fused.1} parent=1 // pred_check
      _
    $region87: #{net_forward_fused.1} parent=1 // pred_check_branch
      %150 = sbr.rel (0) target = $region89
    $region88: #{net_forward_fused.1} parent=1 // pred_region
      %s152 = ssub.s32 512, 512
      %153 = vsyncadd [#allocation8], %s152
      %s154 = sshll.u32 [#allocation7], 4
      %s155 = int_to_ptr.vmem [resolvable:$true] %s154
      %160 = dma.hbm_to_vmem [thread:$0]  %s43, 512, %s155, [#allocation8], 64, 64, 4
    $region89: #{net_forward_fused.1} parent=1 // pred_fallthru
      _
    // Predicated region
    $region90: #{net_forward_fused.1} parent=1 // pred_check
      _
    $region91: #{net_forward_fused.1} parent=1 // pred_check_branch
      %162 = sbr.rel (0) target = $region93
    $region92: #{net_forward_fused.1} parent=1 // pred_region
      _
    $region93: #{net_forward_fused.1} parent=1 // pred_fallthru
      _
    // Predicated region
    $region94: #{net_forward_fused.1} parent=1 // pred_check
      _
    $region95: #{net_forward_fused.1} parent=1 // pred_check_branch
      %164 = sbr.rel (0) target = $region97
    $region96: #{net_forward_fused.1} parent=1 // pred_region
      _
    $region97: #{net_forward_fused.1} parent=1 // pred_fallthru
      _
    // Predicated region
    $region98: #{net_forward_fused.1} parent=1 // pred_check
      _
    $region99: #{net_forward_fused.1} parent=1 // pred_check_branch
      %166 = sbr.rel (0) target = $region101
    $region100: #{net_forward_fused.1} parent=1 // pred_region
      _
    $region101: #{net_forward_fused.1} parent=1 // pred_fallthru
      _
    // Predicated region
    $region102: #{net_forward_fused.1} parent=1 // pred_check
      _
    $region103: #{net_forward_fused.1} parent=1 // pred_check_branch
      %168 = sbr.rel (0) target = $region105
    $region104: #{net_forward_fused.1} parent=1 // pred_region
      %s170 = ssub.s32 16384, 16384
      %171 = vsyncadd [#allocation8], %s170
      %s172 = sshll.u32 [#allocation9], 4
      %s173 = int_to_ptr.vmem [resolvable:$true] %s172
      %178 = dma.hbm_to_vmem [thread:$0]  %s51, 16384, %s173, [#allocation8], 512, 512, 32
    $region105: #{net_forward_fused.1} parent=1 // pred_fallthru
      _
    // Predicated region
    $region106: #{net_forward_fused.1} parent=1 // pred_check
      _
    $region107: #{net_forward_fused.1} parent=1 // pred_check_branch
      %180 = sbr.rel (0) target = $region109
    $region108: #{net_forward_fused.1} parent=1 // pred_region
      _
    $region109: #{net_forward_fused.1} parent=1 // pred_fallthru
      _
    // Predicated region
    $region110: #{net_forward_fused.1} parent=1 // pred_check
      _
    $region111: #{net_forward_fused.1} parent=1 // pred_check_branch
      %182 = sbr.rel (0) target = $region113
    $region112: #{net_forward_fused.1} parent=1 // pred_region
      %s184 = ssub.s32 16384, 16384
      %185 = vsyncadd [#allocation11], %s184
      %s186 = sshll.u32 [#allocation10], 4
      %s187 = int_to_ptr.vmem [resolvable:$true] %s186
      %192 = dma.hbm_to_vmem [thread:$0]  %s55, 16384, %s187, [#allocation11], 128, 128, 8
    $region113: #{net_forward_fused.1} parent=1 // pred_fallthru
      _
    // Predicated region
    $region114: #{net_forward_fused.1} parent=1 // pred_check
      _
    $region115: #{net_forward_fused.1} parent=1 // pred_check_branch
      %194 = sbr.rel (0) target = $region117
    $region116: #{net_forward_fused.1} parent=1 // pred_region
      _
    $region117: #{net_forward_fused.1} parent=1 // pred_fallthru
      _
    // Predicated region
    $region118: #{net_forward_fused.1} parent=1 // pred_check
      _
    $region119: #{net_forward_fused.1} parent=1 // pred_check_branch
      %196 = sbr.rel (0) target = $region121
    $region120: #{net_forward_fused.1} parent=1 // pred_region
      _
    $region121: #{net_forward_fused.1} parent=1 // pred_fallthru
      _
    // Predicated region
    $region122: #{net_forward_fused.1} parent=1 // pred_check
      _
    $region123: #{net_forward_fused.1} parent=1 // pred_check_branch
      %198 = sbr.rel (0) target = $region125
    $region124: #{net_forward_fused.1} parent=1 // pred_region
      %s200 = ssub.s32 16, 16
      %201 = vsyncadd [#allocation11], %s200
      %s203 = sshll.u32 [#allocation12], 4
      %s204 = int_to_ptr.vmem [resolvable:$true] %s203
      %206 = dma.hbm_to_vmem [thread:$0]  %s61, 16, %s204, [#allocation11]
    $region125: #{net_forward_fused.1} parent=1 // pred_fallthru
      _
    // Predicated region
    $region126: #{net_forward_fused.1} parent=1 // pred_check
      _
    $region127: #{net_forward_fused.1} parent=1 // pred_check_branch
      %208 = sbr.rel (0) target = $region129
    $region128: #{net_forward_fused.1} parent=1 // pred_region
      _
    $region129: #{net_forward_fused.1} parent=1 // pred_fallthru
      _
    // Predicated region
    $region130: #{net_forward_fused.1} parent=1 // pred_check
      _
    $region131: #{net_forward_fused.1} parent=1 // pred_check_branch
      %210 = sbr.rel (0) target = $region133
    $region132: #{net_forward_fused.1} parent=1 // pred_region
      %s212 = ssub.s32 16, 16
      %213 = vsyncadd [#allocation14], %s212
      %s215 = sshll.u32 [#allocation13], 4
      %s216 = int_to_ptr.vmem [resolvable:$true] %s215
      %218 = dma.hbm_to_vmem [thread:$0]  %s65, 16, %s216, [#allocation14]
    $region133: #{net_forward_fused.1} parent=1 // pred_fallthru
      _
    // Predicated region
    $region134: #{net_forward_fused.1} parent=1 // pred_check
      _
    $region135: #{net_forward_fused.1} parent=1 // pred_check_branch
      %220 = sbr.rel (0) target = $region137
    $region136: #{net_forward_fused.1} parent=1 // pred_region
      %221 = dma.done [#allocation3], 512
    $region137: #{net_forward_fused.1} parent=1 // pred_fallthru
      _
    // Predicated region
    $region138: #{net_forward_fused.1} parent=1 // pred_check
      _
    $region139: #{net_forward_fused.1} parent=1 // pred_check_branch
      %223 = sbr.rel (0) target = $region141
    $region140: #{net_forward_fused.1} parent=1 // pred_region
      %224 = dma.done [#allocation5], 512
    $region141: #{net_forward_fused.1} parent=1 // pred_fallthru
      _
    // Predicated region
    $region142: #{net_forward_fused.1} parent=1 // pred_check
      _
    $region143: #{net_forward_fused.1} parent=1 // pred_check_branch
      %226 = sbr.rel (0) target = $region145
    $region144: #{net_forward_fused.1} parent=1 // pred_region
      %227 = dma.done [#allocation5], 512
    $region145: #{net_forward_fused.1} parent=1 // pred_fallthru
      _
    // Predicated region
    $region146: #{net_forward_fused.1} parent=1 // pred_check
      _
    $region147: #{net_forward_fused.1} parent=1 // pred_check_branch
      %229 = sbr.rel (0) target = $region149
    $region148: #{net_forward_fused.1} parent=1 // pred_region
      %230 = dma.done [#allocation8], 512
    $region149: #{net_forward_fused.1} parent=1 // pred_fallthru
      _
    // Predicated region
    $region150: #{net_forward_fused.1} parent=1 // pred_check
      _
    $region151: #{net_forward_fused.1} parent=1 // pred_check_branch
      %232 = sbr.rel (0) target = $region153
    $region152: #{net_forward_fused.1} parent=1 // pred_region
      %233 = dma.done [#allocation8], 16384
    $region153: #{net_forward_fused.1} parent=1 // pred_fallthru
      _
    // Predicated region
    $region154: #{net_forward_fused.1} parent=1 // pred_check
      _
    $region155: #{net_forward_fused.1} parent=1 // pred_check_branch
      %235 = sbr.rel (0) target = $region157
    $region156: #{net_forward_fused.1} parent=1 // pred_region
      %236 = dma.done [#allocation11], 16384
    $region157: #{net_forward_fused.1} parent=1 // pred_fallthru
      _
    // Predicated region
    $region158: #{net_forward_fused.1} parent=1 // pred_check
      _
    $region159: #{net_forward_fused.1} parent=1 // pred_check_branch
      %238 = sbr.rel (0) target = $region161
    $region160: #{net_forward_fused.1} parent=1 // pred_region
      %239 = dma.done [#allocation11], 16
    $region161: #{net_forward_fused.1} parent=1 // pred_fallthru
      _
    // Predicated region
    $region162: #{net_forward_fused.1} parent=1 // pred_check
      _
    $region163: #{net_forward_fused.1} parent=1 // pred_check_branch
      %241 = sbr.rel (0) target = $region165
    $region164: #{net_forward_fused.1} parent=1 // pred_region
      %242 = dma.done [#allocation14], 16
    $region165: #{net_forward_fused.1} parent=1 // pred_fallthru
      _
    %v244 = vld [vmem:[%s3] sm:$0xf]
    %v245 = vld [vmem:[%s3 + $0x4] sm:$0xf]
    %v246 = vld [vmem:[%s3 + $0x8] sm:$0xf]
    %v247 = vld [vmem:[%s3 + $0xc] sm:$0xf]
    %v248 = vld [vmem:[%s3 + $0x10] sm:$0xf]
    %v249 = vld [vmem:[%s3 + $0x14] sm:$0xf]
    %v250 = vld [vmem:[%s3 + $0x18] sm:$0xf]
    %v251 = vld [vmem:[%s3 + $0x1c] sm:$0xf]
    %v252 = vld [vmem:[%s3 + $0x20] sm:$0xf]
    %v253 = vld [vmem:[%s3 + $0x24] sm:$0xf]
    %v254 = vld [vmem:[%s3 + $0x28] sm:$0xf]
    %v255 = vld [vmem:[%s3 + $0x2c] sm:$0xf]
    %v256 = vld [vmem:[%s3 + $0x30] sm:$0xf]
    %v257 = vld [vmem:[%s3 + $0x34] sm:$0xf]
    %v258 = vld [vmem:[%s3 + $0x38] sm:$0xf]
    %v259 = vld [vmem:[%s3 + $0x3c] sm:$0xf]
    %v260 = vld [vmem:[%s3 + $0x40] sm:$0xf]
    %v261 = vld [vmem:[%s3 + $0x44] sm:$0xf]
    %v262 = vld [vmem:[%s3 + $0x48] sm:$0xf]
    %v263 = vld [vmem:[%s3 + $0x4c] sm:$0xf]
    %v264 = vld [vmem:[%s3 + $0x50] sm:$0xf]
    %v265 = vld [vmem:[%s3 + $0x54] sm:$0xf]
    %v266 = vld [vmem:[%s3 + $0x58] sm:$0xf]
    %v267 = vld [vmem:[%s3 + $0x5c] sm:$0xf]
    %v268 = vld [vmem:[%s3 + $0x60] sm:$0xf]
    %v269 = vld [vmem:[%s3 + $0x64] sm:$0xf]
    %v270 = vld [vmem:[%s3 + $0x68] sm:$0xf]
    %v271 = vld [vmem:[%s3 + $0x6c] sm:$0xf]
    %v272 = vld [vmem:[%s3 + $0x70] sm:$0xf]
    %v273 = vld [vmem:[%s3 + $0x74] sm:$0xf]
    %v274 = vld [vmem:[%s3 + $0x78] sm:$0xf]
    %v275 = vld [vmem:[%s3 + $0x7c] sm:$0xf]
    %v276 = vld [vmem:[%s5] sm:$0xf]
    %v277 = vld [vmem:[%s5 + $0x4] sm:$0xf]
    %v278 = vld [vmem:[%s5 + $0x8] sm:$0xf]
    %v279 = vld [vmem:[%s5 + $0xc] sm:$0xf]
    %v280 = vld [vmem:[%s5 + $0x10] sm:$0xf]
    %v281 = vld [vmem:[%s5 + $0x14] sm:$0xf]
    %v282 = vld [vmem:[%s5 + $0x18] sm:$0xf]
    %v283 = vld [vmem:[%s5 + $0x1c] sm:$0xf]
    %v284 = vld [vmem:[%s5 + $0x20] sm:$0xf]
    %v285 = vld [vmem:[%s5 + $0x24] sm:$0xf]
    %v286 = vld [vmem:[%s5 + $0x28] sm:$0xf]
    %v287 = vld [vmem:[%s5 + $0x2c] sm:$0xf]
    %v288 = vld [vmem:[%s5 + $0x30] sm:$0xf]
    %v289 = vld [vmem:[%s5 + $0x34] sm:$0xf]
    %v290 = vld [vmem:[%s5 + $0x38] sm:$0xf]
    %v291 = vld [vmem:[%s5 + $0x3c] sm:$0xf]
    %v292 = vld [vmem:[%s5 + $0x40] sm:$0xf]
    %v293 = vld [vmem:[%s5 + $0x44] sm:$0xf]
    %v294 = vld [vmem:[%s5 + $0x48] sm:$0xf]
    %v295 = vld [vmem:[%s5 + $0x4c] sm:$0xf]
    %v296 = vld [vmem:[%s5 + $0x50] sm:$0xf]
    %v297 = vld [vmem:[%s5 + $0x54] sm:$0xf]
    %v298 = vld [vmem:[%s5 + $0x58] sm:$0xf]
    %v299 = vld [vmem:[%s5 + $0x5c] sm:$0xf]
    %v300 = vld [vmem:[%s5 + $0x60] sm:$0xf]
    %v301 = vld [vmem:[%s5 + $0x64] sm:$0xf]
    %v302 = vld [vmem:[%s5 + $0x68] sm:$0xf]
    %v303 = vld [vmem:[%s5 + $0x6c] sm:$0xf]
    %v304 = vld [vmem:[%s5 + $0x70] sm:$0xf]
    %v305 = vld [vmem:[%s5 + $0x74] sm:$0xf]
    %v306 = vld [vmem:[%s5 + $0x78] sm:$0xf]
    %v307 = vld [vmem:[%s5 + $0x7c] sm:$0xf]
    %v308 = vld [vmem:[%s7] sm:$0xff]
    %v309 = vld [vmem:[%s7 + $0x8] sm:$0xff]
    %v310 = vld [vmem:[%s7 + $0x10] sm:$0xff]
    %v311 = vld [vmem:[%s7 + $0x18] sm:$0xff]
    %v312 = vld [vmem:[%s7 + $0x20] sm:$0xff]
    %v313 = vld [vmem:[%s7 + $0x28] sm:$0xff]
    %v314 = vld [vmem:[%s7 + $0x30] sm:$0xff]
    %v315 = vld [vmem:[%s7 + $0x38] sm:$0xff]
    %v316 = vld [vmem:[%s1] sm:$0xff]
    %v317 = vld [vmem:[%s1 + $0x8] sm:$0xff]
    %v318 = vld [vmem:[%s1 + $0x10] sm:$0xff]
    %v319 = vld [vmem:[%s1 + $0x18] sm:$0xff]
    %v320 = vld [vmem:[%s1 + $0x20] sm:$0xff]
    %v321 = vld [vmem:[%s1 + $0x28] sm:$0xff]
    %v322 = vld [vmem:[%s1 + $0x30] sm:$0xff]
    %v323 = vld [vmem:[%s1 + $0x38] sm:$0xff]
    %v324 = vpack.c.bf16 %v317, %v316
    %v325 = vpack.c.bf16 %v319, %v318
    %v326 = vpack.c.bf16 %v321, %v320
    %v327 = vpack.c.bf16 %v323, %v322
    %v328 = vld [vmem:[%s9] sm:$0x3]
    %vm329 = vcmask 31744
    %v331 = vsel %vm329, %v324, 0
    %v334 = vsel %vm329, %v325, 0
    %v337 = vsel %vm329, %v326, 0
    %v340 = vsel %vm329, %v327, 0
    %vm342 = vcmask 1041408
    %v344 = vsel %vm342, %v328, 0
    %346 = vmatprep.subr.bf16.mxu0 0
    %347 = vmatpush1.bf16.msra.mxu0 0
    %348 = vmatprep.subr.bf16.mxu0 0
    %349 = vmatpush1.bf16.msra.mxu0 0
    %350 = vmatprep.subr.bf16.mxu0 0
    %351 = vmatpush1.bf16.msra.mxu0 0
    %352 = vmatprep.subr.bf16.mxu0 0
    %353 = vmatpush1.bf16.msra.mxu0 0
    %354 = vmatprep.subr.bf16.mxu0 0
    %355 = vmatpush1.bf16.msra.mxu0 0
    %356 = vmatprep.subr.bf16.mxu0 0
    %357 = vmatpush1.bf16.msra.mxu0 0
    %358 = vmatprep.subr.bf16.mxu0 0
    %359 = vmatpush1.bf16.msra.mxu0 0
    %360 = vmatprep.subr.bf16.mxu0 0
    %361 = vmatpush1.bf16.msra.mxu0 %v344
    %362 = vmatprep.subr.bf16.mxu0 0
    %363 = vmatpush2.bf16.msra.mxu0 0
    %364 = vmatprep.subr.bf16.mxu0 0
    %365 = vmatpush2.bf16.msra.mxu0 0
    %366 = vmatprep.subr.bf16.mxu0 0
    %367 = vmatpush2.bf16.msra.mxu0 0
    %368 = vmatprep.subr.bf16.mxu0 0
    %369 = vmatpush2.bf16.msra.mxu0 0
    %370 = vmatprep.subr.bf16.mxu0 0
    %371 = vmatpush2.bf16.msra.mxu0 0
    %372 = vmatprep.subr.bf16.mxu0 0
    %373 = vmatpush2.bf16.msra.mxu0 0
    %374 = vmatprep.subr.bf16.mxu0 0
    %375 = vmatpush2.bf16.msra.mxu0 0
    %376 = vmatprep.subr.bf16.mxu0 0
    %377 = vmatpush2.bf16.msra.mxu0 0
    %378 = vmatprep.mubr.bf16.mxu0 0
    %379 = vmatmul.mubr.bf16.gmra.mxu0 %v331
    %v380 = vpop.f32.mrf.mxu0
    %v381 = vadd.f32 0.0, %v380
    %v382 = vpop.f32.mrf.mxu0
    %v383 = vpop.f32.mrf.mxu0
    %v384 = vadd.f32 0.0, %v383
    %v385 = vpop.f32.mrf.mxu0
    %386 = vmatprep.mubr.bf16.mxu0 0
    %387 = vmatmul.mubr.bf16.gmra.mxu0 %v334
    %v388 = vpop.f32.mrf.mxu0
    %v389 = vadd.f32 0.0, %v388
    %v390 = vpop.f32.mrf.mxu0
    %v391 = vpop.f32.mrf.mxu0
    %v392 = vadd.f32 0.0, %v391
    %v393 = vpop.f32.mrf.mxu0
    %394 = vmatprep.mubr.bf16.mxu0 0
    %395 = vmatmul.mubr.bf16.gmra.mxu0 %v337
    %v396 = vpop.f32.mrf.mxu0
    %v397 = vadd.f32 0.0, %v396
    %v398 = vpop.f32.mrf.mxu0
    %v399 = vpop.f32.mrf.mxu0
    %v400 = vadd.f32 0.0, %v399
    %v401 = vpop.f32.mrf.mxu0
    %402 = vmatprep.mubr.bf16.mxu0 0
    %403 = vmatmul.mubr.bf16.gmra.mxu0 %v340
    %v404 = vpop.f32.mrf.mxu0
    %v405 = vadd.f32 0.0, %v404
    %v406 = vpop.f32.mrf.mxu0
    %v407 = vpop.f32.mrf.mxu0
    %v408 = vadd.f32 0.0, %v407
    %v409 = vpop.f32.mrf.mxu0
    %410 = vdwg.mxu0
    %v411 = vpack.c.bf16 %v384, %v381
    %v412 = vpack.c.bf16 %v392, %v389
    %v413 = vpack.c.bf16 %v400, %v397
    %v414 = vpack.c.bf16 %v408, %v405
    %v415 = vld [vmem:[%s11] sm:$0x3]
    %v417 = vsel %vm342, %v415, 0
    %419 = vmatprep.subr.bf16.mxu0 0
    %420 = vmatpush1.bf16.msra.mxu0 0
    %421 = vmatprep.subr.bf16.mxu0 0
    %422 = vmatpush1.bf16.msra.mxu0 0
    %423 = vmatprep.subr.bf16.mxu0 0
    %424 = vmatpush1.bf16.msra.mxu0 0
    %425 = vmatprep.subr.bf16.mxu0 0
    %426 = vmatpush1.bf16.msra.mxu0 0
    %427 = vmatprep.subr.bf16.mxu0 0
    %428 = vmatpush1.bf16.msra.mxu0 0
    %429 = vmatprep.subr.bf16.mxu0 0
    %430 = vmatpush1.bf16.msra.mxu0 0
    %431 = vmatprep.subr.bf16.mxu0 0
    %432 = vmatpush1.bf16.msra.mxu0 0
    %433 = vmatprep.subr.bf16.mxu0 0
    %434 = vmatpush1.bf16.msra.mxu0 %v417
    %435 = vmatprep.subr.bf16.mxu0 0
    %436 = vmatpush2.bf16.msra.mxu0 0
    %437 = vmatprep.subr.bf16.mxu0 0
    %438 = vmatpush2.bf16.msra.mxu0 0
    %439 = vmatprep.subr.bf16.mxu0 0
    %440 = vmatpush2.bf16.msra.mxu0 0
    %441 = vmatprep.subr.bf16.mxu0 0
    %442 = vmatpush2.bf16.msra.mxu0 0
    %443 = vmatprep.subr.bf16.mxu0 0
    %444 = vmatpush2.bf16.msra.mxu0 0
    %445 = vmatprep.subr.bf16.mxu0 0
    %446 = vmatpush2.bf16.msra.mxu0 0
    %447 = vmatprep.subr.bf16.mxu0 0
    %448 = vmatpush2.bf16.msra.mxu0 0
    %449 = vmatprep.subr.bf16.mxu0 0
    %450 = vmatpush2.bf16.msra.mxu0 0
    %451 = vmatprep.mubr.bf16.mxu0 0
    %452 = vmatmul.mubr.bf16.gmra.mxu0 %v331
    %v453 = vpop.f32.mrf.mxu0
    %v454 = vadd.f32 0.0, %v453
    %v455 = vpop.f32.mrf.mxu0
    %v456 = vpop.f32.mrf.mxu0
    %v457 = vadd.f32 0.0, %v456
    %v458 = vpop.f32.mrf.mxu0
    %459 = vmatprep.mubr.bf16.mxu0 0
    %460 = vmatmul.mubr.bf16.gmra.mxu0 %v334
    %v461 = vpop.f32.mrf.mxu0
    %v462 = vadd.f32 0.0, %v461
    %v463 = vpop.f32.mrf.mxu0
    %v464 = vpop.f32.mrf.mxu0
    %v465 = vadd.f32 0.0, %v464
    %v466 = vpop.f32.mrf.mxu0
    %467 = vmatprep.mubr.bf16.mxu0 0
    %468 = vmatmul.mubr.bf16.gmra.mxu0 %v337
    %v469 = vpop.f32.mrf.mxu0
    %v470 = vadd.f32 0.0, %v469
    %v471 = vpop.f32.mrf.mxu0
    %v472 = vpop.f32.mrf.mxu0
    %v473 = vadd.f32 0.0, %v472
    %v474 = vpop.f32.mrf.mxu0
    %475 = vmatprep.mubr.bf16.mxu0 0
    %476 = vmatmul.mubr.bf16.gmra.mxu0 %v340
    %v477 = vpop.f32.mrf.mxu0
    %v478 = vadd.f32 0.0, %v477
    %v479 = vpop.f32.mrf.mxu0
    %v480 = vpop.f32.mrf.mxu0
    %v481 = vadd.f32 0.0, %v480
    %v482 = vpop.f32.mrf.mxu0
    %483 = vdwg.mxu0
    %v484 = vpack.c.bf16 %v457, %v454
    %v485 = vpack.c.bf16 %v465, %v462
    %v486 = vpack.c.bf16 %v473, %v470
    %v487 = vpack.c.bf16 %v481, %v478
    %v520 = vunpack.c.l.b16 %v244
    %v521 = vunpack.c.l.b16 %v245
    %v522 = vunpack.c.l.b16 %v246
    %v523 = vunpack.c.l.b16 %v247
    %v524 = vunpack.c.l.b16 %v248
    %v525 = vunpack.c.l.b16 %v249
    %v526 = vunpack.c.l.b16 %v250
    %v527 = vunpack.c.l.b16 %v251
    %v528 = vunpack.c.l.b16 %v252
    %v529 = vunpack.c.l.b16 %v253
    %v530 = vunpack.c.l.b16 %v254
    %v531 = vunpack.c.l.b16 %v255
    %v532 = vunpack.c.l.b16 %v256
    %v533 = vunpack.c.l.b16 %v257
    %v534 = vunpack.c.l.b16 %v258
    %v535 = vunpack.c.l.b16 %v259
    %v536 = vunpack.c.l.b16 %v260
    %v537 = vunpack.c.l.b16 %v261
    %v538 = vunpack.c.l.b16 %v262
    %v539 = vunpack.c.l.b16 %v263
    %v540 = vunpack.c.l.b16 %v264
    %v541 = vunpack.c.l.b16 %v265
    %v542 = vunpack.c.l.b16 %v266
    %v543 = vunpack.c.l.b16 %v267
    %v544 = vunpack.c.l.b16 %v268
    %v545 = vunpack.c.l.b16 %v269
    %v546 = vunpack.c.l.b16 %v270
    %v547 = vunpack.c.l.b16 %v271
    %v548 = vunpack.c.l.b16 %v272
    %v549 = vunpack.c.l.b16 %v273
    %v550 = vunpack.c.l.b16 %v274
    %v551 = vunpack.c.l.b16 %v275
    %v552 = vpack.c.b16 %v521, %v520
    %v553 = vpack.c.b16 %v523, %v522
    %v554 = vpack.c.b16 %v525, %v524
    %v555 = vpack.c.b16 %v527, %v526
    %v556 = vpack.c.b16 %v529, %v528
    %v557 = vpack.c.b16 %v531, %v530
    %v558 = vpack.c.b16 %v533, %v532
    %v559 = vpack.c.b16 %v535, %v534
    %v560 = vpack.c.b16 %v537, %v536
    %v561 = vpack.c.b16 %v539, %v538
    %v562 = vpack.c.b16 %v541, %v540
    %v563 = vpack.c.b16 %v543, %v542
    %v564 = vpack.c.b16 %v545, %v544
    %v565 = vpack.c.b16 %v547, %v546
    %v566 = vpack.c.b16 %v549, %v548
    %v567 = vpack.c.b16 %v551, %v550
    %vm568 = vcmask 523264
    %v570 = vsel %vm568, %v552, 0
    %v573 = vsel %vm568, %v553, 0
    %v576 = vsel %vm568, %v554, 0
    %v579 = vsel %vm568, %v555, 0
    %v582 = vsel %vm568, %v556, 0
    %v585 = vsel %vm568, %v557, 0
    %v588 = vsel %vm568, %v558, 0
    %v591 = vsel %vm568, %v559, 0
    %v594 = vsel %vm568, %v560, 0
    %v597 = vsel %vm568, %v561, 0
    %v600 = vsel %vm568, %v562, 0
    %v603 = vsel %vm568, %v563, 0
    %v606 = vsel %vm568, %v564, 0
    %v609 = vsel %vm568, %v565, 0
    %v612 = vsel %vm568, %v566, 0
    %v615 = vsel %vm568, %v567, 0
    %617 = vmatprep.subr.bf16.mxu0 0
    %618 = vmatpush1.bf16.msra.mxu0 0
    %619 = vmatprep.subr.bf16.mxu0 0
    %620 = vmatpush1.bf16.msra.mxu0 0
    %621 = vmatprep.subr.bf16.mxu0 0
    %622 = vmatpush1.bf16.msra.mxu0 0
    %623 = vmatprep.subr.bf16.mxu0 0
    %624 = vmatpush1.bf16.msra.mxu0 0
    %625 = vmatprep.subr.bf16.mxu0 0
    %626 = vmatpush1.bf16.msra.mxu0 %v487
    %627 = vmatprep.subr.bf16.mxu0 0
    %628 = vmatpush1.bf16.msra.mxu0 %v486
    %629 = vmatprep.subr.bf16.mxu0 0
    %630 = vmatpush1.bf16.msra.mxu0 %v485
    %631 = vmatprep.subr.bf16.mxu0 0
    %632 = vmatpush1.bf16.msra.mxu0 %v484
    %633 = vmatprep.subr.bf16.mxu0 0
    %634 = vmatpush2.bf16.msra.mxu0 0
    %635 = vmatprep.subr.bf16.mxu0 0
    %636 = vmatpush2.bf16.msra.mxu0 0
    %637 = vmatprep.subr.bf16.mxu0 0
    %638 = vmatpush2.bf16.msra.mxu0 0
    %639 = vmatprep.subr.bf16.mxu0 0
    %640 = vmatpush2.bf16.msra.mxu0 0
    %641 = vmatprep.subr.bf16.mxu0 0
    %642 = vmatpush2.bf16.msra.mxu0 0
    %643 = vmatprep.subr.bf16.mxu0 0
    %644 = vmatpush2.bf16.msra.mxu0 0
    %645 = vmatprep.subr.bf16.mxu0 0
    %646 = vmatpush2.bf16.msra.mxu0 0
    %647 = vmatprep.subr.bf16.mxu0 0
    %648 = vmatpush2.bf16.msra.mxu0 0
    %649 = vmatprep.mubr.bf16.mxu0 0
    %650 = vmatmul.mubr.bf16.gmra.mxu0 %v570
    %v651 = vpop.f32.mrf.mxu0
    %v652 = vadd.f32 0.0, %v651
    %v653 = vpop.f32.mrf.mxu0
    %v654 = vpop.f32.mrf.mxu0
    %v655 = vadd.f32 0.0, %v654
    %v656 = vpop.f32.mrf.mxu0
    %657 = vmatprep.mubr.bf16.mxu0 0
    %658 = vmatmul.mubr.bf16.gmra.mxu0 %v573
    %v659 = vpop.f32.mrf.mxu0
    %v660 = vadd.f32 0.0, %v659
    %v661 = vpop.f32.mrf.mxu0
    %v662 = vpop.f32.mrf.mxu0
    %v663 = vadd.f32 0.0, %v662
    %v664 = vpop.f32.mrf.mxu0
    %665 = vmatprep.mubr.bf16.mxu0 0
    %666 = vmatmul.mubr.bf16.gmra.mxu0 %v576
    %v667 = vpop.f32.mrf.mxu0
    %v668 = vadd.f32 0.0, %v667
    %v669 = vpop.f32.mrf.mxu0
    %v670 = vpop.f32.mrf.mxu0
    %v671 = vadd.f32 0.0, %v670
    %v672 = vpop.f32.mrf.mxu0
    %673 = vmatprep.mubr.bf16.mxu0 0
    %674 = vmatmul.mubr.bf16.gmra.mxu0 %v579
    %v675 = vpop.f32.mrf.mxu0
    %v676 = vadd.f32 0.0, %v675
    %v677 = vpop.f32.mrf.mxu0
    %v678 = vpop.f32.mrf.mxu0
    %v679 = vadd.f32 0.0, %v678
    %v680 = vpop.f32.mrf.mxu0
    %681 = vmatprep.mubr.bf16.mxu0 0
    %682 = vmatmul.mubr.bf16.gmra.mxu0 %v582
    %v683 = vpop.f32.mrf.mxu0
    %v684 = vadd.f32 0.0, %v683
    %v685 = vpop.f32.mrf.mxu0
    %v686 = vpop.f32.mrf.mxu0
    %v687 = vadd.f32 0.0, %v686
    %v688 = vpop.f32.mrf.mxu0
    %689 = vmatprep.mubr.bf16.mxu0 0
    %690 = vmatmul.mubr.bf16.gmra.mxu0 %v585
    %v691 = vpop.f32.mrf.mxu0
    %v692 = vadd.f32 0.0, %v691
    %v693 = vpop.f32.mrf.mxu0
    %v694 = vpop.f32.mrf.mxu0
    %v695 = vadd.f32 0.0, %v694
    %v696 = vpop.f32.mrf.mxu0
    %697 = vmatprep.mubr.bf16.mxu0 0
    %698 = vmatmul.mubr.bf16.gmra.mxu0 %v588
    %v699 = vpop.f32.mrf.mxu0
    %v700 = vadd.f32 0.0, %v699
    %v701 = vpop.f32.mrf.mxu0
    %v702 = vpop.f32.mrf.mxu0
    %v703 = vadd.f32 0.0, %v702
    %v704 = vpop.f32.mrf.mxu0
    %705 = vmatprep.mubr.bf16.mxu0 0
    %706 = vmatmul.mubr.bf16.gmra.mxu0 %v591
    %v707 = vpop.f32.mrf.mxu0
    %v708 = vadd.f32 0.0, %v707
    %v709 = vpop.f32.mrf.mxu0
    %v710 = vpop.f32.mrf.mxu0
    %v711 = vadd.f32 0.0, %v710
    %v712 = vpop.f32.mrf.mxu0
    %713 = vmatprep.mubr.bf16.mxu0 0
    %714 = vmatmul.mubr.bf16.gmra.mxu0 %v594
    %v715 = vpop.f32.mrf.mxu0
    %v716 = vadd.f32 0.0, %v715
    %v717 = vpop.f32.mrf.mxu0
    %v718 = vpop.f32.mrf.mxu0
    %v719 = vadd.f32 0.0, %v718
    %v720 = vpop.f32.mrf.mxu0
    %721 = vmatprep.mubr.bf16.mxu0 0
    %722 = vmatmul.mubr.bf16.gmra.mxu0 %v597
    %v723 = vpop.f32.mrf.mxu0
    %v724 = vadd.f32 0.0, %v723
    %v725 = vpop.f32.mrf.mxu0
    %v726 = vpop.f32.mrf.mxu0
    %v727 = vadd.f32 0.0, %v726
    %v728 = vpop.f32.mrf.mxu0
    %729 = vmatprep.mubr.bf16.mxu0 0
    %730 = vmatmul.mubr.bf16.gmra.mxu0 %v600
    %v731 = vpop.f32.mrf.mxu0
    %v732 = vadd.f32 0.0, %v731
    %v733 = vpop.f32.mrf.mxu0
    %v734 = vpop.f32.mrf.mxu0
    %v735 = vadd.f32 0.0, %v734
    %v736 = vpop.f32.mrf.mxu0
    %737 = vmatprep.mubr.bf16.mxu0 0
    %738 = vmatmul.mubr.bf16.gmra.mxu0 %v603
    %v739 = vpop.f32.mrf.mxu0
    %v740 = vadd.f32 0.0, %v739
    %v741 = vpop.f32.mrf.mxu0
    %v742 = vpop.f32.mrf.mxu0
    %v743 = vadd.f32 0.0, %v742
    %v744 = vpop.f32.mrf.mxu0
    %745 = vmatprep.mubr.bf16.mxu0 0
    %746 = vmatmul.mubr.bf16.gmra.mxu0 %v606
    %v747 = vpop.f32.mrf.mxu0
    %v748 = vadd.f32 0.0, %v747
    %v749 = vpop.f32.mrf.mxu0
    %v750 = vpop.f32.mrf.mxu0
    %v751 = vadd.f32 0.0, %v750
    %v752 = vpop.f32.mrf.mxu0
    %753 = vmatprep.mubr.bf16.mxu0 0
    %754 = vmatmul.mubr.bf16.gmra.mxu0 %v609
    %v755 = vpop.f32.mrf.mxu0
    %v756 = vadd.f32 0.0, %v755
    %v757 = vpop.f32.mrf.mxu0
    %v758 = vpop.f32.mrf.mxu0
    %v759 = vadd.f32 0.0, %v758
    %v760 = vpop.f32.mrf.mxu0
    %761 = vmatprep.mubr.bf16.mxu0 0
    %762 = vmatmul.mubr.bf16.gmra.mxu0 %v612
    %v763 = vpop.f32.mrf.mxu0
    %v764 = vadd.f32 0.0, %v763
    %v765 = vpop.f32.mrf.mxu0
    %v766 = vpop.f32.mrf.mxu0
    %v767 = vadd.f32 0.0, %v766
    %v768 = vpop.f32.mrf.mxu0
    %769 = vmatprep.mubr.bf16.mxu0 0
    %770 = vmatmul.mubr.bf16.gmra.mxu0 %v615
    %v771 = vpop.f32.mrf.mxu0
    %v772 = vadd.f32 0.0, %v771
    %v773 = vpop.f32.mrf.mxu0
    %v774 = vpop.f32.mrf.mxu0
    %v775 = vadd.f32 0.0, %v774
    %v776 = vpop.f32.mrf.mxu0
    %777 = vdwg.mxu0
    %v810 = vunpack.c.l.b16 %v276
    %v811 = vunpack.c.l.b16 %v277
    %v812 = vunpack.c.l.b16 %v278
    %v813 = vunpack.c.l.b16 %v279
    %v814 = vunpack.c.l.b16 %v280
    %v815 = vunpack.c.l.b16 %v281
    %v816 = vunpack.c.l.b16 %v282
    %v817 = vunpack.c.l.b16 %v283
    %v818 = vunpack.c.l.b16 %v284
    %v819 = vunpack.c.l.b16 %v285
    %v820 = vunpack.c.l.b16 %v286
    %v821 = vunpack.c.l.b16 %v287
    %v822 = vunpack.c.l.b16 %v288
    %v823 = vunpack.c.l.b16 %v289
    %v824 = vunpack.c.l.b16 %v290
    %v825 = vunpack.c.l.b16 %v291
    %v826 = vunpack.c.l.b16 %v292
    %v827 = vunpack.c.l.b16 %v293
    %v828 = vunpack.c.l.b16 %v294
    %v829 = vunpack.c.l.b16 %v295
    %v830 = vunpack.c.l.b16 %v296
    %v831 = vunpack.c.l.b16 %v297
    %v832 = vunpack.c.l.b16 %v298
    %v833 = vunpack.c.l.b16 %v299
    %v834 = vunpack.c.l.b16 %v300
    %v835 = vunpack.c.l.b16 %v301
    %v836 = vunpack.c.l.b16 %v302
    %v837 = vunpack.c.l.b16 %v303
    %v838 = vunpack.c.l.b16 %v304
    %v839 = vunpack.c.l.b16 %v305
    %v840 = vunpack.c.l.b16 %v306
    %v841 = vunpack.c.l.b16 %v307
    %v842 = vpack.c.b16 %v811, %v810
    %v843 = vpack.c.b16 %v813, %v812
    %v844 = vpack.c.b16 %v815, %v814
    %v845 = vpack.c.b16 %v817, %v816
    %v846 = vpack.c.b16 %v819, %v818
    %v847 = vpack.c.b16 %v821, %v820
    %v848 = vpack.c.b16 %v823, %v822
    %v849 = vpack.c.b16 %v825, %v824
    %v850 = vpack.c.b16 %v827, %v826
    %v851 = vpack.c.b16 %v829, %v828
    %v852 = vpack.c.b16 %v831, %v830
    %v853 = vpack.c.b16 %v833, %v832
    %v854 = vpack.c.b16 %v835, %v834
    %v855 = vpack.c.b16 %v837, %v836
    %v856 = vpack.c.b16 %v839, %v838
    %v857 = vpack.c.b16 %v841, %v840
    %v859 = vsel %vm568, %v842, 0
    %v862 = vsel %vm568, %v843, 0
    %v865 = vsel %vm568, %v844, 0
    %v868 = vsel %vm568, %v845, 0
    %v871 = vsel %vm568, %v846, 0
    %v874 = vsel %vm568, %v847, 0
    %v877 = vsel %vm568, %v848, 0
    %v880 = vsel %vm568, %v849, 0
    %v883 = vsel %vm568, %v850, 0
    %v886 = vsel %vm568, %v851, 0
    %v889 = vsel %vm568, %v852, 0
    %v892 = vsel %vm568, %v853, 0
    %v895 = vsel %vm568, %v854, 0
    %v898 = vsel %vm568, %v855, 0
    %v901 = vsel %vm568, %v856, 0
    %v904 = vsel %vm568, %v857, 0
    %906 = vmatprep.subr.bf16.mxu0 0
    %907 = vmatpush1.bf16.msra.mxu0 0
    %908 = vmatprep.subr.bf16.mxu0 0
    %909 = vmatpush1.bf16.msra.mxu0 0
    %910 = vmatprep.subr.bf16.mxu0 0
    %911 = vmatpush1.bf16.msra.mxu0 0
    %912 = vmatprep.subr.bf16.mxu0 0
    %913 = vmatpush1.bf16.msra.mxu0 0
    %914 = vmatprep.subr.bf16.mxu0 0
    %915 = vmatpush1.bf16.msra.mxu0 %v414
    %916 = vmatprep.subr.bf16.mxu0 0
    %917 = vmatpush1.bf16.msra.mxu0 %v413
    %918 = vmatprep.subr.bf16.mxu0 0
    %919 = vmatpush1.bf16.msra.mxu0 %v412
    %920 = vmatprep.subr.bf16.mxu0 0
    %921 = vmatpush1.bf16.msra.mxu0 %v411
    %922 = vmatprep.subr.bf16.mxu0 0
    %923 = vmatpush2.bf16.msra.mxu0 0
    %924 = vmatprep.subr.bf16.mxu0 0
    %925 = vmatpush2.bf16.msra.mxu0 0
    %926 = vmatprep.subr.bf16.mxu0 0
    %927 = vmatpush2.bf16.msra.mxu0 0
    %928 = vmatprep.subr.bf16.mxu0 0
    %929 = vmatpush2.bf16.msra.mxu0 0
    %930 = vmatprep.subr.bf16.mxu0 0
    %931 = vmatpush2.bf16.msra.mxu0 0
    %932 = vmatprep.subr.bf16.mxu0 0
    %933 = vmatpush2.bf16.msra.mxu0 0
    %934 = vmatprep.subr.bf16.mxu0 0
    %935 = vmatpush2.bf16.msra.mxu0 0
    %936 = vmatprep.subr.bf16.mxu0 0
    %937 = vmatpush2.bf16.msra.mxu0 0
    %938 = vmatprep.mubr.bf16.mxu0 0
    %939 = vmatmul.mubr.bf16.gmra.mxu0 %v859
    %v940 = vpop.f32.mrf.mxu0
    %v941 = vadd.f32 %v652, %v940
    %v942 = vpop.f32.mrf.mxu0
    %v943 = vpop.f32.mrf.mxu0
    %v944 = vadd.f32 %v655, %v943
    %v945 = vpop.f32.mrf.mxu0
    %946 = vmatprep.mubr.bf16.mxu0 0
    %947 = vmatmul.mubr.bf16.gmra.mxu0 %v862
    %v948 = vpop.f32.mrf.mxu0
    %v949 = vadd.f32 %v660, %v948
    %v950 = vpop.f32.mrf.mxu0
    %v951 = vpop.f32.mrf.mxu0
    %v952 = vadd.f32 %v663, %v951
    %v953 = vpop.f32.mrf.mxu0
    %954 = vmatprep.mubr.bf16.mxu0 0
    %955 = vmatmul.mubr.bf16.gmra.mxu0 %v865
    %v956 = vpop.f32.mrf.mxu0
    %v957 = vadd.f32 %v668, %v956
    %v958 = vpop.f32.mrf.mxu0
    %v959 = vpop.f32.mrf.mxu0
    %v960 = vadd.f32 %v671, %v959
    %v961 = vpop.f32.mrf.mxu0
    %962 = vmatprep.mubr.bf16.mxu0 0
    %963 = vmatmul.mubr.bf16.gmra.mxu0 %v868
    %v964 = vpop.f32.mrf.mxu0
    %v965 = vadd.f32 %v676, %v964
    %v966 = vpop.f32.mrf.mxu0
    %v967 = vpop.f32.mrf.mxu0
    %v968 = vadd.f32 %v679, %v967
    %v969 = vpop.f32.mrf.mxu0
    %970 = vmatprep.mubr.bf16.mxu0 0
    %971 = vmatmul.mubr.bf16.gmra.mxu0 %v871
    %v972 = vpop.f32.mrf.mxu0
    %v973 = vadd.f32 %v684, %v972
    %v974 = vpop.f32.mrf.mxu0
    %v975 = vpop.f32.mrf.mxu0
    %v976 = vadd.f32 %v687, %v975
    %v977 = vpop.f32.mrf.mxu0
    %978 = vmatprep.mubr.bf16.mxu0 0
    %979 = vmatmul.mubr.bf16.gmra.mxu0 %v874
    %v980 = vpop.f32.mrf.mxu0
    %v981 = vadd.f32 %v692, %v980
    %v982 = vpop.f32.mrf.mxu0
    %v983 = vpop.f32.mrf.mxu0
    %v984 = vadd.f32 %v695, %v983
    %v985 = vpop.f32.mrf.mxu0
    %986 = vmatprep.mubr.bf16.mxu0 0
    %987 = vmatmul.mubr.bf16.gmra.mxu0 %v877
    %v988 = vpop.f32.mrf.mxu0
    %v989 = vadd.f32 %v700, %v988
    %v990 = vpop.f32.mrf.mxu0
    %v991 = vpop.f32.mrf.mxu0
    %v992 = vadd.f32 %v703, %v991
    %v993 = vpop.f32.mrf.mxu0
    %994 = vmatprep.mubr.bf16.mxu0 0
    %995 = vmatmul.mubr.bf16.gmra.mxu0 %v880
    %v996 = vpop.f32.mrf.mxu0
    %v997 = vadd.f32 %v708, %v996
    %v998 = vpop.f32.mrf.mxu0
    %v999 = vpop.f32.mrf.mxu0
    %v1000 = vadd.f32 %v711, %v999
    %v1001 = vpop.f32.mrf.mxu0
    %1002 = vmatprep.mubr.bf16.mxu0 0
    %1003 = vmatmul.mubr.bf16.gmra.mxu0 %v883
    %v1004 = vpop.f32.mrf.mxu0
    %v1005 = vadd.f32 %v716, %v1004
    %v1006 = vpop.f32.mrf.mxu0
    %v1007 = vpop.f32.mrf.mxu0
    %v1008 = vadd.f32 %v719, %v1007
    %v1009 = vpop.f32.mrf.mxu0
    %1010 = vmatprep.mubr.bf16.mxu0 0
    %1011 = vmatmul.mubr.bf16.gmra.mxu0 %v886
    %v1012 = vpop.f32.mrf.mxu0
    %v1013 = vadd.f32 %v724, %v1012
    %v1014 = vpop.f32.mrf.mxu0
    %v1015 = vpop.f32.mrf.mxu0
    %v1016 = vadd.f32 %v727, %v1015
    %v1017 = vpop.f32.mrf.mxu0
    %1018 = vmatprep.mubr.bf16.mxu0 0
    %1019 = vmatmul.mubr.bf16.gmra.mxu0 %v889
    %v1020 = vpop.f32.mrf.mxu0
    %v1021 = vadd.f32 %v732, %v1020
    %v1022 = vpop.f32.mrf.mxu0
    %v1023 = vpop.f32.mrf.mxu0
    %v1024 = vadd.f32 %v735, %v1023
    %v1025 = vpop.f32.mrf.mxu0
    %1026 = vmatprep.mubr.bf16.mxu0 0
    %1027 = vmatmul.mubr.bf16.gmra.mxu0 %v892
    %v1028 = vpop.f32.mrf.mxu0
    %v1029 = vadd.f32 %v740, %v1028
    %v1030 = vpop.f32.mrf.mxu0
    %v1031 = vpop.f32.mrf.mxu0
    %v1032 = vadd.f32 %v743, %v1031
    %v1033 = vpop.f32.mrf.mxu0
    %1034 = vmatprep.mubr.bf16.mxu0 0
    %1035 = vmatmul.mubr.bf16.gmra.mxu0 %v895
    %v1036 = vpop.f32.mrf.mxu0
    %v1037 = vadd.f32 %v748, %v1036
    %v1038 = vpop.f32.mrf.mxu0
    %v1039 = vpop.f32.mrf.mxu0
    %v1040 = vadd.f32 %v751, %v1039
    %v1041 = vpop.f32.mrf.mxu0
    %1042 = vmatprep.mubr.bf16.mxu0 0
    %1043 = vmatmul.mubr.bf16.gmra.mxu0 %v898
    %v1044 = vpop.f32.mrf.mxu0
    %v1045 = vadd.f32 %v756, %v1044
    %v1046 = vpop.f32.mrf.mxu0
    %v1047 = vpop.f32.mrf.mxu0
    %v1048 = vadd.f32 %v759, %v1047
    %v1049 = vpop.f32.mrf.mxu0
    %1050 = vmatprep.mubr.bf16.mxu0 0
    %1051 = vmatmul.mubr.bf16.gmra.mxu0 %v901
    %v1052 = vpop.f32.mrf.mxu0
    %v1053 = vadd.f32 %v764, %v1052
    %v1054 = vpop.f32.mrf.mxu0
    %v1055 = vpop.f32.mrf.mxu0
    %v1056 = vadd.f32 %v767, %v1055
    %v1057 = vpop.f32.mrf.mxu0
    %1058 = vmatprep.mubr.bf16.mxu0 0
    %1059 = vmatmul.mubr.bf16.gmra.mxu0 %v904
    %v1060 = vpop.f32.mrf.mxu0
    %v1061 = vadd.f32 %v772, %v1060
    %v1062 = vpop.f32.mrf.mxu0
    %v1063 = vpop.f32.mrf.mxu0
    %v1064 = vadd.f32 %v775, %v1063
    %v1065 = vpop.f32.mrf.mxu0
    %1066 = vdwg.mxu0
    %v1067 = vld [vmem:[%s13] sm:$0x1]
    %v1069 = vlaneseq
    %v1070 = vshrl.u32 %v1069, 7
    %v1071 = vsub.s32 0, %v1070
    %v1072 = vrot.slane %v1067, %v1071
    %v1074 = vadd.f32 %v941, %v1072
    %v1075 = vadd.f32 %v944, %v1072
    %v1076 = vadd.f32 %v949, %v1072
    %v1077 = vadd.f32 %v952, %v1072
    %v1078 = vadd.f32 %v957, %v1072
    %v1079 = vadd.f32 %v960, %v1072
    %v1080 = vadd.f32 %v965, %v1072
    %v1081 = vadd.f32 %v968, %v1072
    %v1082 = vadd.f32 %v973, %v1072
    %v1083 = vadd.f32 %v976, %v1072
    %v1084 = vadd.f32 %v981, %v1072
    %v1085 = vadd.f32 %v984, %v1072
    %v1086 = vadd.f32 %v989, %v1072
    %v1087 = vadd.f32 %v992, %v1072
    %v1088 = vadd.f32 %v997, %v1072
    %v1089 = vadd.f32 %v1000, %v1072
    %v1090 = vadd.f32 %v1005, %v1072
    %v1091 = vadd.f32 %v1008, %v1072
    %v1092 = vadd.f32 %v1013, %v1072
    %v1093 = vadd.f32 %v1016, %v1072
    %v1094 = vadd.f32 %v1021, %v1072
    %v1095 = vadd.f32 %v1024, %v1072
    %v1096 = vadd.f32 %v1029, %v1072
    %v1097 = vadd.f32 %v1032, %v1072
    %v1098 = vadd.f32 %v1037, %v1072
    %v1099 = vadd.f32 %v1040, %v1072
    %v1100 = vadd.f32 %v1045, %v1072
    %v1101 = vadd.f32 %v1048, %v1072
    %v1102 = vadd.f32 %v1053, %v1072
    %v1103 = vadd.f32 %v1056, %v1072
    %v1104 = vadd.f32 %v1061, %v1072
    %v1105 = vadd.f32 %v1064, %v1072
    %v1106 = vmax.f32 %v1074, 0.0
    %v1107 = vmax.f32 %v1075, 0.0
    %v1108 = vmax.f32 %v1076, 0.0
    %v1109 = vmax.f32 %v1077, 0.0
    %v1110 = vmax.f32 %v1078, 0.0
    %v1111 = vmax.f32 %v1079, 0.0
    %v1112 = vmax.f32 %v1080, 0.0
    %v1113 = vmax.f32 %v1081, 0.0
    %v1114 = vmax.f32 %v1082, 0.0
    %v1115 = vmax.f32 %v1083, 0.0
    %v1116 = vmax.f32 %v1084, 0.0
    %v1117 = vmax.f32 %v1085, 0.0
    %v1118 = vmax.f32 %v1086, 0.0
    %v1119 = vmax.f32 %v1087, 0.0
    %v1120 = vmax.f32 %v1088, 0.0
    %v1121 = vmax.f32 %v1089, 0.0
    %v1122 = vmax.f32 %v1090, 0.0
    %v1123 = vmax.f32 %v1091, 0.0
    %v1124 = vmax.f32 %v1092, 0.0
    %v1125 = vmax.f32 %v1093, 0.0
    %v1126 = vmax.f32 %v1094, 0.0
    %v1127 = vmax.f32 %v1095, 0.0
    %v1128 = vmax.f32 %v1096, 0.0
    %v1129 = vmax.f32 %v1097, 0.0
    %v1130 = vmax.f32 %v1098, 0.0
    %v1131 = vmax.f32 %v1099, 0.0
    %v1132 = vmax.f32 %v1100, 0.0
    %v1133 = vmax.f32 %v1101, 0.0
    %v1134 = vmax.f32 %v1102, 0.0
    %v1135 = vmax.f32 %v1103, 0.0
    %v1136 = vmax.f32 %v1104, 0.0
    %v1137 = vmax.f32 %v1105, 0.0
    %v1138 = vpack.c.bf16 %v1107, %v1106
    %v1139 = vpack.c.bf16 %v1109, %v1108
    %v1140 = vpack.c.bf16 %v1111, %v1110
    %v1141 = vpack.c.bf16 %v1113, %v1112
    %v1142 = vpack.c.bf16 %v1115, %v1114
    %v1143 = vpack.c.bf16 %v1117, %v1116
    %v1144 = vpack.c.bf16 %v1119, %v1118
    %v1145 = vpack.c.bf16 %v1121, %v1120
    %v1146 = vpack.c.bf16 %v1123, %v1122
    %v1147 = vpack.c.bf16 %v1125, %v1124
    %v1148 = vpack.c.bf16 %v1127, %v1126
    %v1149 = vpack.c.bf16 %v1129, %v1128
    %v1150 = vpack.c.bf16 %v1131, %v1130
    %v1151 = vpack.c.bf16 %v1133, %v1132
    %v1152 = vpack.c.bf16 %v1135, %v1134
    %v1153 = vpack.c.bf16 %v1137, %v1136
    %v1154 = vld [vmem:[%s15] sm:$0xf]
    %v1155 = vld [vmem:[%s15 + $0x4] sm:$0xf]
    %v1156 = vld [vmem:[%s15 + $0x8] sm:$0xf]
    %v1157 = vld [vmem:[%s15 + $0xc] sm:$0xf]
    %v1158 = vld [vmem:[%s15 + $0x10] sm:$0xf]
    %v1159 = vld [vmem:[%s15 + $0x14] sm:$0xf]
    %v1160 = vld [vmem:[%s15 + $0x18] sm:$0xf]
    %v1161 = vld [vmem:[%s15 + $0x1c] sm:$0xf]
    %v1162 = vld [vmem:[%s17] sm:$0x1]
    %v1164 = vlaneseq
    %v1165 = vshrl.u32 %v1164, 7
    %v1166 = vsub.s32 0, %v1165
    %v1167 = vrot.slane %v1162, %v1166
    %v1177 = vunpack.c.l.b16 %v1154
    %v1178 = vunpack.c.l.b16 %v1155
    %v1179 = vunpack.c.l.b16 %v1156
    %v1180 = vunpack.c.l.b16 %v1157
    %v1181 = vunpack.c.l.b16 %v1158
    %v1182 = vunpack.c.l.b16 %v1159
    %v1183 = vunpack.c.l.b16 %v1160
    %v1184 = vunpack.c.l.b16 %v1161
    %v1185 = vpack.c.b16 %v1178, %v1177
    %v1186 = vpack.c.b16 %v1180, %v1179
    %v1187 = vpack.c.b16 %v1182, %v1181
    %v1188 = vpack.c.b16 %v1184, %v1183
    %v1194 = vsel %vm568, %v1138, 0
    %v1197 = vsel %vm568, %v1139, 0
    %v1200 = vsel %vm568, %v1140, 0
    %v1203 = vsel %vm568, %v1141, 0
    %v1206 = vsel %vm568, %v1142, 0
    %v1209 = vsel %vm568, %v1143, 0
    %v1212 = vsel %vm568, %v1144, 0
    %v1215 = vsel %vm568, %v1145, 0
    %v1218 = vsel %vm568, %v1146, 0
    %v1221 = vsel %vm568, %v1147, 0
    %v1224 = vsel %vm568, %v1148, 0
    %v1227 = vsel %vm568, %v1149, 0
    %v1230 = vsel %vm568, %v1150, 0
    %v1233 = vsel %vm568, %v1151, 0
    %v1236 = vsel %vm568, %v1152, 0
    %v1239 = vsel %vm568, %v1153, 0
    %1241 = vmatprep.subr.bf16.mxu0 0
    %1242 = vmatpush1.bf16.msra.mxu0 0
    %1243 = vmatprep.subr.bf16.mxu0 0
    %1244 = vmatpush1.bf16.msra.mxu0 0
    %1245 = vmatprep.subr.bf16.mxu0 0
    %1246 = vmatpush1.bf16.msra.mxu0 0
    %1247 = vmatprep.subr.bf16.mxu0 0
    %1248 = vmatpush1.bf16.msra.mxu0 0
    %1249 = vmatprep.subr.bf16.mxu0 0
    %1250 = vmatpush1.bf16.msra.mxu0 %v1188
    %1251 = vmatprep.subr.bf16.mxu0 0
    %1252 = vmatpush1.bf16.msra.mxu0 %v1187
    %1253 = vmatprep.subr.bf16.mxu0 0
    %1254 = vmatpush1.bf16.msra.mxu0 %v1186
    %1255 = vmatprep.subr.bf16.mxu0 0
    %1256 = vmatpush1.bf16.msra.mxu0 %v1185
    %1257 = vmatprep.subr.bf16.mxu0 0
    %1258 = vmatpush2.bf16.msra.mxu0 0
    %1259 = vmatprep.subr.bf16.mxu0 0
    %1260 = vmatpush2.bf16.msra.mxu0 0
    %1261 = vmatprep.subr.bf16.mxu0 0
    %1262 = vmatpush2.bf16.msra.mxu0 0
    %1263 = vmatprep.subr.bf16.mxu0 0
    %1264 = vmatpush2.bf16.msra.mxu0 0
    %1265 = vmatprep.subr.bf16.mxu0 0
    %1266 = vmatpush2.bf16.msra.mxu0 0
    %1267 = vmatprep.subr.bf16.mxu0 0
    %1268 = vmatpush2.bf16.msra.mxu0 0
    %1269 = vmatprep.subr.bf16.mxu0 0
    %1270 = vmatpush2.bf16.msra.mxu0 0
    %1271 = vmatprep.subr.bf16.mxu0 0
    %1272 = vmatpush2.bf16.msra.mxu0 0
    %1273 = vmatprep.mubr.bf16.mxu0 0
    %1274 = vmatmul.mubr.bf16.gmra.mxu0 %v1194
    %v1275 = vpop.f32.mrf.mxu0
    %v1276 = vadd.f32 %v1167, %v1275
    %v1277 = vpop.f32.mrf.mxu0
    %v1278 = vpop.f32.mrf.mxu0
    %v1279 = vadd.f32 %v1167, %v1278
    %v1280 = vpop.f32.mrf.mxu0
    %1281 = vmatprep.mubr.bf16.mxu0 0
    %1282 = vmatmul.mubr.bf16.gmra.mxu0 %v1197
    %v1283 = vpop.f32.mrf.mxu0
    %v1284 = vadd.f32 %v1167, %v1283
    %v1285 = vpop.f32.mrf.mxu0
    %v1286 = vpop.f32.mrf.mxu0
    %v1287 = vadd.f32 %v1167, %v1286
    %v1288 = vpop.f32.mrf.mxu0
    %1289 = vmatprep.mubr.bf16.mxu0 0
    %1290 = vmatmul.mubr.bf16.gmra.mxu0 %v1200
    %v1291 = vpop.f32.mrf.mxu0
    %v1292 = vadd.f32 %v1167, %v1291
    %v1293 = vpop.f32.mrf.mxu0
    %v1294 = vpop.f32.mrf.mxu0
    %v1295 = vadd.f32 %v1167, %v1294
    %v1296 = vpop.f32.mrf.mxu0
    %1297 = vmatprep.mubr.bf16.mxu0 0
    %1298 = vmatmul.mubr.bf16.gmra.mxu0 %v1203
    %v1299 = vpop.f32.mrf.mxu0
    %v1300 = vadd.f32 %v1167, %v1299
    %v1301 = vpop.f32.mrf.mxu0
    %v1302 = vpop.f32.mrf.mxu0
    %v1303 = vadd.f32 %v1167, %v1302
    %v1304 = vpop.f32.mrf.mxu0
    %1305 = vmatprep.mubr.bf16.mxu0 0
    %1306 = vmatmul.mubr.bf16.gmra.mxu0 %v1206
    %v1307 = vpop.f32.mrf.mxu0
    %v1308 = vadd.f32 %v1167, %v1307
    %v1309 = vpop.f32.mrf.mxu0
    %v1310 = vpop.f32.mrf.mxu0
    %v1311 = vadd.f32 %v1167, %v1310
    %v1312 = vpop.f32.mrf.mxu0
    %1313 = vmatprep.mubr.bf16.mxu0 0
    %1314 = vmatmul.mubr.bf16.gmra.mxu0 %v1209
    %v1315 = vpop.f32.mrf.mxu0
    %v1316 = vadd.f32 %v1167, %v1315
    %v1317 = vpop.f32.mrf.mxu0
    %v1318 = vpop.f32.mrf.mxu0
    %v1319 = vadd.f32 %v1167, %v1318
    %v1320 = vpop.f32.mrf.mxu0
    %1321 = vmatprep.mubr.bf16.mxu0 0
    %1322 = vmatmul.mubr.bf16.gmra.mxu0 %v1212
    %v1323 = vpop.f32.mrf.mxu0
    %v1324 = vadd.f32 %v1167, %v1323
    %v1325 = vpop.f32.mrf.mxu0
    %v1326 = vpop.f32.mrf.mxu0
    %v1327 = vadd.f32 %v1167, %v1326
    %v1328 = vpop.f32.mrf.mxu0
    %1329 = vmatprep.mubr.bf16.mxu0 0
    %1330 = vmatmul.mubr.bf16.gmra.mxu0 %v1215
    %v1331 = vpop.f32.mrf.mxu0
    %v1332 = vadd.f32 %v1167, %v1331
    %v1333 = vpop.f32.mrf.mxu0
    %v1334 = vpop.f32.mrf.mxu0
    %v1335 = vadd.f32 %v1167, %v1334
    %v1336 = vpop.f32.mrf.mxu0
    %1337 = vmatprep.mubr.bf16.mxu0 0
    %1338 = vmatmul.mubr.bf16.gmra.mxu0 %v1218
    %v1339 = vpop.f32.mrf.mxu0
    %v1340 = vadd.f32 %v1167, %v1339
    %v1341 = vpop.f32.mrf.mxu0
    %v1342 = vpop.f32.mrf.mxu0
    %v1343 = vadd.f32 %v1167, %v1342
    %v1344 = vpop.f32.mrf.mxu0
    %1345 = vmatprep.mubr.bf16.mxu0 0
    %1346 = vmatmul.mubr.bf16.gmra.mxu0 %v1221
    %v1347 = vpop.f32.mrf.mxu0
    %v1348 = vadd.f32 %v1167, %v1347
    %v1349 = vpop.f32.mrf.mxu0
    %v1350 = vpop.f32.mrf.mxu0
    %v1351 = vadd.f32 %v1167, %v1350
    %v1352 = vpop.f32.mrf.mxu0
    %1353 = vmatprep.mubr.bf16.mxu0 0
    %1354 = vmatmul.mubr.bf16.gmra.mxu0 %v1224
    %v1355 = vpop.f32.mrf.mxu0
    %v1356 = vadd.f32 %v1167, %v1355
    %v1357 = vpop.f32.mrf.mxu0
    %v1358 = vpop.f32.mrf.mxu0
    %v1359 = vadd.f32 %v1167, %v1358
    %v1360 = vpop.f32.mrf.mxu0
    %1361 = vmatprep.mubr.bf16.mxu0 0
    %1362 = vmatmul.mubr.bf16.gmra.mxu0 %v1227
    %v1363 = vpop.f32.mrf.mxu0
    %v1364 = vadd.f32 %v1167, %v1363
    %v1365 = vpop.f32.mrf.mxu0
    %v1366 = vpop.f32.mrf.mxu0
    %v1367 = vadd.f32 %v1167, %v1366
    %v1368 = vpop.f32.mrf.mxu0
    %1369 = vmatprep.mubr.bf16.mxu0 0
    %1370 = vmatmul.mubr.bf16.gmra.mxu0 %v1230
    %v1371 = vpop.f32.mrf.mxu0
    %v1372 = vadd.f32 %v1167, %v1371
    %v1373 = vpop.f32.mrf.mxu0
    %v1374 = vpop.f32.mrf.mxu0
    %v1375 = vadd.f32 %v1167, %v1374
    %v1376 = vpop.f32.mrf.mxu0
    %1377 = vmatprep.mubr.bf16.mxu0 0
    %1378 = vmatmul.mubr.bf16.gmra.mxu0 %v1233
    %v1379 = vpop.f32.mrf.mxu0
    %v1380 = vadd.f32 %v1167, %v1379
    %v1381 = vpop.f32.mrf.mxu0
    %v1382 = vpop.f32.mrf.mxu0
    %v1383 = vadd.f32 %v1167, %v1382
    %v1384 = vpop.f32.mrf.mxu0
    %1385 = vmatprep.mubr.bf16.mxu0 0
    %1386 = vmatmul.mubr.bf16.gmra.mxu0 %v1236
    %v1387 = vpop.f32.mrf.mxu0
    %v1388 = vadd.f32 %v1167, %v1387
    %v1389 = vpop.f32.mrf.mxu0
    %v1390 = vpop.f32.mrf.mxu0
    %v1391 = vadd.f32 %v1167, %v1390
    %v1392 = vpop.f32.mrf.mxu0
    %1393 = vmatprep.mubr.bf16.mxu0 0
    %1394 = vmatmul.mubr.bf16.gmra.mxu0 %v1239
    %v1395 = vpop.f32.mrf.mxu0
    %v1396 = vadd.f32 %v1167, %v1395
    %v1397 = vpop.f32.mrf.mxu0
    %v1398 = vpop.f32.mrf.mxu0
    %v1399 = vadd.f32 %v1167, %v1398
    %v1400 = vpop.f32.mrf.mxu0
    %1401 = vdwg.mxu0
    %v1402 = vmax.f32 %v1276, 0.0
    %v1403 = vmax.f32 %v1279, 0.0
    %v1404 = vmax.f32 %v1284, 0.0
    %v1405 = vmax.f32 %v1287, 0.0
    %v1406 = vmax.f32 %v1292, 0.0
    %v1407 = vmax.f32 %v1295, 0.0
    %v1408 = vmax.f32 %v1300, 0.0
    %v1409 = vmax.f32 %v1303, 0.0
    %v1410 = vmax.f32 %v1308, 0.0
    %v1411 = vmax.f32 %v1311, 0.0
    %v1412 = vmax.f32 %v1316, 0.0
    %v1413 = vmax.f32 %v1319, 0.0
    %v1414 = vmax.f32 %v1324, 0.0
    %v1415 = vmax.f32 %v1327, 0.0
    %v1416 = vmax.f32 %v1332, 0.0
    %v1417 = vmax.f32 %v1335, 0.0
    %v1418 = vmax.f32 %v1340, 0.0
    %v1419 = vmax.f32 %v1343, 0.0
    %v1420 = vmax.f32 %v1348, 0.0
    %v1421 = vmax.f32 %v1351, 0.0
    %v1422 = vmax.f32 %v1356, 0.0
    %v1423 = vmax.f32 %v1359, 0.0
    %v1424 = vmax.f32 %v1364, 0.0
    %v1425 = vmax.f32 %v1367, 0.0
    %v1426 = vmax.f32 %v1372, 0.0
    %v1427 = vmax.f32 %v1375, 0.0
    %v1428 = vmax.f32 %v1380, 0.0
    %v1429 = vmax.f32 %v1383, 0.0
    %v1430 = vmax.f32 %v1388, 0.0
    %v1431 = vmax.f32 %v1391, 0.0
    %v1432 = vmax.f32 %v1396, 0.0
    %v1433 = vmax.f32 %v1399, 0.0
    %v1434 = vld [vmem:[%s19] sm:$0x1]
    %v1436 = vlaneseq
    %v1437 = vshrl.u32 %v1436, 7
    %v1438 = vsub.s32 0, %v1437
    %v1439 = vrot.slane %v1434, %v1438
    %v1441 = vmul.f32 %v1402, %v1439
    %v1442 = vmul.f32 %v1403, %v1439
    %v1443 = vmul.f32 %v1404, %v1439
    %v1444 = vmul.f32 %v1405, %v1439
    %v1445 = vmul.f32 %v1406, %v1439
    %v1446 = vmul.f32 %v1407, %v1439
    %v1447 = vmul.f32 %v1408, %v1439
    %v1448 = vmul.f32 %v1409, %v1439
    %v1449 = vmul.f32 %v1410, %v1439
    %v1450 = vmul.f32 %v1411, %v1439
    %v1451 = vmul.f32 %v1412, %v1439
    %v1452 = vmul.f32 %v1413, %v1439
    %v1453 = vmul.f32 %v1414, %v1439
    %v1454 = vmul.f32 %v1415, %v1439
    %v1455 = vmul.f32 %v1416, %v1439
    %v1456 = vmul.f32 %v1417, %v1439
    %v1457 = vmul.f32 %v1418, %v1439
    %v1458 = vmul.f32 %v1419, %v1439
    %v1459 = vmul.f32 %v1420, %v1439
    %v1460 = vmul.f32 %v1421, %v1439
    %v1461 = vmul.f32 %v1422, %v1439
    %v1462 = vmul.f32 %v1423, %v1439
    %v1463 = vmul.f32 %v1424, %v1439
    %v1464 = vmul.f32 %v1425, %v1439
    %v1465 = vmul.f32 %v1426, %v1439
    %v1466 = vmul.f32 %v1427, %v1439
    %v1467 = vmul.f32 %v1428, %v1439
    %v1468 = vmul.f32 %v1429, %v1439
    %v1469 = vmul.f32 %v1430, %v1439
    %v1470 = vmul.f32 %v1431, %v1439
    %v1471 = vmul.f32 %v1432, %v1439
    %v1472 = vmul.f32 %v1433, %v1439
    %v1473 = vld [vmem:[%s21] sm:$0x1]
    %v1475 = vlaneseq
    %v1476 = vshrl.u32 %v1475, 7
    %v1477 = vsub.s32 0, %v1476
    %v1478 = vrot.slane %v1473, %v1477
    %v1480 = vadd.f32 %v1441, %v1478
    %v1481 = vadd.f32 %v1442, %v1478
    %v1482 = vadd.f32 %v1443, %v1478
    %v1483 = vadd.f32 %v1444, %v1478
    %v1484 = vadd.f32 %v1445, %v1478
    %v1485 = vadd.f32 %v1446, %v1478
    %v1486 = vadd.f32 %v1447, %v1478
    %v1487 = vadd.f32 %v1448, %v1478
    %v1488 = vadd.f32 %v1449, %v1478
    %v1489 = vadd.f32 %v1450, %v1478
    %v1490 = vadd.f32 %v1451, %v1478
    %v1491 = vadd.f32 %v1452, %v1478
    %v1492 = vadd.f32 %v1453, %v1478
    %v1493 = vadd.f32 %v1454, %v1478
    %v1494 = vadd.f32 %v1455, %v1478
    %v1495 = vadd.f32 %v1456, %v1478
    %v1496 = vadd.f32 %v1457, %v1478
    %v1497 = vadd.f32 %v1458, %v1478
    %v1498 = vadd.f32 %v1459, %v1478
    %v1499 = vadd.f32 %v1460, %v1478
    %v1500 = vadd.f32 %v1461, %v1478
    %v1501 = vadd.f32 %v1462, %v1478
    %v1502 = vadd.f32 %v1463, %v1478
    %v1503 = vadd.f32 %v1464, %v1478
    %v1504 = vadd.f32 %v1465, %v1478
    %v1505 = vadd.f32 %v1466, %v1478
    %v1506 = vadd.f32 %v1467, %v1478
    %v1507 = vadd.f32 %v1468, %v1478
    %v1508 = vadd.f32 %v1469, %v1478
    %v1509 = vadd.f32 %v1470, %v1478
    %v1510 = vadd.f32 %v1471, %v1478
    %v1511 = vadd.f32 %v1472, %v1478
    %v1512 = vpack.c.bf16 %v1481, %v1480
    %v1513 = vpack.c.bf16 %v1483, %v1482
    %v1514 = vpack.c.bf16 %v1485, %v1484
    %v1515 = vpack.c.bf16 %v1487, %v1486
    %v1516 = vpack.c.bf16 %v1489, %v1488
    %v1517 = vpack.c.bf16 %v1491, %v1490
    %v1518 = vpack.c.bf16 %v1493, %v1492
    %v1519 = vpack.c.bf16 %v1495, %v1494
    %v1520 = vpack.c.bf16 %v1497, %v1496
    %v1521 = vpack.c.bf16 %v1499, %v1498
    %v1522 = vpack.c.bf16 %v1501, %v1500
    %v1523 = vpack.c.bf16 %v1503, %v1502
    %v1524 = vpack.c.bf16 %v1505, %v1504
    %v1525 = vpack.c.bf16 %v1507, %v1506
    %v1526 = vpack.c.bf16 %v1509, %v1508
    %v1527 = vpack.c.bf16 %v1511, %v1510
    %v1536 = vunpack.c.l.b16 %v308
    %v1537 = vunpack.c.h.b16 %v308
    %v1538 = vunpack.c.l.b16 %v309
    %v1539 = vunpack.c.h.b16 %v309
    %v1540 = vunpack.c.l.b16 %v310
    %v1541 = vunpack.c.h.b16 %v310
    %v1542 = vunpack.c.l.b16 %v311
    %v1543 = vunpack.c.h.b16 %v311
    %v1544 = vunpack.c.l.b16 %v312
    %v1545 = vunpack.c.h.b16 %v312
    %v1546 = vunpack.c.l.b16 %v313
    %v1547 = vunpack.c.h.b16 %v313
    %v1548 = vunpack.c.l.b16 %v314
    %v1549 = vunpack.c.h.b16 %v314
    %v1550 = vunpack.c.l.b16 %v315
    %v1551 = vunpack.c.h.b16 %v315
    %v1552 = vpack.c.b16 %v1538, %v1536
    %v1553 = vpack.c.b16 %v1539, %v1537
    %v1554 = vpack.c.b16 %v1542, %v1540
    %v1555 = vpack.c.b16 %v1543, %v1541
    %v1556 = vpack.c.b16 %v1546, %v1544
    %v1557 = vpack.c.b16 %v1547, %v1545
    %v1558 = vpack.c.b16 %v1550, %v1548
    %v1559 = vpack.c.b16 %v1551, %v1549
    %1568 = vmatprep.subr.bf16.mxu0 0
    %1569 = vmatpush1.bf16.msra.mxu0 %v1519
    %1570 = vmatprep.subr.bf16.mxu0 0
    %1571 = vmatpush1.bf16.msra.mxu0 %v1518
    %1572 = vmatprep.subr.bf16.mxu0 0
    %1573 = vmatpush1.bf16.msra.mxu0 %v1517
    %1574 = vmatprep.subr.bf16.mxu0 0
    %1575 = vmatpush1.bf16.msra.mxu0 %v1516
    %1576 = vmatprep.subr.bf16.mxu0 0
    %1577 = vmatpush1.bf16.msra.mxu0 %v1515
    %1578 = vmatprep.subr.bf16.mxu0 0
    %1579 = vmatpush1.bf16.msra.mxu0 %v1514
    %1580 = vmatprep.subr.bf16.mxu0 0
    %1581 = vmatpush1.bf16.msra.mxu0 %v1513
    %1582 = vmatprep.subr.bf16.mxu0 0
    %1583 = vmatpush1.bf16.msra.mxu0 %v1512
    %1584 = vmatprep.subr.bf16.mxu0 0
    %1585 = vmatpush2.bf16.msra.mxu0 %v1527
    %1586 = vmatprep.subr.bf16.mxu0 0
    %1587 = vmatpush2.bf16.msra.mxu0 %v1526
    %1588 = vmatprep.subr.bf16.mxu0 0
    %1589 = vmatpush2.bf16.msra.mxu0 %v1525
    %1590 = vmatprep.subr.bf16.mxu0 0
    %1591 = vmatpush2.bf16.msra.mxu0 %v1524
    %1592 = vmatprep.subr.bf16.mxu0 0
    %1593 = vmatpush2.bf16.msra.mxu0 %v1523
    %1594 = vmatprep.subr.bf16.mxu0 0
    %1595 = vmatpush2.bf16.msra.mxu0 %v1522
    %1596 = vmatprep.subr.bf16.mxu0 0
    %1597 = vmatpush2.bf16.msra.mxu0 %v1521
    %1598 = vmatprep.subr.bf16.mxu0 0
    %1599 = vmatpush2.bf16.msra.mxu0 %v1520
    %1600 = vmatprep.mubr.bf16.mxu0 %v1553
    %1601 = vmatmul.mubr.bf16.gmra.mxu0 %v1552
    %v1602 = vpop.f32.mrf.mxu0
    %v1603 = vadd.f32 0.0, %v1602
    %v1604 = vpop.f32.mrf.mxu0
    %v1605 = vpop.f32.mrf.mxu0
    %v1606 = vadd.f32 0.0, %v1605
    %v1607 = vpop.f32.mrf.mxu0
    %1608 = vmatprep.mubr.bf16.mxu0 %v1555
    %1609 = vmatmul.mubr.bf16.gmra.mxu0 %v1554
    %v1610 = vpop.f32.mrf.mxu0
    %v1611 = vadd.f32 0.0, %v1610
    %v1612 = vpop.f32.mrf.mxu0
    %v1613 = vpop.f32.mrf.mxu0
    %v1614 = vadd.f32 0.0, %v1613
    %v1615 = vpop.f32.mrf.mxu0
    %1616 = vmatprep.mubr.bf16.mxu0 %v1557
    %1617 = vmatmul.mubr.bf16.gmra.mxu0 %v1556
    %v1618 = vpop.f32.mrf.mxu0
    %v1619 = vadd.f32 0.0, %v1618
    %v1620 = vpop.f32.mrf.mxu0
    %v1621 = vpop.f32.mrf.mxu0
    %v1622 = vadd.f32 0.0, %v1621
    %v1623 = vpop.f32.mrf.mxu0
    %1624 = vmatprep.mubr.bf16.mxu0 %v1559
    %1625 = vmatmul.mubr.bf16.gmra.mxu0 %v1558
    %v1626 = vpop.f32.mrf.mxu0
    %v1627 = vadd.f32 0.0, %v1626
    %v1628 = vpop.f32.mrf.mxu0
    %v1629 = vpop.f32.mrf.mxu0
    %v1630 = vadd.f32 0.0, %v1629
    %v1631 = vpop.f32.mrf.mxu0
    %1632 = vdwg.mxu0
    %v1633 = vpack.c.bf16 %v1606, %v1603
    %v1634 = vpack.c.bf16 %v1614, %v1611
    %v1635 = vpack.c.bf16 %v1622, %v1619
    %v1636 = vpack.c.bf16 %v1630, %v1627
    %v1637 = vld [vmem:[%s23] sm:$0xf]
    %v1638 = vld [vmem:[%s23 + $0x4] sm:$0xf]
    %v1639 = vld [vmem:[%s23 + $0x8] sm:$0xf]
    %v1640 = vld [vmem:[%s23 + $0xc] sm:$0xf]
    %v1641 = vld [vmem:[%s23 + $0x10] sm:$0xf]
    %v1642 = vld [vmem:[%s23 + $0x14] sm:$0xf]
    %v1643 = vld [vmem:[%s23 + $0x18] sm:$0xf]
    %v1644 = vld [vmem:[%s23 + $0x1c] sm:$0xf]
    %v1653 = vunpack.c.l.b16 %v1637
    %v1654 = vunpack.c.l.b16 %v1638
    %v1655 = vunpack.c.l.b16 %v1639
    %v1656 = vunpack.c.l.b16 %v1640
    %v1657 = vunpack.c.l.b16 %v1641
    %v1658 = vunpack.c.l.b16 %v1642
    %v1659 = vunpack.c.l.b16 %v1643
    %v1660 = vunpack.c.l.b16 %v1644
    %v1661 = vpack.c.b16 %v1654, %v1653
    %v1662 = vpack.c.b16 %v1656, %v1655
    %v1663 = vpack.c.b16 %v1658, %v1657
    %v1664 = vpack.c.b16 %v1660, %v1659
    %v1670 = vsel %vm568, %v1633, 0
    %v1673 = vsel %vm568, %v1634, 0
    %v1676 = vsel %vm568, %v1635, 0
    %v1679 = vsel %vm568, %v1636, 0
    %1681 = vmatprep.subr.bf16.mxu0 0
    %1682 = vmatpush1.bf16.msra.mxu0 0
    %1683 = vmatprep.subr.bf16.mxu0 0
    %1684 = vmatpush1.bf16.msra.mxu0 0
    %1685 = vmatprep.subr.bf16.mxu0 0
    %1686 = vmatpush1.bf16.msra.mxu0 0
    %1687 = vmatprep.subr.bf16.mxu0 0
    %1688 = vmatpush1.bf16.msra.mxu0 0
    %1689 = vmatprep.subr.bf16.mxu0 0
    %1690 = vmatpush1.bf16.msra.mxu0 %v1664
    %1691 = vmatprep.subr.bf16.mxu0 0
    %1692 = vmatpush1.bf16.msra.mxu0 %v1663
    %1693 = vmatprep.subr.bf16.mxu0 0
    %1694 = vmatpush1.bf16.msra.mxu0 %v1662
    %1695 = vmatprep.subr.bf16.mxu0 0
    %1696 = vmatpush1.bf16.msra.mxu0 %v1661
    %1697 = vmatprep.subr.bf16.mxu0 0
    %1698 = vmatpush2.bf16.msra.mxu0 0
    %1699 = vmatprep.subr.bf16.mxu0 0
    %1700 = vmatpush2.bf16.msra.mxu0 0
    %1701 = vmatprep.subr.bf16.mxu0 0
    %1702 = vmatpush2.bf16.msra.mxu0 0
    %1703 = vmatprep.subr.bf16.mxu0 0
    %1704 = vmatpush2.bf16.msra.mxu0 0
    %1705 = vmatprep.subr.bf16.mxu0 0
    %1706 = vmatpush2.bf16.msra.mxu0 0
    %1707 = vmatprep.subr.bf16.mxu0 0
    %1708 = vmatpush2.bf16.msra.mxu0 0
    %1709 = vmatprep.subr.bf16.mxu0 0
    %1710 = vmatpush2.bf16.msra.mxu0 0
    %1711 = vmatprep.subr.bf16.mxu0 0
    %1712 = vmatpush2.bf16.msra.mxu0 0
    %1713 = vmatprep.mubr.bf16.mxu0 0
    %1714 = vmatmul.mubr.bf16.gmra.mxu0 %v1670
    %v1715 = vpop.f32.mrf.mxu0
    %v1716 = vadd.f32 0.0, %v1715
    %v1717 = vpop.f32.mrf.mxu0
    %v1718 = vpop.f32.mrf.mxu0
    %v1719 = vadd.f32 0.0, %v1718
    %v1720 = vpop.f32.mrf.mxu0
    %1721 = vmatprep.mubr.bf16.mxu0 0
    %1722 = vmatmul.mubr.bf16.gmra.mxu0 %v1673
    %v1723 = vpop.f32.mrf.mxu0
    %v1724 = vadd.f32 0.0, %v1723
    %v1725 = vpop.f32.mrf.mxu0
    %v1726 = vpop.f32.mrf.mxu0
    %v1727 = vadd.f32 0.0, %v1726
    %v1728 = vpop.f32.mrf.mxu0
    %1729 = vmatprep.mubr.bf16.mxu0 0
    %1730 = vmatmul.mubr.bf16.gmra.mxu0 %v1676
    %v1731 = vpop.f32.mrf.mxu0
    %v1732 = vadd.f32 0.0, %v1731
    %v1733 = vpop.f32.mrf.mxu0
    %v1734 = vpop.f32.mrf.mxu0
    %v1735 = vadd.f32 0.0, %v1734
    %v1736 = vpop.f32.mrf.mxu0
    %1737 = vmatprep.mubr.bf16.mxu0 0
    %1738 = vmatmul.mubr.bf16.gmra.mxu0 %v1679
    %v1739 = vpop.f32.mrf.mxu0
    %v1740 = vadd.f32 0.0, %v1739
    %v1741 = vpop.f32.mrf.mxu0
    %v1742 = vpop.f32.mrf.mxu0
    %v1743 = vadd.f32 0.0, %v1742
    %v1744 = vpop.f32.mrf.mxu0
    %1745 = vdwg.mxu0
    %v1746 = vpack.c.bf16 %v1719, %v1716
    %v1747 = vpack.c.bf16 %v1727, %v1724
    %v1748 = vpack.c.bf16 %v1735, %v1732
    %v1749 = vpack.c.bf16 %v1743, %v1740
    %v1750 = vld [vmem:[%s25] sm:$0xf]
    %v1751 = vld [vmem:[%s25 + $0x4] sm:$0xf]
    %v1752 = vld [vmem:[%s25 + $0x8] sm:$0xf]
    %v1753 = vld [vmem:[%s25 + $0xc] sm:$0xf]
    %v1754 = vld [vmem:[%s25 + $0x10] sm:$0xf]
    %v1755 = vld [vmem:[%s25 + $0x14] sm:$0xf]
    %v1756 = vld [vmem:[%s25 + $0x18] sm:$0xf]
    %v1757 = vld [vmem:[%s25 + $0x1c] sm:$0xf]
    %v1766 = vunpack.c.l.b16 %v1750
    %v1767 = vunpack.c.l.b16 %v1751
    %v1768 = vunpack.c.l.b16 %v1752
    %v1769 = vunpack.c.l.b16 %v1753
    %v1770 = vunpack.c.l.b16 %v1754
    %v1771 = vunpack.c.l.b16 %v1755
    %v1772 = vunpack.c.l.b16 %v1756
    %v1773 = vunpack.c.l.b16 %v1757
    %v1774 = vpack.c.b16 %v1767, %v1766
    %v1775 = vpack.c.b16 %v1769, %v1768
    %v1776 = vpack.c.b16 %v1771, %v1770
    %v1777 = vpack.c.b16 %v1773, %v1772
    %1782 = vmatprep.subr.bf16.mxu0 0
    %1783 = vmatpush1.bf16.msra.mxu0 0
    %1784 = vmatprep.subr.bf16.mxu0 0
    %1785 = vmatpush1.bf16.msra.mxu0 0
    %1786 = vmatprep.subr.bf16.mxu0 0
    %1787 = vmatpush1.bf16.msra.mxu0 0
    %1788 = vmatprep.subr.bf16.mxu0 0
    %1789 = vmatpush1.bf16.msra.mxu0 0
    %1790 = vmatprep.subr.bf16.mxu0 0
    %1791 = vmatpush1.bf16.msra.mxu0 %v1777
    %1792 = vmatprep.subr.bf16.mxu0 0
    %1793 = vmatpush1.bf16.msra.mxu0 %v1776
    %1794 = vmatprep.subr.bf16.mxu0 0
    %1795 = vmatpush1.bf16.msra.mxu0 %v1775
    %1796 = vmatprep.subr.bf16.mxu0 0
    %1797 = vmatpush1.bf16.msra.mxu0 %v1774
    %1798 = vmatprep.subr.bf16.mxu0 0
    %1799 = vmatpush2.bf16.msra.mxu0 0
    %1800 = vmatprep.subr.bf16.mxu0 0
    %1801 = vmatpush2.bf16.msra.mxu0 0
    %1802 = vmatprep.subr.bf16.mxu0 0
    %1803 = vmatpush2.bf16.msra.mxu0 0
    %1804 = vmatprep.subr.bf16.mxu0 0
    %1805 = vmatpush2.bf16.msra.mxu0 0
    %1806 = vmatprep.subr.bf16.mxu0 0
    %1807 = vmatpush2.bf16.msra.mxu0 0
    %1808 = vmatprep.subr.bf16.mxu0 0
    %1809 = vmatpush2.bf16.msra.mxu0 0
    %1810 = vmatprep.subr.bf16.mxu0 0
    %1811 = vmatpush2.bf16.msra.mxu0 0
    %1812 = vmatprep.subr.bf16.mxu0 0
    %1813 = vmatpush2.bf16.msra.mxu0 0
    %1814 = vmatprep.mubr.bf16.mxu0 0
    %1815 = vmatmul.mubr.bf16.gmra.mxu0 %v1670
    %v1816 = vpop.f32.mrf.mxu0
    %v1817 = vadd.f32 0.0, %v1816
    %v1818 = vpop.f32.mrf.mxu0
    %v1819 = vpop.f32.mrf.mxu0
    %v1820 = vadd.f32 0.0, %v1819
    %v1821 = vpop.f32.mrf.mxu0
    %1822 = vmatprep.mubr.bf16.mxu0 0
    %1823 = vmatmul.mubr.bf16.gmra.mxu0 %v1673
    %v1824 = vpop.f32.mrf.mxu0
    %v1825 = vadd.f32 0.0, %v1824
    %v1826 = vpop.f32.mrf.mxu0
    %v1827 = vpop.f32.mrf.mxu0
    %v1828 = vadd.f32 0.0, %v1827
    %v1829 = vpop.f32.mrf.mxu0
    %1830 = vmatprep.mubr.bf16.mxu0 0
    %1831 = vmatmul.mubr.bf16.gmra.mxu0 %v1676
    %v1832 = vpop.f32.mrf.mxu0
    %v1833 = vadd.f32 0.0, %v1832
    %v1834 = vpop.f32.mrf.mxu0
    %v1835 = vpop.f32.mrf.mxu0
    %v1836 = vadd.f32 0.0, %v1835
    %v1837 = vpop.f32.mrf.mxu0
    %1838 = vmatprep.mubr.bf16.mxu0 0
    %1839 = vmatmul.mubr.bf16.gmra.mxu0 %v1679
    %v1840 = vpop.f32.mrf.mxu0
    %v1841 = vadd.f32 0.0, %v1840
    %v1842 = vpop.f32.mrf.mxu0
    %v1843 = vpop.f32.mrf.mxu0
    %v1844 = vadd.f32 0.0, %v1843
    %v1845 = vpop.f32.mrf.mxu0
    %1846 = vdwg.mxu0
    %v1847 = vpack.c.bf16 %v1820, %v1817
    %v1848 = vpack.c.bf16 %v1828, %v1825
    %v1849 = vpack.c.bf16 %v1836, %v1833
    %v1850 = vpack.c.bf16 %v1844, %v1841
    %1851 = vmatprep.subr.bf16.mxu0 0
    %1852 = vmatpush1.bf16.msra.mxu0 0
    %1853 = vmatprep.subr.bf16.mxu0 0
    %1854 = vmatpush1.bf16.msra.mxu0 0
    %1855 = vmatprep.subr.bf16.mxu0 0
    %1856 = vmatpush1.bf16.msra.mxu0 0
    %1857 = vmatprep.subr.bf16.mxu0 0
    %1858 = vmatpush1.bf16.msra.mxu0 0
    %1859 = vmatprep.subr.bf16.mxu0 0
    %1860 = vmatpush1.bf16.msra.mxu0 %v1850
    %1861 = vmatprep.subr.bf16.mxu0 0
    %1862 = vmatpush1.bf16.msra.mxu0 %v1849
    %1863 = vmatprep.subr.bf16.mxu0 0
    %1864 = vmatpush1.bf16.msra.mxu0 %v1848
    %1865 = vmatprep.subr.bf16.mxu0 0
    %1866 = vmatpush1.bf16.msra.mxu0 %v1847
    %1867 = vmatprep.subr.bf16.mxu0 0
    %1868 = vmatpush2.bf16.msra.mxu0 0
    %1869 = vmatprep.subr.bf16.mxu0 0
    %1870 = vmatpush2.bf16.msra.mxu0 0
    %1871 = vmatprep.subr.bf16.mxu0 0
    %1872 = vmatpush2.bf16.msra.mxu0 0
    %1873 = vmatprep.subr.bf16.mxu0 0
    %1874 = vmatpush2.bf16.msra.mxu0 0
    %1875 = vmatprep.subr.bf16.mxu0 0
    %1876 = vmatpush2.bf16.msra.mxu0 0
    %1877 = vmatprep.subr.bf16.mxu0 0
    %1878 = vmatpush2.bf16.msra.mxu0 0
    %1879 = vmatprep.subr.bf16.mxu0 0
    %1880 = vmatpush2.bf16.msra.mxu0 0
    %1881 = vmatprep.subr.bf16.mxu0 0
    %1882 = vmatpush2.bf16.msra.mxu0 0
    %1883 = vmatprep.mubr.bf16.mxu0 0
    %1884 = vmatmul.mubr.bf16.gmra.mxu0 %v570
    %v1885 = vpop.f32.mrf.mxu0
    %v1886 = vadd.f32 0.0, %v1885
    %v1887 = vpop.f32.mrf.mxu0
    %v1888 = vpop.f32.mrf.mxu0
    %v1889 = vadd.f32 0.0, %v1888
    %v1890 = vpop.f32.mrf.mxu0
    %1891 = vmatprep.mubr.bf16.mxu0 0
    %1892 = vmatmul.mubr.bf16.gmra.mxu0 %v573
    %v1893 = vpop.f32.mrf.mxu0
    %v1894 = vadd.f32 0.0, %v1893
    %v1895 = vpop.f32.mrf.mxu0
    %v1896 = vpop.f32.mrf.mxu0
    %v1897 = vadd.f32 0.0, %v1896
    %v1898 = vpop.f32.mrf.mxu0
    %1899 = vmatprep.mubr.bf16.mxu0 0
    %1900 = vmatmul.mubr.bf16.gmra.mxu0 %v576
    %v1901 = vpop.f32.mrf.mxu0
    %v1902 = vadd.f32 0.0, %v1901
    %v1903 = vpop.f32.mrf.mxu0
    %v1904 = vpop.f32.mrf.mxu0
    %v1905 = vadd.f32 0.0, %v1904
    %v1906 = vpop.f32.mrf.mxu0
    %1907 = vmatprep.mubr.bf16.mxu0 0
    %1908 = vmatmul.mubr.bf16.gmra.mxu0 %v579
    %v1909 = vpop.f32.mrf.mxu0
    %v1910 = vadd.f32 0.0, %v1909
    %v1911 = vpop.f32.mrf.mxu0
    %v1912 = vpop.f32.mrf.mxu0
    %v1913 = vadd.f32 0.0, %v1912
    %v1914 = vpop.f32.mrf.mxu0
    %1915 = vmatprep.mubr.bf16.mxu0 0
    %1916 = vmatmul.mubr.bf16.gmra.mxu0 %v582
    %v1917 = vpop.f32.mrf.mxu0
    %v1918 = vadd.f32 0.0, %v1917
    %v1919 = vpop.f32.mrf.mxu0
    %v1920 = vpop.f32.mrf.mxu0
    %v1921 = vadd.f32 0.0, %v1920
    %v1922 = vpop.f32.mrf.mxu0
    %1923 = vmatprep.mubr.bf16.mxu0 0
    %1924 = vmatmul.mubr.bf16.gmra.mxu0 %v585
    %v1925 = vpop.f32.mrf.mxu0
    %v1926 = vadd.f32 0.0, %v1925
    %v1927 = vpop.f32.mrf.mxu0
    %v1928 = vpop.f32.mrf.mxu0
    %v1929 = vadd.f32 0.0, %v1928
    %v1930 = vpop.f32.mrf.mxu0
    %1931 = vmatprep.mubr.bf16.mxu0 0
    %1932 = vmatmul.mubr.bf16.gmra.mxu0 %v588
    %v1933 = vpop.f32.mrf.mxu0
    %v1934 = vadd.f32 0.0, %v1933
    %v1935 = vpop.f32.mrf.mxu0
    %v1936 = vpop.f32.mrf.mxu0
    %v1937 = vadd.f32 0.0, %v1936
    %v1938 = vpop.f32.mrf.mxu0
    %1939 = vmatprep.mubr.bf16.mxu0 0
    %1940 = vmatmul.mubr.bf16.gmra.mxu0 %v591
    %v1941 = vpop.f32.mrf.mxu0
    %v1942 = vadd.f32 0.0, %v1941
    %v1943 = vpop.f32.mrf.mxu0
    %v1944 = vpop.f32.mrf.mxu0
    %v1945 = vadd.f32 0.0, %v1944
    %v1946 = vpop.f32.mrf.mxu0
    %1947 = vmatprep.mubr.bf16.mxu0 0
    %1948 = vmatmul.mubr.bf16.gmra.mxu0 %v594
    %v1949 = vpop.f32.mrf.mxu0
    %v1950 = vadd.f32 0.0, %v1949
    %v1951 = vpop.f32.mrf.mxu0
    %v1952 = vpop.f32.mrf.mxu0
    %v1953 = vadd.f32 0.0, %v1952
    %v1954 = vpop.f32.mrf.mxu0
    %1955 = vmatprep.mubr.bf16.mxu0 0
    %1956 = vmatmul.mubr.bf16.gmra.mxu0 %v597
    %v1957 = vpop.f32.mrf.mxu0
    %v1958 = vadd.f32 0.0, %v1957
    %v1959 = vpop.f32.mrf.mxu0
    %v1960 = vpop.f32.mrf.mxu0
    %v1961 = vadd.f32 0.0, %v1960
    %v1962 = vpop.f32.mrf.mxu0
    %1963 = vmatprep.mubr.bf16.mxu0 0
    %1964 = vmatmul.mubr.bf16.gmra.mxu0 %v600
    %v1965 = vpop.f32.mrf.mxu0
    %v1966 = vadd.f32 0.0, %v1965
    %v1967 = vpop.f32.mrf.mxu0
    %v1968 = vpop.f32.mrf.mxu0
    %v1969 = vadd.f32 0.0, %v1968
    %v1970 = vpop.f32.mrf.mxu0
    %1971 = vmatprep.mubr.bf16.mxu0 0
    %1972 = vmatmul.mubr.bf16.gmra.mxu0 %v603
    %v1973 = vpop.f32.mrf.mxu0
    %v1974 = vadd.f32 0.0, %v1973
    %v1975 = vpop.f32.mrf.mxu0
    %v1976 = vpop.f32.mrf.mxu0
    %v1977 = vadd.f32 0.0, %v1976
    %v1978 = vpop.f32.mrf.mxu0
    %1979 = vmatprep.mubr.bf16.mxu0 0
    %1980 = vmatmul.mubr.bf16.gmra.mxu0 %v606
    %v1981 = vpop.f32.mrf.mxu0
    %v1982 = vadd.f32 0.0, %v1981
    %v1983 = vpop.f32.mrf.mxu0
    %v1984 = vpop.f32.mrf.mxu0
    %v1985 = vadd.f32 0.0, %v1984
    %v1986 = vpop.f32.mrf.mxu0
    %1987 = vmatprep.mubr.bf16.mxu0 0
    %1988 = vmatmul.mubr.bf16.gmra.mxu0 %v609
    %v1989 = vpop.f32.mrf.mxu0
    %v1990 = vadd.f32 0.0, %v1989
    %v1991 = vpop.f32.mrf.mxu0
    %v1992 = vpop.f32.mrf.mxu0
    %v1993 = vadd.f32 0.0, %v1992
    %v1994 = vpop.f32.mrf.mxu0
    %1995 = vmatprep.mubr.bf16.mxu0 0
    %1996 = vmatmul.mubr.bf16.gmra.mxu0 %v612
    %v1997 = vpop.f32.mrf.mxu0
    %v1998 = vadd.f32 0.0, %v1997
    %v1999 = vpop.f32.mrf.mxu0
    %v2000 = vpop.f32.mrf.mxu0
    %v2001 = vadd.f32 0.0, %v2000
    %v2002 = vpop.f32.mrf.mxu0
    %2003 = vmatprep.mubr.bf16.mxu0 0
    %2004 = vmatmul.mubr.bf16.gmra.mxu0 %v615
    %v2005 = vpop.f32.mrf.mxu0
    %v2006 = vadd.f32 0.0, %v2005
    %v2007 = vpop.f32.mrf.mxu0
    %v2008 = vpop.f32.mrf.mxu0
    %v2009 = vadd.f32 0.0, %v2008
    %v2010 = vpop.f32.mrf.mxu0
    %2011 = vdwg.mxu0
    %2012 = vmatprep.subr.bf16.mxu0 0
    %2013 = vmatpush1.bf16.msra.mxu0 0
    %2014 = vmatprep.subr.bf16.mxu0 0
    %2015 = vmatpush1.bf16.msra.mxu0 0
    %2016 = vmatprep.subr.bf16.mxu0 0
    %2017 = vmatpush1.bf16.msra.mxu0 0
    %2018 = vmatprep.subr.bf16.mxu0 0
    %2019 = vmatpush1.bf16.msra.mxu0 0
    %2020 = vmatprep.subr.bf16.mxu0 0
    %2021 = vmatpush1.bf16.msra.mxu0 %v1749
    %2022 = vmatprep.subr.bf16.mxu0 0
    %2023 = vmatpush1.bf16.msra.mxu0 %v1748
    %2024 = vmatprep.subr.bf16.mxu0 0
    %2025 = vmatpush1.bf16.msra.mxu0 %v1747
    %2026 = vmatprep.subr.bf16.mxu0 0
    %2027 = vmatpush1.bf16.msra.mxu0 %v1746
    %2028 = vmatprep.subr.bf16.mxu0 0
    %2029 = vmatpush2.bf16.msra.mxu0 0
    %2030 = vmatprep.subr.bf16.mxu0 0
    %2031 = vmatpush2.bf16.msra.mxu0 0
    %2032 = vmatprep.subr.bf16.mxu0 0
    %2033 = vmatpush2.bf16.msra.mxu0 0
    %2034 = vmatprep.subr.bf16.mxu0 0
    %2035 = vmatpush2.bf16.msra.mxu0 0
    %2036 = vmatprep.subr.bf16.mxu0 0
    %2037 = vmatpush2.bf16.msra.mxu0 0
    %2038 = vmatprep.subr.bf16.mxu0 0
    %2039 = vmatpush2.bf16.msra.mxu0 0
    %2040 = vmatprep.subr.bf16.mxu0 0
    %2041 = vmatpush2.bf16.msra.mxu0 0
    %2042 = vmatprep.subr.bf16.mxu0 0
    %2043 = vmatpush2.bf16.msra.mxu0 0
    %2044 = vmatprep.mubr.bf16.mxu0 0
    %2045 = vmatmul.mubr.bf16.gmra.mxu0 %v859
    %v2046 = vpop.f32.mrf.mxu0
    %v2047 = vadd.f32 %v1886, %v2046
    %v2048 = vpop.f32.mrf.mxu0
    %v2049 = vpop.f32.mrf.mxu0
    %v2050 = vadd.f32 %v1889, %v2049
    %v2051 = vpop.f32.mrf.mxu0
    %2052 = vmatprep.mubr.bf16.mxu0 0
    %2053 = vmatmul.mubr.bf16.gmra.mxu0 %v862
    %v2054 = vpop.f32.mrf.mxu0
    %v2055 = vadd.f32 %v1894, %v2054
    %v2056 = vpop.f32.mrf.mxu0
    %v2057 = vpop.f32.mrf.mxu0
    %v2058 = vadd.f32 %v1897, %v2057
    %v2059 = vpop.f32.mrf.mxu0
    %2060 = vmatprep.mubr.bf16.mxu0 0
    %2061 = vmatmul.mubr.bf16.gmra.mxu0 %v865
    %v2062 = vpop.f32.mrf.mxu0
    %v2063 = vadd.f32 %v1902, %v2062
    %v2064 = vpop.f32.mrf.mxu0
    %v2065 = vpop.f32.mrf.mxu0
    %v2066 = vadd.f32 %v1905, %v2065
    %v2067 = vpop.f32.mrf.mxu0
    %2068 = vmatprep.mubr.bf16.mxu0 0
    %2069 = vmatmul.mubr.bf16.gmra.mxu0 %v868
    %v2070 = vpop.f32.mrf.mxu0
    %v2071 = vadd.f32 %v1910, %v2070
    %v2072 = vpop.f32.mrf.mxu0
    %v2073 = vpop.f32.mrf.mxu0
    %v2074 = vadd.f32 %v1913, %v2073
    %v2075 = vpop.f32.mrf.mxu0
    %2076 = vmatprep.mubr.bf16.mxu0 0
    %2077 = vmatmul.mubr.bf16.gmra.mxu0 %v871
    %v2078 = vpop.f32.mrf.mxu0
    %v2079 = vadd.f32 %v1918, %v2078
    %v2080 = vpop.f32.mrf.mxu0
    %v2081 = vpop.f32.mrf.mxu0
    %v2082 = vadd.f32 %v1921, %v2081
    %v2083 = vpop.f32.mrf.mxu0
    %2084 = vmatprep.mubr.bf16.mxu0 0
    %2085 = vmatmul.mubr.bf16.gmra.mxu0 %v874
    %v2086 = vpop.f32.mrf.mxu0
    %v2087 = vadd.f32 %v1926, %v2086
    %v2088 = vpop.f32.mrf.mxu0
    %v2089 = vpop.f32.mrf.mxu0
    %v2090 = vadd.f32 %v1929, %v2089
    %v2091 = vpop.f32.mrf.mxu0
    %2092 = vmatprep.mubr.bf16.mxu0 0
    %2093 = vmatmul.mubr.bf16.gmra.mxu0 %v877
    %v2094 = vpop.f32.mrf.mxu0
    %v2095 = vadd.f32 %v1934, %v2094
    %v2096 = vpop.f32.mrf.mxu0
    %v2097 = vpop.f32.mrf.mxu0
    %v2098 = vadd.f32 %v1937, %v2097
    %v2099 = vpop.f32.mrf.mxu0
    %2100 = vmatprep.mubr.bf16.mxu0 0
    %2101 = vmatmul.mubr.bf16.gmra.mxu0 %v880
    %v2102 = vpop.f32.mrf.mxu0
    %v2103 = vadd.f32 %v1942, %v2102
    %v2104 = vpop.f32.mrf.mxu0
    %v2105 = vpop.f32.mrf.mxu0
    %v2106 = vadd.f32 %v1945, %v2105
    %v2107 = vpop.f32.mrf.mxu0
    %2108 = vmatprep.mubr.bf16.mxu0 0
    %2109 = vmatmul.mubr.bf16.gmra.mxu0 %v883
    %v2110 = vpop.f32.mrf.mxu0
    %v2111 = vadd.f32 %v1950, %v2110
    %v2112 = vpop.f32.mrf.mxu0
    %v2113 = vpop.f32.mrf.mxu0
    %v2114 = vadd.f32 %v1953, %v2113
    %v2115 = vpop.f32.mrf.mxu0
    %2116 = vmatprep.mubr.bf16.mxu0 0
    %2117 = vmatmul.mubr.bf16.gmra.mxu0 %v886
    %v2118 = vpop.f32.mrf.mxu0
    %v2119 = vadd.f32 %v1958, %v2118
    %v2120 = vpop.f32.mrf.mxu0
    %v2121 = vpop.f32.mrf.mxu0
    %v2122 = vadd.f32 %v1961, %v2121
    %v2123 = vpop.f32.mrf.mxu0
    %2124 = vmatprep.mubr.bf16.mxu0 0
    %2125 = vmatmul.mubr.bf16.gmra.mxu0 %v889
    %v2126 = vpop.f32.mrf.mxu0
    %v2127 = vadd.f32 %v1966, %v2126
    %v2128 = vpop.f32.mrf.mxu0
    %v2129 = vpop.f32.mrf.mxu0
    %v2130 = vadd.f32 %v1969, %v2129
    %v2131 = vpop.f32.mrf.mxu0
    %2132 = vmatprep.mubr.bf16.mxu0 0
    %2133 = vmatmul.mubr.bf16.gmra.mxu0 %v892
    %v2134 = vpop.f32.mrf.mxu0
    %v2135 = vadd.f32 %v1974, %v2134
    %v2136 = vpop.f32.mrf.mxu0
    %v2137 = vpop.f32.mrf.mxu0
    %v2138 = vadd.f32 %v1977, %v2137
    %v2139 = vpop.f32.mrf.mxu0
    %2140 = vmatprep.mubr.bf16.mxu0 0
    %2141 = vmatmul.mubr.bf16.gmra.mxu0 %v895
    %v2142 = vpop.f32.mrf.mxu0
    %v2143 = vadd.f32 %v1982, %v2142
    %v2144 = vpop.f32.mrf.mxu0
    %v2145 = vpop.f32.mrf.mxu0
    %v2146 = vadd.f32 %v1985, %v2145
    %v2147 = vpop.f32.mrf.mxu0
    %2148 = vmatprep.mubr.bf16.mxu0 0
    %2149 = vmatmul.mubr.bf16.gmra.mxu0 %v898
    %v2150 = vpop.f32.mrf.mxu0
    %v2151 = vadd.f32 %v1990, %v2150
    %v2152 = vpop.f32.mrf.mxu0
    %v2153 = vpop.f32.mrf.mxu0
    %v2154 = vadd.f32 %v1993, %v2153
    %v2155 = vpop.f32.mrf.mxu0
    %2156 = vmatprep.mubr.bf16.mxu0 0
    %2157 = vmatmul.mubr.bf16.gmra.mxu0 %v901
    %v2158 = vpop.f32.mrf.mxu0
    %v2159 = vadd.f32 %v1998, %v2158
    %v2160 = vpop.f32.mrf.mxu0
    %v2161 = vpop.f32.mrf.mxu0
    %v2162 = vadd.f32 %v2001, %v2161
    %v2163 = vpop.f32.mrf.mxu0
    %2164 = vmatprep.mubr.bf16.mxu0 0
    %2165 = vmatmul.mubr.bf16.gmra.mxu0 %v904
    %v2166 = vpop.f32.mrf.mxu0
    %v2167 = vadd.f32 %v2006, %v2166
    %v2168 = vpop.f32.mrf.mxu0
    %v2169 = vpop.f32.mrf.mxu0
    %v2170 = vadd.f32 %v2009, %v2169
    %v2171 = vpop.f32.mrf.mxu0
    %2172 = vdwg.mxu0
    %v2173 = vld [vmem:[%s27] sm:$0x1]
    %v2175 = vlaneseq
    %v2176 = vshrl.u32 %v2175, 7
    %v2177 = vsub.s32 0, %v2176
    %v2178 = vrot.slane %v2173, %v2177
    %v2180 = vadd.f32 %v2047, %v2178
    %v2181 = vadd.f32 %v2050, %v2178
    %v2182 = vadd.f32 %v2055, %v2178
    %v2183 = vadd.f32 %v2058, %v2178
    %v2184 = vadd.f32 %v2063, %v2178
    %v2185 = vadd.f32 %v2066, %v2178
    %v2186 = vadd.f32 %v2071, %v2178
    %v2187 = vadd.f32 %v2074, %v2178
    %v2188 = vadd.f32 %v2079, %v2178
    %v2189 = vadd.f32 %v2082, %v2178
    %v2190 = vadd.f32 %v2087, %v2178
    %v2191 = vadd.f32 %v2090, %v2178
    %v2192 = vadd.f32 %v2095, %v2178
    %v2193 = vadd.f32 %v2098, %v2178
    %v2194 = vadd.f32 %v2103, %v2178
    %v2195 = vadd.f32 %v2106, %v2178
    %v2196 = vadd.f32 %v2111, %v2178
    %v2197 = vadd.f32 %v2114, %v2178
    %v2198 = vadd.f32 %v2119, %v2178
    %v2199 = vadd.f32 %v2122, %v2178
    %v2200 = vadd.f32 %v2127, %v2178
    %v2201 = vadd.f32 %v2130, %v2178
    %v2202 = vadd.f32 %v2135, %v2178
    %v2203 = vadd.f32 %v2138, %v2178
    %v2204 = vadd.f32 %v2143, %v2178
    %v2205 = vadd.f32 %v2146, %v2178
    %v2206 = vadd.f32 %v2151, %v2178
    %v2207 = vadd.f32 %v2154, %v2178
    %v2208 = vadd.f32 %v2159, %v2178
    %v2209 = vadd.f32 %v2162, %v2178
    %v2210 = vadd.f32 %v2167, %v2178
    %v2211 = vadd.f32 %v2170, %v2178
    %v2212 = vmax.f32 %v2180, 0.0
    %v2213 = vmax.f32 %v2181, 0.0
    %v2214 = vmax.f32 %v2182, 0.0
    %v2215 = vmax.f32 %v2183, 0.0
    %v2216 = vmax.f32 %v2184, 0.0
    %v2217 = vmax.f32 %v2185, 0.0
    %v2218 = vmax.f32 %v2186, 0.0
    %v2219 = vmax.f32 %v2187, 0.0
    %v2220 = vmax.f32 %v2188, 0.0
    %v2221 = vmax.f32 %v2189, 0.0
    %v2222 = vmax.f32 %v2190, 0.0
    %v2223 = vmax.f32 %v2191, 0.0
    %v2224 = vmax.f32 %v2192, 0.0
    %v2225 = vmax.f32 %v2193, 0.0
    %v2226 = vmax.f32 %v2194, 0.0
    %v2227 = vmax.f32 %v2195, 0.0
    %v2228 = vmax.f32 %v2196, 0.0
    %v2229 = vmax.f32 %v2197, 0.0
    %v2230 = vmax.f32 %v2198, 0.0
    %v2231 = vmax.f32 %v2199, 0.0
    %v2232 = vmax.f32 %v2200, 0.0
    %v2233 = vmax.f32 %v2201, 0.0
    %v2234 = vmax.f32 %v2202, 0.0
    %v2235 = vmax.f32 %v2203, 0.0
    %v2236 = vmax.f32 %v2204, 0.0
    %v2237 = vmax.f32 %v2205, 0.0
    %v2238 = vmax.f32 %v2206, 0.0
    %v2239 = vmax.f32 %v2207, 0.0
    %v2240 = vmax.f32 %v2208, 0.0
    %v2241 = vmax.f32 %v2209, 0.0
    %v2242 = vmax.f32 %v2210, 0.0
    %v2243 = vmax.f32 %v2211, 0.0
    %v2244 = vpack.c.bf16 %v2213, %v2212
    %v2245 = vpack.c.bf16 %v2215, %v2214
    %v2246 = vpack.c.bf16 %v2217, %v2216
    %v2247 = vpack.c.bf16 %v2219, %v2218
    %v2248 = vpack.c.bf16 %v2221, %v2220
    %v2249 = vpack.c.bf16 %v2223, %v2222
    %v2250 = vpack.c.bf16 %v2225, %v2224
    %v2251 = vpack.c.bf16 %v2227, %v2226
    %v2252 = vpack.c.bf16 %v2229, %v2228
    %v2253 = vpack.c.bf16 %v2231, %v2230
    %v2254 = vpack.c.bf16 %v2233, %v2232
    %v2255 = vpack.c.bf16 %v2235, %v2234
    %v2256 = vpack.c.bf16 %v2237, %v2236
    %v2257 = vpack.c.bf16 %v2239, %v2238
    %v2258 = vpack.c.bf16 %v2241, %v2240
    %v2259 = vpack.c.bf16 %v2243, %v2242
    %v2260 = vld [vmem:[#allocation2] sm:$0xf]
    %v2261 = vld [vmem:[#allocation2 + $0x4] sm:$0xf]
    %v2262 = vld [vmem:[#allocation2 + $0x8] sm:$0xf]
    %v2263 = vld [vmem:[#allocation2 + $0xc] sm:$0xf]
    %v2264 = vld [vmem:[#allocation2 + $0x10] sm:$0xf]
    %v2265 = vld [vmem:[#allocation2 + $0x14] sm:$0xf]
    %v2266 = vld [vmem:[#allocation2 + $0x18] sm:$0xf]
    %v2267 = vld [vmem:[#allocation2 + $0x1c] sm:$0xf]
    %v2268 = vld [vmem:[%s31] sm:$0x1]
    %v2270 = vlaneseq
    %v2271 = vshrl.u32 %v2270, 7
    %v2272 = vsub.s32 0, %v2271
    %v2273 = vrot.slane %v2268, %v2272
    %v2283 = vunpack.c.l.b16 %v2260
    %v2284 = vunpack.c.l.b16 %v2261
    %v2285 = vunpack.c.l.b16 %v2262
    %v2286 = vunpack.c.l.b16 %v2263
    %v2287 = vunpack.c.l.b16 %v2264
    %v2288 = vunpack.c.l.b16 %v2265
    %v2289 = vunpack.c.l.b16 %v2266
    %v2290 = vunpack.c.l.b16 %v2267
    %v2291 = vpack.c.b16 %v2284, %v2283
    %v2292 = vpack.c.b16 %v2286, %v2285
    %v2293 = vpack.c.b16 %v2288, %v2287
    %v2294 = vpack.c.b16 %v2290, %v2289
    %v2300 = vsel %vm568, %v2244, 0
    %v2303 = vsel %vm568, %v2245, 0
    %v2306 = vsel %vm568, %v2246, 0
    %v2309 = vsel %vm568, %v2247, 0
    %v2312 = vsel %vm568, %v2248, 0
    %v2315 = vsel %vm568, %v2249, 0
    %v2318 = vsel %vm568, %v2250, 0
    %v2321 = vsel %vm568, %v2251, 0
    %v2324 = vsel %vm568, %v2252, 0
    %v2327 = vsel %vm568, %v2253, 0
    %v2330 = vsel %vm568, %v2254, 0
    %v2333 = vsel %vm568, %v2255, 0
    %v2336 = vsel %vm568, %v2256, 0
    %v2339 = vsel %vm568, %v2257, 0
    %v2342 = vsel %vm568, %v2258, 0
    %v2345 = vsel %vm568, %v2259, 0
    %2347 = vmatprep.subr.bf16.mxu0 0
    %2348 = vmatpush1.bf16.msra.mxu0 0
    %2349 = vmatprep.subr.bf16.mxu0 0
    %2350 = vmatpush1.bf16.msra.mxu0 0
    %2351 = vmatprep.subr.bf16.mxu0 0
    %2352 = vmatpush1.bf16.msra.mxu0 0
    %2353 = vmatprep.subr.bf16.mxu0 0
    %2354 = vmatpush1.bf16.msra.mxu0 0
    %2355 = vmatprep.subr.bf16.mxu0 0
    %2356 = vmatpush1.bf16.msra.mxu0 %v2294
    %2357 = vmatprep.subr.bf16.mxu0 0
    %2358 = vmatpush1.bf16.msra.mxu0 %v2293
    %2359 = vmatprep.subr.bf16.mxu0 0
    %2360 = vmatpush1.bf16.msra.mxu0 %v2292
    %2361 = vmatprep.subr.bf16.mxu0 0
    %2362 = vmatpush1.bf16.msra.mxu0 %v2291
    %2363 = vmatprep.subr.bf16.mxu0 0
    %2364 = vmatpush2.bf16.msra.mxu0 0
    %2365 = vmatprep.subr.bf16.mxu0 0
    %2366 = vmatpush2.bf16.msra.mxu0 0
    %2367 = vmatprep.subr.bf16.mxu0 0
    %2368 = vmatpush2.bf16.msra.mxu0 0
    %2369 = vmatprep.subr.bf16.mxu0 0
    %2370 = vmatpush2.bf16.msra.mxu0 0
    %2371 = vmatprep.subr.bf16.mxu0 0
    %2372 = vmatpush2.bf16.msra.mxu0 0
    %2373 = vmatprep.subr.bf16.mxu0 0
    %2374 = vmatpush2.bf16.msra.mxu0 0
    %2375 = vmatprep.subr.bf16.mxu0 0
    %2376 = vmatpush2.bf16.msra.mxu0 0
    %2377 = vmatprep.subr.bf16.mxu0 0
    %2378 = vmatpush2.bf16.msra.mxu0 0
    %2379 = vmatprep.mubr.bf16.mxu0 0
    %2380 = vmatmul.mubr.bf16.gmra.mxu0 %v2300
    %v2381 = vpop.f32.mrf.mxu0
    %v2382 = vadd.f32 %v2273, %v2381
    %v2383 = vpop.f32.mrf.mxu0
    %v2384 = vpop.f32.mrf.mxu0
    %v2385 = vadd.f32 %v2273, %v2384
    %v2386 = vpop.f32.mrf.mxu0
    %2387 = vmatprep.mubr.bf16.mxu0 0
    %2388 = vmatmul.mubr.bf16.gmra.mxu0 %v2303
    %v2389 = vpop.f32.mrf.mxu0
    %v2390 = vadd.f32 %v2273, %v2389
    %v2391 = vpop.f32.mrf.mxu0
    %v2392 = vpop.f32.mrf.mxu0
    %v2393 = vadd.f32 %v2273, %v2392
    %v2394 = vpop.f32.mrf.mxu0
    %2395 = vmatprep.mubr.bf16.mxu0 0
    %2396 = vmatmul.mubr.bf16.gmra.mxu0 %v2306
    %v2397 = vpop.f32.mrf.mxu0
    %v2398 = vadd.f32 %v2273, %v2397
    %v2399 = vpop.f32.mrf.mxu0
    %v2400 = vpop.f32.mrf.mxu0
    %v2401 = vadd.f32 %v2273, %v2400
    %v2402 = vpop.f32.mrf.mxu0
    %2403 = vmatprep.mubr.bf16.mxu0 0
    %2404 = vmatmul.mubr.bf16.gmra.mxu0 %v2309
    %v2405 = vpop.f32.mrf.mxu0
    %v2406 = vadd.f32 %v2273, %v2405
    %v2407 = vpop.f32.mrf.mxu0
    %v2408 = vpop.f32.mrf.mxu0
    %v2409 = vadd.f32 %v2273, %v2408
    %v2410 = vpop.f32.mrf.mxu0
    %2411 = vmatprep.mubr.bf16.mxu0 0
    %2412 = vmatmul.mubr.bf16.gmra.mxu0 %v2312
    %v2413 = vpop.f32.mrf.mxu0
    %v2414 = vadd.f32 %v2273, %v2413
    %v2415 = vpop.f32.mrf.mxu0
    %v2416 = vpop.f32.mrf.mxu0
    %v2417 = vadd.f32 %v2273, %v2416
    %v2418 = vpop.f32.mrf.mxu0
    %2419 = vmatprep.mubr.bf16.mxu0 0
    %2420 = vmatmul.mubr.bf16.gmra.mxu0 %v2315
    %v2421 = vpop.f32.mrf.mxu0
    %v2422 = vadd.f32 %v2273, %v2421
    %v2423 = vpop.f32.mrf.mxu0
    %v2424 = vpop.f32.mrf.mxu0
    %v2425 = vadd.f32 %v2273, %v2424
    %v2426 = vpop.f32.mrf.mxu0
    %2427 = vmatprep.mubr.bf16.mxu0 0
    %2428 = vmatmul.mubr.bf16.gmra.mxu0 %v2318
    %v2429 = vpop.f32.mrf.mxu0
    %v2430 = vadd.f32 %v2273, %v2429
    %v2431 = vpop.f32.mrf.mxu0
    %v2432 = vpop.f32.mrf.mxu0
    %v2433 = vadd.f32 %v2273, %v2432
    %v2434 = vpop.f32.mrf.mxu0
    %2435 = vmatprep.mubr.bf16.mxu0 0
    %2436 = vmatmul.mubr.bf16.gmra.mxu0 %v2321
    %v2437 = vpop.f32.mrf.mxu0
    %v2438 = vadd.f32 %v2273, %v2437
    %v2439 = vpop.f32.mrf.mxu0
    %v2440 = vpop.f32.mrf.mxu0
    %v2441 = vadd.f32 %v2273, %v2440
    %v2442 = vpop.f32.mrf.mxu0
    %2443 = vmatprep.mubr.bf16.mxu0 0
    %2444 = vmatmul.mubr.bf16.gmra.mxu0 %v2324
    %v2445 = vpop.f32.mrf.mxu0
    %v2446 = vadd.f32 %v2273, %v2445
    %v2447 = vpop.f32.mrf.mxu0
    %v2448 = vpop.f32.mrf.mxu0
    %v2449 = vadd.f32 %v2273, %v2448
    %v2450 = vpop.f32.mrf.mxu0
    %2451 = vmatprep.mubr.bf16.mxu0 0
    %2452 = vmatmul.mubr.bf16.gmra.mxu0 %v2327
    %v2453 = vpop.f32.mrf.mxu0
    %v2454 = vadd.f32 %v2273, %v2453
    %v2455 = vpop.f32.mrf.mxu0
    %v2456 = vpop.f32.mrf.mxu0
    %v2457 = vadd.f32 %v2273, %v2456
    %v2458 = vpop.f32.mrf.mxu0
    %2459 = vmatprep.mubr.bf16.mxu0 0
    %2460 = vmatmul.mubr.bf16.gmra.mxu0 %v2330
    %v2461 = vpop.f32.mrf.mxu0
    %v2462 = vadd.f32 %v2273, %v2461
    %v2463 = vpop.f32.mrf.mxu0
    %v2464 = vpop.f32.mrf.mxu0
    %v2465 = vadd.f32 %v2273, %v2464
    %v2466 = vpop.f32.mrf.mxu0
    %2467 = vmatprep.mubr.bf16.mxu0 0
    %2468 = vmatmul.mubr.bf16.gmra.mxu0 %v2333
    %v2469 = vpop.f32.mrf.mxu0
    %v2470 = vadd.f32 %v2273, %v2469
    %v2471 = vpop.f32.mrf.mxu0
    %v2472 = vpop.f32.mrf.mxu0
    %v2473 = vadd.f32 %v2273, %v2472
    %v2474 = vpop.f32.mrf.mxu0
    %2475 = vmatprep.mubr.bf16.mxu0 0
    %2476 = vmatmul.mubr.bf16.gmra.mxu0 %v2336
    %v2477 = vpop.f32.mrf.mxu0
    %v2478 = vadd.f32 %v2273, %v2477
    %v2479 = vpop.f32.mrf.mxu0
    %v2480 = vpop.f32.mrf.mxu0
    %v2481 = vadd.f32 %v2273, %v2480
    %v2482 = vpop.f32.mrf.mxu0
    %2483 = vmatprep.mubr.bf16.mxu0 0
    %2484 = vmatmul.mubr.bf16.gmra.mxu0 %v2339
    %v2485 = vpop.f32.mrf.mxu0
    %v2486 = vadd.f32 %v2273, %v2485
    %v2487 = vpop.f32.mrf.mxu0
    %v2488 = vpop.f32.mrf.mxu0
    %v2489 = vadd.f32 %v2273, %v2488
    %v2490 = vpop.f32.mrf.mxu0
    %2491 = vmatprep.mubr.bf16.mxu0 0
    %2492 = vmatmul.mubr.bf16.gmra.mxu0 %v2342
    %v2493 = vpop.f32.mrf.mxu0
    %v2494 = vadd.f32 %v2273, %v2493
    %v2495 = vpop.f32.mrf.mxu0
    %v2496 = vpop.f32.mrf.mxu0
    %v2497 = vadd.f32 %v2273, %v2496
    %v2498 = vpop.f32.mrf.mxu0
    %2499 = vmatprep.mubr.bf16.mxu0 0
    %2500 = vmatmul.mubr.bf16.gmra.mxu0 %v2345
    %v2501 = vpop.f32.mrf.mxu0
    %v2502 = vadd.f32 %v2273, %v2501
    %v2503 = vpop.f32.mrf.mxu0
    %v2504 = vpop.f32.mrf.mxu0
    %v2505 = vadd.f32 %v2273, %v2504
    %v2506 = vpop.f32.mrf.mxu0
    %2507 = vdwg.mxu0
    %v2508 = vmax.f32 %v2382, 0.0
    %v2509 = vmax.f32 %v2385, 0.0
    %v2510 = vmax.f32 %v2390, 0.0
    %v2511 = vmax.f32 %v2393, 0.0
    %v2512 = vmax.f32 %v2398, 0.0
    %v2513 = vmax.f32 %v2401, 0.0
    %v2514 = vmax.f32 %v2406, 0.0
    %v2515 = vmax.f32 %v2409, 0.0
    %v2516 = vmax.f32 %v2414, 0.0
    %v2517 = vmax.f32 %v2417, 0.0
    %v2518 = vmax.f32 %v2422, 0.0
    %v2519 = vmax.f32 %v2425, 0.0
    %v2520 = vmax.f32 %v2430, 0.0
    %v2521 = vmax.f32 %v2433, 0.0
    %v2522 = vmax.f32 %v2438, 0.0
    %v2523 = vmax.f32 %v2441, 0.0
    %v2524 = vmax.f32 %v2446, 0.0
    %v2525 = vmax.f32 %v2449, 0.0
    %v2526 = vmax.f32 %v2454, 0.0
    %v2527 = vmax.f32 %v2457, 0.0
    %v2528 = vmax.f32 %v2462, 0.0
    %v2529 = vmax.f32 %v2465, 0.0
    %v2530 = vmax.f32 %v2470, 0.0
    %v2531 = vmax.f32 %v2473, 0.0
    %v2532 = vmax.f32 %v2478, 0.0
    %v2533 = vmax.f32 %v2481, 0.0
    %v2534 = vmax.f32 %v2486, 0.0
    %v2535 = vmax.f32 %v2489, 0.0
    %v2536 = vmax.f32 %v2494, 0.0
    %v2537 = vmax.f32 %v2497, 0.0
    %v2538 = vmax.f32 %v2502, 0.0
    %v2539 = vmax.f32 %v2505, 0.0
    %v2540 = vld [vmem:[%s33] sm:$0x1]
    %v2542 = vlaneseq
    %v2543 = vshrl.u32 %v2542, 7
    %v2544 = vsub.s32 0, %v2543
    %v2545 = vrot.slane %v2540, %v2544
    %v2547 = vmul.f32 %v2508, %v2545
    %v2548 = vmul.f32 %v2509, %v2545
    %v2549 = vmul.f32 %v2510, %v2545
    %v2550 = vmul.f32 %v2511, %v2545
    %v2551 = vmul.f32 %v2512, %v2545
    %v2552 = vmul.f32 %v2513, %v2545
    %v2553 = vmul.f32 %v2514, %v2545
    %v2554 = vmul.f32 %v2515, %v2545
    %v2555 = vmul.f32 %v2516, %v2545
    %v2556 = vmul.f32 %v2517, %v2545
    %v2557 = vmul.f32 %v2518, %v2545
    %v2558 = vmul.f32 %v2519, %v2545
    %v2559 = vmul.f32 %v2520, %v2545
    %v2560 = vmul.f32 %v2521, %v2545
    %v2561 = vmul.f32 %v2522, %v2545
    %v2562 = vmul.f32 %v2523, %v2545
    %v2563 = vmul.f32 %v2524, %v2545
    %v2564 = vmul.f32 %v2525, %v2545
    %v2565 = vmul.f32 %v2526, %v2545
    %v2566 = vmul.f32 %v2527, %v2545
    %v2567 = vmul.f32 %v2528, %v2545
    %v2568 = vmul.f32 %v2529, %v2545
    %v2569 = vmul.f32 %v2530, %v2545
    %v2570 = vmul.f32 %v2531, %v2545
    %v2571 = vmul.f32 %v2532, %v2545
    %v2572 = vmul.f32 %v2533, %v2545
    %v2573 = vmul.f32 %v2534, %v2545
    %v2574 = vmul.f32 %v2535, %v2545
    %v2575 = vmul.f32 %v2536, %v2545
    %v2576 = vmul.f32 %v2537, %v2545
    %v2577 = vmul.f32 %v2538, %v2545
    %v2578 = vmul.f32 %v2539, %v2545
    %v2579 = vld [vmem:[%s35] sm:$0x1]
    %v2581 = vlaneseq
    %v2582 = vshrl.u32 %v2581, 7
    %v2583 = vsub.s32 0, %v2582
    %v2584 = vrot.slane %v2579, %v2583
    %v2586 = vadd.f32 %v2547, %v2584
    %v2587 = vadd.f32 %v2548, %v2584
    %v2588 = vadd.f32 %v2549, %v2584
    %v2589 = vadd.f32 %v2550, %v2584
    %v2590 = vadd.f32 %v2551, %v2584
    %v2591 = vadd.f32 %v2552, %v2584
    %v2592 = vadd.f32 %v2553, %v2584
    %v2593 = vadd.f32 %v2554, %v2584
    %v2594 = vadd.f32 %v2555, %v2584
    %v2595 = vadd.f32 %v2556, %v2584
    %v2596 = vadd.f32 %v2557, %v2584
    %v2597 = vadd.f32 %v2558, %v2584
    %v2598 = vadd.f32 %v2559, %v2584
    %v2599 = vadd.f32 %v2560, %v2584
    %v2600 = vadd.f32 %v2561, %v2584
    %v2601 = vadd.f32 %v2562, %v2584
    %v2602 = vadd.f32 %v2563, %v2584
    %v2603 = vadd.f32 %v2564, %v2584
    %v2604 = vadd.f32 %v2565, %v2584
    %v2605 = vadd.f32 %v2566, %v2584
    %v2606 = vadd.f32 %v2567, %v2584
    %v2607 = vadd.f32 %v2568, %v2584
    %v2608 = vadd.f32 %v2569, %v2584
    %v2609 = vadd.f32 %v2570, %v2584
    %v2610 = vadd.f32 %v2571, %v2584
    %v2611 = vadd.f32 %v2572, %v2584
    %v2612 = vadd.f32 %v2573, %v2584
    %v2613 = vadd.f32 %v2574, %v2584
    %v2614 = vadd.f32 %v2575, %v2584
    %v2615 = vadd.f32 %v2576, %v2584
    %v2616 = vadd.f32 %v2577, %v2584
    %v2617 = vadd.f32 %v2578, %v2584
    %v2618 = vpack.c.bf16 %v2587, %v2586
    %v2619 = vpack.c.bf16 %v2589, %v2588
    %v2620 = vpack.c.bf16 %v2591, %v2590
    %v2621 = vpack.c.bf16 %v2593, %v2592
    %v2622 = vpack.c.bf16 %v2595, %v2594
    %v2623 = vpack.c.bf16 %v2597, %v2596
    %v2624 = vpack.c.bf16 %v2599, %v2598
    %v2625 = vpack.c.bf16 %v2601, %v2600
    %v2626 = vpack.c.bf16 %v2603, %v2602
    %v2627 = vpack.c.bf16 %v2605, %v2604
    %v2628 = vpack.c.bf16 %v2607, %v2606
    %v2629 = vpack.c.bf16 %v2609, %v2608
    %v2630 = vpack.c.bf16 %v2611, %v2610
    %v2631 = vpack.c.bf16 %v2613, %v2612
    %v2632 = vpack.c.bf16 %v2615, %v2614
    %v2633 = vpack.c.bf16 %v2617, %v2616
    %2634 = vmatprep.subr.bf16.mxu0 0
    %2635 = vmatpush1.bf16.msra.mxu0 %v2625
    %2636 = vmatprep.subr.bf16.mxu0 0
    %2637 = vmatpush1.bf16.msra.mxu0 %v2624
    %2638 = vmatprep.subr.bf16.mxu0 0
    %2639 = vmatpush1.bf16.msra.mxu0 %v2623
    %2640 = vmatprep.subr.bf16.mxu0 0
    %2641 = vmatpush1.bf16.msra.mxu0 %v2622
    %2642 = vmatprep.subr.bf16.mxu0 0
    %2643 = vmatpush1.bf16.msra.mxu0 %v2621
    %2644 = vmatprep.subr.bf16.mxu0 0
    %2645 = vmatpush1.bf16.msra.mxu0 %v2620
    %2646 = vmatprep.subr.bf16.mxu0 0
    %2647 = vmatpush1.bf16.msra.mxu0 %v2619
    %2648 = vmatprep.subr.bf16.mxu0 0
    %2649 = vmatpush1.bf16.msra.mxu0 %v2618
    %2650 = vmatprep.subr.bf16.mxu0 0
    %2651 = vmatpush2.bf16.msra.mxu0 %v2633
    %2652 = vmatprep.subr.bf16.mxu0 0
    %2653 = vmatpush2.bf16.msra.mxu0 %v2632
    %2654 = vmatprep.subr.bf16.mxu0 0
    %2655 = vmatpush2.bf16.msra.mxu0 %v2631
    %2656 = vmatprep.subr.bf16.mxu0 0
    %2657 = vmatpush2.bf16.msra.mxu0 %v2630
    %2658 = vmatprep.subr.bf16.mxu0 0
    %2659 = vmatpush2.bf16.msra.mxu0 %v2629
    %2660 = vmatprep.subr.bf16.mxu0 0
    %2661 = vmatpush2.bf16.msra.mxu0 %v2628
    %2662 = vmatprep.subr.bf16.mxu0 0
    %2663 = vmatpush2.bf16.msra.mxu0 %v2627
    %2664 = vmatprep.subr.bf16.mxu0 0
    %2665 = vmatpush2.bf16.msra.mxu0 %v2626
    %2666 = vmatprep.mubr.bf16.mxu0 %v1553
    %2667 = vmatmul.mubr.bf16.gmra.mxu0 %v1552
    %v2668 = vpop.f32.mrf.mxu0
    %v2669 = vadd.f32 0.0, %v2668
    %v2670 = vpop.f32.mrf.mxu0
    %v2671 = vpop.f32.mrf.mxu0
    %v2672 = vadd.f32 0.0, %v2671
    %v2673 = vpop.f32.mrf.mxu0
    %2674 = vmatprep.mubr.bf16.mxu0 %v1555
    %2675 = vmatmul.mubr.bf16.gmra.mxu0 %v1554
    %v2676 = vpop.f32.mrf.mxu0
    %v2677 = vadd.f32 0.0, %v2676
    %v2678 = vpop.f32.mrf.mxu0
    %v2679 = vpop.f32.mrf.mxu0
    %v2680 = vadd.f32 0.0, %v2679
    %v2681 = vpop.f32.mrf.mxu0
    %2682 = vmatprep.mubr.bf16.mxu0 %v1557
    %2683 = vmatmul.mubr.bf16.gmra.mxu0 %v1556
    %v2684 = vpop.f32.mrf.mxu0
    %v2685 = vadd.f32 0.0, %v2684
    %v2686 = vpop.f32.mrf.mxu0
    %v2687 = vpop.f32.mrf.mxu0
    %v2688 = vadd.f32 0.0, %v2687
    %v2689 = vpop.f32.mrf.mxu0
    %2690 = vmatprep.mubr.bf16.mxu0 %v1559
    %2691 = vmatmul.mubr.bf16.gmra.mxu0 %v1558
    %v2692 = vpop.f32.mrf.mxu0
    %v2693 = vadd.f32 0.0, %v2692
    %v2694 = vpop.f32.mrf.mxu0
    %v2695 = vpop.f32.mrf.mxu0
    %v2696 = vadd.f32 0.0, %v2695
    %v2697 = vpop.f32.mrf.mxu0
    %2698 = vdwg.mxu0
    %v2699 = vpack.c.bf16 %v2672, %v2669
    %v2700 = vpack.c.bf16 %v2680, %v2677
    %v2701 = vpack.c.bf16 %v2688, %v2685
    %v2702 = vpack.c.bf16 %v2696, %v2693
    %v2703 = vld [vmem:[#allocation4] sm:$0xf]
    %v2704 = vld [vmem:[#allocation4 + $0x4] sm:$0xf]
    %v2705 = vld [vmem:[#allocation4 + $0x8] sm:$0xf]
    %v2706 = vld [vmem:[#allocation4 + $0xc] sm:$0xf]
    %v2707 = vld [vmem:[#allocation4 + $0x10] sm:$0xf]
    %v2708 = vld [vmem:[#allocation4 + $0x14] sm:$0xf]
    %v2709 = vld [vmem:[#allocation4 + $0x18] sm:$0xf]
    %v2710 = vld [vmem:[#allocation4 + $0x1c] sm:$0xf]
    %v2719 = vunpack.c.l.b16 %v2703
    %v2720 = vunpack.c.l.b16 %v2704
    %v2721 = vunpack.c.l.b16 %v2705
    %v2722 = vunpack.c.l.b16 %v2706
    %v2723 = vunpack.c.l.b16 %v2707
    %v2724 = vunpack.c.l.b16 %v2708
    %v2725 = vunpack.c.l.b16 %v2709
    %v2726 = vunpack.c.l.b16 %v2710
    %v2727 = vpack.c.b16 %v2720, %v2719
    %v2728 = vpack.c.b16 %v2722, %v2721
    %v2729 = vpack.c.b16 %v2724, %v2723
    %v2730 = vpack.c.b16 %v2726, %v2725
    %v2736 = vsel %vm568, %v2699, 0
    %v2739 = vsel %vm568, %v2700, 0
    %v2742 = vsel %vm568, %v2701, 0
    %v2745 = vsel %vm568, %v2702, 0
    %2747 = vmatprep.subr.bf16.mxu0 0
    %2748 = vmatpush1.bf16.msra.mxu0 0
    %2749 = vmatprep.subr.bf16.mxu0 0
    %2750 = vmatpush1.bf16.msra.mxu0 0
    %2751 = vmatprep.subr.bf16.mxu0 0
    %2752 = vmatpush1.bf16.msra.mxu0 0
    %2753 = vmatprep.subr.bf16.mxu0 0
    %2754 = vmatpush1.bf16.msra.mxu0 0
    %2755 = vmatprep.subr.bf16.mxu0 0
    %2756 = vmatpush1.bf16.msra.mxu0 %v2730
    %2757 = vmatprep.subr.bf16.mxu0 0
    %2758 = vmatpush1.bf16.msra.mxu0 %v2729
    %2759 = vmatprep.subr.bf16.mxu0 0
    %2760 = vmatpush1.bf16.msra.mxu0 %v2728
    %2761 = vmatprep.subr.bf16.mxu0 0
    %2762 = vmatpush1.bf16.msra.mxu0 %v2727
    %2763 = vmatprep.subr.bf16.mxu0 0
    %2764 = vmatpush2.bf16.msra.mxu0 0
    %2765 = vmatprep.subr.bf16.mxu0 0
    %2766 = vmatpush2.bf16.msra.mxu0 0
    %2767 = vmatprep.subr.bf16.mxu0 0
    %2768 = vmatpush2.bf16.msra.mxu0 0
    %2769 = vmatprep.subr.bf16.mxu0 0
    %2770 = vmatpush2.bf16.msra.mxu0 0
    %2771 = vmatprep.subr.bf16.mxu0 0
    %2772 = vmatpush2.bf16.msra.mxu0 0
    %2773 = vmatprep.subr.bf16.mxu0 0
    %2774 = vmatpush2.bf16.msra.mxu0 0
    %2775 = vmatprep.subr.bf16.mxu0 0
    %2776 = vmatpush2.bf16.msra.mxu0 0
    %2777 = vmatprep.subr.bf16.mxu0 0
    %2778 = vmatpush2.bf16.msra.mxu0 0
    %2779 = vmatprep.mubr.bf16.mxu0 0
    %2780 = vmatmul.mubr.bf16.gmra.mxu0 %v2736
    %v2781 = vpop.f32.mrf.mxu0
    %v2782 = vadd.f32 0.0, %v2781
    %v2783 = vpop.f32.mrf.mxu0
    %v2784 = vpop.f32.mrf.mxu0
    %v2785 = vadd.f32 0.0, %v2784
    %v2786 = vpop.f32.mrf.mxu0
    %2787 = vmatprep.mubr.bf16.mxu0 0
    %2788 = vmatmul.mubr.bf16.gmra.mxu0 %v2739
    %v2789 = vpop.f32.mrf.mxu0
    %v2790 = vadd.f32 0.0, %v2789
    %v2791 = vpop.f32.mrf.mxu0
    %v2792 = vpop.f32.mrf.mxu0
    %v2793 = vadd.f32 0.0, %v2792
    %v2794 = vpop.f32.mrf.mxu0
    %2795 = vmatprep.mubr.bf16.mxu0 0
    %2796 = vmatmul.mubr.bf16.gmra.mxu0 %v2742
    %v2797 = vpop.f32.mrf.mxu0
    %v2798 = vadd.f32 0.0, %v2797
    %v2799 = vpop.f32.mrf.mxu0
    %v2800 = vpop.f32.mrf.mxu0
    %v2801 = vadd.f32 0.0, %v2800
    %v2802 = vpop.f32.mrf.mxu0
    %2803 = vmatprep.mubr.bf16.mxu0 0
    %2804 = vmatmul.mubr.bf16.gmra.mxu0 %v2745
    %v2805 = vpop.f32.mrf.mxu0
    %v2806 = vadd.f32 0.0, %v2805
    %v2807 = vpop.f32.mrf.mxu0
    %v2808 = vpop.f32.mrf.mxu0
    %v2809 = vadd.f32 0.0, %v2808
    %v2810 = vpop.f32.mrf.mxu0
    %2811 = vdwg.mxu0
    %v2812 = vpack.c.bf16 %v2785, %v2782
    %v2813 = vpack.c.bf16 %v2793, %v2790
    %v2814 = vpack.c.bf16 %v2801, %v2798
    %v2815 = vpack.c.bf16 %v2809, %v2806
    %v2816 = vld [vmem:[#allocation6] sm:$0xf]
    %v2817 = vld [vmem:[#allocation6 + $0x4] sm:$0xf]
    %v2818 = vld [vmem:[#allocation6 + $0x8] sm:$0xf]
    %v2819 = vld [vmem:[#allocation6 + $0xc] sm:$0xf]
    %v2820 = vld [vmem:[#allocation6 + $0x10] sm:$0xf]
    %v2821 = vld [vmem:[#allocation6 + $0x14] sm:$0xf]
    %v2822 = vld [vmem:[#allocation6 + $0x18] sm:$0xf]
    %v2823 = vld [vmem:[#allocation6 + $0x1c] sm:$0xf]
    %v2832 = vunpack.c.l.b16 %v2816
    %v2833 = vunpack.c.l.b16 %v2817
    %v2834 = vunpack.c.l.b16 %v2818
    %v2835 = vunpack.c.l.b16 %v2819
    %v2836 = vunpack.c.l.b16 %v2820
    %v2837 = vunpack.c.l.b16 %v2821
    %v2838 = vunpack.c.l.b16 %v2822
    %v2839 = vunpack.c.l.b16 %v2823
    %v2840 = vpack.c.b16 %v2833, %v2832
    %v2841 = vpack.c.b16 %v2835, %v2834
    %v2842 = vpack.c.b16 %v2837, %v2836
    %v2843 = vpack.c.b16 %v2839, %v2838
    %2848 = vmatprep.subr.bf16.mxu0 0
    %2849 = vmatpush1.bf16.msra.mxu0 0
    %2850 = vmatprep.subr.bf16.mxu0 0
    %2851 = vmatpush1.bf16.msra.mxu0 0
    %2852 = vmatprep.subr.bf16.mxu0 0
    %2853 = vmatpush1.bf16.msra.mxu0 0
    %2854 = vmatprep.subr.bf16.mxu0 0
    %2855 = vmatpush1.bf16.msra.mxu0 0
    %2856 = vmatprep.subr.bf16.mxu0 0
    %2857 = vmatpush1.bf16.msra.mxu0 %v2843
    %2858 = vmatprep.subr.bf16.mxu0 0
    %2859 = vmatpush1.bf16.msra.mxu0 %v2842
    %2860 = vmatprep.subr.bf16.mxu0 0
    %2861 = vmatpush1.bf16.msra.mxu0 %v2841
    %2862 = vmatprep.subr.bf16.mxu0 0
    %2863 = vmatpush1.bf16.msra.mxu0 %v2840
    %2864 = vmatprep.subr.bf16.mxu0 0
    %2865 = vmatpush2.bf16.msra.mxu0 0
    %2866 = vmatprep.subr.bf16.mxu0 0
    %2867 = vmatpush2.bf16.msra.mxu0 0
    %2868 = vmatprep.subr.bf16.mxu0 0
    %2869 = vmatpush2.bf16.msra.mxu0 0
    %2870 = vmatprep.subr.bf16.mxu0 0
    %2871 = vmatpush2.bf16.msra.mxu0 0
    %2872 = vmatprep.subr.bf16.mxu0 0
    %2873 = vmatpush2.bf16.msra.mxu0 0
    %2874 = vmatprep.subr.bf16.mxu0 0
    %2875 = vmatpush2.bf16.msra.mxu0 0
    %2876 = vmatprep.subr.bf16.mxu0 0
    %2877 = vmatpush2.bf16.msra.mxu0 0
    %2878 = vmatprep.subr.bf16.mxu0 0
    %2879 = vmatpush2.bf16.msra.mxu0 0
    %2880 = vmatprep.mubr.bf16.mxu0 0
    %2881 = vmatmul.mubr.bf16.gmra.mxu0 %v2736
    %v2882 = vpop.f32.mrf.mxu0
    %v2883 = vadd.f32 0.0, %v2882
    %v2884 = vpop.f32.mrf.mxu0
    %v2885 = vpop.f32.mrf.mxu0
    %v2886 = vadd.f32 0.0, %v2885
    %v2887 = vpop.f32.mrf.mxu0
    %2888 = vmatprep.mubr.bf16.mxu0 0
    %2889 = vmatmul.mubr.bf16.gmra.mxu0 %v2739
    %v2890 = vpop.f32.mrf.mxu0
    %v2891 = vadd.f32 0.0, %v2890
    %v2892 = vpop.f32.mrf.mxu0
    %v2893 = vpop.f32.mrf.mxu0
    %v2894 = vadd.f32 0.0, %v2893
    %v2895 = vpop.f32.mrf.mxu0
    %2896 = vmatprep.mubr.bf16.mxu0 0
    %2897 = vmatmul.mubr.bf16.gmra.mxu0 %v2742
    %v2898 = vpop.f32.mrf.mxu0
    %v2899 = vadd.f32 0.0, %v2898
    %v2900 = vpop.f32.mrf.mxu0
    %v2901 = vpop.f32.mrf.mxu0
    %v2902 = vadd.f32 0.0, %v2901
    %v2903 = vpop.f32.mrf.mxu0
    %2904 = vmatprep.mubr.bf16.mxu0 0
    %2905 = vmatmul.mubr.bf16.gmra.mxu0 %v2745
    %v2906 = vpop.f32.mrf.mxu0
    %v2907 = vadd.f32 0.0, %v2906
    %v2908 = vpop.f32.mrf.mxu0
    %v2909 = vpop.f32.mrf.mxu0
    %v2910 = vadd.f32 0.0, %v2909
    %v2911 = vpop.f32.mrf.mxu0
    %2912 = vdwg.mxu0
    %v2913 = vpack.c.bf16 %v2886, %v2883
    %v2914 = vpack.c.bf16 %v2894, %v2891
    %v2915 = vpack.c.bf16 %v2902, %v2899
    %v2916 = vpack.c.bf16 %v2910, %v2907
    %2917 = vmatprep.subr.bf16.mxu0 0
    %2918 = vmatpush1.bf16.msra.mxu0 0
    %2919 = vmatprep.subr.bf16.mxu0 0
    %2920 = vmatpush1.bf16.msra.mxu0 0
    %2921 = vmatprep.subr.bf16.mxu0 0
    %2922 = vmatpush1.bf16.msra.mxu0 0
    %2923 = vmatprep.subr.bf16.mxu0 0
    %2924 = vmatpush1.bf16.msra.mxu0 0
    %2925 = vmatprep.subr.bf16.mxu0 0
    %2926 = vmatpush1.bf16.msra.mxu0 %v2916
    %2927 = vmatprep.subr.bf16.mxu0 0
    %2928 = vmatpush1.bf16.msra.mxu0 %v2915
    %2929 = vmatprep.subr.bf16.mxu0 0
    %2930 = vmatpush1.bf16.msra.mxu0 %v2914
    %2931 = vmatprep.subr.bf16.mxu0 0
    %2932 = vmatpush1.bf16.msra.mxu0 %v2913
    %2933 = vmatprep.subr.bf16.mxu0 0
    %2934 = vmatpush2.bf16.msra.mxu0 0
    %2935 = vmatprep.subr.bf16.mxu0 0
    %2936 = vmatpush2.bf16.msra.mxu0 0
    %2937 = vmatprep.subr.bf16.mxu0 0
    %2938 = vmatpush2.bf16.msra.mxu0 0
    %2939 = vmatprep.subr.bf16.mxu0 0
    %2940 = vmatpush2.bf16.msra.mxu0 0
    %2941 = vmatprep.subr.bf16.mxu0 0
    %2942 = vmatpush2.bf16.msra.mxu0 0
    %2943 = vmatprep.subr.bf16.mxu0 0
    %2944 = vmatpush2.bf16.msra.mxu0 0
    %2945 = vmatprep.subr.bf16.mxu0 0
    %2946 = vmatpush2.bf16.msra.mxu0 0
    %2947 = vmatprep.subr.bf16.mxu0 0
    %2948 = vmatpush2.bf16.msra.mxu0 0
    %2949 = vmatprep.mubr.bf16.mxu0 0
    %2950 = vmatmul.mubr.bf16.gmra.mxu0 %v570
    %v2951 = vpop.f32.mrf.mxu0
    %v2952 = vadd.f32 0.0, %v2951
    %v2953 = vpop.f32.mrf.mxu0
    %v2954 = vpop.f32.mrf.mxu0
    %v2955 = vadd.f32 0.0, %v2954
    %v2956 = vpop.f32.mrf.mxu0
    %2957 = vmatprep.mubr.bf16.mxu0 0
    %2958 = vmatmul.mubr.bf16.gmra.mxu0 %v573
    %v2959 = vpop.f32.mrf.mxu0
    %v2960 = vadd.f32 0.0, %v2959
    %v2961 = vpop.f32.mrf.mxu0
    %v2962 = vpop.f32.mrf.mxu0
    %v2963 = vadd.f32 0.0, %v2962
    %v2964 = vpop.f32.mrf.mxu0
    %2965 = vmatprep.mubr.bf16.mxu0 0
    %2966 = vmatmul.mubr.bf16.gmra.mxu0 %v576
    %v2967 = vpop.f32.mrf.mxu0
    %v2968 = vadd.f32 0.0, %v2967
    %v2969 = vpop.f32.mrf.mxu0
    %v2970 = vpop.f32.mrf.mxu0
    %v2971 = vadd.f32 0.0, %v2970
    %v2972 = vpop.f32.mrf.mxu0
    %2973 = vmatprep.mubr.bf16.mxu0 0
    %2974 = vmatmul.mubr.bf16.gmra.mxu0 %v579
    %v2975 = vpop.f32.mrf.mxu0
    %v2976 = vadd.f32 0.0, %v2975
    %v2977 = vpop.f32.mrf.mxu0
    %v2978 = vpop.f32.mrf.mxu0
    %v2979 = vadd.f32 0.0, %v2978
    %v2980 = vpop.f32.mrf.mxu0
    %2981 = vmatprep.mubr.bf16.mxu0 0
    %2982 = vmatmul.mubr.bf16.gmra.mxu0 %v582
    %v2983 = vpop.f32.mrf.mxu0
    %v2984 = vadd.f32 0.0, %v2983
    %v2985 = vpop.f32.mrf.mxu0
    %v2986 = vpop.f32.mrf.mxu0
    %v2987 = vadd.f32 0.0, %v2986
    %v2988 = vpop.f32.mrf.mxu0
    %2989 = vmatprep.mubr.bf16.mxu0 0
    %2990 = vmatmul.mubr.bf16.gmra.mxu0 %v585
    %v2991 = vpop.f32.mrf.mxu0
    %v2992 = vadd.f32 0.0, %v2991
    %v2993 = vpop.f32.mrf.mxu0
    %v2994 = vpop.f32.mrf.mxu0
    %v2995 = vadd.f32 0.0, %v2994
    %v2996 = vpop.f32.mrf.mxu0
    %2997 = vmatprep.mubr.bf16.mxu0 0
    %2998 = vmatmul.mubr.bf16.gmra.mxu0 %v588
    %v2999 = vpop.f32.mrf.mxu0
    %v3000 = vadd.f32 0.0, %v2999
    %v3001 = vpop.f32.mrf.mxu0
    %v3002 = vpop.f32.mrf.mxu0
    %v3003 = vadd.f32 0.0, %v3002
    %v3004 = vpop.f32.mrf.mxu0
    %3005 = vmatprep.mubr.bf16.mxu0 0
    %3006 = vmatmul.mubr.bf16.gmra.mxu0 %v591
    %v3007 = vpop.f32.mrf.mxu0
    %v3008 = vadd.f32 0.0, %v3007
    %v3009 = vpop.f32.mrf.mxu0
    %v3010 = vpop.f32.mrf.mxu0
    %v3011 = vadd.f32 0.0, %v3010
    %v3012 = vpop.f32.mrf.mxu0
    %3013 = vmatprep.mubr.bf16.mxu0 0
    %3014 = vmatmul.mubr.bf16.gmra.mxu0 %v594
    %v3015 = vpop.f32.mrf.mxu0
    %v3016 = vadd.f32 0.0, %v3015
    %v3017 = vpop.f32.mrf.mxu0
    %v3018 = vpop.f32.mrf.mxu0
    %v3019 = vadd.f32 0.0, %v3018
    %v3020 = vpop.f32.mrf.mxu0
    %3021 = vmatprep.mubr.bf16.mxu0 0
    %3022 = vmatmul.mubr.bf16.gmra.mxu0 %v597
    %v3023 = vpop.f32.mrf.mxu0
    %v3024 = vadd.f32 0.0, %v3023
    %v3025 = vpop.f32.mrf.mxu0
    %v3026 = vpop.f32.mrf.mxu0
    %v3027 = vadd.f32 0.0, %v3026
    %v3028 = vpop.f32.mrf.mxu0
    %3029 = vmatprep.mubr.bf16.mxu0 0
    %3030 = vmatmul.mubr.bf16.gmra.mxu0 %v600
    %v3031 = vpop.f32.mrf.mxu0
    %v3032 = vadd.f32 0.0, %v3031
    %v3033 = vpop.f32.mrf.mxu0
    %v3034 = vpop.f32.mrf.mxu0
    %v3035 = vadd.f32 0.0, %v3034
    %v3036 = vpop.f32.mrf.mxu0
    %3037 = vmatprep.mubr.bf16.mxu0 0
    %3038 = vmatmul.mubr.bf16.gmra.mxu0 %v603
    %v3039 = vpop.f32.mrf.mxu0
    %v3040 = vadd.f32 0.0, %v3039
    %v3041 = vpop.f32.mrf.mxu0
    %v3042 = vpop.f32.mrf.mxu0
    %v3043 = vadd.f32 0.0, %v3042
    %v3044 = vpop.f32.mrf.mxu0
    %3045 = vmatprep.mubr.bf16.mxu0 0
    %3046 = vmatmul.mubr.bf16.gmra.mxu0 %v606
    %v3047 = vpop.f32.mrf.mxu0
    %v3048 = vadd.f32 0.0, %v3047
    %v3049 = vpop.f32.mrf.mxu0
    %v3050 = vpop.f32.mrf.mxu0
    %v3051 = vadd.f32 0.0, %v3050
    %v3052 = vpop.f32.mrf.mxu0
    %3053 = vmatprep.mubr.bf16.mxu0 0
    %3054 = vmatmul.mubr.bf16.gmra.mxu0 %v609
    %v3055 = vpop.f32.mrf.mxu0
    %v3056 = vadd.f32 0.0, %v3055
    %v3057 = vpop.f32.mrf.mxu0
    %v3058 = vpop.f32.mrf.mxu0
    %v3059 = vadd.f32 0.0, %v3058
    %v3060 = vpop.f32.mrf.mxu0
    %3061 = vmatprep.mubr.bf16.mxu0 0
    %3062 = vmatmul.mubr.bf16.gmra.mxu0 %v612
    %v3063 = vpop.f32.mrf.mxu0
    %v3064 = vadd.f32 0.0, %v3063
    %v3065 = vpop.f32.mrf.mxu0
    %v3066 = vpop.f32.mrf.mxu0
    %v3067 = vadd.f32 0.0, %v3066
    %v3068 = vpop.f32.mrf.mxu0
    %3069 = vmatprep.mubr.bf16.mxu0 0
    %3070 = vmatmul.mubr.bf16.gmra.mxu0 %v615
    %v3071 = vpop.f32.mrf.mxu0
    %v3072 = vadd.f32 0.0, %v3071
    %v3073 = vpop.f32.mrf.mxu0
    %v3074 = vpop.f32.mrf.mxu0
    %v3075 = vadd.f32 0.0, %v3074
    %v3076 = vpop.f32.mrf.mxu0
    %3077 = vdwg.mxu0
    %3078 = vmatprep.subr.bf16.mxu0 0
    %3079 = vmatpush1.bf16.msra.mxu0 0
    %3080 = vmatprep.subr.bf16.mxu0 0
    %3081 = vmatpush1.bf16.msra.mxu0 0
    %3082 = vmatprep.subr.bf16.mxu0 0
    %3083 = vmatpush1.bf16.msra.mxu0 0
    %3084 = vmatprep.subr.bf16.mxu0 0
    %3085 = vmatpush1.bf16.msra.mxu0 0
    %3086 = vmatprep.subr.bf16.mxu0 0
    %3087 = vmatpush1.bf16.msra.mxu0 %v2815
    %3088 = vmatprep.subr.bf16.mxu0 0
    %3089 = vmatpush1.bf16.msra.mxu0 %v2814
    %3090 = vmatprep.subr.bf16.mxu0 0
    %3091 = vmatpush1.bf16.msra.mxu0 %v2813
    %3092 = vmatprep.subr.bf16.mxu0 0
    %3093 = vmatpush1.bf16.msra.mxu0 %v2812
    %3094 = vmatprep.subr.bf16.mxu0 0
    %3095 = vmatpush2.bf16.msra.mxu0 0
    %3096 = vmatprep.subr.bf16.mxu0 0
    %3097 = vmatpush2.bf16.msra.mxu0 0
    %3098 = vmatprep.subr.bf16.mxu0 0
    %3099 = vmatpush2.bf16.msra.mxu0 0
    %3100 = vmatprep.subr.bf16.mxu0 0
    %3101 = vmatpush2.bf16.msra.mxu0 0
    %3102 = vmatprep.subr.bf16.mxu0 0
    %3103 = vmatpush2.bf16.msra.mxu0 0
    %3104 = vmatprep.subr.bf16.mxu0 0
    %3105 = vmatpush2.bf16.msra.mxu0 0
    %3106 = vmatprep.subr.bf16.mxu0 0
    %3107 = vmatpush2.bf16.msra.mxu0 0
    %3108 = vmatprep.subr.bf16.mxu0 0
    %3109 = vmatpush2.bf16.msra.mxu0 0
    %3110 = vmatprep.mubr.bf16.mxu0 0
    %3111 = vmatmul.mubr.bf16.gmra.mxu0 %v859
    %v3112 = vpop.f32.mrf.mxu0
    %v3113 = vadd.f32 %v2952, %v3112
    %v3114 = vpop.f32.mrf.mxu0
    %v3115 = vpop.f32.mrf.mxu0
    %v3116 = vadd.f32 %v2955, %v3115
    %v3117 = vpop.f32.mrf.mxu0
    %3118 = vmatprep.mubr.bf16.mxu0 0
    %3119 = vmatmul.mubr.bf16.gmra.mxu0 %v862
    %v3120 = vpop.f32.mrf.mxu0
    %v3121 = vadd.f32 %v2960, %v3120
    %v3122 = vpop.f32.mrf.mxu0
    %v3123 = vpop.f32.mrf.mxu0
    %v3124 = vadd.f32 %v2963, %v3123
    %v3125 = vpop.f32.mrf.mxu0
    %3126 = vmatprep.mubr.bf16.mxu0 0
    %3127 = vmatmul.mubr.bf16.gmra.mxu0 %v865
    %v3128 = vpop.f32.mrf.mxu0
    %v3129 = vadd.f32 %v2968, %v3128
    %v3130 = vpop.f32.mrf.mxu0
    %v3131 = vpop.f32.mrf.mxu0
    %v3132 = vadd.f32 %v2971, %v3131
    %v3133 = vpop.f32.mrf.mxu0
    %3134 = vmatprep.mubr.bf16.mxu0 0
    %3135 = vmatmul.mubr.bf16.gmra.mxu0 %v868
    %v3136 = vpop.f32.mrf.mxu0
    %v3137 = vadd.f32 %v2976, %v3136
    %v3138 = vpop.f32.mrf.mxu0
    %v3139 = vpop.f32.mrf.mxu0
    %v3140 = vadd.f32 %v2979, %v3139
    %v3141 = vpop.f32.mrf.mxu0
    %3142 = vmatprep.mubr.bf16.mxu0 0
    %3143 = vmatmul.mubr.bf16.gmra.mxu0 %v871
    %v3144 = vpop.f32.mrf.mxu0
    %v3145 = vadd.f32 %v2984, %v3144
    %v3146 = vpop.f32.mrf.mxu0
    %v3147 = vpop.f32.mrf.mxu0
    %v3148 = vadd.f32 %v2987, %v3147
    %v3149 = vpop.f32.mrf.mxu0
    %3150 = vmatprep.mubr.bf16.mxu0 0
    %3151 = vmatmul.mubr.bf16.gmra.mxu0 %v874
    %v3152 = vpop.f32.mrf.mxu0
    %v3153 = vadd.f32 %v2992, %v3152
    %v3154 = vpop.f32.mrf.mxu0
    %v3155 = vpop.f32.mrf.mxu0
    %v3156 = vadd.f32 %v2995, %v3155
    %v3157 = vpop.f32.mrf.mxu0
    %3158 = vmatprep.mubr.bf16.mxu0 0
    %3159 = vmatmul.mubr.bf16.gmra.mxu0 %v877
    %v3160 = vpop.f32.mrf.mxu0
    %v3161 = vadd.f32 %v3000, %v3160
    %v3162 = vpop.f32.mrf.mxu0
    %v3163 = vpop.f32.mrf.mxu0
    %v3164 = vadd.f32 %v3003, %v3163
    %v3165 = vpop.f32.mrf.mxu0
    %3166 = vmatprep.mubr.bf16.mxu0 0
    %3167 = vmatmul.mubr.bf16.gmra.mxu0 %v880
    %v3168 = vpop.f32.mrf.mxu0
    %v3169 = vadd.f32 %v3008, %v3168
    %v3170 = vpop.f32.mrf.mxu0
    %v3171 = vpop.f32.mrf.mxu0
    %v3172 = vadd.f32 %v3011, %v3171
    %v3173 = vpop.f32.mrf.mxu0
    %3174 = vmatprep.mubr.bf16.mxu0 0
    %3175 = vmatmul.mubr.bf16.gmra.mxu0 %v883
    %v3176 = vpop.f32.mrf.mxu0
    %v3177 = vadd.f32 %v3016, %v3176
    %v3178 = vpop.f32.mrf.mxu0
    %v3179 = vpop.f32.mrf.mxu0
    %v3180 = vadd.f32 %v3019, %v3179
    %v3181 = vpop.f32.mrf.mxu0
    %3182 = vmatprep.mubr.bf16.mxu0 0
    %3183 = vmatmul.mubr.bf16.gmra.mxu0 %v886
    %v3184 = vpop.f32.mrf.mxu0
    %v3185 = vadd.f32 %v3024, %v3184
    %v3186 = vpop.f32.mrf.mxu0
    %v3187 = vpop.f32.mrf.mxu0
    %v3188 = vadd.f32 %v3027, %v3187
    %v3189 = vpop.f32.mrf.mxu0
    %3190 = vmatprep.mubr.bf16.mxu0 0
    %3191 = vmatmul.mubr.bf16.gmra.mxu0 %v889
    %v3192 = vpop.f32.mrf.mxu0
    %v3193 = vadd.f32 %v3032, %v3192
    %v3194 = vpop.f32.mrf.mxu0
    %v3195 = vpop.f32.mrf.mxu0
    %v3196 = vadd.f32 %v3035, %v3195
    %v3197 = vpop.f32.mrf.mxu0
    %3198 = vmatprep.mubr.bf16.mxu0 0
    %3199 = vmatmul.mubr.bf16.gmra.mxu0 %v892
    %v3200 = vpop.f32.mrf.mxu0
    %v3201 = vadd.f32 %v3040, %v3200
    %v3202 = vpop.f32.mrf.mxu0
    %v3203 = vpop.f32.mrf.mxu0
    %v3204 = vadd.f32 %v3043, %v3203
    %v3205 = vpop.f32.mrf.mxu0
    %3206 = vmatprep.mubr.bf16.mxu0 0
    %3207 = vmatmul.mubr.bf16.gmra.mxu0 %v895
    %v3208 = vpop.f32.mrf.mxu0
    %v3209 = vadd.f32 %v3048, %v3208
    %v3210 = vpop.f32.mrf.mxu0
    %v3211 = vpop.f32.mrf.mxu0
    %v3212 = vadd.f32 %v3051, %v3211
    %v3213 = vpop.f32.mrf.mxu0
    %3214 = vmatprep.mubr.bf16.mxu0 0
    %3215 = vmatmul.mubr.bf16.gmra.mxu0 %v898
    %v3216 = vpop.f32.mrf.mxu0
    %v3217 = vadd.f32 %v3056, %v3216
    %v3218 = vpop.f32.mrf.mxu0
    %v3219 = vpop.f32.mrf.mxu0
    %v3220 = vadd.f32 %v3059, %v3219
    %v3221 = vpop.f32.mrf.mxu0
    %3222 = vmatprep.mubr.bf16.mxu0 0
    %3223 = vmatmul.mubr.bf16.gmra.mxu0 %v901
    %v3224 = vpop.f32.mrf.mxu0
    %v3225 = vadd.f32 %v3064, %v3224
    %v3226 = vpop.f32.mrf.mxu0
    %v3227 = vpop.f32.mrf.mxu0
    %v3228 = vadd.f32 %v3067, %v3227
    %v3229 = vpop.f32.mrf.mxu0
    %3230 = vmatprep.mubr.bf16.mxu0 0
    %3231 = vmatmul.mubr.bf16.gmra.mxu0 %v904
    %v3232 = vpop.f32.mrf.mxu0
    %v3233 = vadd.f32 %v3072, %v3232
    %v3234 = vpop.f32.mrf.mxu0
    %v3235 = vpop.f32.mrf.mxu0
    %v3236 = vadd.f32 %v3075, %v3235
    %v3237 = vpop.f32.mrf.mxu0
    %3238 = vdwg.mxu0
    %v3239 = vld [vmem:[%s41] sm:$0x1]
    %v3241 = vlaneseq
    %v3242 = vshrl.u32 %v3241, 7
    %v3243 = vsub.s32 0, %v3242
    %v3244 = vrot.slane %v3239, %v3243
    %v3246 = vadd.f32 %v3113, %v3244
    %v3247 = vadd.f32 %v3116, %v3244
    %v3248 = vadd.f32 %v3121, %v3244
    %v3249 = vadd.f32 %v3124, %v3244
    %v3250 = vadd.f32 %v3129, %v3244
    %v3251 = vadd.f32 %v3132, %v3244
    %v3252 = vadd.f32 %v3137, %v3244
    %v3253 = vadd.f32 %v3140, %v3244
    %v3254 = vadd.f32 %v3145, %v3244
    %v3255 = vadd.f32 %v3148, %v3244
    %v3256 = vadd.f32 %v3153, %v3244
    %v3257 = vadd.f32 %v3156, %v3244
    %v3258 = vadd.f32 %v3161, %v3244
    %v3259 = vadd.f32 %v3164, %v3244
    %v3260 = vadd.f32 %v3169, %v3244
    %v3261 = vadd.f32 %v3172, %v3244
    %v3262 = vadd.f32 %v3177, %v3244
    %v3263 = vadd.f32 %v3180, %v3244
    %v3264 = vadd.f32 %v3185, %v3244
    %v3265 = vadd.f32 %v3188, %v3244
    %v3266 = vadd.f32 %v3193, %v3244
    %v3267 = vadd.f32 %v3196, %v3244
    %v3268 = vadd.f32 %v3201, %v3244
    %v3269 = vadd.f32 %v3204, %v3244
    %v3270 = vadd.f32 %v3209, %v3244
    %v3271 = vadd.f32 %v3212, %v3244
    %v3272 = vadd.f32 %v3217, %v3244
    %v3273 = vadd.f32 %v3220, %v3244
    %v3274 = vadd.f32 %v3225, %v3244
    %v3275 = vadd.f32 %v3228, %v3244
    %v3276 = vadd.f32 %v3233, %v3244
    %v3277 = vadd.f32 %v3236, %v3244
    %v3278 = vmax.f32 %v3246, 0.0
    %v3279 = vmax.f32 %v3247, 0.0
    %v3280 = vmax.f32 %v3248, 0.0
    %v3281 = vmax.f32 %v3249, 0.0
    %v3282 = vmax.f32 %v3250, 0.0
    %v3283 = vmax.f32 %v3251, 0.0
    %v3284 = vmax.f32 %v3252, 0.0
    %v3285 = vmax.f32 %v3253, 0.0
    %v3286 = vmax.f32 %v3254, 0.0
    %v3287 = vmax.f32 %v3255, 0.0
    %v3288 = vmax.f32 %v3256, 0.0
    %v3289 = vmax.f32 %v3257, 0.0
    %v3290 = vmax.f32 %v3258, 0.0
    %v3291 = vmax.f32 %v3259, 0.0
    %v3292 = vmax.f32 %v3260, 0.0
    %v3293 = vmax.f32 %v3261, 0.0
    %v3294 = vmax.f32 %v3262, 0.0
    %v3295 = vmax.f32 %v3263, 0.0
    %v3296 = vmax.f32 %v3264, 0.0
    %v3297 = vmax.f32 %v3265, 0.0
    %v3298 = vmax.f32 %v3266, 0.0
    %v3299 = vmax.f32 %v3267, 0.0
    %v3300 = vmax.f32 %v3268, 0.0
    %v3301 = vmax.f32 %v3269, 0.0
    %v3302 = vmax.f32 %v3270, 0.0
    %v3303 = vmax.f32 %v3271, 0.0
    %v3304 = vmax.f32 %v3272, 0.0
    %v3305 = vmax.f32 %v3273, 0.0
    %v3306 = vmax.f32 %v3274, 0.0
    %v3307 = vmax.f32 %v3275, 0.0
    %v3308 = vmax.f32 %v3276, 0.0
    %v3309 = vmax.f32 %v3277, 0.0
    %v3310 = vpack.c.bf16 %v3279, %v3278
    %v3311 = vpack.c.bf16 %v3281, %v3280
    %v3312 = vpack.c.bf16 %v3283, %v3282
    %v3313 = vpack.c.bf16 %v3285, %v3284
    %v3314 = vpack.c.bf16 %v3287, %v3286
    %v3315 = vpack.c.bf16 %v3289, %v3288
    %v3316 = vpack.c.bf16 %v3291, %v3290
    %v3317 = vpack.c.bf16 %v3293, %v3292
    %v3318 = vpack.c.bf16 %v3295, %v3294
    %v3319 = vpack.c.bf16 %v3297, %v3296
    %v3320 = vpack.c.bf16 %v3299, %v3298
    %v3321 = vpack.c.bf16 %v3301, %v3300
    %v3322 = vpack.c.bf16 %v3303, %v3302
    %v3323 = vpack.c.bf16 %v3305, %v3304
    %v3324 = vpack.c.bf16 %v3307, %v3306
    %v3325 = vpack.c.bf16 %v3309, %v3308
    %v3326 = vld [vmem:[#allocation7] sm:$0xf]
    %v3327 = vld [vmem:[#allocation7 + $0x4] sm:$0xf]
    %v3328 = vld [vmem:[#allocation7 + $0x8] sm:$0xf]
    %v3329 = vld [vmem:[#allocation7 + $0xc] sm:$0xf]
    %v3330 = vld [vmem:[#allocation7 + $0x10] sm:$0xf]
    %v3331 = vld [vmem:[#allocation7 + $0x14] sm:$0xf]
    %v3332 = vld [vmem:[#allocation7 + $0x18] sm:$0xf]
    %v3333 = vld [vmem:[#allocation7 + $0x1c] sm:$0xf]
    %v3334 = vld [vmem:[%s45] sm:$0x1]
    %v3336 = vlaneseq
    %v3337 = vshrl.u32 %v3336, 7
    %v3338 = vsub.s32 0, %v3337
    %v3339 = vrot.slane %v3334, %v3338
    %v3349 = vunpack.c.l.b16 %v3326
    %v3350 = vunpack.c.l.b16 %v3327
    %v3351 = vunpack.c.l.b16 %v3328
    %v3352 = vunpack.c.l.b16 %v3329
    %v3353 = vunpack.c.l.b16 %v3330
    %v3354 = vunpack.c.l.b16 %v3331
    %v3355 = vunpack.c.l.b16 %v3332
    %v3356 = vunpack.c.l.b16 %v3333
    %v3357 = vpack.c.b16 %v3350, %v3349
    %v3358 = vpack.c.b16 %v3352, %v3351
    %v3359 = vpack.c.b16 %v3354, %v3353
    %v3360 = vpack.c.b16 %v3356, %v3355
    %v3366 = vsel %vm568, %v3310, 0
    %v3369 = vsel %vm568, %v3311, 0
    %v3372 = vsel %vm568, %v3312, 0
    %v3375 = vsel %vm568, %v3313, 0
    %v3378 = vsel %vm568, %v3314, 0
    %v3381 = vsel %vm568, %v3315, 0
    %v3384 = vsel %vm568, %v3316, 0
    %v3387 = vsel %vm568, %v3317, 0
    %v3390 = vsel %vm568, %v3318, 0
    %v3393 = vsel %vm568, %v3319, 0
    %v3396 = vsel %vm568, %v3320, 0
    %v3399 = vsel %vm568, %v3321, 0
    %v3402 = vsel %vm568, %v3322, 0
    %v3405 = vsel %vm568, %v3323, 0
    %v3408 = vsel %vm568, %v3324, 0
    %v3411 = vsel %vm568, %v3325, 0
    %3413 = vmatprep.subr.bf16.mxu0 0
    %3414 = vmatpush1.bf16.msra.mxu0 0
    %3415 = vmatprep.subr.bf16.mxu0 0
    %3416 = vmatpush1.bf16.msra.mxu0 0
    %3417 = vmatprep.subr.bf16.mxu0 0
    %3418 = vmatpush1.bf16.msra.mxu0 0
    %3419 = vmatprep.subr.bf16.mxu0 0
    %3420 = vmatpush1.bf16.msra.mxu0 0
    %3421 = vmatprep.subr.bf16.mxu0 0
    %3422 = vmatpush1.bf16.msra.mxu0 %v3360
    %3423 = vmatprep.subr.bf16.mxu0 0
    %3424 = vmatpush1.bf16.msra.mxu0 %v3359
    %3425 = vmatprep.subr.bf16.mxu0 0
    %3426 = vmatpush1.bf16.msra.mxu0 %v3358
    %3427 = vmatprep.subr.bf16.mxu0 0
    %3428 = vmatpush1.bf16.msra.mxu0 %v3357
    %3429 = vmatprep.subr.bf16.mxu0 0
    %3430 = vmatpush2.bf16.msra.mxu0 0
    %3431 = vmatprep.subr.bf16.mxu0 0
    %3432 = vmatpush2.bf16.msra.mxu0 0
    %3433 = vmatprep.subr.bf16.mxu0 0
    %3434 = vmatpush2.bf16.msra.mxu0 0
    %3435 = vmatprep.subr.bf16.mxu0 0
    %3436 = vmatpush2.bf16.msra.mxu0 0
    %3437 = vmatprep.subr.bf16.mxu0 0
    %3438 = vmatpush2.bf16.msra.mxu0 0
    %3439 = vmatprep.subr.bf16.mxu0 0
    %3440 = vmatpush2.bf16.msra.mxu0 0
    %3441 = vmatprep.subr.bf16.mxu0 0
    %3442 = vmatpush2.bf16.msra.mxu0 0
    %3443 = vmatprep.subr.bf16.mxu0 0
    %3444 = vmatpush2.bf16.msra.mxu0 0
    %3445 = vmatprep.mubr.bf16.mxu0 0
    %3446 = vmatmul.mubr.bf16.gmra.mxu0 %v3366
    %v3447 = vpop.f32.mrf.mxu0
    %v3448 = vadd.f32 %v3339, %v3447
    %v3449 = vpop.f32.mrf.mxu0
    %v3450 = vpop.f32.mrf.mxu0
    %v3451 = vadd.f32 %v3339, %v3450
    %v3452 = vpop.f32.mrf.mxu0
    %3453 = vmatprep.mubr.bf16.mxu0 0
    %3454 = vmatmul.mubr.bf16.gmra.mxu0 %v3369
    %v3455 = vpop.f32.mrf.mxu0
    %v3456 = vadd.f32 %v3339, %v3455
    %v3457 = vpop.f32.mrf.mxu0
    %v3458 = vpop.f32.mrf.mxu0
    %v3459 = vadd.f32 %v3339, %v3458
    %v3460 = vpop.f32.mrf.mxu0
    %3461 = vmatprep.mubr.bf16.mxu0 0
    %3462 = vmatmul.mubr.bf16.gmra.mxu0 %v3372
    %v3463 = vpop.f32.mrf.mxu0
    %v3464 = vadd.f32 %v3339, %v3463
    %v3465 = vpop.f32.mrf.mxu0
    %v3466 = vpop.f32.mrf.mxu0
    %v3467 = vadd.f32 %v3339, %v3466
    %v3468 = vpop.f32.mrf.mxu0
    %3469 = vmatprep.mubr.bf16.mxu0 0
    %3470 = vmatmul.mubr.bf16.gmra.mxu0 %v3375
    %v3471 = vpop.f32.mrf.mxu0
    %v3472 = vadd.f32 %v3339, %v3471
    %v3473 = vpop.f32.mrf.mxu0
    %v3474 = vpop.f32.mrf.mxu0
    %v3475 = vadd.f32 %v3339, %v3474
    %v3476 = vpop.f32.mrf.mxu0
    %3477 = vmatprep.mubr.bf16.mxu0 0
    %3478 = vmatmul.mubr.bf16.gmra.mxu0 %v3378
    %v3479 = vpop.f32.mrf.mxu0
    %v3480 = vadd.f32 %v3339, %v3479
    %v3481 = vpop.f32.mrf.mxu0
    %v3482 = vpop.f32.mrf.mxu0
    %v3483 = vadd.f32 %v3339, %v3482
    %v3484 = vpop.f32.mrf.mxu0
    %3485 = vmatprep.mubr.bf16.mxu0 0
    %3486 = vmatmul.mubr.bf16.gmra.mxu0 %v3381
    %v3487 = vpop.f32.mrf.mxu0
    %v3488 = vadd.f32 %v3339, %v3487
    %v3489 = vpop.f32.mrf.mxu0
    %v3490 = vpop.f32.mrf.mxu0
    %v3491 = vadd.f32 %v3339, %v3490
    %v3492 = vpop.f32.mrf.mxu0
    %3493 = vmatprep.mubr.bf16.mxu0 0
    %3494 = vmatmul.mubr.bf16.gmra.mxu0 %v3384
    %v3495 = vpop.f32.mrf.mxu0
    %v3496 = vadd.f32 %v3339, %v3495
    %v3497 = vpop.f32.mrf.mxu0
    %v3498 = vpop.f32.mrf.mxu0
    %v3499 = vadd.f32 %v3339, %v3498
    %v3500 = vpop.f32.mrf.mxu0
    %3501 = vmatprep.mubr.bf16.mxu0 0
    %3502 = vmatmul.mubr.bf16.gmra.mxu0 %v3387
    %v3503 = vpop.f32.mrf.mxu0
    %v3504 = vadd.f32 %v3339, %v3503
    %v3505 = vpop.f32.mrf.mxu0
    %v3506 = vpop.f32.mrf.mxu0
    %v3507 = vadd.f32 %v3339, %v3506
    %v3508 = vpop.f32.mrf.mxu0
    %3509 = vmatprep.mubr.bf16.mxu0 0
    %3510 = vmatmul.mubr.bf16.gmra.mxu0 %v3390
    %v3511 = vpop.f32.mrf.mxu0
    %v3512 = vadd.f32 %v3339, %v3511
    %v3513 = vpop.f32.mrf.mxu0
    %v3514 = vpop.f32.mrf.mxu0
    %v3515 = vadd.f32 %v3339, %v3514
    %v3516 = vpop.f32.mrf.mxu0
    %3517 = vmatprep.mubr.bf16.mxu0 0
    %3518 = vmatmul.mubr.bf16.gmra.mxu0 %v3393
    %v3519 = vpop.f32.mrf.mxu0
    %v3520 = vadd.f32 %v3339, %v3519
    %v3521 = vpop.f32.mrf.mxu0
    %v3522 = vpop.f32.mrf.mxu0
    %v3523 = vadd.f32 %v3339, %v3522
    %v3524 = vpop.f32.mrf.mxu0
    %3525 = vmatprep.mubr.bf16.mxu0 0
    %3526 = vmatmul.mubr.bf16.gmra.mxu0 %v3396
    %v3527 = vpop.f32.mrf.mxu0
    %v3528 = vadd.f32 %v3339, %v3527
    %v3529 = vpop.f32.mrf.mxu0
    %v3530 = vpop.f32.mrf.mxu0
    %v3531 = vadd.f32 %v3339, %v3530
    %v3532 = vpop.f32.mrf.mxu0
    %3533 = vmatprep.mubr.bf16.mxu0 0
    %3534 = vmatmul.mubr.bf16.gmra.mxu0 %v3399
    %v3535 = vpop.f32.mrf.mxu0
    %v3536 = vadd.f32 %v3339, %v3535
    %v3537 = vpop.f32.mrf.mxu0
    %v3538 = vpop.f32.mrf.mxu0
    %v3539 = vadd.f32 %v3339, %v3538
    %v3540 = vpop.f32.mrf.mxu0
    %3541 = vmatprep.mubr.bf16.mxu0 0
    %3542 = vmatmul.mubr.bf16.gmra.mxu0 %v3402
    %v3543 = vpop.f32.mrf.mxu0
    %v3544 = vadd.f32 %v3339, %v3543
    %v3545 = vpop.f32.mrf.mxu0
    %v3546 = vpop.f32.mrf.mxu0
    %v3547 = vadd.f32 %v3339, %v3546
    %v3548 = vpop.f32.mrf.mxu0
    %3549 = vmatprep.mubr.bf16.mxu0 0
    %3550 = vmatmul.mubr.bf16.gmra.mxu0 %v3405
    %v3551 = vpop.f32.mrf.mxu0
    %v3552 = vadd.f32 %v3339, %v3551
    %v3553 = vpop.f32.mrf.mxu0
    %v3554 = vpop.f32.mrf.mxu0
    %v3555 = vadd.f32 %v3339, %v3554
    %v3556 = vpop.f32.mrf.mxu0
    %3557 = vmatprep.mubr.bf16.mxu0 0
    %3558 = vmatmul.mubr.bf16.gmra.mxu0 %v3408
    %v3559 = vpop.f32.mrf.mxu0
    %v3560 = vadd.f32 %v3339, %v3559
    %v3561 = vpop.f32.mrf.mxu0
    %v3562 = vpop.f32.mrf.mxu0
    %v3563 = vadd.f32 %v3339, %v3562
    %v3564 = vpop.f32.mrf.mxu0
    %3565 = vmatprep.mubr.bf16.mxu0 0
    %3566 = vmatmul.mubr.bf16.gmra.mxu0 %v3411
    %v3567 = vpop.f32.mrf.mxu0
    %v3568 = vadd.f32 %v3339, %v3567
    %v3569 = vpop.f32.mrf.mxu0
    %v3570 = vpop.f32.mrf.mxu0
    %v3571 = vadd.f32 %v3339, %v3570
    %v3572 = vpop.f32.mrf.mxu0
    %3573 = vdwg.mxu0
    %v3574 = vmax.f32 %v3448, 0.0
    %v3575 = vmax.f32 %v3451, 0.0
    %v3576 = vmax.f32 %v3456, 0.0
    %v3577 = vmax.f32 %v3459, 0.0
    %v3578 = vmax.f32 %v3464, 0.0
    %v3579 = vmax.f32 %v3467, 0.0
    %v3580 = vmax.f32 %v3472, 0.0
    %v3581 = vmax.f32 %v3475, 0.0
    %v3582 = vmax.f32 %v3480, 0.0
    %v3583 = vmax.f32 %v3483, 0.0
    %v3584 = vmax.f32 %v3488, 0.0
    %v3585 = vmax.f32 %v3491, 0.0
    %v3586 = vmax.f32 %v3496, 0.0
    %v3587 = vmax.f32 %v3499, 0.0
    %v3588 = vmax.f32 %v3504, 0.0
    %v3589 = vmax.f32 %v3507, 0.0
    %v3590 = vmax.f32 %v3512, 0.0
    %v3591 = vmax.f32 %v3515, 0.0
    %v3592 = vmax.f32 %v3520, 0.0
    %v3593 = vmax.f32 %v3523, 0.0
    %v3594 = vmax.f32 %v3528, 0.0
    %v3595 = vmax.f32 %v3531, 0.0
    %v3596 = vmax.f32 %v3536, 0.0
    %v3597 = vmax.f32 %v3539, 0.0
    %v3598 = vmax.f32 %v3544, 0.0
    %v3599 = vmax.f32 %v3547, 0.0
    %v3600 = vmax.f32 %v3552, 0.0
    %v3601 = vmax.f32 %v3555, 0.0
    %v3602 = vmax.f32 %v3560, 0.0
    %v3603 = vmax.f32 %v3563, 0.0
    %v3604 = vmax.f32 %v3568, 0.0
    %v3605 = vmax.f32 %v3571, 0.0
    %v3606 = vld [vmem:[%s47] sm:$0x1]
    %v3608 = vlaneseq
    %v3609 = vshrl.u32 %v3608, 7
    %v3610 = vsub.s32 0, %v3609
    %v3611 = vrot.slane %v3606, %v3610
    %v3613 = vmul.f32 %v3574, %v3611
    %v3614 = vmul.f32 %v3575, %v3611
    %v3615 = vmul.f32 %v3576, %v3611
    %v3616 = vmul.f32 %v3577, %v3611
    %v3617 = vmul.f32 %v3578, %v3611
    %v3618 = vmul.f32 %v3579, %v3611
    %v3619 = vmul.f32 %v3580, %v3611
    %v3620 = vmul.f32 %v3581, %v3611
    %v3621 = vmul.f32 %v3582, %v3611
    %v3622 = vmul.f32 %v3583, %v3611
    %v3623 = vmul.f32 %v3584, %v3611
    %v3624 = vmul.f32 %v3585, %v3611
    %v3625 = vmul.f32 %v3586, %v3611
    %v3626 = vmul.f32 %v3587, %v3611
    %v3627 = vmul.f32 %v3588, %v3611
    %v3628 = vmul.f32 %v3589, %v3611
    %v3629 = vmul.f32 %v3590, %v3611
    %v3630 = vmul.f32 %v3591, %v3611
    %v3631 = vmul.f32 %v3592, %v3611
    %v3632 = vmul.f32 %v3593, %v3611
    %v3633 = vmul.f32 %v3594, %v3611
    %v3634 = vmul.f32 %v3595, %v3611
    %v3635 = vmul.f32 %v3596, %v3611
    %v3636 = vmul.f32 %v3597, %v3611
    %v3637 = vmul.f32 %v3598, %v3611
    %v3638 = vmul.f32 %v3599, %v3611
    %v3639 = vmul.f32 %v3600, %v3611
    %v3640 = vmul.f32 %v3601, %v3611
    %v3641 = vmul.f32 %v3602, %v3611
    %v3642 = vmul.f32 %v3603, %v3611
    %v3643 = vmul.f32 %v3604, %v3611
    %v3644 = vmul.f32 %v3605, %v3611
    %v3645 = vld [vmem:[%s49] sm:$0x1]
    %v3647 = vlaneseq
    %v3648 = vshrl.u32 %v3647, 7
    %v3649 = vsub.s32 0, %v3648
    %v3650 = vrot.slane %v3645, %v3649
    %v3652 = vadd.f32 %v3613, %v3650
    %v3653 = vadd.f32 %v3614, %v3650
    %v3654 = vadd.f32 %v3615, %v3650
    %v3655 = vadd.f32 %v3616, %v3650
    %v3656 = vadd.f32 %v3617, %v3650
    %v3657 = vadd.f32 %v3618, %v3650
    %v3658 = vadd.f32 %v3619, %v3650
    %v3659 = vadd.f32 %v3620, %v3650
    %v3660 = vadd.f32 %v3621, %v3650
    %v3661 = vadd.f32 %v3622, %v3650
    %v3662 = vadd.f32 %v3623, %v3650
    %v3663 = vadd.f32 %v3624, %v3650
    %v3664 = vadd.f32 %v3625, %v3650
    %v3665 = vadd.f32 %v3626, %v3650
    %v3666 = vadd.f32 %v3627, %v3650
    %v3667 = vadd.f32 %v3628, %v3650
    %v3668 = vadd.f32 %v3629, %v3650
    %v3669 = vadd.f32 %v3630, %v3650
    %v3670 = vadd.f32 %v3631, %v3650
    %v3671 = vadd.f32 %v3632, %v3650
    %v3672 = vadd.f32 %v3633, %v3650
    %v3673 = vadd.f32 %v3634, %v3650
    %v3674 = vadd.f32 %v3635, %v3650
    %v3675 = vadd.f32 %v3636, %v3650
    %v3676 = vadd.f32 %v3637, %v3650
    %v3677 = vadd.f32 %v3638, %v3650
    %v3678 = vadd.f32 %v3639, %v3650
    %v3679 = vadd.f32 %v3640, %v3650
    %v3680 = vadd.f32 %v3641, %v3650
    %v3681 = vadd.f32 %v3642, %v3650
    %v3682 = vadd.f32 %v3643, %v3650
    %v3683 = vadd.f32 %v3644, %v3650
    %v3684 = vpack.c.bf16 %v3653, %v3652
    %v3685 = vpack.c.bf16 %v3655, %v3654
    %v3686 = vpack.c.bf16 %v3657, %v3656
    %v3687 = vpack.c.bf16 %v3659, %v3658
    %v3688 = vpack.c.bf16 %v3661, %v3660
    %v3689 = vpack.c.bf16 %v3663, %v3662
    %v3690 = vpack.c.bf16 %v3665, %v3664
    %v3691 = vpack.c.bf16 %v3667, %v3666
    %v3692 = vpack.c.bf16 %v3669, %v3668
    %v3693 = vpack.c.bf16 %v3671, %v3670
    %v3694 = vpack.c.bf16 %v3673, %v3672
    %v3695 = vpack.c.bf16 %v3675, %v3674
    %v3696 = vpack.c.bf16 %v3677, %v3676
    %v3697 = vpack.c.bf16 %v3679, %v3678
    %v3698 = vpack.c.bf16 %v3681, %v3680
    %v3699 = vpack.c.bf16 %v3683, %v3682
    %3700 = vmatprep.subr.bf16.mxu0 0
    %3701 = vmatpush1.bf16.msra.mxu0 %v3691
    %3702 = vmatprep.subr.bf16.mxu0 0
    %3703 = vmatpush1.bf16.msra.mxu0 %v3690
    %3704 = vmatprep.subr.bf16.mxu0 0
    %3705 = vmatpush1.bf16.msra.mxu0 %v3689
    %3706 = vmatprep.subr.bf16.mxu0 0
    %3707 = vmatpush1.bf16.msra.mxu0 %v3688
    %3708 = vmatprep.subr.bf16.mxu0 0
    %3709 = vmatpush1.bf16.msra.mxu0 %v3687
    %3710 = vmatprep.subr.bf16.mxu0 0
    %3711 = vmatpush1.bf16.msra.mxu0 %v3686
    %3712 = vmatprep.subr.bf16.mxu0 0
    %3713 = vmatpush1.bf16.msra.mxu0 %v3685
    %3714 = vmatprep.subr.bf16.mxu0 0
    %3715 = vmatpush1.bf16.msra.mxu0 %v3684
    %3716 = vmatprep.subr.bf16.mxu0 0
    %3717 = vmatpush2.bf16.msra.mxu0 %v3699
    %3718 = vmatprep.subr.bf16.mxu0 0
    %3719 = vmatpush2.bf16.msra.mxu0 %v3698
    %3720 = vmatprep.subr.bf16.mxu0 0
    %3721 = vmatpush2.bf16.msra.mxu0 %v3697
    %3722 = vmatprep.subr.bf16.mxu0 0
    %3723 = vmatpush2.bf16.msra.mxu0 %v3696
    %3724 = vmatprep.subr.bf16.mxu0 0
    %3725 = vmatpush2.bf16.msra.mxu0 %v3695
    %3726 = vmatprep.subr.bf16.mxu0 0
    %3727 = vmatpush2.bf16.msra.mxu0 %v3694
    %3728 = vmatprep.subr.bf16.mxu0 0
    %3729 = vmatpush2.bf16.msra.mxu0 %v3693
    %3730 = vmatprep.subr.bf16.mxu0 0
    %3731 = vmatpush2.bf16.msra.mxu0 %v3692
    %3732 = vmatprep.mubr.bf16.mxu0 %v1553
    %3733 = vmatmul.mubr.bf16.gmra.mxu0 %v1552
    %v3734 = vpop.f32.mrf.mxu0
    %v3735 = vadd.f32 0.0, %v3734
    %v3736 = vpop.f32.mrf.mxu0
    %v3737 = vpop.f32.mrf.mxu0
    %v3738 = vadd.f32 0.0, %v3737
    %v3739 = vpop.f32.mrf.mxu0
    %3740 = vmatprep.mubr.bf16.mxu0 %v1555
    %3741 = vmatmul.mubr.bf16.gmra.mxu0 %v1554
    %v3742 = vpop.f32.mrf.mxu0
    %v3743 = vadd.f32 0.0, %v3742
    %v3744 = vpop.f32.mrf.mxu0
    %v3745 = vpop.f32.mrf.mxu0
    %v3746 = vadd.f32 0.0, %v3745
    %v3747 = vpop.f32.mrf.mxu0
    %3748 = vmatprep.mubr.bf16.mxu0 %v1557
    %3749 = vmatmul.mubr.bf16.gmra.mxu0 %v1556
    %v3750 = vpop.f32.mrf.mxu0
    %v3751 = vadd.f32 0.0, %v3750
    %v3752 = vpop.f32.mrf.mxu0
    %v3753 = vpop.f32.mrf.mxu0
    %v3754 = vadd.f32 0.0, %v3753
    %v3755 = vpop.f32.mrf.mxu0
    %3756 = vmatprep.mubr.bf16.mxu0 %v1559
    %3757 = vmatmul.mubr.bf16.gmra.mxu0 %v1558
    %v3758 = vpop.f32.mrf.mxu0
    %v3759 = vadd.f32 0.0, %v3758
    %v3760 = vpop.f32.mrf.mxu0
    %v3761 = vpop.f32.mrf.mxu0
    %v3762 = vadd.f32 0.0, %v3761
    %v3763 = vpop.f32.mrf.mxu0
    %3764 = vdwg.mxu0
    %v3765 = vld [vmem:[#allocation9] sm:$0xff]
    %v3766 = vld [vmem:[#allocation9 + $0x8] sm:$0xff]
    %v3767 = vld [vmem:[#allocation9 + $0x10] sm:$0xff]
    %v3768 = vld [vmem:[#allocation9 + $0x18] sm:$0xff]
    %v3769 = vld [vmem:[#allocation9 + $0x20] sm:$0xff]
    %v3770 = vld [vmem:[#allocation9 + $0x28] sm:$0xff]
    %v3771 = vld [vmem:[#allocation9 + $0x30] sm:$0xff]
    %v3772 = vld [vmem:[#allocation9 + $0x38] sm:$0xff]
    %v3773 = vld [vmem:[#allocation9 + $0x40] sm:$0xff]
    %v3774 = vld [vmem:[#allocation9 + $0x48] sm:$0xff]
    %v3775 = vld [vmem:[#allocation9 + $0x50] sm:$0xff]
    %v3776 = vld [vmem:[#allocation9 + $0x58] sm:$0xff]
    %v3777 = vld [vmem:[#allocation9 + $0x60] sm:$0xff]
    %v3778 = vld [vmem:[#allocation9 + $0x68] sm:$0xff]
    %v3779 = vld [vmem:[#allocation9 + $0x70] sm:$0xff]
    %v3780 = vld [vmem:[#allocation9 + $0x78] sm:$0xff]
    %v3781 = vld [vmem:[#allocation9 + $0x80] sm:$0xff]
    %v3782 = vld [vmem:[#allocation9 + $0x88] sm:$0xff]
    %v3783 = vld [vmem:[#allocation9 + $0x90] sm:$0xff]
    %v3784 = vld [vmem:[#allocation9 + $0x98] sm:$0xff]
    %v3785 = vld [vmem:[#allocation9 + $0xa0] sm:$0xff]
    %v3786 = vld [vmem:[#allocation9 + $0xa8] sm:$0xff]
    %v3787 = vld [vmem:[#allocation9 + $0xb0] sm:$0xff]
    %v3788 = vld [vmem:[#allocation9 + $0xb8] sm:$0xff]
    %v3789 = vld [vmem:[#allocation9 + $0xc0] sm:$0xff]
    %v3790 = vld [vmem:[#allocation9 + $0xc8] sm:$0xff]
    %v3791 = vld [vmem:[#allocation9 + $0xd0] sm:$0xff]
    %v3792 = vld [vmem:[#allocation9 + $0xd8] sm:$0xff]
    %v3793 = vld [vmem:[#allocation9 + $0xe0] sm:$0xff]
    %v3794 = vld [vmem:[#allocation9 + $0xe8] sm:$0xff]
    %v3795 = vld [vmem:[#allocation9 + $0xf0] sm:$0xff]
    %v3796 = vld [vmem:[#allocation9 + $0xf8] sm:$0xff]
    %v3797 = vld [vmem:[#allocation9 + $0x100] sm:$0xff]
    %v3798 = vld [vmem:[#allocation9 + $0x108] sm:$0xff]
    %v3799 = vld [vmem:[#allocation9 + $0x110] sm:$0xff]
    %v3800 = vld [vmem:[#allocation9 + $0x118] sm:$0xff]
    %v3801 = vld [vmem:[#allocation9 + $0x120] sm:$0xff]
    %v3802 = vld [vmem:[#allocation9 + $0x128] sm:$0xff]
    %v3803 = vld [vmem:[#allocation9 + $0x130] sm:$0xff]
    %v3804 = vld [vmem:[#allocation9 + $0x138] sm:$0xff]
    %v3805 = vld [vmem:[#allocation9 + $0x140] sm:$0xff]
    %v3806 = vld [vmem:[#allocation9 + $0x148] sm:$0xff]
    %v3807 = vld [vmem:[#allocation9 + $0x150] sm:$0xff]
    %v3808 = vld [vmem:[#allocation9 + $0x158] sm:$0xff]
    %v3809 = vld [vmem:[#allocation9 + $0x160] sm:$0xff]
    %v3810 = vld [vmem:[#allocation9 + $0x168] sm:$0xff]
    %v3811 = vld [vmem:[#allocation9 + $0x170] sm:$0xff]
    %v3812 = vld [vmem:[#allocation9 + $0x178] sm:$0xff]
    %v3813 = vld [vmem:[#allocation9 + $0x180] sm:$0xff]
    %v3814 = vld [vmem:[#allocation9 + $0x188] sm:$0xff]
    %v3815 = vld [vmem:[#allocation9 + $0x190] sm:$0xff]
    %v3816 = vld [vmem:[#allocation9 + $0x198] sm:$0xff]
    %v3817 = vld [vmem:[#allocation9 + $0x1a0] sm:$0xff]
    %v3818 = vld [vmem:[#allocation9 + $0x1a8] sm:$0xff]
    %v3819 = vld [vmem:[#allocation9 + $0x1b0] sm:$0xff]
    %v3820 = vld [vmem:[#allocation9 + $0x1b8] sm:$0xff]
    %v3821 = vld [vmem:[#allocation9 + $0x1c0] sm:$0xff]
    %v3822 = vld [vmem:[#allocation9 + $0x1c8] sm:$0xff]
    %v3823 = vld [vmem:[#allocation9 + $0x1d0] sm:$0xff]
    %v3824 = vld [vmem:[#allocation9 + $0x1d8] sm:$0xff]
    %v3825 = vld [vmem:[#allocation9 + $0x1e0] sm:$0xff]
    %v3826 = vld [vmem:[#allocation9 + $0x1e8] sm:$0xff]
    %v3827 = vld [vmem:[#allocation9 + $0x1f0] sm:$0xff]
    %v3828 = vld [vmem:[#allocation9 + $0x1f8] sm:$0xff]
    %v3861 = vunpack.c.l.b16 %v3797
    %v3862 = vunpack.c.h.b16 %v3797
    %v3863 = vunpack.c.l.b16 %v3798
    %v3864 = vunpack.c.h.b16 %v3798
    %v3865 = vunpack.c.l.b16 %v3799
    %v3866 = vunpack.c.h.b16 %v3799
    %v3867 = vunpack.c.l.b16 %v3800
    %v3868 = vunpack.c.h.b16 %v3800
    %v3869 = vunpack.c.l.b16 %v3801
    %v3870 = vunpack.c.h.b16 %v3801
    %v3871 = vunpack.c.l.b16 %v3802
    %v3872 = vunpack.c.h.b16 %v3802
    %v3873 = vunpack.c.l.b16 %v3803
    %v3874 = vunpack.c.h.b16 %v3803
    %v3875 = vunpack.c.l.b16 %v3804
    %v3876 = vunpack.c.h.b16 %v3804
    %v3877 = vunpack.c.l.b16 %v3805
    %v3878 = vunpack.c.h.b16 %v3805
    %v3879 = vunpack.c.l.b16 %v3806
    %v3880 = vunpack.c.h.b16 %v3806
    %v3881 = vunpack.c.l.b16 %v3807
    %v3882 = vunpack.c.h.b16 %v3807
    %v3883 = vunpack.c.l.b16 %v3808
    %v3884 = vunpack.c.h.b16 %v3808
    %v3885 = vunpack.c.l.b16 %v3809
    %v3886 = vunpack.c.h.b16 %v3809
    %v3887 = vunpack.c.l.b16 %v3810
    %v3888 = vunpack.c.h.b16 %v3810
    %v3889 = vunpack.c.l.b16 %v3811
    %v3890 = vunpack.c.h.b16 %v3811
    %v3891 = vunpack.c.l.b16 %v3812
    %v3892 = vunpack.c.h.b16 %v3812
    %v3893 = vunpack.c.l.b16 %v3813
    %v3894 = vunpack.c.h.b16 %v3813
    %v3895 = vunpack.c.l.b16 %v3814
    %v3896 = vunpack.c.h.b16 %v3814
    %v3897 = vunpack.c.l.b16 %v3815
    %v3898 = vunpack.c.h.b16 %v3815
    %v3899 = vunpack.c.l.b16 %v3816
    %v3900 = vunpack.c.h.b16 %v3816
    %v3901 = vunpack.c.l.b16 %v3817
    %v3902 = vunpack.c.h.b16 %v3817
    %v3903 = vunpack.c.l.b16 %v3818
    %v3904 = vunpack.c.h.b16 %v3818
    %v3905 = vunpack.c.l.b16 %v3819
    %v3906 = vunpack.c.h.b16 %v3819
    %v3907 = vunpack.c.l.b16 %v3820
    %v3908 = vunpack.c.h.b16 %v3820
    %v3909 = vunpack.c.l.b16 %v3821
    %v3910 = vunpack.c.h.b16 %v3821
    %v3911 = vunpack.c.l.b16 %v3822
    %v3912 = vunpack.c.h.b16 %v3822
    %v3913 = vunpack.c.l.b16 %v3823
    %v3914 = vunpack.c.h.b16 %v3823
    %v3915 = vunpack.c.l.b16 %v3824
    %v3916 = vunpack.c.h.b16 %v3824
    %v3917 = vunpack.c.l.b16 %v3825
    %v3918 = vunpack.c.h.b16 %v3825
    %v3919 = vunpack.c.l.b16 %v3826
    %v3920 = vunpack.c.h.b16 %v3826
    %v3921 = vunpack.c.l.b16 %v3827
    %v3922 = vunpack.c.h.b16 %v3827
    %v3923 = vunpack.c.l.b16 %v3828
    %v3924 = vunpack.c.h.b16 %v3828
    %v3925 = vpack.c.b16 %v3869, %v3861
    %v3926 = vpack.c.b16 %v3870, %v3862
    %v3927 = vpack.c.b16 %v3871, %v3863
    %v3928 = vpack.c.b16 %v3872, %v3864
    %v3929 = vpack.c.b16 %v3873, %v3865
    %v3930 = vpack.c.b16 %v3874, %v3866
    %v3931 = vpack.c.b16 %v3875, %v3867
    %v3932 = vpack.c.b16 %v3876, %v3868
    %v3933 = vpack.c.b16 %v3885, %v3877
    %v3934 = vpack.c.b16 %v3886, %v3878
    %v3935 = vpack.c.b16 %v3887, %v3879
    %v3936 = vpack.c.b16 %v3888, %v3880
    %v3937 = vpack.c.b16 %v3889, %v3881
    %v3938 = vpack.c.b16 %v3890, %v3882
    %v3939 = vpack.c.b16 %v3891, %v3883
    %v3940 = vpack.c.b16 %v3892, %v3884
    %v3941 = vpack.c.b16 %v3901, %v3893
    %v3942 = vpack.c.b16 %v3902, %v3894
    %v3943 = vpack.c.b16 %v3903, %v3895
    %v3944 = vpack.c.b16 %v3904, %v3896
    %v3945 = vpack.c.b16 %v3905, %v3897
    %v3946 = vpack.c.b16 %v3906, %v3898
    %v3947 = vpack.c.b16 %v3907, %v3899
    %v3948 = vpack.c.b16 %v3908, %v3900
    %v3949 = vpack.c.b16 %v3917, %v3909
    %v3950 = vpack.c.b16 %v3918, %v3910
    %v3951 = vpack.c.b16 %v3919, %v3911
    %v3952 = vpack.c.b16 %v3920, %v3912
    %v3953 = vpack.c.b16 %v3921, %v3913
    %v3954 = vpack.c.b16 %v3922, %v3914
    %v3955 = vpack.c.b16 %v3923, %v3915
    %v3956 = vpack.c.b16 %v3924, %v3916
    %3989 = vmatprep.subr.bf16.mxu0 0
    %3990 = vmatpush1.bf16.msra.mxu0 0
    %3991 = vmatprep.subr.bf16.mxu0 0
    %3992 = vmatpush1.bf16.msra.mxu0 0
    %3993 = vmatprep.subr.bf16.mxu0 0
    %3994 = vmatpush1.bf16.msra.mxu0 0
    %3995 = vmatprep.subr.bf16.mxu0 0
    %3996 = vmatpush1.bf16.msra.mxu0 0
    %3997 = vmatprep.subr.bf16.mxu0 %v3950
    %3998 = vmatpush1.bf16.msra.mxu0 %v3949
    %3999 = vmatprep.subr.bf16.mxu0 %v3942
    %4000 = vmatpush1.bf16.msra.mxu0 %v3941
    %4001 = vmatprep.subr.bf16.mxu0 %v3934
    %4002 = vmatpush1.bf16.msra.mxu0 %v3933
    %4003 = vmatprep.subr.bf16.mxu0 %v3926
    %4004 = vmatpush1.bf16.msra.mxu0 %v3925
    %4005 = vmatprep.subr.bf16.mxu0 0
    %4006 = vmatpush2.bf16.msra.mxu0 0
    %4007 = vmatprep.subr.bf16.mxu0 0
    %4008 = vmatpush2.bf16.msra.mxu0 0
    %4009 = vmatprep.subr.bf16.mxu0 0
    %4010 = vmatpush2.bf16.msra.mxu0 0
    %4011 = vmatprep.subr.bf16.mxu0 0
    %4012 = vmatpush2.bf16.msra.mxu0 0
    %4013 = vmatprep.subr.bf16.mxu0 0
    %4014 = vmatpush2.bf16.msra.mxu0 0
    %4015 = vmatprep.subr.bf16.mxu0 0
    %4016 = vmatpush2.bf16.msra.mxu0 0
    %4017 = vmatprep.subr.bf16.mxu0 0
    %4018 = vmatpush2.bf16.msra.mxu0 0
    %4019 = vmatprep.subr.bf16.mxu0 0
    %4020 = vmatpush2.bf16.msra.mxu0 0
    %4021 = vmatprep.mubr.bf16.mxu0 0
    %4022 = vmatmul.mubr.bf16.gmra.mxu0 %v2736
    %v4023 = vpop.f32.mrf.mxu0
    %v4024 = vadd.f32 0.0, %v4023
    %v4025 = vpop.f32.mrf.mxu0
    %v4026 = vadd.f32 0.0, %v4025
    %v4027 = vpop.f32.mrf.mxu0
    %v4028 = vadd.f32 0.0, %v4027
    %v4029 = vpop.f32.mrf.mxu0
    %v4030 = vadd.f32 0.0, %v4029
    %4031 = vmatprep.mubr.bf16.mxu0 0
    %4032 = vmatmul.mubr.bf16.gmra.mxu0 %v2739
    %v4033 = vpop.f32.mrf.mxu0
    %v4034 = vadd.f32 0.0, %v4033
    %v4035 = vpop.f32.mrf.mxu0
    %v4036 = vadd.f32 0.0, %v4035
    %v4037 = vpop.f32.mrf.mxu0
    %v4038 = vadd.f32 0.0, %v4037
    %v4039 = vpop.f32.mrf.mxu0
    %v4040 = vadd.f32 0.0, %v4039
    %4041 = vmatprep.mubr.bf16.mxu0 0
    %4042 = vmatmul.mubr.bf16.gmra.mxu0 %v2742
    %v4043 = vpop.f32.mrf.mxu0
    %v4044 = vadd.f32 0.0, %v4043
    %v4045 = vpop.f32.mrf.mxu0
    %v4046 = vadd.f32 0.0, %v4045
    %v4047 = vpop.f32.mrf.mxu0
    %v4048 = vadd.f32 0.0, %v4047
    %v4049 = vpop.f32.mrf.mxu0
    %v4050 = vadd.f32 0.0, %v4049
    %4051 = vmatprep.mubr.bf16.mxu0 0
    %4052 = vmatmul.mubr.bf16.gmra.mxu0 %v2745
    %v4053 = vpop.f32.mrf.mxu0
    %v4054 = vadd.f32 0.0, %v4053
    %v4055 = vpop.f32.mrf.mxu0
    %v4056 = vadd.f32 0.0, %v4055
    %v4057 = vpop.f32.mrf.mxu0
    %v4058 = vadd.f32 0.0, %v4057
    %v4059 = vpop.f32.mrf.mxu0
    %v4060 = vadd.f32 0.0, %v4059
    %4061 = vdwg.mxu0
    %4062 = vmatprep.subr.bf16.mxu0 0
    %4063 = vmatpush1.bf16.msra.mxu0 0
    %4064 = vmatprep.subr.bf16.mxu0 0
    %4065 = vmatpush1.bf16.msra.mxu0 0
    %4066 = vmatprep.subr.bf16.mxu0 0
    %4067 = vmatpush1.bf16.msra.mxu0 0
    %4068 = vmatprep.subr.bf16.mxu0 0
    %4069 = vmatpush1.bf16.msra.mxu0 0
    %4070 = vmatprep.subr.bf16.mxu0 %v3952
    %4071 = vmatpush1.bf16.msra.mxu0 %v3951
    %4072 = vmatprep.subr.bf16.mxu0 %v3944
    %4073 = vmatpush1.bf16.msra.mxu0 %v3943
    %4074 = vmatprep.subr.bf16.mxu0 %v3936
    %4075 = vmatpush1.bf16.msra.mxu0 %v3935
    %4076 = vmatprep.subr.bf16.mxu0 %v3928
    %4077 = vmatpush1.bf16.msra.mxu0 %v3927
    %4078 = vmatprep.subr.bf16.mxu0 0
    %4079 = vmatpush2.bf16.msra.mxu0 0
    %4080 = vmatprep.subr.bf16.mxu0 0
    %4081 = vmatpush2.bf16.msra.mxu0 0
    %4082 = vmatprep.subr.bf16.mxu0 0
    %4083 = vmatpush2.bf16.msra.mxu0 0
    %4084 = vmatprep.subr.bf16.mxu0 0
    %4085 = vmatpush2.bf16.msra.mxu0 0
    %4086 = vmatprep.subr.bf16.mxu0 0
    %4087 = vmatpush2.bf16.msra.mxu0 0
    %4088 = vmatprep.subr.bf16.mxu0 0
    %4089 = vmatpush2.bf16.msra.mxu0 0
    %4090 = vmatprep.subr.bf16.mxu0 0
    %4091 = vmatpush2.bf16.msra.mxu0 0
    %4092 = vmatprep.subr.bf16.mxu0 0
    %4093 = vmatpush2.bf16.msra.mxu0 0
    %4094 = vmatprep.mubr.bf16.mxu0 0
    %4095 = vmatmul.mubr.bf16.gmra.mxu0 %v2736
    %v4096 = vpop.f32.mrf.mxu0
    %v4097 = vadd.f32 0.0, %v4096
    %v4098 = vpop.f32.mrf.mxu0
    %v4099 = vadd.f32 0.0, %v4098
    %v4100 = vpop.f32.mrf.mxu0
    %v4101 = vadd.f32 0.0, %v4100
    %v4102 = vpop.f32.mrf.mxu0
    %v4103 = vadd.f32 0.0, %v4102
    %4104 = vmatprep.mubr.bf16.mxu0 0
    %4105 = vmatmul.mubr.bf16.gmra.mxu0 %v2739
    %v4106 = vpop.f32.mrf.mxu0
    %v4107 = vadd.f32 0.0, %v4106
    %v4108 = vpop.f32.mrf.mxu0
    %v4109 = vadd.f32 0.0, %v4108
    %v4110 = vpop.f32.mrf.mxu0
    %v4111 = vadd.f32 0.0, %v4110
    %v4112 = vpop.f32.mrf.mxu0
    %v4113 = vadd.f32 0.0, %v4112
    %4114 = vmatprep.mubr.bf16.mxu0 0
    %4115 = vmatmul.mubr.bf16.gmra.mxu0 %v2742
    %v4116 = vpop.f32.mrf.mxu0
    %v4117 = vadd.f32 0.0, %v4116
    %v4118 = vpop.f32.mrf.mxu0
    %v4119 = vadd.f32 0.0, %v4118
    %v4120 = vpop.f32.mrf.mxu0
    %v4121 = vadd.f32 0.0, %v4120
    %v4122 = vpop.f32.mrf.mxu0
    %v4123 = vadd.f32 0.0, %v4122
    %4124 = vmatprep.mubr.bf16.mxu0 0
    %4125 = vmatmul.mubr.bf16.gmra.mxu0 %v2745
    %v4126 = vpop.f32.mrf.mxu0
    %v4127 = vadd.f32 0.0, %v4126
    %v4128 = vpop.f32.mrf.mxu0
    %v4129 = vadd.f32 0.0, %v4128
    %v4130 = vpop.f32.mrf.mxu0
    %v4131 = vadd.f32 0.0, %v4130
    %v4132 = vpop.f32.mrf.mxu0
    %v4133 = vadd.f32 0.0, %v4132
    %4134 = vdwg.mxu0
    %4135 = vmatprep.subr.bf16.mxu0 0
    %4136 = vmatpush1.bf16.msra.mxu0 0
    %4137 = vmatprep.subr.bf16.mxu0 0
    %4138 = vmatpush1.bf16.msra.mxu0 0
    %4139 = vmatprep.subr.bf16.mxu0 0
    %4140 = vmatpush1.bf16.msra.mxu0 0
    %4141 = vmatprep.subr.bf16.mxu0 0
    %4142 = vmatpush1.bf16.msra.mxu0 0
    %4143 = vmatprep.subr.bf16.mxu0 %v3954
    %4144 = vmatpush1.bf16.msra.mxu0 %v3953
    %4145 = vmatprep.subr.bf16.mxu0 %v3946
    %4146 = vmatpush1.bf16.msra.mxu0 %v3945
    %4147 = vmatprep.subr.bf16.mxu0 %v3938
    %4148 = vmatpush1.bf16.msra.mxu0 %v3937
    %4149 = vmatprep.subr.bf16.mxu0 %v3930
    %4150 = vmatpush1.bf16.msra.mxu0 %v3929
    %4151 = vmatprep.subr.bf16.mxu0 0
    %4152 = vmatpush2.bf16.msra.mxu0 0
    %4153 = vmatprep.subr.bf16.mxu0 0
    %4154 = vmatpush2.bf16.msra.mxu0 0
    %4155 = vmatprep.subr.bf16.mxu0 0
    %4156 = vmatpush2.bf16.msra.mxu0 0
    %4157 = vmatprep.subr.bf16.mxu0 0
    %4158 = vmatpush2.bf16.msra.mxu0 0
    %4159 = vmatprep.subr.bf16.mxu0 0
    %4160 = vmatpush2.bf16.msra.mxu0 0
    %4161 = vmatprep.subr.bf16.mxu0 0
    %4162 = vmatpush2.bf16.msra.mxu0 0
    %4163 = vmatprep.subr.bf16.mxu0 0
    %4164 = vmatpush2.bf16.msra.mxu0 0
    %4165 = vmatprep.subr.bf16.mxu0 0
    %4166 = vmatpush2.bf16.msra.mxu0 0
    %4167 = vmatprep.mubr.bf16.mxu0 0
    %4168 = vmatmul.mubr.bf16.gmra.mxu0 %v2736
    %v4169 = vpop.f32.mrf.mxu0
    %v4170 = vadd.f32 0.0, %v4169
    %v4171 = vpop.f32.mrf.mxu0
    %v4172 = vadd.f32 0.0, %v4171
    %v4173 = vpop.f32.mrf.mxu0
    %v4174 = vadd.f32 0.0, %v4173
    %v4175 = vpop.f32.mrf.mxu0
    %v4176 = vadd.f32 0.0, %v4175
    %4177 = vmatprep.mubr.bf16.mxu0 0
    %4178 = vmatmul.mubr.bf16.gmra.mxu0 %v2739
    %v4179 = vpop.f32.mrf.mxu0
    %v4180 = vadd.f32 0.0, %v4179
    %v4181 = vpop.f32.mrf.mxu0
    %v4182 = vadd.f32 0.0, %v4181
    %v4183 = vpop.f32.mrf.mxu0
    %v4184 = vadd.f32 0.0, %v4183
    %v4185 = vpop.f32.mrf.mxu0
    %v4186 = vadd.f32 0.0, %v4185
    %4187 = vmatprep.mubr.bf16.mxu0 0
    %4188 = vmatmul.mubr.bf16.gmra.mxu0 %v2742
    %v4189 = vpop.f32.mrf.mxu0
    %v4190 = vadd.f32 0.0, %v4189
    %v4191 = vpop.f32.mrf.mxu0
    %v4192 = vadd.f32 0.0, %v4191
    %v4193 = vpop.f32.mrf.mxu0
    %v4194 = vadd.f32 0.0, %v4193
    %v4195 = vpop.f32.mrf.mxu0
    %v4196 = vadd.f32 0.0, %v4195
    %4197 = vmatprep.mubr.bf16.mxu0 0
    %4198 = vmatmul.mubr.bf16.gmra.mxu0 %v2745
    %v4199 = vpop.f32.mrf.mxu0
    %v4200 = vadd.f32 0.0, %v4199
    %v4201 = vpop.f32.mrf.mxu0
    %v4202 = vadd.f32 0.0, %v4201
    %v4203 = vpop.f32.mrf.mxu0
    %v4204 = vadd.f32 0.0, %v4203
    %v4205 = vpop.f32.mrf.mxu0
    %v4206 = vadd.f32 0.0, %v4205
    %4207 = vdwg.mxu0
    %4208 = vmatprep.subr.bf16.mxu0 0
    %4209 = vmatpush1.bf16.msra.mxu0 0
    %4210 = vmatprep.subr.bf16.mxu0 0
    %4211 = vmatpush1.bf16.msra.mxu0 0
    %4212 = vmatprep.subr.bf16.mxu0 0
    %4213 = vmatpush1.bf16.msra.mxu0 0
    %4214 = vmatprep.subr.bf16.mxu0 0
    %4215 = vmatpush1.bf16.msra.mxu0 0
    %4216 = vmatprep.subr.bf16.mxu0 %v3956
    %4217 = vmatpush1.bf16.msra.mxu0 %v3955
    %4218 = vmatprep.subr.bf16.mxu0 %v3948
    %4219 = vmatpush1.bf16.msra.mxu0 %v3947
    %4220 = vmatprep.subr.bf16.mxu0 %v3940
    %4221 = vmatpush1.bf16.msra.mxu0 %v3939
    %4222 = vmatprep.subr.bf16.mxu0 %v3932
    %4223 = vmatpush1.bf16.msra.mxu0 %v3931
    %4224 = vmatprep.subr.bf16.mxu0 0
    %4225 = vmatpush2.bf16.msra.mxu0 0
    %4226 = vmatprep.subr.bf16.mxu0 0
    %4227 = vmatpush2.bf16.msra.mxu0 0
    %4228 = vmatprep.subr.bf16.mxu0 0
    %4229 = vmatpush2.bf16.msra.mxu0 0
    %4230 = vmatprep.subr.bf16.mxu0 0
    %4231 = vmatpush2.bf16.msra.mxu0 0
    %4232 = vmatprep.subr.bf16.mxu0 0
    %4233 = vmatpush2.bf16.msra.mxu0 0
    %4234 = vmatprep.subr.bf16.mxu0 0
    %4235 = vmatpush2.bf16.msra.mxu0 0
    %4236 = vmatprep.subr.bf16.mxu0 0
    %4237 = vmatpush2.bf16.msra.mxu0 0
    %4238 = vmatprep.subr.bf16.mxu0 0
    %4239 = vmatpush2.bf16.msra.mxu0 0
    %4240 = vmatprep.mubr.bf16.mxu0 0
    %4241 = vmatmul.mubr.bf16.gmra.mxu0 %v2736
    %v4242 = vpop.f32.mrf.mxu0
    %v4243 = vadd.f32 0.0, %v4242
    %v4244 = vpop.f32.mrf.mxu0
    %v4245 = vadd.f32 0.0, %v4244
    %v4246 = vpop.f32.mrf.mxu0
    %v4247 = vadd.f32 0.0, %v4246
    %v4248 = vpop.f32.mrf.mxu0
    %v4249 = vadd.f32 0.0, %v4248
    %4250 = vmatprep.mubr.bf16.mxu0 0
    %4251 = vmatmul.mubr.bf16.gmra.mxu0 %v2739
    %v4252 = vpop.f32.mrf.mxu0
    %v4253 = vadd.f32 0.0, %v4252
    %v4254 = vpop.f32.mrf.mxu0
    %v4255 = vadd.f32 0.0, %v4254
    %v4256 = vpop.f32.mrf.mxu0
    %v4257 = vadd.f32 0.0, %v4256
    %v4258 = vpop.f32.mrf.mxu0
    %v4259 = vadd.f32 0.0, %v4258
    %4260 = vmatprep.mubr.bf16.mxu0 0
    %4261 = vmatmul.mubr.bf16.gmra.mxu0 %v2742
    %v4262 = vpop.f32.mrf.mxu0
    %v4263 = vadd.f32 0.0, %v4262
    %v4264 = vpop.f32.mrf.mxu0
    %v4265 = vadd.f32 0.0, %v4264
    %v4266 = vpop.f32.mrf.mxu0
    %v4267 = vadd.f32 0.0, %v4266
    %v4268 = vpop.f32.mrf.mxu0
    %v4269 = vadd.f32 0.0, %v4268
    %4270 = vmatprep.mubr.bf16.mxu0 0
    %4271 = vmatmul.mubr.bf16.gmra.mxu0 %v2745
    %v4272 = vpop.f32.mrf.mxu0
    %v4273 = vadd.f32 0.0, %v4272
    %v4274 = vpop.f32.mrf.mxu0
    %v4275 = vadd.f32 0.0, %v4274
    %v4276 = vpop.f32.mrf.mxu0
    %v4277 = vadd.f32 0.0, %v4276
    %v4278 = vpop.f32.mrf.mxu0
    %v4279 = vadd.f32 0.0, %v4278
    %4280 = vdwg.mxu0
    %v4313 = vunpack.c.l.b16 %v3765
    %v4314 = vunpack.c.h.b16 %v3765
    %v4315 = vunpack.c.l.b16 %v3766
    %v4316 = vunpack.c.h.b16 %v3766
    %v4317 = vunpack.c.l.b16 %v3767
    %v4318 = vunpack.c.h.b16 %v3767
    %v4319 = vunpack.c.l.b16 %v3768
    %v4320 = vunpack.c.h.b16 %v3768
    %v4321 = vunpack.c.l.b16 %v3769
    %v4322 = vunpack.c.h.b16 %v3769
    %v4323 = vunpack.c.l.b16 %v3770
    %v4324 = vunpack.c.h.b16 %v3770
    %v4325 = vunpack.c.l.b16 %v3771
    %v4326 = vunpack.c.h.b16 %v3771
    %v4327 = vunpack.c.l.b16 %v3772
    %v4328 = vunpack.c.h.b16 %v3772
    %v4329 = vunpack.c.l.b16 %v3773
    %v4330 = vunpack.c.h.b16 %v3773
    %v4331 = vunpack.c.l.b16 %v3774
    %v4332 = vunpack.c.h.b16 %v3774
    %v4333 = vunpack.c.l.b16 %v3775
    %v4334 = vunpack.c.h.b16 %v3775
    %v4335 = vunpack.c.l.b16 %v3776
    %v4336 = vunpack.c.h.b16 %v3776
    %v4337 = vunpack.c.l.b16 %v3777
    %v4338 = vunpack.c.h.b16 %v3777
    %v4339 = vunpack.c.l.b16 %v3778
    %v4340 = vunpack.c.h.b16 %v3778
    %v4341 = vunpack.c.l.b16 %v3779
    %v4342 = vunpack.c.h.b16 %v3779
    %v4343 = vunpack.c.l.b16 %v3780
    %v4344 = vunpack.c.h.b16 %v3780
    %v4345 = vunpack.c.l.b16 %v3781
    %v4346 = vunpack.c.h.b16 %v3781
    %v4347 = vunpack.c.l.b16 %v3782
    %v4348 = vunpack.c.h.b16 %v3782
    %v4349 = vunpack.c.l.b16 %v3783
    %v4350 = vunpack.c.h.b16 %v3783
    %v4351 = vunpack.c.l.b16 %v3784
    %v4352 = vunpack.c.h.b16 %v3784
    %v4353 = vunpack.c.l.b16 %v3785
    %v4354 = vunpack.c.h.b16 %v3785
    %v4355 = vunpack.c.l.b16 %v3786
    %v4356 = vunpack.c.h.b16 %v3786
    %v4357 = vunpack.c.l.b16 %v3787
    %v4358 = vunpack.c.h.b16 %v3787
    %v4359 = vunpack.c.l.b16 %v3788
    %v4360 = vunpack.c.h.b16 %v3788
    %v4361 = vunpack.c.l.b16 %v3789
    %v4362 = vunpack.c.h.b16 %v3789
    %v4363 = vunpack.c.l.b16 %v3790
    %v4364 = vunpack.c.h.b16 %v3790
    %v4365 = vunpack.c.l.b16 %v3791
    %v4366 = vunpack.c.h.b16 %v3791
    %v4367 = vunpack.c.l.b16 %v3792
    %v4368 = vunpack.c.h.b16 %v3792
    %v4369 = vunpack.c.l.b16 %v3793
    %v4370 = vunpack.c.h.b16 %v3793
    %v4371 = vunpack.c.l.b16 %v3794
    %v4372 = vunpack.c.h.b16 %v3794
    %v4373 = vunpack.c.l.b16 %v3795
    %v4374 = vunpack.c.h.b16 %v3795
    %v4375 = vunpack.c.l.b16 %v3796
    %v4376 = vunpack.c.h.b16 %v3796
    %v4377 = vpack.c.b16 %v4321, %v4313
    %v4378 = vpack.c.b16 %v4322, %v4314
    %v4379 = vpack.c.b16 %v4323, %v4315
    %v4380 = vpack.c.b16 %v4324, %v4316
    %v4381 = vpack.c.b16 %v4325, %v4317
    %v4382 = vpack.c.b16 %v4326, %v4318
    %v4383 = vpack.c.b16 %v4327, %v4319
    %v4384 = vpack.c.b16 %v4328, %v4320
    %v4385 = vpack.c.b16 %v4337, %v4329
    %v4386 = vpack.c.b16 %v4338, %v4330
    %v4387 = vpack.c.b16 %v4339, %v4331
    %v4388 = vpack.c.b16 %v4340, %v4332
    %v4389 = vpack.c.b16 %v4341, %v4333
    %v4390 = vpack.c.b16 %v4342, %v4334
    %v4391 = vpack.c.b16 %v4343, %v4335
    %v4392 = vpack.c.b16 %v4344, %v4336
    %v4393 = vpack.c.b16 %v4353, %v4345
    %v4394 = vpack.c.b16 %v4354, %v4346
    %v4395 = vpack.c.b16 %v4355, %v4347
    %v4396 = vpack.c.b16 %v4356, %v4348
    %v4397 = vpack.c.b16 %v4357, %v4349
    %v4398 = vpack.c.b16 %v4358, %v4350
    %v4399 = vpack.c.b16 %v4359, %v4351
    %v4400 = vpack.c.b16 %v4360, %v4352
    %v4401 = vpack.c.b16 %v4369, %v4361
    %v4402 = vpack.c.b16 %v4370, %v4362
    %v4403 = vpack.c.b16 %v4371, %v4363
    %v4404 = vpack.c.b16 %v4372, %v4364
    %v4405 = vpack.c.b16 %v4373, %v4365
    %v4406 = vpack.c.b16 %v4374, %v4366
    %v4407 = vpack.c.b16 %v4375, %v4367
    %v4408 = vpack.c.b16 %v4376, %v4368
    %4441 = vmatprep.subr.bf16.mxu0 0
    %4442 = vmatpush1.bf16.msra.mxu0 0
    %4443 = vmatprep.subr.bf16.mxu0 0
    %4444 = vmatpush1.bf16.msra.mxu0 0
    %4445 = vmatprep.subr.bf16.mxu0 0
    %4446 = vmatpush1.bf16.msra.mxu0 0
    %4447 = vmatprep.subr.bf16.mxu0 0
    %4448 = vmatpush1.bf16.msra.mxu0 0
    %4449 = vmatprep.subr.bf16.mxu0 %v4402
    %4450 = vmatpush1.bf16.msra.mxu0 %v4401
    %4451 = vmatprep.subr.bf16.mxu0 %v4394
    %4452 = vmatpush1.bf16.msra.mxu0 %v4393
    %4453 = vmatprep.subr.bf16.mxu0 %v4386
    %4454 = vmatpush1.bf16.msra.mxu0 %v4385
    %4455 = vmatprep.subr.bf16.mxu0 %v4378
    %4456 = vmatpush1.bf16.msra.mxu0 %v4377
    %4457 = vmatprep.subr.bf16.mxu0 0
    %4458 = vmatpush2.bf16.msra.mxu0 0
    %4459 = vmatprep.subr.bf16.mxu0 0
    %4460 = vmatpush2.bf16.msra.mxu0 0
    %4461 = vmatprep.subr.bf16.mxu0 0
    %4462 = vmatpush2.bf16.msra.mxu0 0
    %4463 = vmatprep.subr.bf16.mxu0 0
    %4464 = vmatpush2.bf16.msra.mxu0 0
    %4465 = vmatprep.subr.bf16.mxu0 0
    %4466 = vmatpush2.bf16.msra.mxu0 0
    %4467 = vmatprep.subr.bf16.mxu0 0
    %4468 = vmatpush2.bf16.msra.mxu0 0
    %4469 = vmatprep.subr.bf16.mxu0 0
    %4470 = vmatpush2.bf16.msra.mxu0 0
    %4471 = vmatprep.subr.bf16.mxu0 0
    %4472 = vmatpush2.bf16.msra.mxu0 0
    %4473 = vmatprep.mubr.bf16.mxu0 0
    %4474 = vmatmul.mubr.bf16.gmra.mxu0 %v1670
    %v4475 = vpop.f32.mrf.mxu0
    %v4476 = vadd.f32 %v4024, %v4475
    %v4477 = vpop.f32.mrf.mxu0
    %v4478 = vadd.f32 %v4026, %v4477
    %v4479 = vpop.f32.mrf.mxu0
    %v4480 = vadd.f32 %v4028, %v4479
    %v4481 = vpop.f32.mrf.mxu0
    %v4482 = vadd.f32 %v4030, %v4481
    %4483 = vmatprep.mubr.bf16.mxu0 0
    %4484 = vmatmul.mubr.bf16.gmra.mxu0 %v1673
    %v4485 = vpop.f32.mrf.mxu0
    %v4486 = vadd.f32 %v4034, %v4485
    %v4487 = vpop.f32.mrf.mxu0
    %v4488 = vadd.f32 %v4036, %v4487
    %v4489 = vpop.f32.mrf.mxu0
    %v4490 = vadd.f32 %v4038, %v4489
    %v4491 = vpop.f32.mrf.mxu0
    %v4492 = vadd.f32 %v4040, %v4491
    %4493 = vmatprep.mubr.bf16.mxu0 0
    %4494 = vmatmul.mubr.bf16.gmra.mxu0 %v1676
    %v4495 = vpop.f32.mrf.mxu0
    %v4496 = vadd.f32 %v4044, %v4495
    %v4497 = vpop.f32.mrf.mxu0
    %v4498 = vadd.f32 %v4046, %v4497
    %v4499 = vpop.f32.mrf.mxu0
    %v4500 = vadd.f32 %v4048, %v4499
    %v4501 = vpop.f32.mrf.mxu0
    %v4502 = vadd.f32 %v4050, %v4501
    %4503 = vmatprep.mubr.bf16.mxu0 0
    %4504 = vmatmul.mubr.bf16.gmra.mxu0 %v1679
    %v4505 = vpop.f32.mrf.mxu0
    %v4506 = vadd.f32 %v4054, %v4505
    %v4507 = vpop.f32.mrf.mxu0
    %v4508 = vadd.f32 %v4056, %v4507
    %v4509 = vpop.f32.mrf.mxu0
    %v4510 = vadd.f32 %v4058, %v4509
    %v4511 = vpop.f32.mrf.mxu0
    %v4512 = vadd.f32 %v4060, %v4511
    %4513 = vdwg.mxu0
    %4514 = vmatprep.subr.bf16.mxu0 0
    %4515 = vmatpush1.bf16.msra.mxu0 0
    %4516 = vmatprep.subr.bf16.mxu0 0
    %4517 = vmatpush1.bf16.msra.mxu0 0
    %4518 = vmatprep.subr.bf16.mxu0 0
    %4519 = vmatpush1.bf16.msra.mxu0 0
    %4520 = vmatprep.subr.bf16.mxu0 0
    %4521 = vmatpush1.bf16.msra.mxu0 0
    %4522 = vmatprep.subr.bf16.mxu0 %v4404
    %4523 = vmatpush1.bf16.msra.mxu0 %v4403
    %4524 = vmatprep.subr.bf16.mxu0 %v4396
    %4525 = vmatpush1.bf16.msra.mxu0 %v4395
    %4526 = vmatprep.subr.bf16.mxu0 %v4388
    %4527 = vmatpush1.bf16.msra.mxu0 %v4387
    %4528 = vmatprep.subr.bf16.mxu0 %v4380
    %4529 = vmatpush1.bf16.msra.mxu0 %v4379
    %4530 = vmatprep.subr.bf16.mxu0 0
    %4531 = vmatpush2.bf16.msra.mxu0 0
    %4532 = vmatprep.subr.bf16.mxu0 0
    %4533 = vmatpush2.bf16.msra.mxu0 0
    %4534 = vmatprep.subr.bf16.mxu0 0
    %4535 = vmatpush2.bf16.msra.mxu0 0
    %4536 = vmatprep.subr.bf16.mxu0 0
    %4537 = vmatpush2.bf16.msra.mxu0 0
    %4538 = vmatprep.subr.bf16.mxu0 0
    %4539 = vmatpush2.bf16.msra.mxu0 0
    %4540 = vmatprep.subr.bf16.mxu0 0
    %4541 = vmatpush2.bf16.msra.mxu0 0
    %4542 = vmatprep.subr.bf16.mxu0 0
    %4543 = vmatpush2.bf16.msra.mxu0 0
    %4544 = vmatprep.subr.bf16.mxu0 0
    %4545 = vmatpush2.bf16.msra.mxu0 0
    %4546 = vmatprep.mubr.bf16.mxu0 0
    %4547 = vmatmul.mubr.bf16.gmra.mxu0 %v1670
    %v4548 = vpop.f32.mrf.mxu0
    %v4549 = vadd.f32 %v4097, %v4548
    %v4550 = vpop.f32.mrf.mxu0
    %v4551 = vadd.f32 %v4099, %v4550
    %v4552 = vpop.f32.mrf.mxu0
    %v4553 = vadd.f32 %v4101, %v4552
    %v4554 = vpop.f32.mrf.mxu0
    %v4555 = vadd.f32 %v4103, %v4554
    %4556 = vmatprep.mubr.bf16.mxu0 0
    %4557 = vmatmul.mubr.bf16.gmra.mxu0 %v1673
    %v4558 = vpop.f32.mrf.mxu0
    %v4559 = vadd.f32 %v4107, %v4558
    %v4560 = vpop.f32.mrf.mxu0
    %v4561 = vadd.f32 %v4109, %v4560
    %v4562 = vpop.f32.mrf.mxu0
    %v4563 = vadd.f32 %v4111, %v4562
    %v4564 = vpop.f32.mrf.mxu0
    %v4565 = vadd.f32 %v4113, %v4564
    %4566 = vmatprep.mubr.bf16.mxu0 0
    %4567 = vmatmul.mubr.bf16.gmra.mxu0 %v1676
    %v4568 = vpop.f32.mrf.mxu0
    %v4569 = vadd.f32 %v4117, %v4568
    %v4570 = vpop.f32.mrf.mxu0
    %v4571 = vadd.f32 %v4119, %v4570
    %v4572 = vpop.f32.mrf.mxu0
    %v4573 = vadd.f32 %v4121, %v4572
    %v4574 = vpop.f32.mrf.mxu0
    %v4575 = vadd.f32 %v4123, %v4574
    %4576 = vmatprep.mubr.bf16.mxu0 0
    %4577 = vmatmul.mubr.bf16.gmra.mxu0 %v1679
    %v4578 = vpop.f32.mrf.mxu0
    %v4579 = vadd.f32 %v4127, %v4578
    %v4580 = vpop.f32.mrf.mxu0
    %v4581 = vadd.f32 %v4129, %v4580
    %v4582 = vpop.f32.mrf.mxu0
    %v4583 = vadd.f32 %v4131, %v4582
    %v4584 = vpop.f32.mrf.mxu0
    %v4585 = vadd.f32 %v4133, %v4584
    %4586 = vdwg.mxu0
    %4587 = vmatprep.subr.bf16.mxu0 0
    %4588 = vmatpush1.bf16.msra.mxu0 0
    %4589 = vmatprep.subr.bf16.mxu0 0
    %4590 = vmatpush1.bf16.msra.mxu0 0
    %4591 = vmatprep.subr.bf16.mxu0 0
    %4592 = vmatpush1.bf16.msra.mxu0 0
    %4593 = vmatprep.subr.bf16.mxu0 0
    %4594 = vmatpush1.bf16.msra.mxu0 0
    %4595 = vmatprep.subr.bf16.mxu0 %v4406
    %4596 = vmatpush1.bf16.msra.mxu0 %v4405
    %4597 = vmatprep.subr.bf16.mxu0 %v4398
    %4598 = vmatpush1.bf16.msra.mxu0 %v4397
    %4599 = vmatprep.subr.bf16.mxu0 %v4390
    %4600 = vmatpush1.bf16.msra.mxu0 %v4389
    %4601 = vmatprep.subr.bf16.mxu0 %v4382
    %4602 = vmatpush1.bf16.msra.mxu0 %v4381
    %4603 = vmatprep.subr.bf16.mxu0 0
    %4604 = vmatpush2.bf16.msra.mxu0 0
    %4605 = vmatprep.subr.bf16.mxu0 0
    %4606 = vmatpush2.bf16.msra.mxu0 0
    %4607 = vmatprep.subr.bf16.mxu0 0
    %4608 = vmatpush2.bf16.msra.mxu0 0
    %4609 = vmatprep.subr.bf16.mxu0 0
    %4610 = vmatpush2.bf16.msra.mxu0 0
    %4611 = vmatprep.subr.bf16.mxu0 0
    %4612 = vmatpush2.bf16.msra.mxu0 0
    %4613 = vmatprep.subr.bf16.mxu0 0
    %4614 = vmatpush2.bf16.msra.mxu0 0
    %4615 = vmatprep.subr.bf16.mxu0 0
    %4616 = vmatpush2.bf16.msra.mxu0 0
    %4617 = vmatprep.subr.bf16.mxu0 0
    %4618 = vmatpush2.bf16.msra.mxu0 0
    %4619 = vmatprep.mubr.bf16.mxu0 0
    %4620 = vmatmul.mubr.bf16.gmra.mxu0 %v1670
    %v4621 = vpop.f32.mrf.mxu0
    %v4622 = vadd.f32 %v4170, %v4621
    %v4623 = vpop.f32.mrf.mxu0
    %v4624 = vadd.f32 %v4172, %v4623
    %v4625 = vpop.f32.mrf.mxu0
    %v4626 = vadd.f32 %v4174, %v4625
    %v4627 = vpop.f32.mrf.mxu0
    %v4628 = vadd.f32 %v4176, %v4627
    %4629 = vmatprep.mubr.bf16.mxu0 0
    %4630 = vmatmul.mubr.bf16.gmra.mxu0 %v1673
    %v4631 = vpop.f32.mrf.mxu0
    %v4632 = vadd.f32 %v4180, %v4631
    %v4633 = vpop.f32.mrf.mxu0
    %v4634 = vadd.f32 %v4182, %v4633
    %v4635 = vpop.f32.mrf.mxu0
    %v4636 = vadd.f32 %v4184, %v4635
    %v4637 = vpop.f32.mrf.mxu0
    %v4638 = vadd.f32 %v4186, %v4637
    %4639 = vmatprep.mubr.bf16.mxu0 0
    %4640 = vmatmul.mubr.bf16.gmra.mxu0 %v1676
    %v4641 = vpop.f32.mrf.mxu0
    %v4642 = vadd.f32 %v4190, %v4641
    %v4643 = vpop.f32.mrf.mxu0
    %v4644 = vadd.f32 %v4192, %v4643
    %v4645 = vpop.f32.mrf.mxu0
    %v4646 = vadd.f32 %v4194, %v4645
    %v4647 = vpop.f32.mrf.mxu0
    %v4648 = vadd.f32 %v4196, %v4647
    %4649 = vmatprep.mubr.bf16.mxu0 0
    %4650 = vmatmul.mubr.bf16.gmra.mxu0 %v1679
    %v4651 = vpop.f32.mrf.mxu0
    %v4652 = vadd.f32 %v4200, %v4651
    %v4653 = vpop.f32.mrf.mxu0
    %v4654 = vadd.f32 %v4202, %v4653
    %v4655 = vpop.f32.mrf.mxu0
    %v4656 = vadd.f32 %v4204, %v4655
    %v4657 = vpop.f32.mrf.mxu0
    %v4658 = vadd.f32 %v4206, %v4657
    %4659 = vdwg.mxu0
    %4660 = vmatprep.subr.bf16.mxu0 0
    %4661 = vmatpush1.bf16.msra.mxu0 0
    %4662 = vmatprep.subr.bf16.mxu0 0
    %4663 = vmatpush1.bf16.msra.mxu0 0
    %4664 = vmatprep.subr.bf16.mxu0 0
    %4665 = vmatpush1.bf16.msra.mxu0 0
    %4666 = vmatprep.subr.bf16.mxu0 0
    %4667 = vmatpush1.bf16.msra.mxu0 0
    %4668 = vmatprep.subr.bf16.mxu0 %v4408
    %4669 = vmatpush1.bf16.msra.mxu0 %v4407
    %4670 = vmatprep.subr.bf16.mxu0 %v4400
    %4671 = vmatpush1.bf16.msra.mxu0 %v4399
    %4672 = vmatprep.subr.bf16.mxu0 %v4392
    %4673 = vmatpush1.bf16.msra.mxu0 %v4391
    %4674 = vmatprep.subr.bf16.mxu0 %v4384
    %4675 = vmatpush1.bf16.msra.mxu0 %v4383
    %4676 = vmatprep.subr.bf16.mxu0 0
    %4677 = vmatpush2.bf16.msra.mxu0 0
    %4678 = vmatprep.subr.bf16.mxu0 0
    %4679 = vmatpush2.bf16.msra.mxu0 0
    %4680 = vmatprep.subr.bf16.mxu0 0
    %4681 = vmatpush2.bf16.msra.mxu0 0
    %4682 = vmatprep.subr.bf16.mxu0 0
    %4683 = vmatpush2.bf16.msra.mxu0 0
    %4684 = vmatprep.subr.bf16.mxu0 0
    %4685 = vmatpush2.bf16.msra.mxu0 0
    %4686 = vmatprep.subr.bf16.mxu0 0
    %4687 = vmatpush2.bf16.msra.mxu0 0
    %4688 = vmatprep.subr.bf16.mxu0 0
    %4689 = vmatpush2.bf16.msra.mxu0 0
    %4690 = vmatprep.subr.bf16.mxu0 0
    %4691 = vmatpush2.bf16.msra.mxu0 0
    %4692 = vmatprep.mubr.bf16.mxu0 0
    %4693 = vmatmul.mubr.bf16.gmra.mxu0 %v1670
    %v4694 = vpop.f32.mrf.mxu0
    %v4695 = vadd.f32 %v4243, %v4694
    %v4696 = vpop.f32.mrf.mxu0
    %v4697 = vadd.f32 %v4245, %v4696
    %v4698 = vpop.f32.mrf.mxu0
    %v4699 = vadd.f32 %v4247, %v4698
    %v4700 = vpop.f32.mrf.mxu0
    %v4701 = vadd.f32 %v4249, %v4700
    %4702 = vmatprep.mubr.bf16.mxu0 0
    %4703 = vmatmul.mubr.bf16.gmra.mxu0 %v1673
    %v4704 = vpop.f32.mrf.mxu0
    %v4705 = vadd.f32 %v4253, %v4704
    %v4706 = vpop.f32.mrf.mxu0
    %v4707 = vadd.f32 %v4255, %v4706
    %v4708 = vpop.f32.mrf.mxu0
    %v4709 = vadd.f32 %v4257, %v4708
    %v4710 = vpop.f32.mrf.mxu0
    %v4711 = vadd.f32 %v4259, %v4710
    %4712 = vmatprep.mubr.bf16.mxu0 0
    %4713 = vmatmul.mubr.bf16.gmra.mxu0 %v1676
    %v4714 = vpop.f32.mrf.mxu0
    %v4715 = vadd.f32 %v4263, %v4714
    %v4716 = vpop.f32.mrf.mxu0
    %v4717 = vadd.f32 %v4265, %v4716
    %v4718 = vpop.f32.mrf.mxu0
    %v4719 = vadd.f32 %v4267, %v4718
    %v4720 = vpop.f32.mrf.mxu0
    %v4721 = vadd.f32 %v4269, %v4720
    %4722 = vmatprep.mubr.bf16.mxu0 0
    %4723 = vmatmul.mubr.bf16.gmra.mxu0 %v1679
    %v4724 = vpop.f32.mrf.mxu0
    %v4725 = vadd.f32 %v4273, %v4724
    %v4726 = vpop.f32.mrf.mxu0
    %v4727 = vadd.f32 %v4275, %v4726
    %v4728 = vpop.f32.mrf.mxu0
    %v4729 = vadd.f32 %v4277, %v4728
    %v4730 = vpop.f32.mrf.mxu0
    %v4731 = vadd.f32 %v4279, %v4730
    %4732 = vdwg.mxu0
    %v4733 = vpack.c.bf16 %v3738, %v3735
    %v4734 = vpack.c.bf16 %v3746, %v3743
    %v4735 = vpack.c.bf16 %v3754, %v3751
    %v4736 = vpack.c.bf16 %v3762, %v3759
    %v4737 = vld [vmem:[#allocation9 + $0x200] sm:$0xff]
    %v4738 = vld [vmem:[#allocation9 + $0x208] sm:$0xff]
    %v4739 = vld [vmem:[#allocation9 + $0x210] sm:$0xff]
    %v4740 = vld [vmem:[#allocation9 + $0x218] sm:$0xff]
    %v4741 = vld [vmem:[#allocation9 + $0x220] sm:$0xff]
    %v4742 = vld [vmem:[#allocation9 + $0x228] sm:$0xff]
    %v4743 = vld [vmem:[#allocation9 + $0x230] sm:$0xff]
    %v4744 = vld [vmem:[#allocation9 + $0x238] sm:$0xff]
    %v4745 = vld [vmem:[#allocation9 + $0x240] sm:$0xff]
    %v4746 = vld [vmem:[#allocation9 + $0x248] sm:$0xff]
    %v4747 = vld [vmem:[#allocation9 + $0x250] sm:$0xff]
    %v4748 = vld [vmem:[#allocation9 + $0x258] sm:$0xff]
    %v4749 = vld [vmem:[#allocation9 + $0x260] sm:$0xff]
    %v4750 = vld [vmem:[#allocation9 + $0x268] sm:$0xff]
    %v4751 = vld [vmem:[#allocation9 + $0x270] sm:$0xff]
    %v4752 = vld [vmem:[#allocation9 + $0x278] sm:$0xff]
    %v4753 = vld [vmem:[#allocation9 + $0x280] sm:$0xff]
    %v4754 = vld [vmem:[#allocation9 + $0x288] sm:$0xff]
    %v4755 = vld [vmem:[#allocation9 + $0x290] sm:$0xff]
    %v4756 = vld [vmem:[#allocation9 + $0x298] sm:$0xff]
    %v4757 = vld [vmem:[#allocation9 + $0x2a0] sm:$0xff]
    %v4758 = vld [vmem:[#allocation9 + $0x2a8] sm:$0xff]
    %v4759 = vld [vmem:[#allocation9 + $0x2b0] sm:$0xff]
    %v4760 = vld [vmem:[#allocation9 + $0x2b8] sm:$0xff]
    %v4761 = vld [vmem:[#allocation9 + $0x2c0] sm:$0xff]
    %v4762 = vld [vmem:[#allocation9 + $0x2c8] sm:$0xff]
    %v4763 = vld [vmem:[#allocation9 + $0x2d0] sm:$0xff]
    %v4764 = vld [vmem:[#allocation9 + $0x2d8] sm:$0xff]
    %v4765 = vld [vmem:[#allocation9 + $0x2e0] sm:$0xff]
    %v4766 = vld [vmem:[#allocation9 + $0x2e8] sm:$0xff]
    %v4767 = vld [vmem:[#allocation9 + $0x2f0] sm:$0xff]
    %v4768 = vld [vmem:[#allocation9 + $0x2f8] sm:$0xff]
    %v4801 = vunpack.c.l.b16 %v4737
    %v4802 = vunpack.c.h.b16 %v4737
    %v4803 = vunpack.c.l.b16 %v4738
    %v4804 = vunpack.c.h.b16 %v4738
    %v4805 = vunpack.c.l.b16 %v4739
    %v4806 = vunpack.c.h.b16 %v4739
    %v4807 = vunpack.c.l.b16 %v4740
    %v4808 = vunpack.c.h.b16 %v4740
    %v4809 = vunpack.c.l.b16 %v4741
    %v4810 = vunpack.c.h.b16 %v4741
    %v4811 = vunpack.c.l.b16 %v4742
    %v4812 = vunpack.c.h.b16 %v4742
    %v4813 = vunpack.c.l.b16 %v4743
    %v4814 = vunpack.c.h.b16 %v4743
    %v4815 = vunpack.c.l.b16 %v4744
    %v4816 = vunpack.c.h.b16 %v4744
    %v4817 = vunpack.c.l.b16 %v4745
    %v4818 = vunpack.c.h.b16 %v4745
    %v4819 = vunpack.c.l.b16 %v4746
    %v4820 = vunpack.c.h.b16 %v4746
    %v4821 = vunpack.c.l.b16 %v4747
    %v4822 = vunpack.c.h.b16 %v4747
    %v4823 = vunpack.c.l.b16 %v4748
    %v4824 = vunpack.c.h.b16 %v4748
    %v4825 = vunpack.c.l.b16 %v4749
    %v4826 = vunpack.c.h.b16 %v4749
    %v4827 = vunpack.c.l.b16 %v4750
    %v4828 = vunpack.c.h.b16 %v4750
    %v4829 = vunpack.c.l.b16 %v4751
    %v4830 = vunpack.c.h.b16 %v4751
    %v4831 = vunpack.c.l.b16 %v4752
    %v4832 = vunpack.c.h.b16 %v4752
    %v4833 = vunpack.c.l.b16 %v4753
    %v4834 = vunpack.c.h.b16 %v4753
    %v4835 = vunpack.c.l.b16 %v4754
    %v4836 = vunpack.c.h.b16 %v4754
    %v4837 = vunpack.c.l.b16 %v4755
    %v4838 = vunpack.c.h.b16 %v4755
    %v4839 = vunpack.c.l.b16 %v4756
    %v4840 = vunpack.c.h.b16 %v4756
    %v4841 = vunpack.c.l.b16 %v4757
    %v4842 = vunpack.c.h.b16 %v4757
    %v4843 = vunpack.c.l.b16 %v4758
    %v4844 = vunpack.c.h.b16 %v4758
    %v4845 = vunpack.c.l.b16 %v4759
    %v4846 = vunpack.c.h.b16 %v4759
    %v4847 = vunpack.c.l.b16 %v4760
    %v4848 = vunpack.c.h.b16 %v4760
    %v4849 = vunpack.c.l.b16 %v4761
    %v4850 = vunpack.c.h.b16 %v4761
    %v4851 = vunpack.c.l.b16 %v4762
    %v4852 = vunpack.c.h.b16 %v4762
    %v4853 = vunpack.c.l.b16 %v4763
    %v4854 = vunpack.c.h.b16 %v4763
    %v4855 = vunpack.c.l.b16 %v4764
    %v4856 = vunpack.c.h.b16 %v4764
    %v4857 = vunpack.c.l.b16 %v4765
    %v4858 = vunpack.c.h.b16 %v4765
    %v4859 = vunpack.c.l.b16 %v4766
    %v4860 = vunpack.c.h.b16 %v4766
    %v4861 = vunpack.c.l.b16 %v4767
    %v4862 = vunpack.c.h.b16 %v4767
    %v4863 = vunpack.c.l.b16 %v4768
    %v4864 = vunpack.c.h.b16 %v4768
    %v4865 = vpack.c.b16 %v4809, %v4801
    %v4866 = vpack.c.b16 %v4810, %v4802
    %v4867 = vpack.c.b16 %v4811, %v4803
    %v4868 = vpack.c.b16 %v4812, %v4804
    %v4869 = vpack.c.b16 %v4813, %v4805
    %v4870 = vpack.c.b16 %v4814, %v4806
    %v4871 = vpack.c.b16 %v4815, %v4807
    %v4872 = vpack.c.b16 %v4816, %v4808
    %v4873 = vpack.c.b16 %v4825, %v4817
    %v4874 = vpack.c.b16 %v4826, %v4818
    %v4875 = vpack.c.b16 %v4827, %v4819
    %v4876 = vpack.c.b16 %v4828, %v4820
    %v4877 = vpack.c.b16 %v4829, %v4821
    %v4878 = vpack.c.b16 %v4830, %v4822
    %v4879 = vpack.c.b16 %v4831, %v4823
    %v4880 = vpack.c.b16 %v4832, %v4824
    %v4881 = vpack.c.b16 %v4841, %v4833
    %v4882 = vpack.c.b16 %v4842, %v4834
    %v4883 = vpack.c.b16 %v4843, %v4835
    %v4884 = vpack.c.b16 %v4844, %v4836
    %v4885 = vpack.c.b16 %v4845, %v4837
    %v4886 = vpack.c.b16 %v4846, %v4838
    %v4887 = vpack.c.b16 %v4847, %v4839
    %v4888 = vpack.c.b16 %v4848, %v4840
    %v4889 = vpack.c.b16 %v4857, %v4849
    %v4890 = vpack.c.b16 %v4858, %v4850
    %v4891 = vpack.c.b16 %v4859, %v4851
    %v4892 = vpack.c.b16 %v4860, %v4852
    %v4893 = vpack.c.b16 %v4861, %v4853
    %v4894 = vpack.c.b16 %v4862, %v4854
    %v4895 = vpack.c.b16 %v4863, %v4855
    %v4896 = vpack.c.b16 %v4864, %v4856
    %v4930 = vsel %vm568, %v4733, 0
    %v4933 = vsel %vm568, %v4734, 0
    %v4936 = vsel %vm568, %v4735, 0
    %v4939 = vsel %vm568, %v4736, 0
    %4941 = vmatprep.subr.bf16.mxu0 0
    %4942 = vmatpush1.bf16.msra.mxu0 0
    %4943 = vmatprep.subr.bf16.mxu0 0
    %4944 = vmatpush1.bf16.msra.mxu0 0
    %4945 = vmatprep.subr.bf16.mxu0 0
    %4946 = vmatpush1.bf16.msra.mxu0 0
    %4947 = vmatprep.subr.bf16.mxu0 0
    %4948 = vmatpush1.bf16.msra.mxu0 0
    %4949 = vmatprep.subr.bf16.mxu0 %v4890
    %4950 = vmatpush1.bf16.msra.mxu0 %v4889
    %4951 = vmatprep.subr.bf16.mxu0 %v4882
    %4952 = vmatpush1.bf16.msra.mxu0 %v4881
    %4953 = vmatprep.subr.bf16.mxu0 %v4874
    %4954 = vmatpush1.bf16.msra.mxu0 %v4873
    %4955 = vmatprep.subr.bf16.mxu0 %v4866
    %4956 = vmatpush1.bf16.msra.mxu0 %v4865
    %4957 = vmatprep.subr.bf16.mxu0 0
    %4958 = vmatpush2.bf16.msra.mxu0 0
    %4959 = vmatprep.subr.bf16.mxu0 0
    %4960 = vmatpush2.bf16.msra.mxu0 0
    %4961 = vmatprep.subr.bf16.mxu0 0
    %4962 = vmatpush2.bf16.msra.mxu0 0
    %4963 = vmatprep.subr.bf16.mxu0 0
    %4964 = vmatpush2.bf16.msra.mxu0 0
    %4965 = vmatprep.subr.bf16.mxu0 0
    %4966 = vmatpush2.bf16.msra.mxu0 0
    %4967 = vmatprep.subr.bf16.mxu0 0
    %4968 = vmatpush2.bf16.msra.mxu0 0
    %4969 = vmatprep.subr.bf16.mxu0 0
    %4970 = vmatpush2.bf16.msra.mxu0 0
    %4971 = vmatprep.subr.bf16.mxu0 0
    %4972 = vmatpush2.bf16.msra.mxu0 0
    %4973 = vmatprep.mubr.bf16.mxu0 0
    %4974 = vmatmul.mubr.bf16.gmra.mxu0 %v4930
    %v4975 = vpop.f32.mrf.mxu0
    %v4976 = vadd.f32 0.0, %v4975
    %v4977 = vpop.f32.mrf.mxu0
    %v4978 = vadd.f32 0.0, %v4977
    %v4979 = vpop.f32.mrf.mxu0
    %v4980 = vadd.f32 0.0, %v4979
    %v4981 = vpop.f32.mrf.mxu0
    %v4982 = vadd.f32 0.0, %v4981
    %4983 = vmatprep.mubr.bf16.mxu0 0
    %4984 = vmatmul.mubr.bf16.gmra.mxu0 %v4933
    %v4985 = vpop.f32.mrf.mxu0
    %v4986 = vadd.f32 0.0, %v4985
    %v4987 = vpop.f32.mrf.mxu0
    %v4988 = vadd.f32 0.0, %v4987
    %v4989 = vpop.f32.mrf.mxu0
    %v4990 = vadd.f32 0.0, %v4989
    %v4991 = vpop.f32.mrf.mxu0
    %v4992 = vadd.f32 0.0, %v4991
    %4993 = vmatprep.mubr.bf16.mxu0 0
    %4994 = vmatmul.mubr.bf16.gmra.mxu0 %v4936
    %v4995 = vpop.f32.mrf.mxu0
    %v4996 = vadd.f32 0.0, %v4995
    %v4997 = vpop.f32.mrf.mxu0
    %v4998 = vadd.f32 0.0, %v4997
    %v4999 = vpop.f32.mrf.mxu0
    %v5000 = vadd.f32 0.0, %v4999
    %v5001 = vpop.f32.mrf.mxu0
    %v5002 = vadd.f32 0.0, %v5001
    %5003 = vmatprep.mubr.bf16.mxu0 0
    %5004 = vmatmul.mubr.bf16.gmra.mxu0 %v4939
    %v5005 = vpop.f32.mrf.mxu0
    %v5006 = vadd.f32 0.0, %v5005
    %v5007 = vpop.f32.mrf.mxu0
    %v5008 = vadd.f32 0.0, %v5007
    %v5009 = vpop.f32.mrf.mxu0
    %v5010 = vadd.f32 0.0, %v5009
    %v5011 = vpop.f32.mrf.mxu0
    %v5012 = vadd.f32 0.0, %v5011
    %5013 = vdwg.mxu0
    %5014 = vmatprep.subr.bf16.mxu0 0
    %5015 = vmatpush1.bf16.msra.mxu0 0
    %5016 = vmatprep.subr.bf16.mxu0 0
    %5017 = vmatpush1.bf16.msra.mxu0 0
    %5018 = vmatprep.subr.bf16.mxu0 0
    %5019 = vmatpush1.bf16.msra.mxu0 0
    %5020 = vmatprep.subr.bf16.mxu0 0
    %5021 = vmatpush1.bf16.msra.mxu0 0
    %5022 = vmatprep.subr.bf16.mxu0 %v4892
    %5023 = vmatpush1.bf16.msra.mxu0 %v4891
    %5024 = vmatprep.subr.bf16.mxu0 %v4884
    %5025 = vmatpush1.bf16.msra.mxu0 %v4883
    %5026 = vmatprep.subr.bf16.mxu0 %v4876
    %5027 = vmatpush1.bf16.msra.mxu0 %v4875
    %5028 = vmatprep.subr.bf16.mxu0 %v4868
    %5029 = vmatpush1.bf16.msra.mxu0 %v4867
    %5030 = vmatprep.subr.bf16.mxu0 0
    %5031 = vmatpush2.bf16.msra.mxu0 0
    %5032 = vmatprep.subr.bf16.mxu0 0
    %5033 = vmatpush2.bf16.msra.mxu0 0
    %5034 = vmatprep.subr.bf16.mxu0 0
    %5035 = vmatpush2.bf16.msra.mxu0 0
    %5036 = vmatprep.subr.bf16.mxu0 0
    %5037 = vmatpush2.bf16.msra.mxu0 0
    %5038 = vmatprep.subr.bf16.mxu0 0
    %5039 = vmatpush2.bf16.msra.mxu0 0
    %5040 = vmatprep.subr.bf16.mxu0 0
    %5041 = vmatpush2.bf16.msra.mxu0 0
    %5042 = vmatprep.subr.bf16.mxu0 0
    %5043 = vmatpush2.bf16.msra.mxu0 0
    %5044 = vmatprep.subr.bf16.mxu0 0
    %5045 = vmatpush2.bf16.msra.mxu0 0
    %5046 = vmatprep.mubr.bf16.mxu0 0
    %5047 = vmatmul.mubr.bf16.gmra.mxu0 %v4930
    %v5048 = vpop.f32.mrf.mxu0
    %v5049 = vadd.f32 0.0, %v5048
    %v5050 = vpop.f32.mrf.mxu0
    %v5051 = vadd.f32 0.0, %v5050
    %v5052 = vpop.f32.mrf.mxu0
    %v5053 = vadd.f32 0.0, %v5052
    %v5054 = vpop.f32.mrf.mxu0
    %v5055 = vadd.f32 0.0, %v5054
    %5056 = vmatprep.mubr.bf16.mxu0 0
    %5057 = vmatmul.mubr.bf16.gmra.mxu0 %v4933
    %v5058 = vpop.f32.mrf.mxu0
    %v5059 = vadd.f32 0.0, %v5058
    %v5060 = vpop.f32.mrf.mxu0
    %v5061 = vadd.f32 0.0, %v5060
    %v5062 = vpop.f32.mrf.mxu0
    %v5063 = vadd.f32 0.0, %v5062
    %v5064 = vpop.f32.mrf.mxu0
    %v5065 = vadd.f32 0.0, %v5064
    %5066 = vmatprep.mubr.bf16.mxu0 0
    %5067 = vmatmul.mubr.bf16.gmra.mxu0 %v4936
    %v5068 = vpop.f32.mrf.mxu0
    %v5069 = vadd.f32 0.0, %v5068
    %v5070 = vpop.f32.mrf.mxu0
    %v5071 = vadd.f32 0.0, %v5070
    %v5072 = vpop.f32.mrf.mxu0
    %v5073 = vadd.f32 0.0, %v5072
    %v5074 = vpop.f32.mrf.mxu0
    %v5075 = vadd.f32 0.0, %v5074
    %5076 = vmatprep.mubr.bf16.mxu0 0
    %5077 = vmatmul.mubr.bf16.gmra.mxu0 %v4939
    %v5078 = vpop.f32.mrf.mxu0
    %v5079 = vadd.f32 0.0, %v5078
    %v5080 = vpop.f32.mrf.mxu0
    %v5081 = vadd.f32 0.0, %v5080
    %v5082 = vpop.f32.mrf.mxu0
    %v5083 = vadd.f32 0.0, %v5082
    %v5084 = vpop.f32.mrf.mxu0
    %v5085 = vadd.f32 0.0, %v5084
    %5086 = vdwg.mxu0
    %5087 = vmatprep.subr.bf16.mxu0 0
    %5088 = vmatpush1.bf16.msra.mxu0 0
    %5089 = vmatprep.subr.bf16.mxu0 0
    %5090 = vmatpush1.bf16.msra.mxu0 0
    %5091 = vmatprep.subr.bf16.mxu0 0
    %5092 = vmatpush1.bf16.msra.mxu0 0
    %5093 = vmatprep.subr.bf16.mxu0 0
    %5094 = vmatpush1.bf16.msra.mxu0 0
    %5095 = vmatprep.subr.bf16.mxu0 %v4894
    %5096 = vmatpush1.bf16.msra.mxu0 %v4893
    %5097 = vmatprep.subr.bf16.mxu0 %v4886
    %5098 = vmatpush1.bf16.msra.mxu0 %v4885
    %5099 = vmatprep.subr.bf16.mxu0 %v4878
    %5100 = vmatpush1.bf16.msra.mxu0 %v4877
    %5101 = vmatprep.subr.bf16.mxu0 %v4870
    %5102 = vmatpush1.bf16.msra.mxu0 %v4869
    %5103 = vmatprep.subr.bf16.mxu0 0
    %5104 = vmatpush2.bf16.msra.mxu0 0
    %5105 = vmatprep.subr.bf16.mxu0 0
    %5106 = vmatpush2.bf16.msra.mxu0 0
    %5107 = vmatprep.subr.bf16.mxu0 0
    %5108 = vmatpush2.bf16.msra.mxu0 0
    %5109 = vmatprep.subr.bf16.mxu0 0
    %5110 = vmatpush2.bf16.msra.mxu0 0
    %5111 = vmatprep.subr.bf16.mxu0 0
    %5112 = vmatpush2.bf16.msra.mxu0 0
    %5113 = vmatprep.subr.bf16.mxu0 0
    %5114 = vmatpush2.bf16.msra.mxu0 0
    %5115 = vmatprep.subr.bf16.mxu0 0
    %5116 = vmatpush2.bf16.msra.mxu0 0
    %5117 = vmatprep.subr.bf16.mxu0 0
    %5118 = vmatpush2.bf16.msra.mxu0 0
    %5119 = vmatprep.mubr.bf16.mxu0 0
    %5120 = vmatmul.mubr.bf16.gmra.mxu0 %v4930
    %v5121 = vpop.f32.mrf.mxu0
    %v5122 = vadd.f32 0.0, %v5121
    %v5123 = vpop.f32.mrf.mxu0
    %v5124 = vadd.f32 0.0, %v5123
    %v5125 = vpop.f32.mrf.mxu0
    %v5126 = vadd.f32 0.0, %v5125
    %v5127 = vpop.f32.mrf.mxu0
    %v5128 = vadd.f32 0.0, %v5127
    %5129 = vmatprep.mubr.bf16.mxu0 0
    %5130 = vmatmul.mubr.bf16.gmra.mxu0 %v4933
    %v5131 = vpop.f32.mrf.mxu0
    %v5132 = vadd.f32 0.0, %v5131
    %v5133 = vpop.f32.mrf.mxu0
    %v5134 = vadd.f32 0.0, %v5133
    %v5135 = vpop.f32.mrf.mxu0
    %v5136 = vadd.f32 0.0, %v5135
    %v5137 = vpop.f32.mrf.mxu0
    %v5138 = vadd.f32 0.0, %v5137
    %5139 = vmatprep.mubr.bf16.mxu0 0
    %5140 = vmatmul.mubr.bf16.gmra.mxu0 %v4936
    %v5141 = vpop.f32.mrf.mxu0
    %v5142 = vadd.f32 0.0, %v5141
    %v5143 = vpop.f32.mrf.mxu0
    %v5144 = vadd.f32 0.0, %v5143
    %v5145 = vpop.f32.mrf.mxu0
    %v5146 = vadd.f32 0.0, %v5145
    %v5147 = vpop.f32.mrf.mxu0
    %v5148 = vadd.f32 0.0, %v5147
    %5149 = vmatprep.mubr.bf16.mxu0 0
    %5150 = vmatmul.mubr.bf16.gmra.mxu0 %v4939
    %v5151 = vpop.f32.mrf.mxu0
    %v5152 = vadd.f32 0.0, %v5151
    %v5153 = vpop.f32.mrf.mxu0
    %v5154 = vadd.f32 0.0, %v5153
    %v5155 = vpop.f32.mrf.mxu0
    %v5156 = vadd.f32 0.0, %v5155
    %v5157 = vpop.f32.mrf.mxu0
    %v5158 = vadd.f32 0.0, %v5157
    %5159 = vdwg.mxu0
    %5160 = vmatprep.subr.bf16.mxu0 0
    %5161 = vmatpush1.bf16.msra.mxu0 0
    %5162 = vmatprep.subr.bf16.mxu0 0
    %5163 = vmatpush1.bf16.msra.mxu0 0
    %5164 = vmatprep.subr.bf16.mxu0 0
    %5165 = vmatpush1.bf16.msra.mxu0 0
    %5166 = vmatprep.subr.bf16.mxu0 0
    %5167 = vmatpush1.bf16.msra.mxu0 0
    %5168 = vmatprep.subr.bf16.mxu0 %v4896
    %5169 = vmatpush1.bf16.msra.mxu0 %v4895
    %5170 = vmatprep.subr.bf16.mxu0 %v4888
    %5171 = vmatpush1.bf16.msra.mxu0 %v4887
    %5172 = vmatprep.subr.bf16.mxu0 %v4880
    %5173 = vmatpush1.bf16.msra.mxu0 %v4879
    %5174 = vmatprep.subr.bf16.mxu0 %v4872
    %5175 = vmatpush1.bf16.msra.mxu0 %v4871
    %5176 = vmatprep.subr.bf16.mxu0 0
    %5177 = vmatpush2.bf16.msra.mxu0 0
    %5178 = vmatprep.subr.bf16.mxu0 0
    %5179 = vmatpush2.bf16.msra.mxu0 0
    %5180 = vmatprep.subr.bf16.mxu0 0
    %5181 = vmatpush2.bf16.msra.mxu0 0
    %5182 = vmatprep.subr.bf16.mxu0 0
    %5183 = vmatpush2.bf16.msra.mxu0 0
    %5184 = vmatprep.subr.bf16.mxu0 0
    %5185 = vmatpush2.bf16.msra.mxu0 0
    %5186 = vmatprep.subr.bf16.mxu0 0
    %5187 = vmatpush2.bf16.msra.mxu0 0
    %5188 = vmatprep.subr.bf16.mxu0 0
    %5189 = vmatpush2.bf16.msra.mxu0 0
    %5190 = vmatprep.subr.bf16.mxu0 0
    %5191 = vmatpush2.bf16.msra.mxu0 0
    %5192 = vmatprep.mubr.bf16.mxu0 0
    %5193 = vmatmul.mubr.bf16.gmra.mxu0 %v4930
    %v5194 = vpop.f32.mrf.mxu0
    %v5195 = vadd.f32 0.0, %v5194
    %v5196 = vpop.f32.mrf.mxu0
    %v5197 = vadd.f32 0.0, %v5196
    %v5198 = vpop.f32.mrf.mxu0
    %v5199 = vadd.f32 0.0, %v5198
    %v5200 = vpop.f32.mrf.mxu0
    %v5201 = vadd.f32 0.0, %v5200
    %5202 = vmatprep.mubr.bf16.mxu0 0
    %5203 = vmatmul.mubr.bf16.gmra.mxu0 %v4933
    %v5204 = vpop.f32.mrf.mxu0
    %v5205 = vadd.f32 0.0, %v5204
    %v5206 = vpop.f32.mrf.mxu0
    %v5207 = vadd.f32 0.0, %v5206
    %v5208 = vpop.f32.mrf.mxu0
    %v5209 = vadd.f32 0.0, %v5208
    %v5210 = vpop.f32.mrf.mxu0
    %v5211 = vadd.f32 0.0, %v5210
    %5212 = vmatprep.mubr.bf16.mxu0 0
    %5213 = vmatmul.mubr.bf16.gmra.mxu0 %v4936
    %v5214 = vpop.f32.mrf.mxu0
    %v5215 = vadd.f32 0.0, %v5214
    %v5216 = vpop.f32.mrf.mxu0
    %v5217 = vadd.f32 0.0, %v5216
    %v5218 = vpop.f32.mrf.mxu0
    %v5219 = vadd.f32 0.0, %v5218
    %v5220 = vpop.f32.mrf.mxu0
    %v5221 = vadd.f32 0.0, %v5220
    %5222 = vmatprep.mubr.bf16.mxu0 0
    %5223 = vmatmul.mubr.bf16.gmra.mxu0 %v4939
    %v5224 = vpop.f32.mrf.mxu0
    %v5225 = vadd.f32 0.0, %v5224
    %v5226 = vpop.f32.mrf.mxu0
    %v5227 = vadd.f32 0.0, %v5226
    %v5228 = vpop.f32.mrf.mxu0
    %v5229 = vadd.f32 0.0, %v5228
    %v5230 = vpop.f32.mrf.mxu0
    %v5231 = vadd.f32 0.0, %v5230
    %5232 = vdwg.mxu0
    %v5233 = vadd.f32 %v4476, %v4976
    %v5234 = vadd.f32 %v4478, %v4978
    %v5235 = vadd.f32 %v4549, %v5049
    %v5236 = vadd.f32 %v4551, %v5051
    %v5237 = vadd.f32 %v4622, %v5122
    %v5238 = vadd.f32 %v4624, %v5124
    %v5239 = vadd.f32 %v4695, %v5195
    %v5240 = vadd.f32 %v4697, %v5197
    %v5241 = vadd.f32 %v4480, %v4980
    %v5242 = vadd.f32 %v4482, %v4982
    %v5243 = vadd.f32 %v4553, %v5053
    %v5244 = vadd.f32 %v4555, %v5055
    %v5245 = vadd.f32 %v4626, %v5126
    %v5246 = vadd.f32 %v4628, %v5128
    %v5247 = vadd.f32 %v4699, %v5199
    %v5248 = vadd.f32 %v4701, %v5201
    %v5249 = vadd.f32 %v4486, %v4986
    %v5250 = vadd.f32 %v4488, %v4988
    %v5251 = vadd.f32 %v4559, %v5059
    %v5252 = vadd.f32 %v4561, %v5061
    %v5253 = vadd.f32 %v4632, %v5132
    %v5254 = vadd.f32 %v4634, %v5134
    %v5255 = vadd.f32 %v4705, %v5205
    %v5256 = vadd.f32 %v4707, %v5207
    %v5257 = vadd.f32 %v4490, %v4990
    %v5258 = vadd.f32 %v4492, %v4992
    %v5259 = vadd.f32 %v4563, %v5063
    %v5260 = vadd.f32 %v4565, %v5065
    %v5261 = vadd.f32 %v4636, %v5136
    %v5262 = vadd.f32 %v4638, %v5138
    %v5263 = vadd.f32 %v4709, %v5209
    %v5264 = vadd.f32 %v4711, %v5211
    %v5265 = vadd.f32 %v4496, %v4996
    %v5266 = vadd.f32 %v4498, %v4998
    %v5267 = vadd.f32 %v4569, %v5069
    %v5268 = vadd.f32 %v4571, %v5071
    %v5269 = vadd.f32 %v4642, %v5142
    %v5270 = vadd.f32 %v4644, %v5144
    %v5271 = vadd.f32 %v4715, %v5215
    %v5272 = vadd.f32 %v4717, %v5217
    %v5273 = vadd.f32 %v4500, %v5000
    %v5274 = vadd.f32 %v4502, %v5002
    %v5275 = vadd.f32 %v4573, %v5073
    %v5276 = vadd.f32 %v4575, %v5075
    %v5277 = vadd.f32 %v4646, %v5146
    %v5278 = vadd.f32 %v4648, %v5148
    %v5279 = vadd.f32 %v4719, %v5219
    %v5280 = vadd.f32 %v4721, %v5221
    %v5281 = vadd.f32 %v4506, %v5006
    %v5282 = vadd.f32 %v4508, %v5008
    %v5283 = vadd.f32 %v4579, %v5079
    %v5284 = vadd.f32 %v4581, %v5081
    %v5285 = vadd.f32 %v4652, %v5152
    %v5286 = vadd.f32 %v4654, %v5154
    %v5287 = vadd.f32 %v4725, %v5225
    %v5288 = vadd.f32 %v4727, %v5227
    %v5289 = vadd.f32 %v4510, %v5010
    %v5290 = vadd.f32 %v4512, %v5012
    %v5291 = vadd.f32 %v4583, %v5083
    %v5292 = vadd.f32 %v4585, %v5085
    %v5293 = vadd.f32 %v4656, %v5156
    %v5294 = vadd.f32 %v4658, %v5158
    %v5295 = vadd.f32 %v4729, %v5229
    %v5296 = vadd.f32 %v4731, %v5231
    %v5297 = vld [vmem:[%s53] sm:$0xff]
    %v5299 = vlaneseq
    %v5300 = vshrl.u32 %v5299, 7
    %v5301 = vsub.s32 0, %v5300
    %v5302 = vrot.slane %v5297, %v5301
    %v5303 = vlaneseq
    %v5304 = vshrl.u32 %v5303, 7
    %v5305 = vsub.s32 1, %v5304
    %v5306 = vrot.slane %v5297, %v5305
    %v5307 = vlaneseq
    %v5308 = vshrl.u32 %v5307, 7
    %v5309 = vsub.s32 2, %v5308
    %v5310 = vrot.slane %v5297, %v5309
    %v5311 = vlaneseq
    %v5312 = vshrl.u32 %v5311, 7
    %v5313 = vsub.s32 3, %v5312
    %v5314 = vrot.slane %v5297, %v5313
    %v5315 = vlaneseq
    %v5316 = vshrl.u32 %v5315, 7
    %v5317 = vsub.s32 4, %v5316
    %v5318 = vrot.slane %v5297, %v5317
    %v5319 = vlaneseq
    %v5320 = vshrl.u32 %v5319, 7
    %v5321 = vsub.s32 5, %v5320
    %v5322 = vrot.slane %v5297, %v5321
    %v5323 = vlaneseq
    %v5324 = vshrl.u32 %v5323, 7
    %v5325 = vsub.s32 6, %v5324
    %v5326 = vrot.slane %v5297, %v5325
    %v5327 = vlaneseq
    %v5328 = vshrl.u32 %v5327, 7
    %v5329 = vsub.s32 7, %v5328
    %v5330 = vrot.slane %v5297, %v5329
    %v5339 = vadd.f32 %v5233, %v5302
    %v5340 = vadd.f32 %v5234, %v5306
    %v5341 = vadd.f32 %v5235, %v5310
    %v5342 = vadd.f32 %v5236, %v5314
    %v5343 = vadd.f32 %v5237, %v5318
    %v5344 = vadd.f32 %v5238, %v5322
    %v5345 = vadd.f32 %v5239, %v5326
    %v5346 = vadd.f32 %v5240, %v5330
    %v5347 = vadd.f32 %v5241, %v5302
    %v5348 = vadd.f32 %v5242, %v5306
    %v5349 = vadd.f32 %v5243, %v5310
    %v5350 = vadd.f32 %v5244, %v5314
    %v5351 = vadd.f32 %v5245, %v5318
    %v5352 = vadd.f32 %v5246, %v5322
    %v5353 = vadd.f32 %v5247, %v5326
    %v5354 = vadd.f32 %v5248, %v5330
    %v5355 = vadd.f32 %v5249, %v5302
    %v5356 = vadd.f32 %v5250, %v5306
    %v5357 = vadd.f32 %v5251, %v5310
    %v5358 = vadd.f32 %v5252, %v5314
    %v5359 = vadd.f32 %v5253, %v5318
    %v5360 = vadd.f32 %v5254, %v5322
    %v5361 = vadd.f32 %v5255, %v5326
    %v5362 = vadd.f32 %v5256, %v5330
    %v5363 = vadd.f32 %v5257, %v5302
    %v5364 = vadd.f32 %v5258, %v5306
    %v5365 = vadd.f32 %v5259, %v5310
    %v5366 = vadd.f32 %v5260, %v5314
    %v5367 = vadd.f32 %v5261, %v5318
    %v5368 = vadd.f32 %v5262, %v5322
    %v5369 = vadd.f32 %v5263, %v5326
    %v5370 = vadd.f32 %v5264, %v5330
    %v5371 = vadd.f32 %v5265, %v5302
    %v5372 = vadd.f32 %v5266, %v5306
    %v5373 = vadd.f32 %v5267, %v5310
    %v5374 = vadd.f32 %v5268, %v5314
    %v5375 = vadd.f32 %v5269, %v5318
    %v5376 = vadd.f32 %v5270, %v5322
    %v5377 = vadd.f32 %v5271, %v5326
    %v5378 = vadd.f32 %v5272, %v5330
    %v5379 = vadd.f32 %v5273, %v5302
    %v5380 = vadd.f32 %v5274, %v5306
    %v5381 = vadd.f32 %v5275, %v5310
    %v5382 = vadd.f32 %v5276, %v5314
    %v5383 = vadd.f32 %v5277, %v5318
    %v5384 = vadd.f32 %v5278, %v5322
    %v5385 = vadd.f32 %v5279, %v5326
    %v5386 = vadd.f32 %v5280, %v5330
    %v5387 = vadd.f32 %v5281, %v5302
    %v5388 = vadd.f32 %v5282, %v5306
    %v5389 = vadd.f32 %v5283, %v5310
    %v5390 = vadd.f32 %v5284, %v5314
    %v5391 = vadd.f32 %v5285, %v5318
    %v5392 = vadd.f32 %v5286, %v5322
    %v5393 = vadd.f32 %v5287, %v5326
    %v5394 = vadd.f32 %v5288, %v5330
    %v5395 = vadd.f32 %v5289, %v5302
    %v5396 = vadd.f32 %v5290, %v5306
    %v5397 = vadd.f32 %v5291, %v5310
    %v5398 = vadd.f32 %v5292, %v5314
    %v5399 = vadd.f32 %v5293, %v5318
    %v5400 = vadd.f32 %v5294, %v5322
    %v5401 = vadd.f32 %v5295, %v5326
    %v5402 = vadd.f32 %v5296, %v5330
    %v5403 = vld [vmem:[#allocation10] sm:$0xff]
    %v5404 = vld [vmem:[#allocation10 + $0x8] sm:$0xff]
    %v5405 = vld [vmem:[#allocation10 + $0x10] sm:$0xff]
    %v5406 = vld [vmem:[#allocation10 + $0x18] sm:$0xff]
    %v5407 = vld [vmem:[#allocation10 + $0x20] sm:$0xff]
    %v5408 = vld [vmem:[#allocation10 + $0x28] sm:$0xff]
    %v5409 = vld [vmem:[#allocation10 + $0x30] sm:$0xff]
    %v5410 = vld [vmem:[#allocation10 + $0x38] sm:$0xff]
    %v5411 = vld [vmem:[#allocation10 + $0x40] sm:$0xff]
    %v5412 = vld [vmem:[#allocation10 + $0x48] sm:$0xff]
    %v5413 = vld [vmem:[#allocation10 + $0x50] sm:$0xff]
    %v5414 = vld [vmem:[#allocation10 + $0x58] sm:$0xff]
    %v5415 = vld [vmem:[#allocation10 + $0x60] sm:$0xff]
    %v5416 = vld [vmem:[#allocation10 + $0x68] sm:$0xff]
    %v5417 = vld [vmem:[#allocation10 + $0x70] sm:$0xff]
    %v5418 = vld [vmem:[#allocation10 + $0x78] sm:$0xff]
    %v5419 = vld [vmem:[#allocation10 + $0x80] sm:$0xff]
    %v5420 = vld [vmem:[#allocation10 + $0x88] sm:$0xff]
    %v5421 = vld [vmem:[#allocation10 + $0x90] sm:$0xff]
    %v5422 = vld [vmem:[#allocation10 + $0x98] sm:$0xff]
    %v5423 = vld [vmem:[#allocation10 + $0xa0] sm:$0xff]
    %v5424 = vld [vmem:[#allocation10 + $0xa8] sm:$0xff]
    %v5425 = vld [vmem:[#allocation10 + $0xb0] sm:$0xff]
    %v5426 = vld [vmem:[#allocation10 + $0xb8] sm:$0xff]
    %v5427 = vld [vmem:[#allocation10 + $0xc0] sm:$0xff]
    %v5428 = vld [vmem:[#allocation10 + $0xc8] sm:$0xff]
    %v5429 = vld [vmem:[#allocation10 + $0xd0] sm:$0xff]
    %v5430 = vld [vmem:[#allocation10 + $0xd8] sm:$0xff]
    %v5431 = vld [vmem:[#allocation10 + $0xe0] sm:$0xff]
    %v5432 = vld [vmem:[#allocation10 + $0xe8] sm:$0xff]
    %v5433 = vld [vmem:[#allocation10 + $0xf0] sm:$0xff]
    %v5434 = vld [vmem:[#allocation10 + $0xf8] sm:$0xff]
    %v5435 = vld [vmem:[#allocation10 + $0x100] sm:$0xff]
    %v5436 = vld [vmem:[#allocation10 + $0x108] sm:$0xff]
    %v5437 = vld [vmem:[#allocation10 + $0x110] sm:$0xff]
    %v5438 = vld [vmem:[#allocation10 + $0x118] sm:$0xff]
    %v5439 = vld [vmem:[#allocation10 + $0x120] sm:$0xff]
    %v5440 = vld [vmem:[#allocation10 + $0x128] sm:$0xff]
    %v5441 = vld [vmem:[#allocation10 + $0x130] sm:$0xff]
    %v5442 = vld [vmem:[#allocation10 + $0x138] sm:$0xff]
    %v5443 = vld [vmem:[#allocation10 + $0x140] sm:$0xff]
    %v5444 = vld [vmem:[#allocation10 + $0x148] sm:$0xff]
    %v5445 = vld [vmem:[#allocation10 + $0x150] sm:$0xff]
    %v5446 = vld [vmem:[#allocation10 + $0x158] sm:$0xff]
    %v5447 = vld [vmem:[#allocation10 + $0x160] sm:$0xff]
    %v5448 = vld [vmem:[#allocation10 + $0x168] sm:$0xff]
    %v5449 = vld [vmem:[#allocation10 + $0x170] sm:$0xff]
    %v5450 = vld [vmem:[#allocation10 + $0x178] sm:$0xff]
    %v5451 = vld [vmem:[#allocation10 + $0x180] sm:$0xff]
    %v5452 = vld [vmem:[#allocation10 + $0x188] sm:$0xff]
    %v5453 = vld [vmem:[#allocation10 + $0x190] sm:$0xff]
    %v5454 = vld [vmem:[#allocation10 + $0x198] sm:$0xff]
    %v5455 = vld [vmem:[#allocation10 + $0x1a0] sm:$0xff]
    %v5456 = vld [vmem:[#allocation10 + $0x1a8] sm:$0xff]
    %v5457 = vld [vmem:[#allocation10 + $0x1b0] sm:$0xff]
    %v5458 = vld [vmem:[#allocation10 + $0x1b8] sm:$0xff]
    %v5459 = vld [vmem:[#allocation10 + $0x1c0] sm:$0xff]
    %v5460 = vld [vmem:[#allocation10 + $0x1c8] sm:$0xff]
    %v5461 = vld [vmem:[#allocation10 + $0x1d0] sm:$0xff]
    %v5462 = vld [vmem:[#allocation10 + $0x1d8] sm:$0xff]
    %v5463 = vld [vmem:[#allocation10 + $0x1e0] sm:$0xff]
    %v5464 = vld [vmem:[#allocation10 + $0x1e8] sm:$0xff]
    %v5465 = vld [vmem:[#allocation10 + $0x1f0] sm:$0xff]
    %v5466 = vld [vmem:[#allocation10 + $0x1f8] sm:$0xff]
    %v5467 = vld [vmem:[#allocation10 + $0x200] sm:$0xff]
    %v5468 = vld [vmem:[#allocation10 + $0x208] sm:$0xff]
    %v5469 = vld [vmem:[#allocation10 + $0x210] sm:$0xff]
    %v5470 = vld [vmem:[#allocation10 + $0x218] sm:$0xff]
    %v5471 = vld [vmem:[#allocation10 + $0x220] sm:$0xff]
    %v5472 = vld [vmem:[#allocation10 + $0x228] sm:$0xff]
    %v5473 = vld [vmem:[#allocation10 + $0x230] sm:$0xff]
    %v5474 = vld [vmem:[#allocation10 + $0x238] sm:$0xff]
    %v5475 = vld [vmem:[#allocation10 + $0x240] sm:$0xff]
    %v5476 = vld [vmem:[#allocation10 + $0x248] sm:$0xff]
    %v5477 = vld [vmem:[#allocation10 + $0x250] sm:$0xff]
    %v5478 = vld [vmem:[#allocation10 + $0x258] sm:$0xff]
    %v5479 = vld [vmem:[#allocation10 + $0x260] sm:$0xff]
    %v5480 = vld [vmem:[#allocation10 + $0x268] sm:$0xff]
    %v5481 = vld [vmem:[#allocation10 + $0x270] sm:$0xff]
    %v5482 = vld [vmem:[#allocation10 + $0x278] sm:$0xff]
    %v5483 = vld [vmem:[#allocation10 + $0x280] sm:$0xff]
    %v5484 = vld [vmem:[#allocation10 + $0x288] sm:$0xff]
    %v5485 = vld [vmem:[#allocation10 + $0x290] sm:$0xff]
    %v5486 = vld [vmem:[#allocation10 + $0x298] sm:$0xff]
    %v5487 = vld [vmem:[#allocation10 + $0x2a0] sm:$0xff]
    %v5488 = vld [vmem:[#allocation10 + $0x2a8] sm:$0xff]
    %v5489 = vld [vmem:[#allocation10 + $0x2b0] sm:$0xff]
    %v5490 = vld [vmem:[#allocation10 + $0x2b8] sm:$0xff]
    %v5491 = vld [vmem:[#allocation10 + $0x2c0] sm:$0xff]
    %v5492 = vld [vmem:[#allocation10 + $0x2c8] sm:$0xff]
    %v5493 = vld [vmem:[#allocation10 + $0x2d0] sm:$0xff]
    %v5494 = vld [vmem:[#allocation10 + $0x2d8] sm:$0xff]
    %v5495 = vld [vmem:[#allocation10 + $0x2e0] sm:$0xff]
    %v5496 = vld [vmem:[#allocation10 + $0x2e8] sm:$0xff]
    %v5497 = vld [vmem:[#allocation10 + $0x2f0] sm:$0xff]
    %v5498 = vld [vmem:[#allocation10 + $0x2f8] sm:$0xff]
    %v5499 = vld [vmem:[#allocation10 + $0x300] sm:$0xff]
    %v5500 = vld [vmem:[#allocation10 + $0x308] sm:$0xff]
    %v5501 = vld [vmem:[#allocation10 + $0x310] sm:$0xff]
    %v5502 = vld [vmem:[#allocation10 + $0x318] sm:$0xff]
    %v5503 = vld [vmem:[#allocation10 + $0x320] sm:$0xff]
    %v5504 = vld [vmem:[#allocation10 + $0x328] sm:$0xff]
    %v5505 = vld [vmem:[#allocation10 + $0x330] sm:$0xff]
    %v5506 = vld [vmem:[#allocation10 + $0x338] sm:$0xff]
    %v5507 = vld [vmem:[#allocation10 + $0x340] sm:$0xff]
    %v5508 = vld [vmem:[#allocation10 + $0x348] sm:$0xff]
    %v5509 = vld [vmem:[#allocation10 + $0x350] sm:$0xff]
    %v5510 = vld [vmem:[#allocation10 + $0x358] sm:$0xff]
    %v5511 = vld [vmem:[#allocation10 + $0x360] sm:$0xff]
    %v5512 = vld [vmem:[#allocation10 + $0x368] sm:$0xff]
    %v5513 = vld [vmem:[#allocation10 + $0x370] sm:$0xff]
    %v5514 = vld [vmem:[#allocation10 + $0x378] sm:$0xff]
    %v5515 = vld [vmem:[#allocation10 + $0x380] sm:$0xff]
    %v5516 = vld [vmem:[#allocation10 + $0x388] sm:$0xff]
    %v5517 = vld [vmem:[#allocation10 + $0x390] sm:$0xff]
    %v5518 = vld [vmem:[#allocation10 + $0x398] sm:$0xff]
    %v5519 = vld [vmem:[#allocation10 + $0x3a0] sm:$0xff]
    %v5520 = vld [vmem:[#allocation10 + $0x3a8] sm:$0xff]
    %v5521 = vld [vmem:[#allocation10 + $0x3b0] sm:$0xff]
    %v5522 = vld [vmem:[#allocation10 + $0x3b8] sm:$0xff]
    %v5523 = vld [vmem:[#allocation10 + $0x3c0] sm:$0xff]
    %v5524 = vld [vmem:[#allocation10 + $0x3c8] sm:$0xff]
    %v5525 = vld [vmem:[#allocation10 + $0x3d0] sm:$0xff]
    %v5526 = vld [vmem:[#allocation10 + $0x3d8] sm:$0xff]
    %v5527 = vld [vmem:[#allocation10 + $0x3e0] sm:$0xff]
    %v5528 = vld [vmem:[#allocation10 + $0x3e8] sm:$0xff]
    %v5529 = vld [vmem:[#allocation10 + $0x3f0] sm:$0xff]
    %v5530 = vld [vmem:[#allocation10 + $0x3f8] sm:$0xff]
    %v5531 = vld [vmem:[%s57] sm:$0x3]
    %v5532 = vld [vmem:[%s59] sm:$0xf]
    %v5533 = vld [vmem:[%s59 + $0x4] sm:$0xf]
    %v5534 = vld [vmem:[%s59 + $0x8] sm:$0xf]
    %v5535 = vld [vmem:[%s59 + $0xc] sm:$0xf]
    %v5536 = vld [vmem:[%s59 + $0x10] sm:$0xf]
    %v5537 = vld [vmem:[%s59 + $0x14] sm:$0xf]
    %v5538 = vld [vmem:[%s59 + $0x18] sm:$0xf]
    %v5539 = vld [vmem:[%s59 + $0x1c] sm:$0xf]
    %v5540 = vld [vmem:[%s59 + $0x20] sm:$0xf]
    %v5541 = vld [vmem:[%s59 + $0x24] sm:$0xf]
    %v5542 = vld [vmem:[%s59 + $0x28] sm:$0xf]
    %v5543 = vld [vmem:[%s59 + $0x2c] sm:$0xf]
    %v5544 = vld [vmem:[%s59 + $0x30] sm:$0xf]
    %v5545 = vld [vmem:[%s59 + $0x34] sm:$0xf]
    %v5546 = vld [vmem:[%s59 + $0x38] sm:$0xf]
    %v5547 = vld [vmem:[%s59 + $0x3c] sm:$0xf]
    %v5548 = vld [vmem:[%s59 + $0x40] sm:$0xf]
    %v5549 = vld [vmem:[%s59 + $0x44] sm:$0xf]
    %v5550 = vld [vmem:[%s59 + $0x48] sm:$0xf]
    %v5551 = vld [vmem:[%s59 + $0x4c] sm:$0xf]
    %v5552 = vld [vmem:[%s59 + $0x50] sm:$0xf]
    %v5553 = vld [vmem:[%s59 + $0x54] sm:$0xf]
    %v5554 = vld [vmem:[%s59 + $0x58] sm:$0xf]
    %v5555 = vld [vmem:[%s59 + $0x5c] sm:$0xf]
    %v5556 = vld [vmem:[%s59 + $0x60] sm:$0xf]
    %v5557 = vld [vmem:[%s59 + $0x64] sm:$0xf]
    %v5558 = vld [vmem:[%s59 + $0x68] sm:$0xf]
    %v5559 = vld [vmem:[%s59 + $0x6c] sm:$0xf]
    %v5560 = vld [vmem:[%s59 + $0x70] sm:$0xf]
    %v5561 = vld [vmem:[%s59 + $0x74] sm:$0xf]
    %v5562 = vld [vmem:[%s59 + $0x78] sm:$0xf]
    %v5563 = vld [vmem:[%s59 + $0x7c] sm:$0xf]
    %v5564 = vld [vmem:[#allocation12] sm:$0x1]
    %v5565 = vld [vmem:[%s63] sm:$0xf]
    %v5566 = vld [vmem:[%s63 + $0x4] sm:$0xf]
    %v5567 = vld [vmem:[%s63 + $0x8] sm:$0xf]
    %v5568 = vld [vmem:[%s63 + $0xc] sm:$0xf]
    %v5569 = vld [vmem:[%s63 + $0x10] sm:$0xf]
    %v5570 = vld [vmem:[%s63 + $0x14] sm:$0xf]
    %v5571 = vld [vmem:[%s63 + $0x18] sm:$0xf]
    %v5572 = vld [vmem:[%s63 + $0x1c] sm:$0xf]
    %v5573 = vld [vmem:[%s63 + $0x20] sm:$0xf]
    %v5574 = vld [vmem:[%s63 + $0x24] sm:$0xf]
    %v5575 = vld [vmem:[%s63 + $0x28] sm:$0xf]
    %v5576 = vld [vmem:[%s63 + $0x2c] sm:$0xf]
    %v5577 = vld [vmem:[%s63 + $0x30] sm:$0xf]
    %v5578 = vld [vmem:[%s63 + $0x34] sm:$0xf]
    %v5579 = vld [vmem:[%s63 + $0x38] sm:$0xf]
    %v5580 = vld [vmem:[%s63 + $0x3c] sm:$0xf]
    %v5581 = vld [vmem:[#allocation13] sm:$0x1]
    %v5582 = vmax.f32 %v5339, 0.0
    %v5583 = vmax.f32 %v5340, 0.0
    %v5584 = vmax.f32 %v5341, 0.0
    %v5585 = vmax.f32 %v5342, 0.0
    %v5586 = vmax.f32 %v5343, 0.0
    %v5587 = vmax.f32 %v5344, 0.0
    %v5588 = vmax.f32 %v5345, 0.0
    %v5589 = vmax.f32 %v5346, 0.0
    %v5590 = vmax.f32 %v5347, 0.0
    %v5591 = vmax.f32 %v5348, 0.0
    %v5592 = vmax.f32 %v5349, 0.0
    %v5593 = vmax.f32 %v5350, 0.0
    %v5594 = vmax.f32 %v5351, 0.0
    %v5595 = vmax.f32 %v5352, 0.0
    %v5596 = vmax.f32 %v5353, 0.0
    %v5597 = vmax.f32 %v5354, 0.0
    %v5598 = vmax.f32 %v5355, 0.0
    %v5599 = vmax.f32 %v5356, 0.0
    %v5600 = vmax.f32 %v5357, 0.0
    %v5601 = vmax.f32 %v5358, 0.0
    %v5602 = vmax.f32 %v5359, 0.0
    %v5603 = vmax.f32 %v5360, 0.0
    %v5604 = vmax.f32 %v5361, 0.0
    %v5605 = vmax.f32 %v5362, 0.0
    %v5606 = vmax.f32 %v5363, 0.0
    %v5607 = vmax.f32 %v5364, 0.0
    %v5608 = vmax.f32 %v5365, 0.0
    %v5609 = vmax.f32 %v5366, 0.0
    %v5610 = vmax.f32 %v5367, 0.0
    %v5611 = vmax.f32 %v5368, 0.0
    %v5612 = vmax.f32 %v5369, 0.0
    %v5613 = vmax.f32 %v5370, 0.0
    %v5614 = vmax.f32 %v5371, 0.0
    %v5615 = vmax.f32 %v5372, 0.0
    %v5616 = vmax.f32 %v5373, 0.0
    %v5617 = vmax.f32 %v5374, 0.0
    %v5618 = vmax.f32 %v5375, 0.0
    %v5619 = vmax.f32 %v5376, 0.0
    %v5620 = vmax.f32 %v5377, 0.0
    %v5621 = vmax.f32 %v5378, 0.0
    %v5622 = vmax.f32 %v5379, 0.0
    %v5623 = vmax.f32 %v5380, 0.0
    %v5624 = vmax.f32 %v5381, 0.0
    %v5625 = vmax.f32 %v5382, 0.0
    %v5626 = vmax.f32 %v5383, 0.0
    %v5627 = vmax.f32 %v5384, 0.0
    %v5628 = vmax.f32 %v5385, 0.0
    %v5629 = vmax.f32 %v5386, 0.0
    %v5630 = vmax.f32 %v5387, 0.0
    %v5631 = vmax.f32 %v5388, 0.0
    %v5632 = vmax.f32 %v5389, 0.0
    %v5633 = vmax.f32 %v5390, 0.0
    %v5634 = vmax.f32 %v5391, 0.0
    %v5635 = vmax.f32 %v5392, 0.0
    %v5636 = vmax.f32 %v5393, 0.0
    %v5637 = vmax.f32 %v5394, 0.0
    %v5638 = vmax.f32 %v5395, 0.0
    %v5639 = vmax.f32 %v5396, 0.0
    %v5640 = vmax.f32 %v5397, 0.0
    %v5641 = vmax.f32 %v5398, 0.0
    %v5642 = vmax.f32 %v5399, 0.0
    %v5643 = vmax.f32 %v5400, 0.0
    %v5644 = vmax.f32 %v5401, 0.0
    %v5645 = vmax.f32 %v5402, 0.0
    %v5646 = vpack.c.bf16 %v5590, %v5582
    %v5647 = vpack.c.bf16 %v5591, %v5583
    %v5648 = vpack.c.bf16 %v5592, %v5584
    %v5649 = vpack.c.bf16 %v5593, %v5585
    %v5650 = vpack.c.bf16 %v5594, %v5586
    %v5651 = vpack.c.bf16 %v5595, %v5587
    %v5652 = vpack.c.bf16 %v5596, %v5588
    %v5653 = vpack.c.bf16 %v5597, %v5589
    %v5654 = vpack.c.bf16 %v5606, %v5598
    %v5655 = vpack.c.bf16 %v5607, %v5599
    %v5656 = vpack.c.bf16 %v5608, %v5600
    %v5657 = vpack.c.bf16 %v5609, %v5601
    %v5658 = vpack.c.bf16 %v5610, %v5602
    %v5659 = vpack.c.bf16 %v5611, %v5603
    %v5660 = vpack.c.bf16 %v5612, %v5604
    %v5661 = vpack.c.bf16 %v5613, %v5605
    %v5662 = vpack.c.bf16 %v5622, %v5614
    %v5663 = vpack.c.bf16 %v5623, %v5615
    %v5664 = vpack.c.bf16 %v5624, %v5616
    %v5665 = vpack.c.bf16 %v5625, %v5617
    %v5666 = vpack.c.bf16 %v5626, %v5618
    %v5667 = vpack.c.bf16 %v5627, %v5619
    %v5668 = vpack.c.bf16 %v5628, %v5620
    %v5669 = vpack.c.bf16 %v5629, %v5621
    %v5670 = vpack.c.bf16 %v5638, %v5630
    %v5671 = vpack.c.bf16 %v5639, %v5631
    %v5672 = vpack.c.bf16 %v5640, %v5632
    %v5673 = vpack.c.bf16 %v5641, %v5633
    %v5674 = vpack.c.bf16 %v5642, %v5634
    %v5675 = vpack.c.bf16 %v5643, %v5635
    %v5676 = vpack.c.bf16 %v5644, %v5636
    %v5677 = vpack.c.bf16 %v5645, %v5637
    %v5679 = vlaneseq
    %v5680 = vshrl.u32 %v5679, 7
    %v5681 = vsub.s32 0, %v5680
    %v5682 = vrot.slane %v5531, %v5681
    %v5683 = vlaneseq
    %v5684 = vshrl.u32 %v5683, 7
    %v5685 = vsub.s32 1, %v5684
    %v5686 = vrot.slane %v5531, %v5685
    %v5817 = vunpack.c.l.b16 %v5403
    %v5818 = vunpack.c.h.b16 %v5403
    %v5819 = vunpack.c.l.b16 %v5404
    %v5820 = vunpack.c.h.b16 %v5404
    %v5821 = vunpack.c.l.b16 %v5405
    %v5822 = vunpack.c.h.b16 %v5405
    %v5823 = vunpack.c.l.b16 %v5406
    %v5824 = vunpack.c.h.b16 %v5406
    %v5825 = vunpack.c.l.b16 %v5407
    %v5826 = vunpack.c.h.b16 %v5407
    %v5827 = vunpack.c.l.b16 %v5408
    %v5828 = vunpack.c.h.b16 %v5408
    %v5829 = vunpack.c.l.b16 %v5409
    %v5830 = vunpack.c.h.b16 %v5409
    %v5831 = vunpack.c.l.b16 %v5410
    %v5832 = vunpack.c.h.b16 %v5410
    %v5833 = vunpack.c.l.b16 %v5411
    %v5834 = vunpack.c.h.b16 %v5411
    %v5835 = vunpack.c.l.b16 %v5412
    %v5836 = vunpack.c.h.b16 %v5412
    %v5837 = vunpack.c.l.b16 %v5413
    %v5838 = vunpack.c.h.b16 %v5413
    %v5839 = vunpack.c.l.b16 %v5414
    %v5840 = vunpack.c.h.b16 %v5414
    %v5841 = vunpack.c.l.b16 %v5415
    %v5842 = vunpack.c.h.b16 %v5415
    %v5843 = vunpack.c.l.b16 %v5416
    %v5844 = vunpack.c.h.b16 %v5416
    %v5845 = vunpack.c.l.b16 %v5417
    %v5846 = vunpack.c.h.b16 %v5417
    %v5847 = vunpack.c.l.b16 %v5418
    %v5848 = vunpack.c.h.b16 %v5418
    %v5849 = vunpack.c.l.b16 %v5419
    %v5850 = vunpack.c.h.b16 %v5419
    %v5851 = vunpack.c.l.b16 %v5420
    %v5852 = vunpack.c.h.b16 %v5420
    %v5853 = vunpack.c.l.b16 %v5421
    %v5854 = vunpack.c.h.b16 %v5421
    %v5855 = vunpack.c.l.b16 %v5422
    %v5856 = vunpack.c.h.b16 %v5422
    %v5857 = vunpack.c.l.b16 %v5423
    %v5858 = vunpack.c.h.b16 %v5423
    %v5859 = vunpack.c.l.b16 %v5424
    %v5860 = vunpack.c.h.b16 %v5424
    %v5861 = vunpack.c.l.b16 %v5425
    %v5862 = vunpack.c.h.b16 %v5425
    %v5863 = vunpack.c.l.b16 %v5426
    %v5864 = vunpack.c.h.b16 %v5426
    %v5865 = vunpack.c.l.b16 %v5427
    %v5866 = vunpack.c.h.b16 %v5427
    %v5867 = vunpack.c.l.b16 %v5428
    %v5868 = vunpack.c.h.b16 %v5428
    %v5869 = vunpack.c.l.b16 %v5429
    %v5870 = vunpack.c.h.b16 %v5429
    %v5871 = vunpack.c.l.b16 %v5430
    %v5872 = vunpack.c.h.b16 %v5430
    %v5873 = vunpack.c.l.b16 %v5431
    %v5874 = vunpack.c.h.b16 %v5431
    %v5875 = vunpack.c.l.b16 %v5432
    %v5876 = vunpack.c.h.b16 %v5432
    %v5877 = vunpack.c.l.b16 %v5433
    %v5878 = vunpack.c.h.b16 %v5433
    %v5879 = vunpack.c.l.b16 %v5434
    %v5880 = vunpack.c.h.b16 %v5434
    %v5881 = vunpack.c.l.b16 %v5435
    %v5882 = vunpack.c.h.b16 %v5435
    %v5883 = vunpack.c.l.b16 %v5436
    %v5884 = vunpack.c.h.b16 %v5436
    %v5885 = vunpack.c.l.b16 %v5437
    %v5886 = vunpack.c.h.b16 %v5437
    %v5887 = vunpack.c.l.b16 %v5438
    %v5888 = vunpack.c.h.b16 %v5438
    %v5889 = vunpack.c.l.b16 %v5439
    %v5890 = vunpack.c.h.b16 %v5439
    %v5891 = vunpack.c.l.b16 %v5440
    %v5892 = vunpack.c.h.b16 %v5440
    %v5893 = vunpack.c.l.b16 %v5441
    %v5894 = vunpack.c.h.b16 %v5441
    %v5895 = vunpack.c.l.b16 %v5442
    %v5896 = vunpack.c.h.b16 %v5442
    %v5897 = vunpack.c.l.b16 %v5443
    %v5898 = vunpack.c.h.b16 %v5443
    %v5899 = vunpack.c.l.b16 %v5444
    %v5900 = vunpack.c.h.b16 %v5444
    %v5901 = vunpack.c.l.b16 %v5445
    %v5902 = vunpack.c.h.b16 %v5445
    %v5903 = vunpack.c.l.b16 %v5446
    %v5904 = vunpack.c.h.b16 %v5446
    %v5905 = vunpack.c.l.b16 %v5447
    %v5906 = vunpack.c.h.b16 %v5447
    %v5907 = vunpack.c.l.b16 %v5448
    %v5908 = vunpack.c.h.b16 %v5448
    %v5909 = vunpack.c.l.b16 %v5449
    %v5910 = vunpack.c.h.b16 %v5449
    %v5911 = vunpack.c.l.b16 %v5450
    %v5912 = vunpack.c.h.b16 %v5450
    %v5913 = vunpack.c.l.b16 %v5451
    %v5914 = vunpack.c.h.b16 %v5451
    %v5915 = vunpack.c.l.b16 %v5452
    %v5916 = vunpack.c.h.b16 %v5452
    %v5917 = vunpack.c.l.b16 %v5453
    %v5918 = vunpack.c.h.b16 %v5453
    %v5919 = vunpack.c.l.b16 %v5454
    %v5920 = vunpack.c.h.b16 %v5454
    %v5921 = vunpack.c.l.b16 %v5455
    %v5922 = vunpack.c.h.b16 %v5455
    %v5923 = vunpack.c.l.b16 %v5456
    %v5924 = vunpack.c.h.b16 %v5456
    %v5925 = vunpack.c.l.b16 %v5457
    %v5926 = vunpack.c.h.b16 %v5457
    %v5927 = vunpack.c.l.b16 %v5458
    %v5928 = vunpack.c.h.b16 %v5458
    %v5929 = vunpack.c.l.b16 %v5459
    %v5930 = vunpack.c.h.b16 %v5459
    %v5931 = vunpack.c.l.b16 %v5460
    %v5932 = vunpack.c.h.b16 %v5460
    %v5933 = vunpack.c.l.b16 %v5461
    %v5934 = vunpack.c.h.b16 %v5461
    %v5935 = vunpack.c.l.b16 %v5462
    %v5936 = vunpack.c.h.b16 %v5462
    %v5937 = vunpack.c.l.b16 %v5463
    %v5938 = vunpack.c.h.b16 %v5463
    %v5939 = vunpack.c.l.b16 %v5464
    %v5940 = vunpack.c.h.b16 %v5464
    %v5941 = vunpack.c.l.b16 %v5465
    %v5942 = vunpack.c.h.b16 %v5465
    %v5943 = vunpack.c.l.b16 %v5466
    %v5944 = vunpack.c.h.b16 %v5466
    %v5945 = vunpack.c.l.b16 %v5467
    %v5946 = vunpack.c.h.b16 %v5467
    %v5947 = vunpack.c.l.b16 %v5468
    %v5948 = vunpack.c.h.b16 %v5468
    %v5949 = vunpack.c.l.b16 %v5469
    %v5950 = vunpack.c.h.b16 %v5469
    %v5951 = vunpack.c.l.b16 %v5470
    %v5952 = vunpack.c.h.b16 %v5470
    %v5953 = vunpack.c.l.b16 %v5471
    %v5954 = vunpack.c.h.b16 %v5471
    %v5955 = vunpack.c.l.b16 %v5472
    %v5956 = vunpack.c.h.b16 %v5472
    %v5957 = vunpack.c.l.b16 %v5473
    %v5958 = vunpack.c.h.b16 %v5473
    %v5959 = vunpack.c.l.b16 %v5474
    %v5960 = vunpack.c.h.b16 %v5474
    %v5961 = vunpack.c.l.b16 %v5475
    %v5962 = vunpack.c.h.b16 %v5475
    %v5963 = vunpack.c.l.b16 %v5476
    %v5964 = vunpack.c.h.b16 %v5476
    %v5965 = vunpack.c.l.b16 %v5477
    %v5966 = vunpack.c.h.b16 %v5477
    %v5967 = vunpack.c.l.b16 %v5478
    %v5968 = vunpack.c.h.b16 %v5478
    %v5969 = vunpack.c.l.b16 %v5479
    %v5970 = vunpack.c.h.b16 %v5479
    %v5971 = vunpack.c.l.b16 %v5480
    %v5972 = vunpack.c.h.b16 %v5480
    %v5973 = vunpack.c.l.b16 %v5481
    %v5974 = vunpack.c.h.b16 %v5481
    %v5975 = vunpack.c.l.b16 %v5482
    %v5976 = vunpack.c.h.b16 %v5482
    %v5977 = vunpack.c.l.b16 %v5483
    %v5978 = vunpack.c.h.b16 %v5483
    %v5979 = vunpack.c.l.b16 %v5484
    %v5980 = vunpack.c.h.b16 %v5484
    %v5981 = vunpack.c.l.b16 %v5485
    %v5982 = vunpack.c.h.b16 %v5485
    %v5983 = vunpack.c.l.b16 %v5486
    %v5984 = vunpack.c.h.b16 %v5486
    %v5985 = vunpack.c.l.b16 %v5487
    %v5986 = vunpack.c.h.b16 %v5487
    %v5987 = vunpack.c.l.b16 %v5488
    %v5988 = vunpack.c.h.b16 %v5488
    %v5989 = vunpack.c.l.b16 %v5489
    %v5990 = vunpack.c.h.b16 %v5489
    %v5991 = vunpack.c.l.b16 %v5490
    %v5992 = vunpack.c.h.b16 %v5490
    %v5993 = vunpack.c.l.b16 %v5491
    %v5994 = vunpack.c.h.b16 %v5491
    %v5995 = vunpack.c.l.b16 %v5492
    %v5996 = vunpack.c.h.b16 %v5492
    %v5997 = vunpack.c.l.b16 %v5493
    %v5998 = vunpack.c.h.b16 %v5493
    %v5999 = vunpack.c.l.b16 %v5494
    %v6000 = vunpack.c.h.b16 %v5494
    %v6001 = vunpack.c.l.b16 %v5495
    %v6002 = vunpack.c.h.b16 %v5495
    %v6003 = vunpack.c.l.b16 %v5496
    %v6004 = vunpack.c.h.b16 %v5496
    %v6005 = vunpack.c.l.b16 %v5497
    %v6006 = vunpack.c.h.b16 %v5497
    %v6007 = vunpack.c.l.b16 %v5498
    %v6008 = vunpack.c.h.b16 %v5498
    %v6009 = vunpack.c.l.b16 %v5499
    %v6010 = vunpack.c.h.b16 %v5499
    %v6011 = vunpack.c.l.b16 %v5500
    %v6012 = vunpack.c.h.b16 %v5500
    %v6013 = vunpack.c.l.b16 %v5501
    %v6014 = vunpack.c.h.b16 %v5501
    %v6015 = vunpack.c.l.b16 %v5502
    %v6016 = vunpack.c.h.b16 %v5502
    %v6017 = vunpack.c.l.b16 %v5503
    %v6018 = vunpack.c.h.b16 %v5503
    %v6019 = vunpack.c.l.b16 %v5504
    %v6020 = vunpack.c.h.b16 %v5504
    %v6021 = vunpack.c.l.b16 %v5505
    %v6022 = vunpack.c.h.b16 %v5505
    %v6023 = vunpack.c.l.b16 %v5506
    %v6024 = vunpack.c.h.b16 %v5506
    %v6025 = vunpack.c.l.b16 %v5507
    %v6026 = vunpack.c.h.b16 %v5507
    %v6027 = vunpack.c.l.b16 %v5508
    %v6028 = vunpack.c.h.b16 %v5508
    %v6029 = vunpack.c.l.b16 %v5509
    %v6030 = vunpack.c.h.b16 %v5509
    %v6031 = vunpack.c.l.b16 %v5510
    %v6032 = vunpack.c.h.b16 %v5510
    %v6033 = vunpack.c.l.b16 %v5511
    %v6034 = vunpack.c.h.b16 %v5511
    %v6035 = vunpack.c.l.b16 %v5512
    %v6036 = vunpack.c.h.b16 %v5512
    %v6037 = vunpack.c.l.b16 %v5513
    %v6038 = vunpack.c.h.b16 %v5513
    %v6039 = vunpack.c.l.b16 %v5514
    %v6040 = vunpack.c.h.b16 %v5514
    %v6041 = vunpack.c.l.b16 %v5515
    %v6042 = vunpack.c.h.b16 %v5515
    %v6043 = vunpack.c.l.b16 %v5516
    %v6044 = vunpack.c.h.b16 %v5516
    %v6045 = vunpack.c.l.b16 %v5517
    %v6046 = vunpack.c.h.b16 %v5517
    %v6047 = vunpack.c.l.b16 %v5518
    %v6048 = vunpack.c.h.b16 %v5518
    %v6049 = vunpack.c.l.b16 %v5519
    %v6050 = vunpack.c.h.b16 %v5519
    %v6051 = vunpack.c.l.b16 %v5520
    %v6052 = vunpack.c.h.b16 %v5520
    %v6053 = vunpack.c.l.b16 %v5521
    %v6054 = vunpack.c.h.b16 %v5521
    %v6055 = vunpack.c.l.b16 %v5522
    %v6056 = vunpack.c.h.b16 %v5522
    %v6057 = vunpack.c.l.b16 %v5523
    %v6058 = vunpack.c.h.b16 %v5523
    %v6059 = vunpack.c.l.b16 %v5524
    %v6060 = vunpack.c.h.b16 %v5524
    %v6061 = vunpack.c.l.b16 %v5525
    %v6062 = vunpack.c.h.b16 %v5525
    %v6063 = vunpack.c.l.b16 %v5526
    %v6064 = vunpack.c.h.b16 %v5526
    %v6065 = vunpack.c.l.b16 %v5527
    %v6066 = vunpack.c.h.b16 %v5527
    %v6067 = vunpack.c.l.b16 %v5528
    %v6068 = vunpack.c.h.b16 %v5528
    %v6069 = vunpack.c.l.b16 %v5529
    %v6070 = vunpack.c.h.b16 %v5529
    %v6071 = vunpack.c.l.b16 %v5530
    %v6072 = vunpack.c.h.b16 %v5530
    %v6073 = vpack.c.b16 %v5819, %v5817
    %v6074 = vpack.c.b16 %v5820, %v5818
    %v6075 = vpack.c.b16 %v5823, %v5821
    %v6076 = vpack.c.b16 %v5824, %v5822
    %v6077 = vpack.c.b16 %v5827, %v5825
    %v6078 = vpack.c.b16 %v5828, %v5826
    %v6079 = vpack.c.b16 %v5831, %v5829
    %v6080 = vpack.c.b16 %v5832, %v5830
    %v6081 = vpack.c.b16 %v5835, %v5833
    %v6082 = vpack.c.b16 %v5836, %v5834
    %v6083 = vpack.c.b16 %v5839, %v5837
    %v6084 = vpack.c.b16 %v5840, %v5838
    %v6085 = vpack.c.b16 %v5843, %v5841
    %v6086 = vpack.c.b16 %v5844, %v5842
    %v6087 = vpack.c.b16 %v5847, %v5845
    %v6088 = vpack.c.b16 %v5848, %v5846
    %v6089 = vpack.c.b16 %v5851, %v5849
    %v6090 = vpack.c.b16 %v5852, %v5850
    %v6091 = vpack.c.b16 %v5855, %v5853
    %v6092 = vpack.c.b16 %v5856, %v5854
    %v6093 = vpack.c.b16 %v5859, %v5857
    %v6094 = vpack.c.b16 %v5860, %v5858
    %v6095 = vpack.c.b16 %v5863, %v5861
    %v6096 = vpack.c.b16 %v5864, %v5862
    %v6097 = vpack.c.b16 %v5867, %v5865
    %v6098 = vpack.c.b16 %v5868, %v5866
    %v6099 = vpack.c.b16 %v5871, %v5869
    %v6100 = vpack.c.b16 %v5872, %v5870
    %v6101 = vpack.c.b16 %v5875, %v5873
    %v6102 = vpack.c.b16 %v5876, %v5874
    %v6103 = vpack.c.b16 %v5879, %v5877
    %v6104 = vpack.c.b16 %v5880, %v5878
    %v6105 = vpack.c.b16 %v5883, %v5881
    %v6106 = vpack.c.b16 %v5884, %v5882
    %v6107 = vpack.c.b16 %v5887, %v5885
    %v6108 = vpack.c.b16 %v5888, %v5886
    %v6109 = vpack.c.b16 %v5891, %v5889
    %v6110 = vpack.c.b16 %v5892, %v5890
    %v6111 = vpack.c.b16 %v5895, %v5893
    %v6112 = vpack.c.b16 %v5896, %v5894
    %v6113 = vpack.c.b16 %v5899, %v5897
    %v6114 = vpack.c.b16 %v5900, %v5898
    %v6115 = vpack.c.b16 %v5903, %v5901
    %v6116 = vpack.c.b16 %v5904, %v5902
    %v6117 = vpack.c.b16 %v5907, %v5905
    %v6118 = vpack.c.b16 %v5908, %v5906
    %v6119 = vpack.c.b16 %v5911, %v5909
    %v6120 = vpack.c.b16 %v5912, %v5910
    %v6121 = vpack.c.b16 %v5915, %v5913
    %v6122 = vpack.c.b16 %v5916, %v5914
    %v6123 = vpack.c.b16 %v5919, %v5917
    %v6124 = vpack.c.b16 %v5920, %v5918
    %v6125 = vpack.c.b16 %v5923, %v5921
    %v6126 = vpack.c.b16 %v5924, %v5922
    %v6127 = vpack.c.b16 %v5927, %v5925
    %v6128 = vpack.c.b16 %v5928, %v5926
    %v6129 = vpack.c.b16 %v5931, %v5929
    %v6130 = vpack.c.b16 %v5932, %v5930
    %v6131 = vpack.c.b16 %v5935, %v5933
    %v6132 = vpack.c.b16 %v5936, %v5934
    %v6133 = vpack.c.b16 %v5939, %v5937
    %v6134 = vpack.c.b16 %v5940, %v5938
    %v6135 = vpack.c.b16 %v5943, %v5941
    %v6136 = vpack.c.b16 %v5944, %v5942
    %v6137 = vpack.c.b16 %v5947, %v5945
    %v6138 = vpack.c.b16 %v5948, %v5946
    %v6139 = vpack.c.b16 %v5951, %v5949
    %v6140 = vpack.c.b16 %v5952, %v5950
    %v6141 = vpack.c.b16 %v5955, %v5953
    %v6142 = vpack.c.b16 %v5956, %v5954
    %v6143 = vpack.c.b16 %v5959, %v5957
    %v6144 = vpack.c.b16 %v5960, %v5958
    %v6145 = vpack.c.b16 %v5963, %v5961
    %v6146 = vpack.c.b16 %v5964, %v5962
    %v6147 = vpack.c.b16 %v5967, %v5965
    %v6148 = vpack.c.b16 %v5968, %v5966
    %v6149 = vpack.c.b16 %v5971, %v5969
    %v6150 = vpack.c.b16 %v5972, %v5970
    %v6151 = vpack.c.b16 %v5975, %v5973
    %v6152 = vpack.c.b16 %v5976, %v5974
    %v6153 = vpack.c.b16 %v5979, %v5977
    %v6154 = vpack.c.b16 %v5980, %v5978
    %v6155 = vpack.c.b16 %v5983, %v5981
    %v6156 = vpack.c.b16 %v5984, %v5982
    %v6157 = vpack.c.b16 %v5987, %v5985
    %v6158 = vpack.c.b16 %v5988, %v5986
    %v6159 = vpack.c.b16 %v5991, %v5989
    %v6160 = vpack.c.b16 %v5992, %v5990
    %v6161 = vpack.c.b16 %v5995, %v5993
    %v6162 = vpack.c.b16 %v5996, %v5994
    %v6163 = vpack.c.b16 %v5999, %v5997
    %v6164 = vpack.c.b16 %v6000, %v5998
    %v6165 = vpack.c.b16 %v6003, %v6001
    %v6166 = vpack.c.b16 %v6004, %v6002
    %v6167 = vpack.c.b16 %v6007, %v6005
    %v6168 = vpack.c.b16 %v6008, %v6006
    %v6169 = vpack.c.b16 %v6011, %v6009
    %v6170 = vpack.c.b16 %v6012, %v6010
    %v6171 = vpack.c.b16 %v6015, %v6013
    %v6172 = vpack.c.b16 %v6016, %v6014
    %v6173 = vpack.c.b16 %v6019, %v6017
    %v6174 = vpack.c.b16 %v6020, %v6018
    %v6175 = vpack.c.b16 %v6023, %v6021
    %v6176 = vpack.c.b16 %v6024, %v6022
    %v6177 = vpack.c.b16 %v6027, %v6025
    %v6178 = vpack.c.b16 %v6028, %v6026
    %v6179 = vpack.c.b16 %v6031, %v6029
    %v6180 = vpack.c.b16 %v6032, %v6030
    %v6181 = vpack.c.b16 %v6035, %v6033
    %v6182 = vpack.c.b16 %v6036, %v6034
    %v6183 = vpack.c.b16 %v6039, %v6037
    %v6184 = vpack.c.b16 %v6040, %v6038
    %v6185 = vpack.c.b16 %v6043, %v6041
    %v6186 = vpack.c.b16 %v6044, %v6042
    %v6187 = vpack.c.b16 %v6047, %v6045
    %v6188 = vpack.c.b16 %v6048, %v6046
    %v6189 = vpack.c.b16 %v6051, %v6049
    %v6190 = vpack.c.b16 %v6052, %v6050
    %v6191 = vpack.c.b16 %v6055, %v6053
    %v6192 = vpack.c.b16 %v6056, %v6054
    %v6193 = vpack.c.b16 %v6059, %v6057
    %v6194 = vpack.c.b16 %v6060, %v6058
    %v6195 = vpack.c.b16 %v6063, %v6061
    %v6196 = vpack.c.b16 %v6064, %v6062
    %v6197 = vpack.c.b16 %v6067, %v6065
    %v6198 = vpack.c.b16 %v6068, %v6066
    %v6199 = vpack.c.b16 %v6071, %v6069
    %v6200 = vpack.c.b16 %v6072, %v6070
    %6329 = vmatprep.subr.bf16.mxu0 %v6088
    %6330 = vmatpush1.bf16.msra.mxu0 %v6087
    %6331 = vmatprep.subr.bf16.mxu0 %v6086
    %6332 = vmatpush1.bf16.msra.mxu0 %v6085
    %6333 = vmatprep.subr.bf16.mxu0 %v6084
    %6334 = vmatpush1.bf16.msra.mxu0 %v6083
    %6335 = vmatprep.subr.bf16.mxu0 %v6082
    %6336 = vmatpush1.bf16.msra.mxu0 %v6081
    %6337 = vmatprep.subr.bf16.mxu0 %v6080
    %6338 = vmatpush1.bf16.msra.mxu0 %v6079
    %6339 = vmatprep.subr.bf16.mxu0 %v6078
    %6340 = vmatpush1.bf16.msra.mxu0 %v6077
    %6341 = vmatprep.subr.bf16.mxu0 %v6076
    %6342 = vmatpush1.bf16.msra.mxu0 %v6075
    %6343 = vmatprep.subr.bf16.mxu0 %v6074
    %6344 = vmatpush1.bf16.msra.mxu0 %v6073
    %6345 = vmatprep.subr.bf16.mxu0 %v6104
    %6346 = vmatpush2.bf16.msra.mxu0 %v6103
    %6347 = vmatprep.subr.bf16.mxu0 %v6102
    %6348 = vmatpush2.bf16.msra.mxu0 %v6101
    %6349 = vmatprep.subr.bf16.mxu0 %v6100
    %6350 = vmatpush2.bf16.msra.mxu0 %v6099
    %6351 = vmatprep.subr.bf16.mxu0 %v6098
    %6352 = vmatpush2.bf16.msra.mxu0 %v6097
    %6353 = vmatprep.subr.bf16.mxu0 %v6096
    %6354 = vmatpush2.bf16.msra.mxu0 %v6095
    %6355 = vmatprep.subr.bf16.mxu0 %v6094
    %6356 = vmatpush2.bf16.msra.mxu0 %v6093
    %6357 = vmatprep.subr.bf16.mxu0 %v6092
    %6358 = vmatpush2.bf16.msra.mxu0 %v6091
    %6359 = vmatprep.subr.bf16.mxu0 %v6090
    %6360 = vmatpush2.bf16.msra.mxu0 %v6089
    %6361 = vmatprep.mubr.bf16.mxu0 %v5647
    %6362 = vmatmul.mubr.bf16.gmra.mxu0 %v5646
    %v6363 = vpop.f32.mrf.mxu0
    %v6364 = vadd.f32 %v5682, %v6363
    %v6365 = vpop.f32.mrf.mxu0
    %v6366 = vadd.f32 %v5686, %v6365
    %v6367 = vpop.f32.mrf.mxu0
    %v6368 = vadd.f32 %v5682, %v6367
    %v6369 = vpop.f32.mrf.mxu0
    %v6370 = vadd.f32 %v5686, %v6369
    %6371 = vmatprep.mubr.bf16.mxu0 %v5655
    %6372 = vmatmul.mubr.bf16.gmra.mxu0 %v5654
    %v6373 = vpop.f32.mrf.mxu0
    %v6374 = vadd.f32 %v5682, %v6373
    %v6375 = vpop.f32.mrf.mxu0
    %v6376 = vadd.f32 %v5686, %v6375
    %v6377 = vpop.f32.mrf.mxu0
    %v6378 = vadd.f32 %v5682, %v6377
    %v6379 = vpop.f32.mrf.mxu0
    %v6380 = vadd.f32 %v5686, %v6379
    %6381 = vmatprep.mubr.bf16.mxu0 %v5663
    %6382 = vmatmul.mubr.bf16.gmra.mxu0 %v5662
    %v6383 = vpop.f32.mrf.mxu0
    %v6384 = vadd.f32 %v5682, %v6383
    %v6385 = vpop.f32.mrf.mxu0
    %v6386 = vadd.f32 %v5686, %v6385
    %v6387 = vpop.f32.mrf.mxu0
    %v6388 = vadd.f32 %v5682, %v6387
    %v6389 = vpop.f32.mrf.mxu0
    %v6390 = vadd.f32 %v5686, %v6389
    %6391 = vmatprep.mubr.bf16.mxu0 %v5671
    %6392 = vmatmul.mubr.bf16.gmra.mxu0 %v5670
    %v6393 = vpop.f32.mrf.mxu0
    %v6394 = vadd.f32 %v5682, %v6393
    %v6395 = vpop.f32.mrf.mxu0
    %v6396 = vadd.f32 %v5686, %v6395
    %v6397 = vpop.f32.mrf.mxu0
    %v6398 = vadd.f32 %v5682, %v6397
    %v6399 = vpop.f32.mrf.mxu0
    %v6400 = vadd.f32 %v5686, %v6399
    %6401 = vdwg.mxu0
    %6402 = vmatprep.subr.bf16.mxu0 %v6120
    %6403 = vmatpush1.bf16.msra.mxu0 %v6119
    %6404 = vmatprep.subr.bf16.mxu0 %v6118
    %6405 = vmatpush1.bf16.msra.mxu0 %v6117
    %6406 = vmatprep.subr.bf16.mxu0 %v6116
    %6407 = vmatpush1.bf16.msra.mxu0 %v6115
    %6408 = vmatprep.subr.bf16.mxu0 %v6114
    %6409 = vmatpush1.bf16.msra.mxu0 %v6113
    %6410 = vmatprep.subr.bf16.mxu0 %v6112
    %6411 = vmatpush1.bf16.msra.mxu0 %v6111
    %6412 = vmatprep.subr.bf16.mxu0 %v6110
    %6413 = vmatpush1.bf16.msra.mxu0 %v6109
    %6414 = vmatprep.subr.bf16.mxu0 %v6108
    %6415 = vmatpush1.bf16.msra.mxu0 %v6107
    %6416 = vmatprep.subr.bf16.mxu0 %v6106
    %6417 = vmatpush1.bf16.msra.mxu0 %v6105
    %6418 = vmatprep.subr.bf16.mxu0 %v6136
    %6419 = vmatpush2.bf16.msra.mxu0 %v6135
    %6420 = vmatprep.subr.bf16.mxu0 %v6134
    %6421 = vmatpush2.bf16.msra.mxu0 %v6133
    %6422 = vmatprep.subr.bf16.mxu0 %v6132
    %6423 = vmatpush2.bf16.msra.mxu0 %v6131
    %6424 = vmatprep.subr.bf16.mxu0 %v6130
    %6425 = vmatpush2.bf16.msra.mxu0 %v6129
    %6426 = vmatprep.subr.bf16.mxu0 %v6128
    %6427 = vmatpush2.bf16.msra.mxu0 %v6127
    %6428 = vmatprep.subr.bf16.mxu0 %v6126
    %6429 = vmatpush2.bf16.msra.mxu0 %v6125
    %6430 = vmatprep.subr.bf16.mxu0 %v6124
    %6431 = vmatpush2.bf16.msra.mxu0 %v6123
    %6432 = vmatprep.subr.bf16.mxu0 %v6122
    %6433 = vmatpush2.bf16.msra.mxu0 %v6121
    %6434 = vmatprep.mubr.bf16.mxu0 %v5649
    %6435 = vmatmul.mubr.bf16.gmra.mxu0 %v5648
    %v6436 = vpop.f32.mrf.mxu0
    %v6437 = vadd.f32 %v6364, %v6436
    %v6438 = vpop.f32.mrf.mxu0
    %v6439 = vadd.f32 %v6366, %v6438
    %v6440 = vpop.f32.mrf.mxu0
    %v6441 = vadd.f32 %v6368, %v6440
    %v6442 = vpop.f32.mrf.mxu0
    %v6443 = vadd.f32 %v6370, %v6442
    %6444 = vmatprep.mubr.bf16.mxu0 %v5657
    %6445 = vmatmul.mubr.bf16.gmra.mxu0 %v5656
    %v6446 = vpop.f32.mrf.mxu0
    %v6447 = vadd.f32 %v6374, %v6446
    %v6448 = vpop.f32.mrf.mxu0
    %v6449 = vadd.f32 %v6376, %v6448
    %v6450 = vpop.f32.mrf.mxu0
    %v6451 = vadd.f32 %v6378, %v6450
    %v6452 = vpop.f32.mrf.mxu0
    %v6453 = vadd.f32 %v6380, %v6452
    %6454 = vmatprep.mubr.bf16.mxu0 %v5665
    %6455 = vmatmul.mubr.bf16.gmra.mxu0 %v5664
    %v6456 = vpop.f32.mrf.mxu0
    %v6457 = vadd.f32 %v6384, %v6456
    %v6458 = vpop.f32.mrf.mxu0
    %v6459 = vadd.f32 %v6386, %v6458
    %v6460 = vpop.f32.mrf.mxu0
    %v6461 = vadd.f32 %v6388, %v6460
    %v6462 = vpop.f32.mrf.mxu0
    %v6463 = vadd.f32 %v6390, %v6462
    %6464 = vmatprep.mubr.bf16.mxu0 %v5673
    %6465 = vmatmul.mubr.bf16.gmra.mxu0 %v5672
    %v6466 = vpop.f32.mrf.mxu0
    %v6467 = vadd.f32 %v6394, %v6466
    %v6468 = vpop.f32.mrf.mxu0
    %v6469 = vadd.f32 %v6396, %v6468
    %v6470 = vpop.f32.mrf.mxu0
    %v6471 = vadd.f32 %v6398, %v6470
    %v6472 = vpop.f32.mrf.mxu0
    %v6473 = vadd.f32 %v6400, %v6472
    %6474 = vdwg.mxu0
    %6475 = vmatprep.subr.bf16.mxu0 %v6152
    %6476 = vmatpush1.bf16.msra.mxu0 %v6151
    %6477 = vmatprep.subr.bf16.mxu0 %v6150
    %6478 = vmatpush1.bf16.msra.mxu0 %v6149
    %6479 = vmatprep.subr.bf16.mxu0 %v6148
    %6480 = vmatpush1.bf16.msra.mxu0 %v6147
    %6481 = vmatprep.subr.bf16.mxu0 %v6146
    %6482 = vmatpush1.bf16.msra.mxu0 %v6145
    %6483 = vmatprep.subr.bf16.mxu0 %v6144
    %6484 = vmatpush1.bf16.msra.mxu0 %v6143
    %6485 = vmatprep.subr.bf16.mxu0 %v6142
    %6486 = vmatpush1.bf16.msra.mxu0 %v6141
    %6487 = vmatprep.subr.bf16.mxu0 %v6140
    %6488 = vmatpush1.bf16.msra.mxu0 %v6139
    %6489 = vmatprep.subr.bf16.mxu0 %v6138
    %6490 = vmatpush1.bf16.msra.mxu0 %v6137
    %6491 = vmatprep.subr.bf16.mxu0 %v6168
    %6492 = vmatpush2.bf16.msra.mxu0 %v6167
    %6493 = vmatprep.subr.bf16.mxu0 %v6166
    %6494 = vmatpush2.bf16.msra.mxu0 %v6165
    %6495 = vmatprep.subr.bf16.mxu0 %v6164
    %6496 = vmatpush2.bf16.msra.mxu0 %v6163
    %6497 = vmatprep.subr.bf16.mxu0 %v6162
    %6498 = vmatpush2.bf16.msra.mxu0 %v6161
    %6499 = vmatprep.subr.bf16.mxu0 %v6160
    %6500 = vmatpush2.bf16.msra.mxu0 %v6159
    %6501 = vmatprep.subr.bf16.mxu0 %v6158
    %6502 = vmatpush2.bf16.msra.mxu0 %v6157
    %6503 = vmatprep.subr.bf16.mxu0 %v6156
    %6504 = vmatpush2.bf16.msra.mxu0 %v6155
    %6505 = vmatprep.subr.bf16.mxu0 %v6154
    %6506 = vmatpush2.bf16.msra.mxu0 %v6153
    %6507 = vmatprep.mubr.bf16.mxu0 %v5651
    %6508 = vmatmul.mubr.bf16.gmra.mxu0 %v5650
    %v6509 = vpop.f32.mrf.mxu0
    %v6510 = vadd.f32 %v6437, %v6509
    %v6511 = vpop.f32.mrf.mxu0
    %v6512 = vadd.f32 %v6439, %v6511
    %v6513 = vpop.f32.mrf.mxu0
    %v6514 = vadd.f32 %v6441, %v6513
    %v6515 = vpop.f32.mrf.mxu0
    %v6516 = vadd.f32 %v6443, %v6515
    %6517 = vmatprep.mubr.bf16.mxu0 %v5659
    %6518 = vmatmul.mubr.bf16.gmra.mxu0 %v5658
    %v6519 = vpop.f32.mrf.mxu0
    %v6520 = vadd.f32 %v6447, %v6519
    %v6521 = vpop.f32.mrf.mxu0
    %v6522 = vadd.f32 %v6449, %v6521
    %v6523 = vpop.f32.mrf.mxu0
    %v6524 = vadd.f32 %v6451, %v6523
    %v6525 = vpop.f32.mrf.mxu0
    %v6526 = vadd.f32 %v6453, %v6525
    %6527 = vmatprep.mubr.bf16.mxu0 %v5667
    %6528 = vmatmul.mubr.bf16.gmra.mxu0 %v5666
    %v6529 = vpop.f32.mrf.mxu0
    %v6530 = vadd.f32 %v6457, %v6529
    %v6531 = vpop.f32.mrf.mxu0
    %v6532 = vadd.f32 %v6459, %v6531
    %v6533 = vpop.f32.mrf.mxu0
    %v6534 = vadd.f32 %v6461, %v6533
    %v6535 = vpop.f32.mrf.mxu0
    %v6536 = vadd.f32 %v6463, %v6535
    %6537 = vmatprep.mubr.bf16.mxu0 %v5675
    %6538 = vmatmul.mubr.bf16.gmra.mxu0 %v5674
    %v6539 = vpop.f32.mrf.mxu0
    %v6540 = vadd.f32 %v6467, %v6539
    %v6541 = vpop.f32.mrf.mxu0
    %v6542 = vadd.f32 %v6469, %v6541
    %v6543 = vpop.f32.mrf.mxu0
    %v6544 = vadd.f32 %v6471, %v6543
    %v6545 = vpop.f32.mrf.mxu0
    %v6546 = vadd.f32 %v6473, %v6545
    %6547 = vdwg.mxu0
    %6548 = vmatprep.subr.bf16.mxu0 %v6184
    %6549 = vmatpush1.bf16.msra.mxu0 %v6183
    %6550 = vmatprep.subr.bf16.mxu0 %v6182
    %6551 = vmatpush1.bf16.msra.mxu0 %v6181
    %6552 = vmatprep.subr.bf16.mxu0 %v6180
    %6553 = vmatpush1.bf16.msra.mxu0 %v6179
    %6554 = vmatprep.subr.bf16.mxu0 %v6178
    %6555 = vmatpush1.bf16.msra.mxu0 %v6177
    %6556 = vmatprep.subr.bf16.mxu0 %v6176
    %6557 = vmatpush1.bf16.msra.mxu0 %v6175
    %6558 = vmatprep.subr.bf16.mxu0 %v6174
    %6559 = vmatpush1.bf16.msra.mxu0 %v6173
    %6560 = vmatprep.subr.bf16.mxu0 %v6172
    %6561 = vmatpush1.bf16.msra.mxu0 %v6171
    %6562 = vmatprep.subr.bf16.mxu0 %v6170
    %6563 = vmatpush1.bf16.msra.mxu0 %v6169
    %6564 = vmatprep.subr.bf16.mxu0 %v6200
    %6565 = vmatpush2.bf16.msra.mxu0 %v6199
    %6566 = vmatprep.subr.bf16.mxu0 %v6198
    %6567 = vmatpush2.bf16.msra.mxu0 %v6197
    %6568 = vmatprep.subr.bf16.mxu0 %v6196
    %6569 = vmatpush2.bf16.msra.mxu0 %v6195
    %6570 = vmatprep.subr.bf16.mxu0 %v6194
    %6571 = vmatpush2.bf16.msra.mxu0 %v6193
    %6572 = vmatprep.subr.bf16.mxu0 %v6192
    %6573 = vmatpush2.bf16.msra.mxu0 %v6191
    %6574 = vmatprep.subr.bf16.mxu0 %v6190
    %6575 = vmatpush2.bf16.msra.mxu0 %v6189
    %6576 = vmatprep.subr.bf16.mxu0 %v6188
    %6577 = vmatpush2.bf16.msra.mxu0 %v6187
    %6578 = vmatprep.subr.bf16.mxu0 %v6186
    %6579 = vmatpush2.bf16.msra.mxu0 %v6185
    %6580 = vmatprep.mubr.bf16.mxu0 %v5653
    %6581 = vmatmul.mubr.bf16.gmra.mxu0 %v5652
    %v6582 = vpop.f32.mrf.mxu0
    %v6583 = vadd.f32 %v6510, %v6582
    %v6584 = vpop.f32.mrf.mxu0
    %v6585 = vadd.f32 %v6512, %v6584
    %v6586 = vpop.f32.mrf.mxu0
    %v6587 = vadd.f32 %v6514, %v6586
    %v6588 = vpop.f32.mrf.mxu0
    %v6589 = vadd.f32 %v6516, %v6588
    %6590 = vmatprep.mubr.bf16.mxu0 %v5661
    %6591 = vmatmul.mubr.bf16.gmra.mxu0 %v5660
    %v6592 = vpop.f32.mrf.mxu0
    %v6593 = vadd.f32 %v6520, %v6592
    %v6594 = vpop.f32.mrf.mxu0
    %v6595 = vadd.f32 %v6522, %v6594
    %v6596 = vpop.f32.mrf.mxu0
    %v6597 = vadd.f32 %v6524, %v6596
    %v6598 = vpop.f32.mrf.mxu0
    %v6599 = vadd.f32 %v6526, %v6598
    %6600 = vmatprep.mubr.bf16.mxu0 %v5669
    %6601 = vmatmul.mubr.bf16.gmra.mxu0 %v5668
    %v6602 = vpop.f32.mrf.mxu0
    %v6603 = vadd.f32 %v6530, %v6602
    %v6604 = vpop.f32.mrf.mxu0
    %v6605 = vadd.f32 %v6532, %v6604
    %v6606 = vpop.f32.mrf.mxu0
    %v6607 = vadd.f32 %v6534, %v6606
    %v6608 = vpop.f32.mrf.mxu0
    %v6609 = vadd.f32 %v6536, %v6608
    %6610 = vmatprep.mubr.bf16.mxu0 %v5677
    %6611 = vmatmul.mubr.bf16.gmra.mxu0 %v5676
    %v6612 = vpop.f32.mrf.mxu0
    %v6613 = vadd.f32 %v6540, %v6612
    %v6614 = vpop.f32.mrf.mxu0
    %v6615 = vadd.f32 %v6542, %v6614
    %v6616 = vpop.f32.mrf.mxu0
    %v6617 = vadd.f32 %v6544, %v6616
    %v6618 = vpop.f32.mrf.mxu0
    %v6619 = vadd.f32 %v6546, %v6618
    %6620 = vdwg.mxu0
    %v6621 = vmax.f32 %v6583, 0.0
    %v6622 = vmax.f32 %v6585, 0.0
    %v6623 = vmax.f32 %v6587, 0.0
    %v6624 = vmax.f32 %v6589, 0.0
    %v6625 = vmax.f32 %v6593, 0.0
    %v6626 = vmax.f32 %v6595, 0.0
    %v6627 = vmax.f32 %v6597, 0.0
    %v6628 = vmax.f32 %v6599, 0.0
    %v6629 = vmax.f32 %v6603, 0.0
    %v6630 = vmax.f32 %v6605, 0.0
    %v6631 = vmax.f32 %v6607, 0.0
    %v6632 = vmax.f32 %v6609, 0.0
    %v6633 = vmax.f32 %v6613, 0.0
    %v6634 = vmax.f32 %v6615, 0.0
    %v6635 = vmax.f32 %v6617, 0.0
    %v6636 = vmax.f32 %v6619, 0.0
    %v6637 = vpack.c.bf16 %v6623, %v6621
    %v6638 = vpack.c.bf16 %v6624, %v6622
    %v6639 = vpack.c.bf16 %v6627, %v6625
    %v6640 = vpack.c.bf16 %v6628, %v6626
    %v6641 = vpack.c.bf16 %v6631, %v6629
    %v6642 = vpack.c.bf16 %v6632, %v6630
    %v6643 = vpack.c.bf16 %v6635, %v6633
    %v6644 = vpack.c.bf16 %v6636, %v6634
    %v6646 = vlaneseq
    %v6647 = vshrl.u32 %v6646, 7
    %v6648 = vsub.s32 0, %v6647
    %v6649 = vrot.slane %v5564, %v6648
    %v6683 = vunpack.c.l.b16 %v5532
    %v6684 = vunpack.c.l.b16 %v5533
    %v6685 = vunpack.c.l.b16 %v5534
    %v6686 = vunpack.c.l.b16 %v5535
    %v6687 = vunpack.c.l.b16 %v5536
    %v6688 = vunpack.c.l.b16 %v5537
    %v6689 = vunpack.c.l.b16 %v5538
    %v6690 = vunpack.c.l.b16 %v5539
    %v6691 = vunpack.c.l.b16 %v5540
    %v6692 = vunpack.c.l.b16 %v5541
    %v6693 = vunpack.c.l.b16 %v5542
    %v6694 = vunpack.c.l.b16 %v5543
    %v6695 = vunpack.c.l.b16 %v5544
    %v6696 = vunpack.c.l.b16 %v5545
    %v6697 = vunpack.c.l.b16 %v5546
    %v6698 = vunpack.c.l.b16 %v5547
    %v6699 = vunpack.c.l.b16 %v5548
    %v6700 = vunpack.c.l.b16 %v5549
    %v6701 = vunpack.c.l.b16 %v5550
    %v6702 = vunpack.c.l.b16 %v5551
    %v6703 = vunpack.c.l.b16 %v5552
    %v6704 = vunpack.c.l.b16 %v5553
    %v6705 = vunpack.c.l.b16 %v5554
    %v6706 = vunpack.c.l.b16 %v5555
    %v6707 = vunpack.c.l.b16 %v5556
    %v6708 = vunpack.c.l.b16 %v5557
    %v6709 = vunpack.c.l.b16 %v5558
    %v6710 = vunpack.c.l.b16 %v5559
    %v6711 = vunpack.c.l.b16 %v5560
    %v6712 = vunpack.c.l.b16 %v5561
    %v6713 = vunpack.c.l.b16 %v5562
    %v6714 = vunpack.c.l.b16 %v5563
    %v6715 = vpack.c.b16 %v6684, %v6683
    %v6716 = vpack.c.b16 %v6686, %v6685
    %v6717 = vpack.c.b16 %v6688, %v6687
    %v6718 = vpack.c.b16 %v6690, %v6689
    %v6719 = vpack.c.b16 %v6692, %v6691
    %v6720 = vpack.c.b16 %v6694, %v6693
    %v6721 = vpack.c.b16 %v6696, %v6695
    %v6722 = vpack.c.b16 %v6698, %v6697
    %v6723 = vpack.c.b16 %v6700, %v6699
    %v6724 = vpack.c.b16 %v6702, %v6701
    %v6725 = vpack.c.b16 %v6704, %v6703
    %v6726 = vpack.c.b16 %v6706, %v6705
    %v6727 = vpack.c.b16 %v6708, %v6707
    %v6728 = vpack.c.b16 %v6710, %v6709
    %v6729 = vpack.c.b16 %v6712, %v6711
    %v6730 = vpack.c.b16 %v6714, %v6713
    %6747 = vmatprep.subr.bf16.mxu0 0
    %6748 = vmatpush1.bf16.msra.mxu0 %v6722
    %6749 = vmatprep.subr.bf16.mxu0 0
    %6750 = vmatpush1.bf16.msra.mxu0 %v6721
    %6751 = vmatprep.subr.bf16.mxu0 0
    %6752 = vmatpush1.bf16.msra.mxu0 %v6720
    %6753 = vmatprep.subr.bf16.mxu0 0
    %6754 = vmatpush1.bf16.msra.mxu0 %v6719
    %6755 = vmatprep.subr.bf16.mxu0 0
    %6756 = vmatpush1.bf16.msra.mxu0 %v6718
    %6757 = vmatprep.subr.bf16.mxu0 0
    %6758 = vmatpush1.bf16.msra.mxu0 %v6717
    %6759 = vmatprep.subr.bf16.mxu0 0
    %6760 = vmatpush1.bf16.msra.mxu0 %v6716
    %6761 = vmatprep.subr.bf16.mxu0 0
    %6762 = vmatpush1.bf16.msra.mxu0 %v6715
    %6763 = vmatprep.subr.bf16.mxu0 0
    %6764 = vmatpush2.bf16.msra.mxu0 %v6730
    %6765 = vmatprep.subr.bf16.mxu0 0
    %6766 = vmatpush2.bf16.msra.mxu0 %v6729
    %6767 = vmatprep.subr.bf16.mxu0 0
    %6768 = vmatpush2.bf16.msra.mxu0 %v6728
    %6769 = vmatprep.subr.bf16.mxu0 0
    %6770 = vmatpush2.bf16.msra.mxu0 %v6727
    %6771 = vmatprep.subr.bf16.mxu0 0
    %6772 = vmatpush2.bf16.msra.mxu0 %v6726
    %6773 = vmatprep.subr.bf16.mxu0 0
    %6774 = vmatpush2.bf16.msra.mxu0 %v6725
    %6775 = vmatprep.subr.bf16.mxu0 0
    %6776 = vmatpush2.bf16.msra.mxu0 %v6724
    %6777 = vmatprep.subr.bf16.mxu0 0
    %6778 = vmatpush2.bf16.msra.mxu0 %v6723
    %6779 = vmatprep.mubr.bf16.mxu0 %v6638
    %6780 = vmatmul.mubr.bf16.gmra.mxu0 %v6637
    %v6781 = vpop.f32.mrf.mxu0
    %v6782 = vadd.f32 %v6649, %v6781
    %v6783 = vpop.f32.mrf.mxu0
    %v6784 = vpop.f32.mrf.mxu0
    %v6785 = vadd.f32 %v6649, %v6784
    %v6786 = vpop.f32.mrf.mxu0
    %6787 = vmatprep.mubr.bf16.mxu0 %v6640
    %6788 = vmatmul.mubr.bf16.gmra.mxu0 %v6639
    %v6789 = vpop.f32.mrf.mxu0
    %v6790 = vadd.f32 %v6649, %v6789
    %v6791 = vpop.f32.mrf.mxu0
    %v6792 = vpop.f32.mrf.mxu0
    %v6793 = vadd.f32 %v6649, %v6792
    %v6794 = vpop.f32.mrf.mxu0
    %6795 = vmatprep.mubr.bf16.mxu0 %v6642
    %6796 = vmatmul.mubr.bf16.gmra.mxu0 %v6641
    %v6797 = vpop.f32.mrf.mxu0
    %v6798 = vadd.f32 %v6649, %v6797
    %v6799 = vpop.f32.mrf.mxu0
    %v6800 = vpop.f32.mrf.mxu0
    %v6801 = vadd.f32 %v6649, %v6800
    %v6802 = vpop.f32.mrf.mxu0
    %6803 = vmatprep.mubr.bf16.mxu0 %v6644
    %6804 = vmatmul.mubr.bf16.gmra.mxu0 %v6643
    %v6805 = vpop.f32.mrf.mxu0
    %v6806 = vadd.f32 %v6649, %v6805
    %v6807 = vpop.f32.mrf.mxu0
    %v6808 = vpop.f32.mrf.mxu0
    %v6809 = vadd.f32 %v6649, %v6808
    %v6810 = vpop.f32.mrf.mxu0
    %6811 = vdwg.mxu0
    %v6812 = vmax.f32 %v6782, 0.0
    %v6813 = vmax.f32 %v6785, 0.0
    %v6814 = vmax.f32 %v6790, 0.0
    %v6815 = vmax.f32 %v6793, 0.0
    %v6816 = vmax.f32 %v6798, 0.0
    %v6817 = vmax.f32 %v6801, 0.0
    %v6818 = vmax.f32 %v6806, 0.0
    %v6819 = vmax.f32 %v6809, 0.0
    %v6820 = vpack.c.bf16 %v6813, %v6812
    %v6821 = vpack.c.bf16 %v6815, %v6814
    %v6822 = vpack.c.bf16 %v6817, %v6816
    %v6823 = vpack.c.bf16 %v6819, %v6818
    %v6825 = vlaneseq
    %v6826 = vshrl.u32 %v6825, 7
    %v6827 = vsub.s32 0, %v6826
    %v6828 = vrot.slane %v5581, %v6827
    %v6846 = vunpack.c.l.b16 %v5565
    %v6847 = vunpack.c.l.b16 %v5566
    %v6848 = vunpack.c.l.b16 %v5567
    %v6849 = vunpack.c.l.b16 %v5568
    %v6850 = vunpack.c.l.b16 %v5569
    %v6851 = vunpack.c.l.b16 %v5570
    %v6852 = vunpack.c.l.b16 %v5571
    %v6853 = vunpack.c.l.b16 %v5572
    %v6854 = vunpack.c.l.b16 %v5573
    %v6855 = vunpack.c.l.b16 %v5574
    %v6856 = vunpack.c.l.b16 %v5575
    %v6857 = vunpack.c.l.b16 %v5576
    %v6858 = vunpack.c.l.b16 %v5577
    %v6859 = vunpack.c.l.b16 %v5578
    %v6860 = vunpack.c.l.b16 %v5579
    %v6861 = vunpack.c.l.b16 %v5580
    %v6862 = vpack.c.b16 %v6847, %v6846
    %v6863 = vpack.c.b16 %v6849, %v6848
    %v6864 = vpack.c.b16 %v6851, %v6850
    %v6865 = vpack.c.b16 %v6853, %v6852
    %v6866 = vpack.c.b16 %v6855, %v6854
    %v6867 = vpack.c.b16 %v6857, %v6856
    %v6868 = vpack.c.b16 %v6859, %v6858
    %v6869 = vpack.c.b16 %v6861, %v6860
    %6878 = vmatprep.subr.bf16.mxu0 0
    %6879 = vmatpush1.bf16.msra.mxu0 %v6869
    %6880 = vmatprep.subr.bf16.mxu0 0
    %6881 = vmatpush1.bf16.msra.mxu0 %v6868
    %6882 = vmatprep.subr.bf16.mxu0 0
    %6883 = vmatpush1.bf16.msra.mxu0 %v6867
    %6884 = vmatprep.subr.bf16.mxu0 0
    %6885 = vmatpush1.bf16.msra.mxu0 %v6866
    %6886 = vmatprep.subr.bf16.mxu0 0
    %6887 = vmatpush1.bf16.msra.mxu0 %v6865
    %6888 = vmatprep.subr.bf16.mxu0 0
    %6889 = vmatpush1.bf16.msra.mxu0 %v6864
    %6890 = vmatprep.subr.bf16.mxu0 0
    %6891 = vmatpush1.bf16.msra.mxu0 %v6863
    %6892 = vmatprep.subr.bf16.mxu0 0
    %6893 = vmatpush1.bf16.msra.mxu0 %v6862
    %6894 = vmatprep.subr.bf16.mxu0 0
    %6895 = vmatpush2.bf16.msra.mxu0 0
    %6896 = vmatprep.subr.bf16.mxu0 0
    %6897 = vmatpush2.bf16.msra.mxu0 0
    %6898 = vmatprep.subr.bf16.mxu0 0
    %6899 = vmatpush2.bf16.msra.mxu0 0
    %6900 = vmatprep.subr.bf16.mxu0 0
    %6901 = vmatpush2.bf16.msra.mxu0 0
    %6902 = vmatprep.subr.bf16.mxu0 0
    %6903 = vmatpush2.bf16.msra.mxu0 0
    %6904 = vmatprep.subr.bf16.mxu0 0
    %6905 = vmatpush2.bf16.msra.mxu0 0
    %6906 = vmatprep.subr.bf16.mxu0 0
    %6907 = vmatpush2.bf16.msra.mxu0 0
    %6908 = vmatprep.subr.bf16.mxu0 0
    %6909 = vmatpush2.bf16.msra.mxu0 0
    %6910 = vmatprep.mubr.bf16.mxu0 0
    %6911 = vmatmul.mubr.bf16.gmra.mxu0 %v6820
    %v6912 = vpop.f32.mrf.mxu0
    %v6913 = vadd.f32 %v6828, %v6912
    %v6914 = vpop.f32.mrf.mxu0
    %v6915 = vpop.f32.mrf.mxu0
    %v6916 = vadd.f32 %v6828, %v6915
    %v6917 = vpop.f32.mrf.mxu0
    %6918 = vmatprep.mubr.bf16.mxu0 0
    %6919 = vmatmul.mubr.bf16.gmra.mxu0 %v6821
    %v6920 = vpop.f32.mrf.mxu0
    %v6921 = vadd.f32 %v6828, %v6920
    %v6922 = vpop.f32.mrf.mxu0
    %v6923 = vpop.f32.mrf.mxu0
    %v6924 = vadd.f32 %v6828, %v6923
    %v6925 = vpop.f32.mrf.mxu0
    %6926 = vmatprep.mubr.bf16.mxu0 0
    %6927 = vmatmul.mubr.bf16.gmra.mxu0 %v6822
    %v6928 = vpop.f32.mrf.mxu0
    %v6929 = vadd.f32 %v6828, %v6928
    %v6930 = vpop.f32.mrf.mxu0
    %v6931 = vpop.f32.mrf.mxu0
    %v6932 = vadd.f32 %v6828, %v6931
    %v6933 = vpop.f32.mrf.mxu0
    %6934 = vmatprep.mubr.bf16.mxu0 0
    %6935 = vmatmul.mubr.bf16.gmra.mxu0 %v6823
    %v6936 = vpop.f32.mrf.mxu0
    %v6937 = vadd.f32 %v6828, %v6936
    %v6938 = vpop.f32.mrf.mxu0
    %v6939 = vpop.f32.mrf.mxu0
    %v6940 = vadd.f32 %v6828, %v6939
    %v6941 = vpop.f32.mrf.mxu0
    %6942 = vdwg.mxu0
    %6943 = vmax.xlane.f32.xlu0 %v6913
    %v6944 = vpop.xlane.xlu0 %6943
    %6945 = vmax.xlane.f32.xlu0 %v6916
    %v6946 = vpop.xlane.xlu0 %6945
    %6947 = vmax.xlane.f32.xlu0 %v6921
    %v6948 = vpop.xlane.xlu0 %6947
    %6949 = vmax.xlane.f32.xlu0 %v6924
    %v6950 = vpop.xlane.xlu0 %6949
    %6951 = vmax.xlane.f32.xlu0 %v6929
    %v6952 = vpop.xlane.xlu0 %6951
    %6953 = vmax.xlane.f32.xlu0 %v6932
    %v6954 = vpop.xlane.xlu0 %6953
    %6955 = vmax.xlane.f32.xlu0 %v6937
    %v6956 = vpop.xlane.xlu0 %6955
    %6957 = vmax.xlane.f32.xlu0 %v6940
    %v6958 = vpop.xlane.xlu0 %6957
    %v6959 = vsub.f32 %v6913, %v6944
    %v6960 = vsub.f32 %v6916, %v6946
    %v6961 = vsub.f32 %v6921, %v6948
    %v6962 = vsub.f32 %v6924, %v6950
    %v6963 = vsub.f32 %v6929, %v6952
    %v6964 = vsub.f32 %v6932, %v6954
    %v6965 = vsub.f32 %v6937, %v6956
    %v6966 = vsub.f32 %v6940, %v6958
    %v6967 = vmul.f32 %v6959, 1.442695
    %v6968 = vpow.pop %v6967
    %v6969 = vmul.f32 %v6960, 1.442695
    %v6970 = vpow.pop %v6969
    %v6971 = vmul.f32 %v6961, 1.442695
    %v6972 = vpow.pop %v6971
    %v6973 = vmul.f32 %v6962, 1.442695
    %v6974 = vpow.pop %v6973
    %v6975 = vmul.f32 %v6963, 1.442695
    %v6976 = vpow.pop %v6975
    %v6977 = vmul.f32 %v6964, 1.442695
    %v6978 = vpow.pop %v6977
    %v6979 = vmul.f32 %v6965, 1.442695
    %v6980 = vpow.pop %v6979
    %v6981 = vmul.f32 %v6966, 1.442695
    %v6982 = vpow.pop %v6981
    %6983 = vadd.xlane.f32.xlu0 %v6968
    %v6984 = vpop.xlane.xlu0 %6983
    %6985 = vadd.xlane.f32.xlu0 %v6970
    %v6986 = vpop.xlane.xlu0 %6985
    %6987 = vadd.xlane.f32.xlu0 %v6972
    %v6988 = vpop.xlane.xlu0 %6987
    %6989 = vadd.xlane.f32.xlu0 %v6974
    %v6990 = vpop.xlane.xlu0 %6989
    %6991 = vadd.xlane.f32.xlu0 %v6976
    %v6992 = vpop.xlane.xlu0 %6991
    %6993 = vadd.xlane.f32.xlu0 %v6978
    %v6994 = vpop.xlane.xlu0 %6993
    %6995 = vadd.xlane.f32.xlu0 %v6980
    %v6996 = vpop.xlane.xlu0 %6995
    %6997 = vadd.xlane.f32.xlu0 %v6982
    %v6998 = vpop.xlane.xlu0 %6997
    %v6999 = vlog2.pop %v6984
    %v7000 = vmul.f32 %v6999, 0.6931472
    %v7001 = vlog2.pop %v6986
    %v7002 = vmul.f32 %v7001, 0.6931472
    %v7003 = vlog2.pop %v6988
    %v7004 = vmul.f32 %v7003, 0.6931472
    %v7005 = vlog2.pop %v6990
    %v7006 = vmul.f32 %v7005, 0.6931472
    %v7007 = vlog2.pop %v6992
    %v7008 = vmul.f32 %v7007, 0.6931472
    %v7009 = vlog2.pop %v6994
    %v7010 = vmul.f32 %v7009, 0.6931472
    %v7011 = vlog2.pop %v6996
    %v7012 = vmul.f32 %v7011, 0.6931472
    %v7013 = vlog2.pop %v6998
    %v7014 = vmul.f32 %v7013, 0.6931472
    %v7015 = vadd.f32 %v6944, %v7000
    %v7016 = vadd.f32 %v6946, %v7002
    %v7017 = vadd.f32 %v6948, %v7004
    %v7018 = vadd.f32 %v6950, %v7006
    %v7019 = vadd.f32 %v6952, %v7008
    %v7020 = vadd.f32 %v6954, %v7010
    %v7021 = vadd.f32 %v6956, %v7012
    %v7022 = vadd.f32 %v6958, %v7014
    %v7023 = vsub.f32 %v6913, %v7015
    %v7024 = vsub.f32 %v6916, %v7016
    %v7025 = vsub.f32 %v6921, %v7017
    %v7026 = vsub.f32 %v6924, %v7018
    %v7027 = vsub.f32 %v6929, %v7019
    %v7028 = vsub.f32 %v6932, %v7020
    %v7029 = vsub.f32 %v6937, %v7021
    %v7030 = vsub.f32 %v6940, %v7022
    %7031 = vst [vmem:[%s67] sm:$0xff] %v7023
    %7032 = vst [vmem:[%s67 + $0x8] sm:$0xff] %v7024
    %7033 = vst [vmem:[%s67 + $0x10] sm:$0xff] %v7025
    %7034 = vst [vmem:[%s67 + $0x18] sm:$0xff] %v7026
    %7035 = vst [vmem:[%s67 + $0x20] sm:$0xff] %v7027
    %7036 = vst [vmem:[%s67 + $0x28] sm:$0xff] %v7028
    %7037 = vst [vmem:[%s67 + $0x30] sm:$0xff] %v7029
    %7038 = vst [vmem:[%s67 + $0x38] sm:$0xff] %v7030
    // Predicated region
    $region166: #{net_forward_fused.1} parent=1 // pred_check
      _
    $region167: #{net_forward_fused.1} parent=1 // pred_check_branch
      %7040 = sbr.rel (0) target = $region169
    $region168: #{net_forward_fused.1} parent=1 // pred_region
      _
    $region169: #{net_forward_fused.1} parent=1 // pred_fallthru
      _
    // Predicated region
    $region170: #{net_forward_fused.1} parent=1 // pred_check
      _
    $region171: #{net_forward_fused.1} parent=1 // pred_check_branch
      %7042 = sbr.rel (0) target = $region173
    $region172: #{net_forward_fused.1} parent=1 // pred_region
      _
    $region173: #{net_forward_fused.1} parent=1 // pred_fallthru
      _
    %7043 = vsyncpa [#allocation3], 1
    %7044 = vsyncpa [#allocation5], 1
    %7045 = vsyncpa [#allocation8], 1
    %7046 = vsyncpa [#allocation11], 1
    %7047 = vsyncpa [#allocation14], 1

</llo_original>
